<compile_context>
chip_gen: v6e
topology: v6e:2x2x1
jax: 0.10.0
libtpu: 0.0.40
codegen_flags: <defaults>
</compile_context>

<pallas_src>
import numpy as np
import jax
import jax.numpy as jnp
from jax import lax
from jax.experimental import pallas as pl
from jax.experimental.pallas import tpu as pltpu

# ----------------------------- config (paras) -------------------------------
VOCAB = 128      # paras.vocab
EMSIZE = 32      # paras.emsize
NHID = 32        # paras.nhid
LAYERS = 2       # paras.layers
TAGSET = 8       # paras.tagset_size
B = 8            # batch
T = 12           # max sequence length


# ------------------------ fused Pallas forward kernel ------------------------
def fused_tagger_kernel(len_ref, ids_ref, emb_ref,
                        wih0_ref, whh0_ref, b0_ref,
                        wih1_ref, whh1_ref, b1_ref,
                        hw1_ref, hb1_ref, hw2_ref, hb2_ref,
                        out_ref,
                        xp_ref, y_ref):
    """Whole LSTMTagger forward in one kernel invocation.

    Refs:
      len_ref : (B, 1) int32 sequence lengths.
      ids_ref : (T*B, 1) int32 time-major flattened token ids (row = t*B + b).
      emb_ref : (VOCAB, E) embedding table.
      wih{l}  : (Din_l, 8H)  fwd|bwd concatenated input weights (0.5 pre-folded
                             on i/f/o columns).
      whh{l}  : (2, H, 4H)   stacked recurrent weights (0.5 pre-folded).
      b{l}    : (1, 8H)      fwd|bwd concatenated (b_ih + b_hh) biases (pre-folded).
      hw1/hb1/hw2/hb2 : tagging head weights.
      out_ref : (T*B, TAGSET) dense tag scores (packed gather done outside).
      xp_ref  : (T*B, 8H) VMEM scratch — fused fwd|bwd hoisted input projection.
      y_ref   : (T*B, 2H) VMEM scratch — bidirectional layer output slab.
    """
    H = NHID
    lens = len_ref[...]                                   # (B, 1) int32

    # In-kernel embedding gather as a one-hot matmul (MXU is otherwise idle here).
    onehot = (ids_ref[...] ==
              lax.broadcasted_iota(jnp.int32, (T * B, VOCAB), 1)).astype(jnp.float32)
    x0 = jnp.dot(onehot, emb_ref[...], preferred_element_type=jnp.float32)

    # Hoisted padding masks: T compare+broadcasts, reused by both layers and
    # both directions (JAX does not CSE broadcast_in_dim in unrolled loops).
    masks = [jnp.broadcast_to(lens > t, (B, H)) for t in range(T)]

    def cell(gates, c_prev):
        # i/f/o gate columns were pre-scaled by 0.5 at init, so
        # sigmoid(x) == 0.5*tanh(x/2) + 0.5 needs only one full-width tanh
        # over the whole (B, 4H) gate tile (plus one tanh(c_new)).
        tg = jnp.tanh(gates)                              # single EUP stream
        i_g = 0.5 * tg[:, 0 * H:1 * H] + 0.5
        f_g = 0.5 * tg[:, 1 * H:2 * H] + 0.5
        g_g = tg[:, 2 * H:3 * H]                          # g column unscaled
        o_g = 0.5 * tg[:, 3 * H:4 * H] + 0.5
        c_new = f_g * c_prev + i_g * g_g
        h_new = o_g * jnp.tanh(c_new)
        return h_new, c_new

    def run_layer(x_flat, wih_ref, whh_ref, b_ref):
        # Single fused fwd|bwd hoisted input projection:
        # one (T*B, Din) x (Din, 8H=256) matmul, bias folded in, lane-dense write.
        xp_ref[...] = (jnp.dot(x_flat, wih_ref[...],
                               preferred_element_type=jnp.float32) + b_ref[...])
        whh_f = whh_ref[0]                                # (H, 4H)
        whh_b = whh_ref[1]

        h_f = jnp.zeros((B, H), jnp.float32)
        c_f = jnp.zeros((B, H), jnp.float32)
        h_b = jnp.zeros((B, H), jnp.float32)
        c_b = jnp.zeros((B, H), jnp.float32)

        # Fully unrolled serial recurrence.
        # TODO(synk): the two per-step recurrent matmuls could be fused via a
        # block-diagonal (2H, 8H) Whh (halves MXU issues); kept as two
        # independent fwd/bwd chains so the scheduler interleaves them and
        # hides MXU drain latency at this tiny B/H.
        for t in range(T):
            # ---- forward direction, time index t ----
            gf = xp_ref[t * B:(t + 1) * B, 0:4 * H] + jnp.dot(
                h_f, whh_f, preferred_element_type=jnp.float32)
            h_new, c_new = cell(gf, c_f)
            h_f = jnp.where(masks[t], h_new, h_f)         # freeze on padding
            c_f = jnp.where(masks[t], c_new, c_f)
            y_ref[t * B:(t + 1) * B, 0:H] = h_f

            # ---- backward direction, actual time index s = T-1-t ----
            s = T - 1 - t
            gb = xp_ref[s * B:(s + 1) * B, 4 * H:8 * H] + jnp.dot(
                h_b, whh_b, preferred_element_type=jnp.float32)
            h_newb, c_newb = cell(gb, c_b)
            h_b = jnp.where(masks[s], h_newb, h_b)
            c_b = jnp.where(masks[s], c_newb, c_b)
            y_ref[s * B:(s + 1) * B, H:2 * H] = h_b

    # Layer 0 (input dim E), then layer 1 (input dim 2H).  Layer 1's hoisted
    # projection reads all of y_ref before the loop overwrites it.
    run_layer(x0, wih0_ref, whh0_ref, b0_ref)
    run_layer(y_ref[...], wih1_ref, whh1_ref, b1_ref)

    # Tagging head on the dense (T*B, 2H) slab: Linear -> tanh -> Linear.
    hmid = jnp.tanh(jnp.dot(y_ref[...], hw1_ref[...],
                            preferred_element_type=jnp.float32) + hb1_ref[...])
    out_ref[...] = (jnp.dot(hmid, hw2_ref[...],
                            preferred_element_type=jnp.float32) + hb2_ref[...])


def fused_forward(lengths_b1, ids_flat, emb, lstm_params, head_params):
    (wih0, whh0, b0), (wih1, whh1, b1) = lstm_params
    w1, b1h, w2, b2h = head_params
    return pl.pallas_call(
        fused_tagger_kernel,
        out_shape=jax.ShapeDtypeStruct((T * B, TAGSET), jnp.float32),
        scratch_shapes=[
            pltpu.VMEM((T * B, 8 * NHID), jnp.float32),   # fused fwd|bwd input projection
            pltpu.VMEM((T * B, 2 * NHID), jnp.float32),   # bidirectional layer output slab
        ],
    )(lengths_b1, ids_flat, emb, wih0, whh0, b0, wih1, whh1, b1, w1, b1h, w2, b2h)


# ------------------------------ parameters -----------------------------------
def init_params(key):
    params = {}
    key, k_emb = jax.random.split(key)
    # TODO(synk): SparseEmbedding (block-sparse structure) approximated by a
    # dense embedding table with the same uniform(-0.1, 0.1) init.
    params["emb"] = jax.random.uniform(k_emb, (VOCAB, EMSIZE),
                                       minval=-0.1, maxval=0.1,
                                       dtype=jnp.float32)

    # 0.5 pre-fold on the i/f/o gate columns (PyTorch gate order i, f, g, o):
    # sigmoid(x) = 0.5*tanh(x/2) + 0.5, so the kernel needs a single
    # full-width tanh per cell.  Float32-ulp-level difference only.
    gate_scale = jnp.concatenate(
        [jnp.full((1, 2 * NHID), 0.5, jnp.float32),       # i, f
         jnp.ones((1, NHID), jnp.float32),                # g (true tanh gate)
         jnp.full((1, NHID), 0.5, jnp.float32)], axis=1)  # o

    std = 1.0 / np.sqrt(NHID)
    layers = []
    for layer in range(LAYERS):
        d_in = EMSIZE if layer == 0 else 2 * NHID
        wih_dirs, whh_dirs, b_dirs = [], [], []
        for _direction in range(2):                       # fwd, bwd
            key, k1, k2, k3, k4 = jax.random.split(key, 5)
            w_ih = jax.random.uniform(k1, (d_in, 4 * NHID),
                                      minval=-std, maxval=std, dtype=jnp.float32)
            w_hh = jax.random.uniform(k2, (NHID, 4 * NHID),
                                      minval=-std, maxval=std, dtype=jnp.float32)
            b_ih = jax.random.uniform(k3, (1, 4 * NHID),
                                      minval=-std, maxval=std, dtype=jnp.float32)
            b_hh = jax.random.uniform(k4, (1, 4 * NHID),
                                      minval=-std, maxval=std, dtype=jnp.float32)
            wih_dirs.append(w_ih * gate_scale)
            whh_dirs.append(w_hh * gate_scale)
            b_dirs.append((b_ih + b_hh) * gate_scale)
        layers.append((jnp.concatenate(wih_dirs, axis=1),   # (Din, 8H) fwd|bwd
                       jnp.stack(whh_dirs),                 # (2, H, 4H)
                       jnp.concatenate(b_dirs, axis=1)))    # (1, 8H)
    params["lstm"] = layers

    std1 = 1.0 / np.sqrt(2 * NHID)
    key, k1, k2, k3, k4 = jax.random.split(key, 5)
    params["w1"] = jax.random.uniform(k1, (2 * NHID, NHID),
                                      minval=-std1, maxval=std1, dtype=jnp.float32)
    params["b1"] = jax.random.uniform(k2, (1, NHID),
                                      minval=-std1, maxval=std1, dtype=jnp.float32)
    std2 = 1.0 / np.sqrt(NHID)
    params["w2"] = jax.random.uniform(k3, (NHID, TAGSET),
                                      minval=-std2, maxval=std2, dtype=jnp.float32)
    params["b2"] = jax.random.uniform(k4, (1, TAGSET),
                                      minval=-std2, maxval=std2, dtype=jnp.float32)
    return params


# ------------------------------- forward --------------------------------------
def lstm_tagger_forward(params, sentences_word, lengths_np):
    """sentences_word: (B, T) int32; lengths_np: numpy int array, descending."""
    lengths_b1 = jnp.asarray(lengths_np, dtype=jnp.int32).reshape(B, 1)
    # Time-major flattened token ids (row = t*B + b); embedding gather is in-kernel.
    ids_flat = jnp.transpose(sentences_word, (1, 0)).reshape(T * B, 1).astype(jnp.int32)

    dense = fused_forward(
        lengths_b1, ids_flat, params["emb"], params["lstm"],
        (params["w1"], params["b1"], params["w2"], params["b2"]))  # (T*B, TAGSET)

    # pack_padded_sequence(batch_first=True) data ordering:
    # for t in range(T): for b in range(B) if lengths[b] > t  ->  row t*B + b.
    # TODO(synk): trace-time index construction retraces if the length pattern
    # changes (inherent to the data-dependent packed output shape).
    packed_rows = np.array([t * B + b for t in range(T) for b in range(B)
                            if lengths_np[b] > t], dtype=np.int32)
    return dense[packed_rows]                                   # (N_packed, TAGSET)


# --------------------------------- main ----------------------------------------
if __name__ == "__main__":
    key = jax.random.PRNGKey(0)
    key, k_params, k_data = jax.random.split(key, 3)

    params = init_params(k_params)

    lengths_np = np.array([12, 10, 9, 8, 6, 5, 3, 2], dtype=np.int32)  # descending
    sentences_word = jax.random.randint(k_data, (B, T), 0, VOCAB, dtype=jnp.int32)
    # Zero out padded token ids (as a padded batch would have).
    pad_mask = np.arange(T)[None, :] < lengths_np[:, None]
    sentences_word = sentences_word * jnp.asarray(pad_mask, dtype=jnp.int32)

    tag_space = lstm_tagger_forward(params, sentences_word, lengths_np)
    tag_space = jax.block_until_ready(tag_space)

    n_packed = int(lengths_np.sum())
    assert tag_space.shape == (n_packed, TAGSET), tag_space.shape
    assert bool(jnp.all(jnp.isfinite(tag_space)))
    print("KERNEL_OK")
</pallas_src>

<mosaic_0001>
module attributes {stable_mosaic.version = 11 : i64} {
  func.func @fused_tagger_kernel(%arg0: memref<8x1xi32, #tpu.memory_space<vmem>>, %arg1: memref<96x1xi32, #tpu.memory_space<vmem>>, %arg2: memref<128x32xf32, #tpu.memory_space<vmem>>, %arg3: memref<32x256xf32, #tpu.memory_space<vmem>>, %arg4: memref<2x32x128xf32, #tpu.memory_space<vmem>>, %arg5: memref<1x256xf32, #tpu.memory_space<vmem>>, %arg6: memref<64x256xf32, #tpu.memory_space<vmem>>, %arg7: memref<2x32x128xf32, #tpu.memory_space<vmem>>, %arg8: memref<1x256xf32, #tpu.memory_space<vmem>>, %arg9: memref<64x32xf32, #tpu.memory_space<vmem>>, %arg10: memref<1x32xf32, #tpu.memory_space<vmem>>, %arg11: memref<32x8xf32, #tpu.memory_space<vmem>>, %arg12: memref<1x8xf32, #tpu.memory_space<vmem>>, %arg13: memref<96x8xf32, #tpu.memory_space<vmem>>, %arg14: memref<96x256xf32, #tpu.memory_space<vmem>>, %arg15: memref<96x64xf32, #tpu.memory_space<vmem>>) attributes {dimension_semantics = [], scalar_prefetch = 0 : i64, scratch_operands = 2 : i64, tpu.core_type = #tpu.core_type<tc>} {
    %c0 = arith.constant 0 : index
    %c0_0 = arith.constant 0 : index
    %0 = vector.load %arg0[%c0, %c0_0] : memref<8x1xi32, #tpu.memory_space<vmem>>, vector<8x1xi32>
    %c0_1 = arith.constant 0 : index
    %c0_2 = arith.constant 0 : index
    %1 = vector.load %arg1[%c0_1, %c0_2] : memref<96x1xi32, #tpu.memory_space<vmem>>, vector<96x1xi32>
    %2 = tpu.iota {dimensions = array<i32: 1>} : vector<96x128xi32>
    %3 = vector.broadcast %1 : vector<96x1xi32> to vector<96x128xi32>
    %4 = arith.cmpi eq, %3, %2 : vector<96x128xi32>
    %5 = arith.extui %4 : vector<96x128xi1> to vector<96x128xi32>
    %6 = arith.sitofp %5 : vector<96x128xi32> to vector<96x128xf32>
    %c0_3 = arith.constant 0 : index
    %c0_4 = arith.constant 0 : index
    %7 = vector.load %arg2[%c0_3, %c0_4] : memref<128x32xf32, #tpu.memory_space<vmem>>, vector<128x32xf32>
    %cst = arith.constant dense<0.000000e+00> : vector<96x32xf32>
    %8 = tpu.matmul %6, %7, %cst {dimension_numbers = #tpu.dot_dimension_numbers<[1], [0], [0], [1], [0, 0, 1, 1], [], []>} : vector<96x128xf32>, vector<128x32xf32>, vector<96x32xf32> -> vector<96x32xf32>
    %c0_i32 = arith.constant 0 : i32
    %9 = vector.broadcast %c0_i32 : i32 to vector<8x1xi32>
    %10 = arith.cmpi sgt, %0, %9 : vector<8x1xi32>
    %11 = vector.shape_cast %10 : vector<8x1xi1> to vector<8x1xi1>
    %12 = vector.broadcast %11 : vector<8x1xi1> to vector<8x32xi1>
    %c1_i32 = arith.constant 1 : i32
    %13 = vector.broadcast %c1_i32 : i32 to vector<8x1xi32>
    %14 = arith.cmpi sgt, %0, %13 : vector<8x1xi32>
    %15 = vector.shape_cast %14 : vector<8x1xi1> to vector<8x1xi1>
    %16 = vector.broadcast %15 : vector<8x1xi1> to vector<8x32xi1>
    %c2_i32 = arith.constant 2 : i32
    %17 = vector.broadcast %c2_i32 : i32 to vector<8x1xi32>
    %18 = arith.cmpi sgt, %0, %17 : vector<8x1xi32>
    %19 = vector.shape_cast %18 : vector<8x1xi1> to vector<8x1xi1>
    %20 = vector.broadcast %19 : vector<8x1xi1> to vector<8x32xi1>
    %c3_i32 = arith.constant 3 : i32
    %21 = vector.broadcast %c3_i32 : i32 to vector<8x1xi32>
    %22 = arith.cmpi sgt, %0, %21 : vector<8x1xi32>
    %23 = vector.shape_cast %22 : vector<8x1xi1> to vector<8x1xi1>
    %24 = vector.broadcast %23 : vector<8x1xi1> to vector<8x32xi1>
    %c4_i32 = arith.constant 4 : i32
    %25 = vector.broadcast %c4_i32 : i32 to vector<8x1xi32>
    %26 = arith.cmpi sgt, %0, %25 : vector<8x1xi32>
    %27 = vector.shape_cast %26 : vector<8x1xi1> to vector<8x1xi1>
    %28 = vector.broadcast %27 : vector<8x1xi1> to vector<8x32xi1>
    %c5_i32 = arith.constant 5 : i32
    %29 = vector.broadcast %c5_i32 : i32 to vector<8x1xi32>
    %30 = arith.cmpi sgt, %0, %29 : vector<8x1xi32>
    %31 = vector.shape_cast %30 : vector<8x1xi1> to vector<8x1xi1>
    %32 = vector.broadcast %31 : vector<8x1xi1> to vector<8x32xi1>
    %c6_i32 = arith.constant 6 : i32
    %33 = vector.broadcast %c6_i32 : i32 to vector<8x1xi32>
    %34 = arith.cmpi sgt, %0, %33 : vector<8x1xi32>
    %35 = vector.shape_cast %34 : vector<8x1xi1> to vector<8x1xi1>
    %36 = vector.broadcast %35 : vector<8x1xi1> to vector<8x32xi1>
    %c7_i32 = arith.constant 7 : i32
    %37 = vector.broadcast %c7_i32 : i32 to vector<8x1xi32>
    %38 = arith.cmpi sgt, %0, %37 : vector<8x1xi32>
    %39 = vector.shape_cast %38 : vector<8x1xi1> to vector<8x1xi1>
    %40 = vector.broadcast %39 : vector<8x1xi1> to vector<8x32xi1>
    %c8_i32 = arith.constant 8 : i32
    %41 = vector.broadcast %c8_i32 : i32 to vector<8x1xi32>
    %42 = arith.cmpi sgt, %0, %41 : vector<8x1xi32>
    %43 = vector.shape_cast %42 : vector<8x1xi1> to vector<8x1xi1>
    %44 = vector.broadcast %43 : vector<8x1xi1> to vector<8x32xi1>
    %c9_i32 = arith.constant 9 : i32
    %45 = vector.broadcast %c9_i32 : i32 to vector<8x1xi32>
    %46 = arith.cmpi sgt, %0, %45 : vector<8x1xi32>
    %47 = vector.shape_cast %46 : vector<8x1xi1> to vector<8x1xi1>
    %48 = vector.broadcast %47 : vector<8x1xi1> to vector<8x32xi1>
    %c10_i32 = arith.constant 10 : i32
    %49 = vector.broadcast %c10_i32 : i32 to vector<8x1xi32>
    %50 = arith.cmpi sgt, %0, %49 : vector<8x1xi32>
    %51 = vector.shape_cast %50 : vector<8x1xi1> to vector<8x1xi1>
    %52 = vector.broadcast %51 : vector<8x1xi1> to vector<8x32xi1>
    %c11_i32 = arith.constant 11 : i32
    %53 = vector.broadcast %c11_i32 : i32 to vector<8x1xi32>
    %54 = arith.cmpi sgt, %0, %53 : vector<8x1xi32>
    %55 = vector.shape_cast %54 : vector<8x1xi1> to vector<8x1xi1>
    %56 = vector.broadcast %55 : vector<8x1xi1> to vector<8x32xi1>
    %c0_5 = arith.constant 0 : index
    %c0_6 = arith.constant 0 : index
    %57 = vector.load %arg3[%c0_5, %c0_6] : memref<32x256xf32, #tpu.memory_space<vmem>>, vector<32x256xf32>
    %cst_7 = arith.constant dense<0.000000e+00> : vector<96x256xf32>
    %58 = tpu.matmul %8, %57, %cst_7 {dimension_numbers = #tpu.dot_dimension_numbers<[1], [0], [0], [1], [0, 0, 1, 1], [], []>} : vector<96x32xf32>, vector<32x256xf32>, vector<96x256xf32> -> vector<96x256xf32>
    %c0_8 = arith.constant 0 : index
    %c0_9 = arith.constant 0 : index
    %59 = vector.load %arg5[%c0_8, %c0_9] : memref<1x256xf32, #tpu.memory_space<vmem>>, vector<1x256xf32>
    %60 = vector.broadcast %59 : vector<1x256xf32> to vector<96x256xf32>
    %61 = arith.addf %58, %60 : vector<96x256xf32>
    %c0_10 = arith.constant 0 : index
    %c0_11 = arith.constant 0 : index
    %62 = vector.load %arg14[%c0_10, %c0_11] : memref<96x256xf32, #tpu.memory_space<vmem>>, vector<96x256xf32>
    tpu.vector_store %arg14[%c0_10, %c0_11], %61 {strides = array<i32>} : memref<96x256xf32, #tpu.memory_space<vmem>>, vector<96x256xf32>,
    %c0_12 = arith.constant 0 : index
    %c0_13 = arith.constant 0 : index
    %c0_14 = arith.constant 0 : index
    %63 = vector.load %arg4[%c0_12, %c0_13, %c0_14] : memref<2x32x128xf32, #tpu.memory_space<vmem>>, vector<1x32x128xf32>
    %64 = vector.shape_cast %63 : vector<1x32x128xf32> to vector<32x128xf32>
    %c1 = arith.constant 1 : index
    %c0_15 = arith.constant 0 : index
    %c0_16 = arith.constant 0 : index
    %65 = vector.load %arg4[%c1, %c0_15, %c0_16] : memref<2x32x128xf32, #tpu.memory_space<vmem>>, vector<1x32x128xf32>
    %66 = vector.shape_cast %65 : vector<1x32x128xf32> to vector<32x128xf32>
    %cst_17 = arith.constant 0.000000e+00 : f32
    %67 = vector.broadcast %cst_17 : f32 to vector<8x32xf32>
    %cst_18 = arith.constant 0.000000e+00 : f32
    %68 = vector.broadcast %cst_18 : f32 to vector<8x32xf32>
    %cst_19 = arith.constant 0.000000e+00 : f32
    %69 = vector.broadcast %cst_19 : f32 to vector<8x32xf32>
    %cst_20 = arith.constant 0.000000e+00 : f32
    %70 = vector.broadcast %cst_20 : f32 to vector<8x32xf32>
    %c0_21 = arith.constant 0 : index
    %c0_22 = arith.constant 0 : index
    %71 = vector.load %arg14[%c0_21, %c0_22] : memref<96x256xf32, #tpu.memory_space<vmem>>, vector<8x128xf32>
    %cst_23 = arith.constant dense<0.000000e+00> : vector<8x128xf32>
    %72 = tpu.matmul %67, %64, %cst_23 {dimension_numbers = #tpu.dot_dimension_numbers<[1], [0], [0], [1], [0, 0, 1, 1], [], []>} : vector<8x32xf32>, vector<32x128xf32>, vector<8x128xf32> -> vector<8x128xf32>
    %73 = arith.addf %71, %72 : vector<8x128xf32>
    %74 = math.tanh %73 : vector<8x128xf32>
    %75 = vector.extract_strided_slice %74 {offsets = [0, 0], sizes = [8, 32], strides = [1, 1]} : vector<8x128xf32> to vector<8x32xf32>
    %cst_24 = arith.constant 5.000000e-01 : f32
    %76 = vector.broadcast %cst_24 : f32 to vector<8x32xf32>
    %77 = arith.mulf %76, %75 : vector<8x32xf32>
    %cst_25 = arith.constant 5.000000e-01 : f32
    %78 = vector.broadcast %cst_25 : f32 to vector<8x32xf32>
    %79 = arith.addf %77, %78 : vector<8x32xf32>
    %80 = vector.extract_strided_slice %74 {offsets = [0, 32], sizes = [8, 32], strides = [1, 1]} : vector<8x128xf32> to vector<8x32xf32>
    %cst_26 = arith.constant 5.000000e-01 : f32
    %81 = vector.broadcast %cst_26 : f32 to vector<8x32xf32>
    %82 = arith.mulf %81, %80 : vector<8x32xf32>
    %cst_27 = arith.constant 5.000000e-01 : f32
    %83 = vector.broadcast %cst_27 : f32 to vector<8x32xf32>
    %84 = arith.addf %82, %83 : vector<8x32xf32>
    %85 = vector.extract_strided_slice %74 {offsets = [0, 64], sizes = [8, 32], strides = [1, 1]} : vector<8x128xf32> to vector<8x32xf32>
    %86 = vector.extract_strided_slice %74 {offsets = [0, 96], sizes = [8, 32], strides = [1, 1]} : vector<8x128xf32> to vector<8x32xf32>
    %cst_28 = arith.constant 5.000000e-01 : f32
    %87 = vector.broadcast %cst_28 : f32 to vector<8x32xf32>
    %88 = arith.mulf %87, %86 : vector<8x32xf32>
    %cst_29 = arith.constant 5.000000e-01 : f32
    %89 = vector.broadcast %cst_29 : f32 to vector<8x32xf32>
    %90 = arith.addf %88, %89 : vector<8x32xf32>
    %91 = arith.mulf %84, %68 : vector<8x32xf32>
    %92 = arith.mulf %79, %85 : vector<8x32xf32>
    %93 = arith.addf %91, %92 : vector<8x32xf32>
    %94 = math.tanh %93 : vector<8x32xf32>
    %95 = arith.mulf %90, %94 : vector<8x32xf32>
    %96 = arith.select %12, %95, %67 : vector<8x32xi1>, vector<8x32xf32>
    %97 = arith.select %12, %93, %68 : vector<8x32xi1>, vector<8x32xf32>
    %c0_30 = arith.constant 0 : index
    %c0_31 = arith.constant 0 : index
    %98 = vector.load %arg15[%c0_30, %c0_31] : memref<96x64xf32, #tpu.memory_space<vmem>>, vector<8x32xf32>
    tpu.vector_store %arg15[%c0_30, %c0_31], %96 {strides = array<i32>} : memref<96x64xf32, #tpu.memory_space<vmem>>, vector<8x32xf32>,
    %c88 = arith.constant 88 : index
    %c128 = arith.constant 128 : index
    %99 = vector.load %arg14[%c88, %c128] : memref<96x256xf32, #tpu.memory_space<vmem>>, vector<8x128xf32>
    %cst_32 = arith.constant dense<0.000000e+00> : vector<8x128xf32>
    %100 = tpu.matmul %69, %66, %cst_32 {dimension_numbers = #tpu.dot_dimension_numbers<[1], [0], [0], [1], [0, 0, 1, 1], [], []>} : vector<8x32xf32>, vector<32x128xf32>, vector<8x128xf32> -> vector<8x128xf32>
    %101 = arith.addf %99, %100 : vector<8x128xf32>
    %102 = math.tanh %101 : vector<8x128xf32>
    %103 = vector.extract_strided_slice %102 {offsets = [0, 0], sizes = [8, 32], strides = [1, 1]} : vector<8x128xf32> to vector<8x32xf32>
    %cst_33 = arith.constant 5.000000e-01 : f32
    %104 = vector.broadcast %cst_33 : f32 to vector<8x32xf32>
    %105 = arith.mulf %104, %103 : vector<8x32xf32>
    %cst_34 = arith.constant 5.000000e-01 : f32
    %106 = vector.broadcast %cst_34 : f32 to vector<8x32xf32>
    %107 = arith.addf %105, %106 : vector<8x32xf32>
    %108 = vector.extract_strided_slice %102 {offsets = [0, 32], sizes = [8, 32], strides = [1, 1]} : vector<8x128xf32> to vector<8x32xf32>
    %cst_35 = arith.constant 5.000000e-01 : f32
    %109 = vector.broadcast %cst_35 : f32 to vector<8x32xf32>
    %110 = arith.mulf %109, %108 : vector<8x32xf32>
    %cst_36 = arith.constant 5.000000e-01 : f32
    %111 = vector.broadcast %cst_36 : f32 to vector<8x32xf32>
    %112 = arith.addf %110, %111 : vector<8x32xf32>
    %113 = vector.extract_strided_slice %102 {offsets = [0, 64], sizes = [8, 32], strides = [1, 1]} : vector<8x128xf32> to vector<8x32xf32>
    %114 = vector.extract_strided_slice %102 {offsets = [0, 96], sizes = [8, 32], strides = [1, 1]} : vector<8x128xf32> to vector<8x32xf32>
    %cst_37 = arith.constant 5.000000e-01 : f32
    %115 = vector.broadcast %cst_37 : f32 to vector<8x32xf32>
    %116 = arith.mulf %115, %114 : vector<8x32xf32>
    %cst_38 = arith.constant 5.000000e-01 : f32
    %117 = vector.broadcast %cst_38 : f32 to vector<8x32xf32>
    %118 = arith.addf %116, %117 : vector<8x32xf32>
    %119 = arith.mulf %112, %70 : vector<8x32xf32>
    %120 = arith.mulf %107, %113 : vector<8x32xf32>
    %121 = arith.addf %119, %120 : vector<8x32xf32>
    %122 = math.tanh %121 : vector<8x32xf32>
    %123 = arith.mulf %118, %122 : vector<8x32xf32>
    %124 = arith.select %56, %123, %69 : vector<8x32xi1>, vector<8x32xf32>
    %125 = arith.select %56, %121, %70 : vector<8x32xi1>, vector<8x32xf32>
    %c88_39 = arith.constant 88 : index
    %c32 = arith.constant 32 : index
    %126 = vector.load %arg15[%c88_39, %c32] : memref<96x64xf32, #tpu.memory_space<vmem>>, vector<8x32xf32>
    tpu.vector_store %arg15[%c88_39, %c32], %124 {strides = array<i32>} : memref<96x64xf32, #tpu.memory_space<vmem>>, vector<8x32xf32>,
    %c8 = arith.constant 8 : index
    %c0_40 = arith.constant 0 : index
    %127 = vector.load %arg14[%c8, %c0_40] : memref<96x256xf32, #tpu.memory_space<vmem>>, vector<8x128xf32>
    %cst_41 = arith.constant dense<0.000000e+00> : vector<8x128xf32>
    %128 = tpu.matmul %96, %64, %cst_41 {dimension_numbers = #tpu.dot_dimension_numbers<[1], [0], [0], [1], [0, 0, 1, 1], [], []>} : vector<8x32xf32>, vector<32x128xf32>, vector<8x128xf32> -> vector<8x128xf32>
    %129 = arith.addf %127, %128 : vector<8x128xf32>
    %130 = math.tanh %129 : vector<8x128xf32>
    %131 = vector.extract_strided_slice %130 {offsets = [0, 0], sizes = [8, 32], strides = [1, 1]} : vector<8x128xf32> to vector<8x32xf32>
    %cst_42 = arith.constant 5.000000e-01 : f32
    %132 = vector.broadcast %cst_42 : f32 to vector<8x32xf32>
    %133 = arith.mulf %132, %131 : vector<8x32xf32>
    %cst_43 = arith.constant 5.000000e-01 : f32
    %134 = vector.broadcast %cst_43 : f32 to vector<8x32xf32>
    %135 = arith.addf %133, %134 : vector<8x32xf32>
    %136 = vector.extract_strided_slice %130 {offsets = [0, 32], sizes = [8, 32], strides = [1, 1]} : vector<8x128xf32> to vector<8x32xf32>
    %cst_44 = arith.constant 5.000000e-01 : f32
    %137 = vector.broadcast %cst_44 : f32 to vector<8x32xf32>
    %138 = arith.mulf %137, %136 : vector<8x32xf32>
    %cst_45 = arith.constant 5.000000e-01 : f32
    %139 = vector.broadcast %cst_45 : f32 to vector<8x32xf32>
    %140 = arith.addf %138, %139 : vector<8x32xf32>
    %141 = vector.extract_strided_slice %130 {offsets = [0, 64], sizes = [8, 32], strides = [1, 1]} : vector<8x128xf32> to vector<8x32xf32>
    %142 = vector.extract_strided_slice %130 {offsets = [0, 96], sizes = [8, 32], strides = [1, 1]} : vector<8x128xf32> to vector<8x32xf32>
    %cst_46 = arith.constant 5.000000e-01 : f32
    %143 = vector.broadcast %cst_46 : f32 to vector<8x32xf32>
    %144 = arith.mulf %143, %142 : vector<8x32xf32>
    %cst_47 = arith.constant 5.000000e-01 : f32
    %145 = vector.broadcast %cst_47 : f32 to vector<8x32xf32>
    %146 = arith.addf %144, %145 : vector<8x32xf32>
    %147 = arith.mulf %140, %97 : vector<8x32xf32>
    %148 = arith.mulf %135, %141 : vector<8x32xf32>
    %149 = arith.addf %147, %148 : vector<8x32xf32>
    %150 = math.tanh %149 : vector<8x32xf32>
    %151 = arith.mulf %146, %150 : vector<8x32xf32>
    %152 = arith.select %16, %151, %96 : vector<8x32xi1>, vector<8x32xf32>
    %153 = arith.select %16, %149, %97 : vector<8x32xi1>, vector<8x32xf32>
    %c8_48 = arith.constant 8 : index
    %c0_49 = arith.constant 0 : index
    %154 = vector.load %arg15[%c8_48, %c0_49] : memref<96x64xf32, #tpu.memory_space<vmem>>, vector<8x32xf32>
    tpu.vector_store %arg15[%c8_48, %c0_49], %152 {strides = array<i32>} : memref<96x64xf32, #tpu.memory_space<vmem>>, vector<8x32xf32>,
    %c80 = arith.constant 80 : index
    %c128_50 = arith.constant 128 : index
    %155 = vector.load %arg14[%c80, %c128_50] : memref<96x256xf32, #tpu.memory_space<vmem>>, vector<8x128xf32>
    %cst_51 = arith.constant dense<0.000000e+00> : vector<8x128xf32>
    %156 = tpu.matmul %124, %66, %cst_51 {dimension_numbers = #tpu.dot_dimension_numbers<[1], [0], [0], [1], [0, 0, 1, 1], [], []>} : vector<8x32xf32>, vector<32x128xf32>, vector<8x128xf32> -> vector<8x128xf32>
    %157 = arith.addf %155, %156 : vector<8x128xf32>
    %158 = math.tanh %157 : vector<8x128xf32>
    %159 = vector.extract_strided_slice %158 {offsets = [0, 0], sizes = [8, 32], strides = [1, 1]} : vector<8x128xf32> to vector<8x32xf32>
    %cst_52 = arith.constant 5.000000e-01 : f32
    %160 = vector.broadcast %cst_52 : f32 to vector<8x32xf32>
    %161 = arith.mulf %160, %159 : vector<8x32xf32>
    %cst_53 = arith.constant 5.000000e-01 : f32
    %162 = vector.broadcast %cst_53 : f32 to vector<8x32xf32>
    %163 = arith.addf %161, %162 : vector<8x32xf32>
    %164 = vector.extract_strided_slice %158 {offsets = [0, 32], sizes = [8, 32], strides = [1, 1]} : vector<8x128xf32> to vector<8x32xf32>
    %cst_54 = arith.constant 5.000000e-01 : f32
    %165 = vector.broadcast %cst_54 : f32 to vector<8x32xf32>
    %166 = arith.mulf %165, %164 : vector<8x32xf32>
    %cst_55 = arith.constant 5.000000e-01 : f32
    %167 = vector.broadcast %cst_55 : f32 to vector<8x32xf32>
    %168 = arith.addf %166, %167 : vector<8x32xf32>
    %169 = vector.extract_strided_slice %158 {offsets = [0, 64], sizes = [8, 32], strides = [1, 1]} : vector<8x128xf32> to vector<8x32xf32>
    %170 = vector.extract_strided_slice %158 {offsets = [0, 96], sizes = [8, 32], strides = [1, 1]} : vector<8x128xf32> to vector<8x32xf32>
    %cst_56 = arith.constant 5.000000e-01 : f32
    %171 = vector.broadcast %cst_56 : f32 to vector<8x32xf32>
    %172 = arith.mulf %171, %170 : vector<8x32xf32>
    %cst_57 = arith.constant 5.000000e-01 : f32
    %173 = vector.broadcast %cst_57 : f32 to vector<8x32xf32>
    %174 = arith.addf %172, %173 : vector<8x32xf32>
    %175 = arith.mulf %168, %125 : vector<8x32xf32>
    %176 = arith.mulf %163, %169 : vector<8x32xf32>
    %177 = arith.addf %175, %176 : vector<8x32xf32>
    %178 = math.tanh %177 : vector<8x32xf32>
    %179 = arith.mulf %174, %178 : vector<8x32xf32>
    %180 = arith.select %52, %179, %124 : vector<8x32xi1>, vector<8x32xf32>
    %181 = arith.select %52, %177, %125 : vector<8x32xi1>, vector<8x32xf32>
    %c80_58 = arith.constant 80 : index
    %c32_59 = arith.constant 32 : index
    %182 = vector.load %arg15[%c80_58, %c32_59] : memref<96x64xf32, #tpu.memory_space<vmem>>, vector<8x32xf32>
    tpu.vector_store %arg15[%c80_58, %c32_59], %180 {strides = array<i32>} : memref<96x64xf32, #tpu.memory_space<vmem>>, vector<8x32xf32>,
    %c16 = arith.constant 16 : index
    %c0_60 = arith.constant 0 : index
    %183 = vector.load %arg14[%c16, %c0_60] : memref<96x256xf32, #tpu.memory_space<vmem>>, vector<8x128xf32>
    %cst_61 = arith.constant dense<0.000000e+00> : vector<8x128xf32>
    %184 = tpu.matmul %152, %64, %cst_61 {dimension_numbers = #tpu.dot_dimension_numbers<[1], [0], [0], [1], [0, 0, 1, 1], [], []>} : vector<8x32xf32>, vector<32x128xf32>, vector<8x128xf32> -> vector<8x128xf32>
    %185 = arith.addf %183, %184 : vector<8x128xf32>
    %186 = math.tanh %185 : vector<8x128xf32>
    %187 = vector.extract_strided_slice %186 {offsets = [0, 0], sizes = [8, 32], strides = [1, 1]} : vector<8x128xf32> to vector<8x32xf32>
    %cst_62 = arith.constant 5.000000e-01 : f32
    %188 = vector.broadcast %cst_62 : f32 to vector<8x32xf32>
    %189 = arith.mulf %188, %187 : vector<8x32xf32>
    %cst_63 = arith.constant 5.000000e-01 : f32
    %190 = vector.broadcast %cst_63 : f32 to vector<8x32xf32>
    %191 = arith.addf %189, %190 : vector<8x32xf32>
    %192 = vector.extract_strided_slice %186 {offsets = [0, 32], sizes = [8, 32], strides = [1, 1]} : vector<8x128xf32> to vector<8x32xf32>
    %cst_64 = arith.constant 5.000000e-01 : f32
    %193 = vector.broadcast %cst_64 : f32 to vector<8x32xf32>
    %194 = arith.mulf %193, %192 : vector<8x32xf32>
    %cst_65 = arith.constant 5.000000e-01 : f32
    %195 = vector.broadcast %cst_65 : f32 to vector<8x32xf32>
    %196 = arith.addf %194, %195 : vector<8x32xf32>
    %197 = vector.extract_strided_slice %186 {offsets = [0, 64], sizes = [8, 32], strides = [1, 1]} : vector<8x128xf32> to vector<8x32xf32>
    %198 = vector.extract_strided_slice %186 {offsets = [0, 96], sizes = [8, 32], strides = [1, 1]} : vector<8x128xf32> to vector<8x32xf32>
    %cst_66 = arith.constant 5.000000e-01 : f32
    %199 = vector.broadcast %cst_66 : f32 to vector<8x32xf32>
    %200 = arith.mulf %199, %198 : vector<8x32xf32>
    %cst_67 = arith.constant 5.000000e-01 : f32
    %201 = vector.broadcast %cst_67 : f32 to vector<8x32xf32>
    %202 = arith.addf %200, %201 : vector<8x32xf32>
    %203 = arith.mulf %196, %153 : vector<8x32xf32>
    %204 = arith.mulf %191, %197 : vector<8x32xf32>
    %205 = arith.addf %203, %204 : vector<8x32xf32>
    %206 = math.tanh %205 : vector<8x32xf32>
    %207 = arith.mulf %202, %206 : vector<8x32xf32>
    %208 = arith.select %20, %207, %152 : vector<8x32xi1>, vector<8x32xf32>
    %209 = arith.select %20, %205, %153 : vector<8x32xi1>, vector<8x32xf32>
    %c16_68 = arith.constant 16 : index
    %c0_69 = arith.constant 0 : index
    %210 = vector.load %arg15[%c16_68, %c0_69] : memref<96x64xf32, #tpu.memory_space<vmem>>, vector<8x32xf32>
    tpu.vector_store %arg15[%c16_68, %c0_69], %208 {strides = array<i32>} : memref<96x64xf32, #tpu.memory_space<vmem>>, vector<8x32xf32>,
    %c72 = arith.constant 72 : index
    %c128_70 = arith.constant 128 : index
    %211 = vector.load %arg14[%c72, %c128_70] : memref<96x256xf32, #tpu.memory_space<vmem>>, vector<8x128xf32>
    %cst_71 = arith.constant dense<0.000000e+00> : vector<8x128xf32>
    %212 = tpu.matmul %180, %66, %cst_71 {dimension_numbers = #tpu.dot_dimension_numbers<[1], [0], [0], [1], [0, 0, 1, 1], [], []>} : vector<8x32xf32>, vector<32x128xf32>, vector<8x128xf32> -> vector<8x128xf32>
    %213 = arith.addf %211, %212 : vector<8x128xf32>
    %214 = math.tanh %213 : vector<8x128xf32>
    %215 = vector.extract_strided_slice %214 {offsets = [0, 0], sizes = [8, 32], strides = [1, 1]} : vector<8x128xf32> to vector<8x32xf32>
    %cst_72 = arith.constant 5.000000e-01 : f32
    %216 = vector.broadcast %cst_72 : f32 to vector<8x32xf32>
    %217 = arith.mulf %216, %215 : vector<8x32xf32>
    %cst_73 = arith.constant 5.000000e-01 : f32
    %218 = vector.broadcast %cst_73 : f32 to vector<8x32xf32>
    %219 = arith.addf %217, %218 : vector<8x32xf32>
    %220 = vector.extract_strided_slice %214 {offsets = [0, 32], sizes = [8, 32], strides = [1, 1]} : vector<8x128xf32> to vector<8x32xf32>
    %cst_74 = arith.constant 5.000000e-01 : f32
    %221 = vector.broadcast %cst_74 : f32 to vector<8x32xf32>
    %222 = arith.mulf %221, %220 : vector<8x32xf32>
    %cst_75 = arith.constant 5.000000e-01 : f32
    %223 = vector.broadcast %cst_75 : f32 to vector<8x32xf32>
    %224 = arith.addf %222, %223 : vector<8x32xf32>
    %225 = vector.extract_strided_slice %214 {offsets = [0, 64], sizes = [8, 32], strides = [1, 1]} : vector<8x128xf32> to vector<8x32xf32>
    %226 = vector.extract_strided_slice %214 {offsets = [0, 96], sizes = [8, 32], strides = [1, 1]} : vector<8x128xf32> to vector<8x32xf32>
    %cst_76 = arith.constant 5.000000e-01 : f32
    %227 = vector.broadcast %cst_76 : f32 to vector<8x32xf32>
    %228 = arith.mulf %227, %226 : vector<8x32xf32>
    %cst_77 = arith.constant 5.000000e-01 : f32
    %229 = vector.broadcast %cst_77 : f32 to vector<8x32xf32>
    %230 = arith.addf %228, %229 : vector<8x32xf32>
    %231 = arith.mulf %224, %181 : vector<8x32xf32>
    %232 = arith.mulf %219, %225 : vector<8x32xf32>
    %233 = arith.addf %231, %232 : vector<8x32xf32>
    %234 = math.tanh %233 : vector<8x32xf32>
    %235 = arith.mulf %230, %234 : vector<8x32xf32>
    %236 = arith.select %48, %235, %180 : vector<8x32xi1>, vector<8x32xf32>
    %237 = arith.select %48, %233, %181 : vector<8x32xi1>, vector<8x32xf32>
    %c72_78 = arith.constant 72 : index
    %c32_79 = arith.constant 32 : index
    %238 = vector.load %arg15[%c72_78, %c32_79] : memref<96x64xf32, #tpu.memory_space<vmem>>, vector<8x32xf32>
    tpu.vector_store %arg15[%c72_78, %c32_79], %236 {strides = array<i32>} : memref<96x64xf32, #tpu.memory_space<vmem>>, vector<8x32xf32>,
    %c24 = arith.constant 24 : index
    %c0_80 = arith.constant 0 : index
    %239 = vector.load %arg14[%c24, %c0_80] : memref<96x256xf32, #tpu.memory_space<vmem>>, vector<8x128xf32>
    %cst_81 = arith.constant dense<0.000000e+00> : vector<8x128xf32>
    %240 = tpu.matmul %208, %64, %cst_81 {dimension_numbers = #tpu.dot_dimension_numbers<[1], [0], [0], [1], [0, 0, 1, 1], [], []>} : vector<8x32xf32>, vector<32x128xf32>, vector<8x128xf32> -> vector<8x128xf32>
    %241 = arith.addf %239, %240 : vector<8x128xf32>
    %242 = math.tanh %241 : vector<8x128xf32>
    %243 = vector.extract_strided_slice %242 {offsets = [0, 0], sizes = [8, 32], strides = [1, 1]} : vector<8x128xf32> to vector<8x32xf32>
    %cst_82 = arith.constant 5.000000e-01 : f32
    %244 = vector.broadcast %cst_82 : f32 to vector<8x32xf32>
    %245 = arith.mulf %244, %243 : vector<8x32xf32>
    %cst_83 = arith.constant 5.000000e-01 : f32
    %246 = vector.broadcast %cst_83 : f32 to vector<8x32xf32>
    %247 = arith.addf %245, %246 : vector<8x32xf32>
    %248 = vector.extract_strided_slice %242 {offsets = [0, 32], sizes = [8, 32], strides = [1, 1]} : vector<8x128xf32> to vector<8x32xf32>
    %cst_84 = arith.constant 5.000000e-01 : f32
    %249 = vector.broadcast %cst_84 : f32 to vector<8x32xf32>
    %250 = arith.mulf %249, %248 : vector<8x32xf32>
    %cst_85 = arith.constant 5.000000e-01 : f32
    %251 = vector.broadcast %cst_85 : f32 to vector<8x32xf32>
    %252 = arith.addf %250, %251 : vector<8x32xf32>
    %253 = vector.extract_strided_slice %242 {offsets = [0, 64], sizes = [8, 32], strides = [1, 1]} : vector<8x128xf32> to vector<8x32xf32>
    %254 = vector.extract_strided_slice %242 {offsets = [0, 96], sizes = [8, 32], strides = [1, 1]} : vector<8x128xf32> to vector<8x32xf32>
    %cst_86 = arith.constant 5.000000e-01 : f32
    %255 = vector.broadcast %cst_86 : f32 to vector<8x32xf32>
    %256 = arith.mulf %255, %254 : vector<8x32xf32>
    %cst_87 = arith.constant 5.000000e-01 : f32
    %257 = vector.broadcast %cst_87 : f32 to vector<8x32xf32>
    %258 = arith.addf %256, %257 : vector<8x32xf32>
    %259 = arith.mulf %252, %209 : vector<8x32xf32>
    %260 = arith.mulf %247, %253 : vector<8x32xf32>
    %261 = arith.addf %259, %260 : vector<8x32xf32>
    %262 = math.tanh %261 : vector<8x32xf32>
    %263 = arith.mulf %258, %262 : vector<8x32xf32>
    %264 = arith.select %24, %263, %208 : vector<8x32xi1>, vector<8x32xf32>
    %265 = arith.select %24, %261, %209 : vector<8x32xi1>, vector<8x32xf32>
    %c24_88 = arith.constant 24 : index
    %c0_89 = arith.constant 0 : index
    %266 = vector.load %arg15[%c24_88, %c0_89] : memref<96x64xf32, #tpu.memory_space<vmem>>, vector<8x32xf32>
    tpu.vector_store %arg15[%c24_88, %c0_89], %264 {strides = array<i32>} : memref<96x64xf32, #tpu.memory_space<vmem>>, vector<8x32xf32>,
    %c64 = arith.constant 64 : index
    %c128_90 = arith.constant 128 : index
    %267 = vector.load %arg14[%c64, %c128_90] : memref<96x256xf32, #tpu.memory_space<vmem>>, vector<8x128xf32>
    %cst_91 = arith.constant dense<0.000000e+00> : vector<8x128xf32>
    %268 = tpu.matmul %236, %66, %cst_91 {dimension_numbers = #tpu.dot_dimension_numbers<[1], [0], [0], [1], [0, 0, 1, 1], [], []>} : vector<8x32xf32>, vector<32x128xf32>, vector<8x128xf32> -> vector<8x128xf32>
    %269 = arith.addf %267, %268 : vector<8x128xf32>
    %270 = math.tanh %269 : vector<8x128xf32>
    %271 = vector.extract_strided_slice %270 {offsets = [0, 0], sizes = [8, 32], strides = [1, 1]} : vector<8x128xf32> to vector<8x32xf32>
    %cst_92 = arith.constant 5.000000e-01 : f32
    %272 = vector.broadcast %cst_92 : f32 to vector<8x32xf32>
    %273 = arith.mulf %272, %271 : vector<8x32xf32>
    %cst_93 = arith.constant 5.000000e-01 : f32
    %274 = vector.broadcast %cst_93 : f32 to vector<8x32xf32>
    %275 = arith.addf %273, %274 : vector<8x32xf32>
    %276 = vector.extract_strided_slice %270 {offsets = [0, 32], sizes = [8, 32], strides = [1, 1]} : vector<8x128xf32> to vector<8x32xf32>
    %cst_94 = arith.constant 5.000000e-01 : f32
    %277 = vector.broadcast %cst_94 : f32 to vector<8x32xf32>
    %278 = arith.mulf %277, %276 : vector<8x32xf32>
    %cst_95 = arith.constant 5.000000e-01 : f32
    %279 = vector.broadcast %cst_95 : f32 to vector<8x32xf32>
    %280 = arith.addf %278, %279 : vector<8x32xf32>
    %281 = vector.extract_strided_slice %270 {offsets = [0, 64], sizes = [8, 32], strides = [1, 1]} : vector<8x128xf32> to vector<8x32xf32>
    %282 = vector.extract_strided_slice %270 {offsets = [0, 96], sizes = [8, 32], strides = [1, 1]} : vector<8x128xf32> to vector<8x32xf32>
    %cst_96 = arith.constant 5.000000e-01 : f32
    %283 = vector.broadcast %cst_96 : f32 to vector<8x32xf32>
    %284 = arith.mulf %283, %282 : vector<8x32xf32>
    %cst_97 = arith.constant 5.000000e-01 : f32
    %285 = vector.broadcast %cst_97 : f32 to vector<8x32xf32>
    %286 = arith.addf %284, %285 : vector<8x32xf32>
    %287 = arith.mulf %280, %237 : vector<8x32xf32>
    %288 = arith.mulf %275, %281 : vector<8x32xf32>
    %289 = arith.addf %287, %288 : vector<8x32xf32>
    %290 = math.tanh %289 : vector<8x32xf32>
    %291 = arith.mulf %286, %290 : vector<8x32xf32>
    %292 = arith.select %44, %291, %236 : vector<8x32xi1>, vector<8x32xf32>
    %293 = arith.select %44, %289, %237 : vector<8x32xi1>, vector<8x32xf32>
    %c64_98 = arith.constant 64 : index
    %c32_99 = arith.constant 32 : index
    %294 = vector.load %arg15[%c64_98, %c32_99] : memref<96x64xf32, #tpu.memory_space<vmem>>, vector<8x32xf32>
    tpu.vector_store %arg15[%c64_98, %c32_99], %292 {strides = array<i32>} : memref<96x64xf32, #tpu.memory_space<vmem>>, vector<8x32xf32>,
    %c32_100 = arith.constant 32 : index
    %c0_101 = arith.constant 0 : index
    %295 = vector.load %arg14[%c32_100, %c0_101] : memref<96x256xf32, #tpu.memory_space<vmem>>, vector<8x128xf32>
    %cst_102 = arith.constant dense<0.000000e+00> : vector<8x128xf32>
    %296 = tpu.matmul %264, %64, %cst_102 {dimension_numbers = #tpu.dot_dimension_numbers<[1], [0], [0], [1], [0, 0, 1, 1], [], []>} : vector<8x32xf32>, vector<32x128xf32>, vector<8x128xf32> -> vector<8x128xf32>
    %297 = arith.addf %295, %296 : vector<8x128xf32>
    %298 = math.tanh %297 : vector<8x128xf32>
    %299 = vector.extract_strided_slice %298 {offsets = [0, 0], sizes = [8, 32], strides = [1, 1]} : vector<8x128xf32> to vector<8x32xf32>
    %cst_103 = arith.constant 5.000000e-01 : f32
    %300 = vector.broadcast %cst_103 : f32 to vector<8x32xf32>
    %301 = arith.mulf %300, %299 : vector<8x32xf32>
    %cst_104 = arith.constant 5.000000e-01 : f32
    %302 = vector.broadcast %cst_104 : f32 to vector<8x32xf32>
    %303 = arith.addf %301, %302 : vector<8x32xf32>
    %304 = vector.extract_strided_slice %298 {offsets = [0, 32], sizes = [8, 32], strides = [1, 1]} : vector<8x128xf32> to vector<8x32xf32>
    %cst_105 = arith.constant 5.000000e-01 : f32
    %305 = vector.broadcast %cst_105 : f32 to vector<8x32xf32>
    %306 = arith.mulf %305, %304 : vector<8x32xf32>
    %cst_106 = arith.constant 5.000000e-01 : f32
    %307 = vector.broadcast %cst_106 : f32 to vector<8x32xf32>
    %308 = arith.addf %306, %307 : vector<8x32xf32>
    %309 = vector.extract_strided_slice %298 {offsets = [0, 64], sizes = [8, 32], strides = [1, 1]} : vector<8x128xf32> to vector<8x32xf32>
    %310 = vector.extract_strided_slice %298 {offsets = [0, 96], sizes = [8, 32], strides = [1, 1]} : vector<8x128xf32> to vector<8x32xf32>
    %cst_107 = arith.constant 5.000000e-01 : f32
    %311 = vector.broadcast %cst_107 : f32 to vector<8x32xf32>
    %312 = arith.mulf %311, %310 : vector<8x32xf32>
    %cst_108 = arith.constant 5.000000e-01 : f32
    %313 = vector.broadcast %cst_108 : f32 to vector<8x32xf32>
    %314 = arith.addf %312, %313 : vector<8x32xf32>
    %315 = arith.mulf %308, %265 : vector<8x32xf32>
    %316 = arith.mulf %303, %309 : vector<8x32xf32>
    %317 = arith.addf %315, %316 : vector<8x32xf32>
    %318 = math.tanh %317 : vector<8x32xf32>
    %319 = arith.mulf %314, %318 : vector<8x32xf32>
    %320 = arith.select %28, %319, %264 : vector<8x32xi1>, vector<8x32xf32>
    %321 = arith.select %28, %317, %265 : vector<8x32xi1>, vector<8x32xf32>
    %c32_109 = arith.constant 32 : index
    %c0_110 = arith.constant 0 : index
    %322 = vector.load %arg15[%c32_109, %c0_110] : memref<96x64xf32, #tpu.memory_space<vmem>>, vector<8x32xf32>
    tpu.vector_store %arg15[%c32_109, %c0_110], %320 {strides = array<i32>} : memref<96x64xf32, #tpu.memory_space<vmem>>, vector<8x32xf32>,
    %c56 = arith.constant 56 : index
    %c128_111 = arith.constant 128 : index
    %323 = vector.load %arg14[%c56, %c128_111] : memref<96x256xf32, #tpu.memory_space<vmem>>, vector<8x128xf32>
    %cst_112 = arith.constant dense<0.000000e+00> : vector<8x128xf32>
    %324 = tpu.matmul %292, %66, %cst_112 {dimension_numbers = #tpu.dot_dimension_numbers<[1], [0], [0], [1], [0, 0, 1, 1], [], []>} : vector<8x32xf32>, vector<32x128xf32>, vector<8x128xf32> -> vector<8x128xf32>
    %325 = arith.addf %323, %324 : vector<8x128xf32>
    %326 = math.tanh %325 : vector<8x128xf32>
    %327 = vector.extract_strided_slice %326 {offsets = [0, 0], sizes = [8, 32], strides = [1, 1]} : vector<8x128xf32> to vector<8x32xf32>
    %cst_113 = arith.constant 5.000000e-01 : f32
    %328 = vector.broadcast %cst_113 : f32 to vector<8x32xf32>
    %329 = arith.mulf %328, %327 : vector<8x32xf32>
    %cst_114 = arith.constant 5.000000e-01 : f32
    %330 = vector.broadcast %cst_114 : f32 to vector<8x32xf32>
    %331 = arith.addf %329, %330 : vector<8x32xf32>
    %332 = vector.extract_strided_slice %326 {offsets = [0, 32], sizes = [8, 32], strides = [1, 1]} : vector<8x128xf32> to vector<8x32xf32>
    %cst_115 = arith.constant 5.000000e-01 : f32
    %333 = vector.broadcast %cst_115 : f32 to vector<8x32xf32>
    %334 = arith.mulf %333, %332 : vector<8x32xf32>
    %cst_116 = arith.constant 5.000000e-01 : f32
    %335 = vector.broadcast %cst_116 : f32 to vector<8x32xf32>
    %336 = arith.addf %334, %335 : vector<8x32xf32>
    %337 = vector.extract_strided_slice %326 {offsets = [0, 64], sizes = [8, 32], strides = [1, 1]} : vector<8x128xf32> to vector<8x32xf32>
    %338 = vector.extract_strided_slice %326 {offsets = [0, 96], sizes = [8, 32], strides = [1, 1]} : vector<8x128xf32> to vector<8x32xf32>
    %cst_117 = arith.constant 5.000000e-01 : f32
    %339 = vector.broadcast %cst_117 : f32 to vector<8x32xf32>
    %340 = arith.mulf %339, %338 : vector<8x32xf32>
    %cst_118 = arith.constant 5.000000e-01 : f32
    %341 = vector.broadcast %cst_118 : f32 to vector<8x32xf32>
    %342 = arith.addf %340, %341 : vector<8x32xf32>
    %343 = arith.mulf %336, %293 : vector<8x32xf32>
    %344 = arith.mulf %331, %337 : vector<8x32xf32>
    %345 = arith.addf %343, %344 : vector<8x32xf32>
    %346 = math.tanh %345 : vector<8x32xf32>
    %347 = arith.mulf %342, %346 : vector<8x32xf32>
    %348 = arith.select %40, %347, %292 : vector<8x32xi1>, vector<8x32xf32>
    %349 = arith.select %40, %345, %293 : vector<8x32xi1>, vector<8x32xf32>
    %c56_119 = arith.constant 56 : index
    %c32_120 = arith.constant 32 : index
    %350 = vector.load %arg15[%c56_119, %c32_120] : memref<96x64xf32, #tpu.memory_space<vmem>>, vector<8x32xf32>
    tpu.vector_store %arg15[%c56_119, %c32_120], %348 {strides = array<i32>} : memref<96x64xf32, #tpu.memory_space<vmem>>, vector<8x32xf32>,
    %c40 = arith.constant 40 : index
    %c0_121 = arith.constant 0 : index
    %351 = vector.load %arg14[%c40, %c0_121] : memref<96x256xf32, #tpu.memory_space<vmem>>, vector<8x128xf32>
    %cst_122 = arith.constant dense<0.000000e+00> : vector<8x128xf32>
    %352 = tpu.matmul %320, %64, %cst_122 {dimension_numbers = #tpu.dot_dimension_numbers<[1], [0], [0], [1], [0, 0, 1, 1], [], []>} : vector<8x32xf32>, vector<32x128xf32>, vector<8x128xf32> -> vector<8x128xf32>
    %353 = arith.addf %351, %352 : vector<8x128xf32>
    %354 = math.tanh %353 : vector<8x128xf32>
    %355 = vector.extract_strided_slice %354 {offsets = [0, 0], sizes = [8, 32], strides = [1, 1]} : vector<8x128xf32> to vector<8x32xf32>
    %cst_123 = arith.constant 5.000000e-01 : f32
    %356 = vector.broadcast %cst_123 : f32 to vector<8x32xf32>
    %357 = arith.mulf %356, %355 : vector<8x32xf32>
    %cst_124 = arith.constant 5.000000e-01 : f32
    %358 = vector.broadcast %cst_124 : f32 to vector<8x32xf32>
    %359 = arith.addf %357, %358 : vector<8x32xf32>
    %360 = vector.extract_strided_slice %354 {offsets = [0, 32], sizes = [8, 32], strides = [1, 1]} : vector<8x128xf32> to vector<8x32xf32>
    %cst_125 = arith.constant 5.000000e-01 : f32
    %361 = vector.broadcast %cst_125 : f32 to vector<8x32xf32>
    %362 = arith.mulf %361, %360 : vector<8x32xf32>
    %cst_126 = arith.constant 5.000000e-01 : f32
    %363 = vector.broadcast %cst_126 : f32 to vector<8x32xf32>
    %364 = arith.addf %362, %363 : vector<8x32xf32>
    %365 = vector.extract_strided_slice %354 {offsets = [0, 64], sizes = [8, 32], strides = [1, 1]} : vector<8x128xf32> to vector<8x32xf32>
    %366 = vector.extract_strided_slice %354 {offsets = [0, 96], sizes = [8, 32], strides = [1, 1]} : vector<8x128xf32> to vector<8x32xf32>
    %cst_127 = arith.constant 5.000000e-01 : f32
    %367 = vector.broadcast %cst_127 : f32 to vector<8x32xf32>
    %368 = arith.mulf %367, %366 : vector<8x32xf32>
    %cst_128 = arith.constant 5.000000e-01 : f32
    %369 = vector.broadcast %cst_128 : f32 to vector<8x32xf32>
    %370 = arith.addf %368, %369 : vector<8x32xf32>
    %371 = arith.mulf %364, %321 : vector<8x32xf32>
    %372 = arith.mulf %359, %365 : vector<8x32xf32>
    %373 = arith.addf %371, %372 : vector<8x32xf32>
    %374 = math.tanh %373 : vector<8x32xf32>
    %375 = arith.mulf %370, %374 : vector<8x32xf32>
    %376 = arith.select %32, %375, %320 : vector<8x32xi1>, vector<8x32xf32>
    %377 = arith.select %32, %373, %321 : vector<8x32xi1>, vector<8x32xf32>
    %c40_129 = arith.constant 40 : index
    %c0_130 = arith.constant 0 : index
    %378 = vector.load %arg15[%c40_129, %c0_130] : memref<96x64xf32, #tpu.memory_space<vmem>>, vector<8x32xf32>
    tpu.vector_store %arg15[%c40_129, %c0_130], %376 {strides = array<i32>} : memref<96x64xf32, #tpu.memory_space<vmem>>, vector<8x32xf32>,
    %c48 = arith.constant 48 : index
    %c128_131 = arith.constant 128 : index
    %379 = vector.load %arg14[%c48, %c128_131] : memref<96x256xf32, #tpu.memory_space<vmem>>, vector<8x128xf32>
    %cst_132 = arith.constant dense<0.000000e+00> : vector<8x128xf32>
    %380 = tpu.matmul %348, %66, %cst_132 {dimension_numbers = #tpu.dot_dimension_numbers<[1], [0], [0], [1], [0, 0, 1, 1], [], []>} : vector<8x32xf32>, vector<32x128xf32>, vector<8x128xf32> -> vector<8x128xf32>
    %381 = arith.addf %379, %380 : vector<8x128xf32>
    %382 = math.tanh %381 : vector<8x128xf32>
    %383 = vector.extract_strided_slice %382 {offsets = [0, 0], sizes = [8, 32], strides = [1, 1]} : vector<8x128xf32> to vector<8x32xf32>
    %cst_133 = arith.constant 5.000000e-01 : f32
    %384 = vector.broadcast %cst_133 : f32 to vector<8x32xf32>
    %385 = arith.mulf %384, %383 : vector<8x32xf32>
    %cst_134 = arith.constant 5.000000e-01 : f32
    %386 = vector.broadcast %cst_134 : f32 to vector<8x32xf32>
    %387 = arith.addf %385, %386 : vector<8x32xf32>
    %388 = vector.extract_strided_slice %382 {offsets = [0, 32], sizes = [8, 32], strides = [1, 1]} : vector<8x128xf32> to vector<8x32xf32>
    %cst_135 = arith.constant 5.000000e-01 : f32
    %389 = vector.broadcast %cst_135 : f32 to vector<8x32xf32>
    %390 = arith.mulf %389, %388 : vector<8x32xf32>
    %cst_136 = arith.constant 5.000000e-01 : f32
    %391 = vector.broadcast %cst_136 : f32 to vector<8x32xf32>
    %392 = arith.addf %390, %391 : vector<8x32xf32>
    %393 = vector.extract_strided_slice %382 {offsets = [0, 64], sizes = [8, 32], strides = [1, 1]} : vector<8x128xf32> to vector<8x32xf32>
    %394 = vector.extract_strided_slice %382 {offsets = [0, 96], sizes = [8, 32], strides = [1, 1]} : vector<8x128xf32> to vector<8x32xf32>
    %cst_137 = arith.constant 5.000000e-01 : f32
    %395 = vector.broadcast %cst_137 : f32 to vector<8x32xf32>
    %396 = arith.mulf %395, %394 : vector<8x32xf32>
    %cst_138 = arith.constant 5.000000e-01 : f32
    %397 = vector.broadcast %cst_138 : f32 to vector<8x32xf32>
    %398 = arith.addf %396, %397 : vector<8x32xf32>
    %399 = arith.mulf %392, %349 : vector<8x32xf32>
    %400 = arith.mulf %387, %393 : vector<8x32xf32>
    %401 = arith.addf %399, %400 : vector<8x32xf32>
    %402 = math.tanh %401 : vector<8x32xf32>
    %403 = arith.mulf %398, %402 : vector<8x32xf32>
    %404 = arith.select %36, %403, %348 : vector<8x32xi1>, vector<8x32xf32>
    %405 = arith.select %36, %401, %349 : vector<8x32xi1>, vector<8x32xf32>
    %c48_139 = arith.constant 48 : index
    %c32_140 = arith.constant 32 : index
    %406 = vector.load %arg15[%c48_139, %c32_140] : memref<96x64xf32, #tpu.memory_space<vmem>>, vector<8x32xf32>
    tpu.vector_store %arg15[%c48_139, %c32_140], %404 {strides = array<i32>} : memref<96x64xf32, #tpu.memory_space<vmem>>, vector<8x32xf32>,
    %c48_141 = arith.constant 48 : index
    %c0_142 = arith.constant 0 : index
    %407 = vector.load %arg14[%c48_141, %c0_142] : memref<96x256xf32, #tpu.memory_space<vmem>>, vector<8x128xf32>
    %cst_143 = arith.constant dense<0.000000e+00> : vector<8x128xf32>
    %408 = tpu.matmul %376, %64, %cst_143 {dimension_numbers = #tpu.dot_dimension_numbers<[1], [0], [0], [1], [0, 0, 1, 1], [], []>} : vector<8x32xf32>, vector<32x128xf32>, vector<8x128xf32> -> vector<8x128xf32>
    %409 = arith.addf %407, %408 : vector<8x128xf32>
    %410 = math.tanh %409 : vector<8x128xf32>
    %411 = vector.extract_strided_slice %410 {offsets = [0, 0], sizes = [8, 32], strides = [1, 1]} : vector<8x128xf32> to vector<8x32xf32>
    %cst_144 = arith.constant 5.000000e-01 : f32
    %412 = vector.broadcast %cst_144 : f32 to vector<8x32xf32>
    %413 = arith.mulf %412, %411 : vector<8x32xf32>
    %cst_145 = arith.constant 5.000000e-01 : f32
    %414 = vector.broadcast %cst_145 : f32 to vector<8x32xf32>
    %415 = arith.addf %413, %414 : vector<8x32xf32>
    %416 = vector.extract_strided_slice %410 {offsets = [0, 32], sizes = [8, 32], strides = [1, 1]} : vector<8x128xf32> to vector<8x32xf32>
    %cst_146 = arith.constant 5.000000e-01 : f32
    %417 = vector.broadcast %cst_146 : f32 to vector<8x32xf32>
    %418 = arith.mulf %417, %416 : vector<8x32xf32>
    %cst_147 = arith.constant 5.000000e-01 : f32
    %419 = vector.broadcast %cst_147 : f32 to vector<8x32xf32>
    %420 = arith.addf %418, %419 : vector<8x32xf32>
    %421 = vector.extract_strided_slice %410 {offsets = [0, 64], sizes = [8, 32], strides = [1, 1]} : vector<8x128xf32> to vector<8x32xf32>
    %422 = vector.extract_strided_slice %410 {offsets = [0, 96], sizes = [8, 32], strides = [1, 1]} : vector<8x128xf32> to vector<8x32xf32>
    %cst_148 = arith.constant 5.000000e-01 : f32
    %423 = vector.broadcast %cst_148 : f32 to vector<8x32xf32>
    %424 = arith.mulf %423, %422 : vector<8x32xf32>
    %cst_149 = arith.constant 5.000000e-01 : f32
    %425 = vector.broadcast %cst_149 : f32 to vector<8x32xf32>
    %426 = arith.addf %424, %425 : vector<8x32xf32>
    %427 = arith.mulf %420, %377 : vector<8x32xf32>
    %428 = arith.mulf %415, %421 : vector<8x32xf32>
    %429 = arith.addf %427, %428 : vector<8x32xf32>
    %430 = math.tanh %429 : vector<8x32xf32>
    %431 = arith.mulf %426, %430 : vector<8x32xf32>
    %432 = arith.select %36, %431, %376 : vector<8x32xi1>, vector<8x32xf32>
    %433 = arith.select %36, %429, %377 : vector<8x32xi1>, vector<8x32xf32>
    %c48_150 = arith.constant 48 : index
    %c0_151 = arith.constant 0 : index
    %434 = vector.load %arg15[%c48_150, %c0_151] : memref<96x64xf32, #tpu.memory_space<vmem>>, vector<8x32xf32>
    tpu.vector_store %arg15[%c48_150, %c0_151], %432 {strides = array<i32>} : memref<96x64xf32, #tpu.memory_space<vmem>>, vector<8x32xf32>,
    %c40_152 = arith.constant 40 : index
    %c128_153 = arith.constant 128 : index
    %435 = vector.load %arg14[%c40_152, %c128_153] : memref<96x256xf32, #tpu.memory_space<vmem>>, vector<8x128xf32>
    %cst_154 = arith.constant dense<0.000000e+00> : vector<8x128xf32>
    %436 = tpu.matmul %404, %66, %cst_154 {dimension_numbers = #tpu.dot_dimension_numbers<[1], [0], [0], [1], [0, 0, 1, 1], [], []>} : vector<8x32xf32>, vector<32x128xf32>, vector<8x128xf32> -> vector<8x128xf32>
    %437 = arith.addf %435, %436 : vector<8x128xf32>
    %438 = math.tanh %437 : vector<8x128xf32>
    %439 = vector.extract_strided_slice %438 {offsets = [0, 0], sizes = [8, 32], strides = [1, 1]} : vector<8x128xf32> to vector<8x32xf32>
    %cst_155 = arith.constant 5.000000e-01 : f32
    %440 = vector.broadcast %cst_155 : f32 to vector<8x32xf32>
    %441 = arith.mulf %440, %439 : vector<8x32xf32>
    %cst_156 = arith.constant 5.000000e-01 : f32
    %442 = vector.broadcast %cst_156 : f32 to vector<8x32xf32>
    %443 = arith.addf %441, %442 : vector<8x32xf32>
    %444 = vector.extract_strided_slice %438 {offsets = [0, 32], sizes = [8, 32], strides = [1, 1]} : vector<8x128xf32> to vector<8x32xf32>
    %cst_157 = arith.constant 5.000000e-01 : f32
    %445 = vector.broadcast %cst_157 : f32 to vector<8x32xf32>
    %446 = arith.mulf %445, %444 : vector<8x32xf32>
    %cst_158 = arith.constant 5.000000e-01 : f32
    %447 = vector.broadcast %cst_158 : f32 to vector<8x32xf32>
    %448 = arith.addf %446, %447 : vector<8x32xf32>
    %449 = vector.extract_strided_slice %438 {offsets = [0, 64], sizes = [8, 32], strides = [1, 1]} : vector<8x128xf32> to vector<8x32xf32>
    %450 = vector.extract_strided_slice %438 {offsets = [0, 96], sizes = [8, 32], strides = [1, 1]} : vector<8x128xf32> to vector<8x32xf32>
    %cst_159 = arith.constant 5.000000e-01 : f32
    %451 = vector.broadcast %cst_159 : f32 to vector<8x32xf32>
    %452 = arith.mulf %451, %450 : vector<8x32xf32>
    %cst_160 = arith.constant 5.000000e-01 : f32
    %453 = vector.broadcast %cst_160 : f32 to vector<8x32xf32>
    %454 = arith.addf %452, %453 : vector<8x32xf32>
    %455 = arith.mulf %448, %405 : vector<8x32xf32>
    %456 = arith.mulf %443, %449 : vector<8x32xf32>
    %457 = arith.addf %455, %456 : vector<8x32xf32>
    %458 = math.tanh %457 : vector<8x32xf32>
    %459 = arith.mulf %454, %458 : vector<8x32xf32>
    %460 = arith.select %32, %459, %404 : vector<8x32xi1>, vector<8x32xf32>
    %461 = arith.select %32, %457, %405 : vector<8x32xi1>, vector<8x32xf32>
    %c40_161 = arith.constant 40 : index
    %c32_162 = arith.constant 32 : index
    %462 = vector.load %arg15[%c40_161, %c32_162] : memref<96x64xf32, #tpu.memory_space<vmem>>, vector<8x32xf32>
    tpu.vector_store %arg15[%c40_161, %c32_162], %460 {strides = array<i32>} : memref<96x64xf32, #tpu.memory_space<vmem>>, vector<8x32xf32>,
    %c56_163 = arith.constant 56 : index
    %c0_164 = arith.constant 0 : index
    %463 = vector.load %arg14[%c56_163, %c0_164] : memref<96x256xf32, #tpu.memory_space<vmem>>, vector<8x128xf32>
    %cst_165 = arith.constant dense<0.000000e+00> : vector<8x128xf32>
    %464 = tpu.matmul %432, %64, %cst_165 {dimension_numbers = #tpu.dot_dimension_numbers<[1], [0], [0], [1], [0, 0, 1, 1], [], []>} : vector<8x32xf32>, vector<32x128xf32>, vector<8x128xf32> -> vector<8x128xf32>
    %465 = arith.addf %463, %464 : vector<8x128xf32>
    %466 = math.tanh %465 : vector<8x128xf32>
    %467 = vector.extract_strided_slice %466 {offsets = [0, 0], sizes = [8, 32], strides = [1, 1]} : vector<8x128xf32> to vector<8x32xf32>
    %cst_166 = arith.constant 5.000000e-01 : f32
    %468 = vector.broadcast %cst_166 : f32 to vector<8x32xf32>
    %469 = arith.mulf %468, %467 : vector<8x32xf32>
    %cst_167 = arith.constant 5.000000e-01 : f32
    %470 = vector.broadcast %cst_167 : f32 to vector<8x32xf32>
    %471 = arith.addf %469, %470 : vector<8x32xf32>
    %472 = vector.extract_strided_slice %466 {offsets = [0, 32], sizes = [8, 32], strides = [1, 1]} : vector<8x128xf32> to vector<8x32xf32>
    %cst_168 = arith.constant 5.000000e-01 : f32
    %473 = vector.broadcast %cst_168 : f32 to vector<8x32xf32>
    %474 = arith.mulf %473, %472 : vector<8x32xf32>
    %cst_169 = arith.constant 5.000000e-01 : f32
    %475 = vector.broadcast %cst_169 : f32 to vector<8x32xf32>
    %476 = arith.addf %474, %475 : vector<8x32xf32>
    %477 = vector.extract_strided_slice %466 {offsets = [0, 64], sizes = [8, 32], strides = [1, 1]} : vector<8x128xf32> to vector<8x32xf32>
    %478 = vector.extract_strided_slice %466 {offsets = [0, 96], sizes = [8, 32], strides = [1, 1]} : vector<8x128xf32> to vector<8x32xf32>
    %cst_170 = arith.constant 5.000000e-01 : f32
    %479 = vector.broadcast %cst_170 : f32 to vector<8x32xf32>
    %480 = arith.mulf %479, %478 : vector<8x32xf32>
    %cst_171 = arith.constant 5.000000e-01 : f32
    %481 = vector.broadcast %cst_171 : f32 to vector<8x32xf32>
    %482 = arith.addf %480, %481 : vector<8x32xf32>
    %483 = arith.mulf %476, %433 : vector<8x32xf32>
    %484 = arith.mulf %471, %477 : vector<8x32xf32>
    %485 = arith.addf %483, %484 : vector<8x32xf32>
    %486 = math.tanh %485 : vector<8x32xf32>
    %487 = arith.mulf %482, %486 : vector<8x32xf32>
    %488 = arith.select %40, %487, %432 : vector<8x32xi1>, vector<8x32xf32>
    %489 = arith.select %40, %485, %433 : vector<8x32xi1>, vector<8x32xf32>
    %c56_172 = arith.constant 56 : index
    %c0_173 = arith.constant 0 : index
    %490 = vector.load %arg15[%c56_172, %c0_173] : memref<96x64xf32, #tpu.memory_space<vmem>>, vector<8x32xf32>
    tpu.vector_store %arg15[%c56_172, %c0_173], %488 {strides = array<i32>} : memref<96x64xf32, #tpu.memory_space<vmem>>, vector<8x32xf32>,
    %c32_174 = arith.constant 32 : index
    %c128_175 = arith.constant 128 : index
    %491 = vector.load %arg14[%c32_174, %c128_175] : memref<96x256xf32, #tpu.memory_space<vmem>>, vector<8x128xf32>
    %cst_176 = arith.constant dense<0.000000e+00> : vector<8x128xf32>
    %492 = tpu.matmul %460, %66, %cst_176 {dimension_numbers = #tpu.dot_dimension_numbers<[1], [0], [0], [1], [0, 0, 1, 1], [], []>} : vector<8x32xf32>, vector<32x128xf32>, vector<8x128xf32> -> vector<8x128xf32>
    %493 = arith.addf %491, %492 : vector<8x128xf32>
    %494 = math.tanh %493 : vector<8x128xf32>
    %495 = vector.extract_strided_slice %494 {offsets = [0, 0], sizes = [8, 32], strides = [1, 1]} : vector<8x128xf32> to vector<8x32xf32>
    %cst_177 = arith.constant 5.000000e-01 : f32
    %496 = vector.broadcast %cst_177 : f32 to vector<8x32xf32>
    %497 = arith.mulf %496, %495 : vector<8x32xf32>
    %cst_178 = arith.constant 5.000000e-01 : f32
    %498 = vector.broadcast %cst_178 : f32 to vector<8x32xf32>
    %499 = arith.addf %497, %498 : vector<8x32xf32>
    %500 = vector.extract_strided_slice %494 {offsets = [0, 32], sizes = [8, 32], strides = [1, 1]} : vector<8x128xf32> to vector<8x32xf32>
    %cst_179 = arith.constant 5.000000e-01 : f32
    %501 = vector.broadcast %cst_179 : f32 to vector<8x32xf32>
    %502 = arith.mulf %501, %500 : vector<8x32xf32>
    %cst_180 = arith.constant 5.000000e-01 : f32
    %503 = vector.broadcast %cst_180 : f32 to vector<8x32xf32>
    %504 = arith.addf %502, %503 : vector<8x32xf32>
    %505 = vector.extract_strided_slice %494 {offsets = [0, 64], sizes = [8, 32], strides = [1, 1]} : vector<8x128xf32> to vector<8x32xf32>
    %506 = vector.extract_strided_slice %494 {offsets = [0, 96], sizes = [8, 32], strides = [1, 1]} : vector<8x128xf32> to vector<8x32xf32>
    %cst_181 = arith.constant 5.000000e-01 : f32
    %507 = vector.broadcast %cst_181 : f32 to vector<8x32xf32>
    %508 = arith.mulf %507, %506 : vector<8x32xf32>
    %cst_182 = arith.constant 5.000000e-01 : f32
    %509 = vector.broadcast %cst_182 : f32 to vector<8x32xf32>
    %510 = arith.addf %508, %509 : vector<8x32xf32>
    %511 = arith.mulf %504, %461 : vector<8x32xf32>
    %512 = arith.mulf %499, %505 : vector<8x32xf32>
    %513 = arith.addf %511, %512 : vector<8x32xf32>
    %514 = math.tanh %513 : vector<8x32xf32>
    %515 = arith.mulf %510, %514 : vector<8x32xf32>
    %516 = arith.select %28, %515, %460 : vector<8x32xi1>, vector<8x32xf32>
    %517 = arith.select %28, %513, %461 : vector<8x32xi1>, vector<8x32xf32>
    %c32_183 = arith.constant 32 : index
    %c32_184 = arith.constant 32 : index
    %518 = vector.load %arg15[%c32_183, %c32_184] : memref<96x64xf32, #tpu.memory_space<vmem>>, vector<8x32xf32>
    tpu.vector_store %arg15[%c32_183, %c32_184], %516 {strides = array<i32>} : memref<96x64xf32, #tpu.memory_space<vmem>>, vector<8x32xf32>,
    %c64_185 = arith.constant 64 : index
    %c0_186 = arith.constant 0 : index
    %519 = vector.load %arg14[%c64_185, %c0_186] : memref<96x256xf32, #tpu.memory_space<vmem>>, vector<8x128xf32>
    %cst_187 = arith.constant dense<0.000000e+00> : vector<8x128xf32>
    %520 = tpu.matmul %488, %64, %cst_187 {dimension_numbers = #tpu.dot_dimension_numbers<[1], [0], [0], [1], [0, 0, 1, 1], [], []>} : vector<8x32xf32>, vector<32x128xf32>, vector<8x128xf32> -> vector<8x128xf32>
    %521 = arith.addf %519, %520 : vector<8x128xf32>
    %522 = math.tanh %521 : vector<8x128xf32>
    %523 = vector.extract_strided_slice %522 {offsets = [0, 0], sizes = [8, 32], strides = [1, 1]} : vector<8x128xf32> to vector<8x32xf32>
    %cst_188 = arith.constant 5.000000e-01 : f32
    %524 = vector.broadcast %cst_188 : f32 to vector<8x32xf32>
    %525 = arith.mulf %524, %523 : vector<8x32xf32>
    %cst_189 = arith.constant 5.000000e-01 : f32
    %526 = vector.broadcast %cst_189 : f32 to vector<8x32xf32>
    %527 = arith.addf %525, %526 : vector<8x32xf32>
    %528 = vector.extract_strided_slice %522 {offsets = [0, 32], sizes = [8, 32], strides = [1, 1]} : vector<8x128xf32> to vector<8x32xf32>
    %cst_190 = arith.constant 5.000000e-01 : f32
    %529 = vector.broadcast %cst_190 : f32 to vector<8x32xf32>
    %530 = arith.mulf %529, %528 : vector<8x32xf32>
    %cst_191 = arith.constant 5.000000e-01 : f32
    %531 = vector.broadcast %cst_191 : f32 to vector<8x32xf32>
    %532 = arith.addf %530, %531 : vector<8x32xf32>
    %533 = vector.extract_strided_slice %522 {offsets = [0, 64], sizes = [8, 32], strides = [1, 1]} : vector<8x128xf32> to vector<8x32xf32>
    %534 = vector.extract_strided_slice %522 {offsets = [0, 96], sizes = [8, 32], strides = [1, 1]} : vector<8x128xf32> to vector<8x32xf32>
    %cst_192 = arith.constant 5.000000e-01 : f32
    %535 = vector.broadcast %cst_192 : f32 to vector<8x32xf32>
    %536 = arith.mulf %535, %534 : vector<8x32xf32>
    %cst_193 = arith.constant 5.000000e-01 : f32
    %537 = vector.broadcast %cst_193 : f32 to vector<8x32xf32>
    %538 = arith.addf %536, %537 : vector<8x32xf32>
    %539 = arith.mulf %532, %489 : vector<8x32xf32>
    %540 = arith.mulf %527, %533 : vector<8x32xf32>
    %541 = arith.addf %539, %540 : vector<8x32xf32>
    %542 = math.tanh %541 : vector<8x32xf32>
    %543 = arith.mulf %538, %542 : vector<8x32xf32>
    %544 = arith.select %44, %543, %488 : vector<8x32xi1>, vector<8x32xf32>
    %545 = arith.select %44, %541, %489 : vector<8x32xi1>, vector<8x32xf32>
    %c64_194 = arith.constant 64 : index
    %c0_195 = arith.constant 0 : index
    %546 = vector.load %arg15[%c64_194, %c0_195] : memref<96x64xf32, #tpu.memory_space<vmem>>, vector<8x32xf32>
    tpu.vector_store %arg15[%c64_194, %c0_195], %544 {strides = array<i32>} : memref<96x64xf32, #tpu.memory_space<vmem>>, vector<8x32xf32>,
    %c24_196 = arith.constant 24 : index
    %c128_197 = arith.constant 128 : index
    %547 = vector.load %arg14[%c24_196, %c128_197] : memref<96x256xf32, #tpu.memory_space<vmem>>, vector<8x128xf32>
    %cst_198 = arith.constant dense<0.000000e+00> : vector<8x128xf32>
    %548 = tpu.matmul %516, %66, %cst_198 {dimension_numbers = #tpu.dot_dimension_numbers<[1], [0], [0], [1], [0, 0, 1, 1], [], []>} : vector<8x32xf32>, vector<32x128xf32>, vector<8x128xf32> -> vector<8x128xf32>
    %549 = arith.addf %547, %548 : vector<8x128xf32>
    %550 = math.tanh %549 : vector<8x128xf32>
    %551 = vector.extract_strided_slice %550 {offsets = [0, 0], sizes = [8, 32], strides = [1, 1]} : vector<8x128xf32> to vector<8x32xf32>
    %cst_199 = arith.constant 5.000000e-01 : f32
    %552 = vector.broadcast %cst_199 : f32 to vector<8x32xf32>
    %553 = arith.mulf %552, %551 : vector<8x32xf32>
    %cst_200 = arith.constant 5.000000e-01 : f32
    %554 = vector.broadcast %cst_200 : f32 to vector<8x32xf32>
    %555 = arith.addf %553, %554 : vector<8x32xf32>
    %556 = vector.extract_strided_slice %550 {offsets = [0, 32], sizes = [8, 32], strides = [1, 1]} : vector<8x128xf32> to vector<8x32xf32>
    %cst_201 = arith.constant 5.000000e-01 : f32
    %557 = vector.broadcast %cst_201 : f32 to vector<8x32xf32>
    %558 = arith.mulf %557, %556 : vector<8x32xf32>
    %cst_202 = arith.constant 5.000000e-01 : f32
    %559 = vector.broadcast %cst_202 : f32 to vector<8x32xf32>
    %560 = arith.addf %558, %559 : vector<8x32xf32>
    %561 = vector.extract_strided_slice %550 {offsets = [0, 64], sizes = [8, 32], strides = [1, 1]} : vector<8x128xf32> to vector<8x32xf32>
    %562 = vector.extract_strided_slice %550 {offsets = [0, 96], sizes = [8, 32], strides = [1, 1]} : vector<8x128xf32> to vector<8x32xf32>
    %cst_203 = arith.constant 5.000000e-01 : f32
    %563 = vector.broadcast %cst_203 : f32 to vector<8x32xf32>
    %564 = arith.mulf %563, %562 : vector<8x32xf32>
    %cst_204 = arith.constant 5.000000e-01 : f32
    %565 = vector.broadcast %cst_204 : f32 to vector<8x32xf32>
    %566 = arith.addf %564, %565 : vector<8x32xf32>
    %567 = arith.mulf %560, %517 : vector<8x32xf32>
    %568 = arith.mulf %555, %561 : vector<8x32xf32>
    %569 = arith.addf %567, %568 : vector<8x32xf32>
    %570 = math.tanh %569 : vector<8x32xf32>
    %571 = arith.mulf %566, %570 : vector<8x32xf32>
    %572 = arith.select %24, %571, %516 : vector<8x32xi1>, vector<8x32xf32>
    %573 = arith.select %24, %569, %517 : vector<8x32xi1>, vector<8x32xf32>
    %c24_205 = arith.constant 24 : index
    %c32_206 = arith.constant 32 : index
    %574 = vector.load %arg15[%c24_205, %c32_206] : memref<96x64xf32, #tpu.memory_space<vmem>>, vector<8x32xf32>
    tpu.vector_store %arg15[%c24_205, %c32_206], %572 {strides = array<i32>} : memref<96x64xf32, #tpu.memory_space<vmem>>, vector<8x32xf32>,
    %c72_207 = arith.constant 72 : index
    %c0_208 = arith.constant 0 : index
    %575 = vector.load %arg14[%c72_207, %c0_208] : memref<96x256xf32, #tpu.memory_space<vmem>>, vector<8x128xf32>
    %cst_209 = arith.constant dense<0.000000e+00> : vector<8x128xf32>
    %576 = tpu.matmul %544, %64, %cst_209 {dimension_numbers = #tpu.dot_dimension_numbers<[1], [0], [0], [1], [0, 0, 1, 1], [], []>} : vector<8x32xf32>, vector<32x128xf32>, vector<8x128xf32> -> vector<8x128xf32>
    %577 = arith.addf %575, %576 : vector<8x128xf32>
    %578 = math.tanh %577 : vector<8x128xf32>
    %579 = vector.extract_strided_slice %578 {offsets = [0, 0], sizes = [8, 32], strides = [1, 1]} : vector<8x128xf32> to vector<8x32xf32>
    %cst_210 = arith.constant 5.000000e-01 : f32
    %580 = vector.broadcast %cst_210 : f32 to vector<8x32xf32>
    %581 = arith.mulf %580, %579 : vector<8x32xf32>
    %cst_211 = arith.constant 5.000000e-01 : f32
    %582 = vector.broadcast %cst_211 : f32 to vector<8x32xf32>
    %583 = arith.addf %581, %582 : vector<8x32xf32>
    %584 = vector.extract_strided_slice %578 {offsets = [0, 32], sizes = [8, 32], strides = [1, 1]} : vector<8x128xf32> to vector<8x32xf32>
    %cst_212 = arith.constant 5.000000e-01 : f32
    %585 = vector.broadcast %cst_212 : f32 to vector<8x32xf32>
    %586 = arith.mulf %585, %584 : vector<8x32xf32>
    %cst_213 = arith.constant 5.000000e-01 : f32
    %587 = vector.broadcast %cst_213 : f32 to vector<8x32xf32>
    %588 = arith.addf %586, %587 : vector<8x32xf32>
    %589 = vector.extract_strided_slice %578 {offsets = [0, 64], sizes = [8, 32], strides = [1, 1]} : vector<8x128xf32> to vector<8x32xf32>
    %590 = vector.extract_strided_slice %578 {offsets = [0, 96], sizes = [8, 32], strides = [1, 1]} : vector<8x128xf32> to vector<8x32xf32>
    %cst_214 = arith.constant 5.000000e-01 : f32
    %591 = vector.broadcast %cst_214 : f32 to vector<8x32xf32>
    %592 = arith.mulf %591, %590 : vector<8x32xf32>
    %cst_215 = arith.constant 5.000000e-01 : f32
    %593 = vector.broadcast %cst_215 : f32 to vector<8x32xf32>
    %594 = arith.addf %592, %593 : vector<8x32xf32>
    %595 = arith.mulf %588, %545 : vector<8x32xf32>
    %596 = arith.mulf %583, %589 : vector<8x32xf32>
    %597 = arith.addf %595, %596 : vector<8x32xf32>
    %598 = math.tanh %597 : vector<8x32xf32>
    %599 = arith.mulf %594, %598 : vector<8x32xf32>
    %600 = arith.select %48, %599, %544 : vector<8x32xi1>, vector<8x32xf32>
    %601 = arith.select %48, %597, %545 : vector<8x32xi1>, vector<8x32xf32>
    %c72_216 = arith.constant 72 : index
    %c0_217 = arith.constant 0 : index
    %602 = vector.load %arg15[%c72_216, %c0_217] : memref<96x64xf32, #tpu.memory_space<vmem>>, vector<8x32xf32>
    tpu.vector_store %arg15[%c72_216, %c0_217], %600 {strides = array<i32>} : memref<96x64xf32, #tpu.memory_space<vmem>>, vector<8x32xf32>,
    %c16_218 = arith.constant 16 : index
    %c128_219 = arith.constant 128 : index
    %603 = vector.load %arg14[%c16_218, %c128_219] : memref<96x256xf32, #tpu.memory_space<vmem>>, vector<8x128xf32>
    %cst_220 = arith.constant dense<0.000000e+00> : vector<8x128xf32>
    %604 = tpu.matmul %572, %66, %cst_220 {dimension_numbers = #tpu.dot_dimension_numbers<[1], [0], [0], [1], [0, 0, 1, 1], [], []>} : vector<8x32xf32>, vector<32x128xf32>, vector<8x128xf32> -> vector<8x128xf32>
    %605 = arith.addf %603, %604 : vector<8x128xf32>
    %606 = math.tanh %605 : vector<8x128xf32>
    %607 = vector.extract_strided_slice %606 {offsets = [0, 0], sizes = [8, 32], strides = [1, 1]} : vector<8x128xf32> to vector<8x32xf32>
    %cst_221 = arith.constant 5.000000e-01 : f32
    %608 = vector.broadcast %cst_221 : f32 to vector<8x32xf32>
    %609 = arith.mulf %608, %607 : vector<8x32xf32>
    %cst_222 = arith.constant 5.000000e-01 : f32
    %610 = vector.broadcast %cst_222 : f32 to vector<8x32xf32>
    %611 = arith.addf %609, %610 : vector<8x32xf32>
    %612 = vector.extract_strided_slice %606 {offsets = [0, 32], sizes = [8, 32], strides = [1, 1]} : vector<8x128xf32> to vector<8x32xf32>
    %cst_223 = arith.constant 5.000000e-01 : f32
    %613 = vector.broadcast %cst_223 : f32 to vector<8x32xf32>
    %614 = arith.mulf %613, %612 : vector<8x32xf32>
    %cst_224 = arith.constant 5.000000e-01 : f32
    %615 = vector.broadcast %cst_224 : f32 to vector<8x32xf32>
    %616 = arith.addf %614, %615 : vector<8x32xf32>
    %617 = vector.extract_strided_slice %606 {offsets = [0, 64], sizes = [8, 32], strides = [1, 1]} : vector<8x128xf32> to vector<8x32xf32>
    %618 = vector.extract_strided_slice %606 {offsets = [0, 96], sizes = [8, 32], strides = [1, 1]} : vector<8x128xf32> to vector<8x32xf32>
    %cst_225 = arith.constant 5.000000e-01 : f32
    %619 = vector.broadcast %cst_225 : f32 to vector<8x32xf32>
    %620 = arith.mulf %619, %618 : vector<8x32xf32>
    %cst_226 = arith.constant 5.000000e-01 : f32
    %621 = vector.broadcast %cst_226 : f32 to vector<8x32xf32>
    %622 = arith.addf %620, %621 : vector<8x32xf32>
    %623 = arith.mulf %616, %573 : vector<8x32xf32>
    %624 = arith.mulf %611, %617 : vector<8x32xf32>
    %625 = arith.addf %623, %624 : vector<8x32xf32>
    %626 = math.tanh %625 : vector<8x32xf32>
    %627 = arith.mulf %622, %626 : vector<8x32xf32>
    %628 = arith.select %20, %627, %572 : vector<8x32xi1>, vector<8x32xf32>
    %629 = arith.select %20, %625, %573 : vector<8x32xi1>, vector<8x32xf32>
    %c16_227 = arith.constant 16 : index
    %c32_228 = arith.constant 32 : index
    %630 = vector.load %arg15[%c16_227, %c32_228] : memref<96x64xf32, #tpu.memory_space<vmem>>, vector<8x32xf32>
    tpu.vector_store %arg15[%c16_227, %c32_228], %628 {strides = array<i32>} : memref<96x64xf32, #tpu.memory_space<vmem>>, vector<8x32xf32>,
    %c80_229 = arith.constant 80 : index
    %c0_230 = arith.constant 0 : index
    %631 = vector.load %arg14[%c80_229, %c0_230] : memref<96x256xf32, #tpu.memory_space<vmem>>, vector<8x128xf32>
    %cst_231 = arith.constant dense<0.000000e+00> : vector<8x128xf32>
    %632 = tpu.matmul %600, %64, %cst_231 {dimension_numbers = #tpu.dot_dimension_numbers<[1], [0], [0], [1], [0, 0, 1, 1], [], []>} : vector<8x32xf32>, vector<32x128xf32>, vector<8x128xf32> -> vector<8x128xf32>
    %633 = arith.addf %631, %632 : vector<8x128xf32>
    %634 = math.tanh %633 : vector<8x128xf32>
    %635 = vector.extract_strided_slice %634 {offsets = [0, 0], sizes = [8, 32], strides = [1, 1]} : vector<8x128xf32> to vector<8x32xf32>
    %cst_232 = arith.constant 5.000000e-01 : f32
    %636 = vector.broadcast %cst_232 : f32 to vector<8x32xf32>
    %637 = arith.mulf %636, %635 : vector<8x32xf32>
    %cst_233 = arith.constant 5.000000e-01 : f32
    %638 = vector.broadcast %cst_233 : f32 to vector<8x32xf32>
    %639 = arith.addf %637, %638 : vector<8x32xf32>
    %640 = vector.extract_strided_slice %634 {offsets = [0, 32], sizes = [8, 32], strides = [1, 1]} : vector<8x128xf32> to vector<8x32xf32>
    %cst_234 = arith.constant 5.000000e-01 : f32
    %641 = vector.broadcast %cst_234 : f32 to vector<8x32xf32>
    %642 = arith.mulf %641, %640 : vector<8x32xf32>
    %cst_235 = arith.constant 5.000000e-01 : f32
    %643 = vector.broadcast %cst_235 : f32 to vector<8x32xf32>
    %644 = arith.addf %642, %643 : vector<8x32xf32>
    %645 = vector.extract_strided_slice %634 {offsets = [0, 64], sizes = [8, 32], strides = [1, 1]} : vector<8x128xf32> to vector<8x32xf32>
    %646 = vector.extract_strided_slice %634 {offsets = [0, 96], sizes = [8, 32], strides = [1, 1]} : vector<8x128xf32> to vector<8x32xf32>
    %cst_236 = arith.constant 5.000000e-01 : f32
    %647 = vector.broadcast %cst_236 : f32 to vector<8x32xf32>
    %648 = arith.mulf %647, %646 : vector<8x32xf32>
    %cst_237 = arith.constant 5.000000e-01 : f32
    %649 = vector.broadcast %cst_237 : f32 to vector<8x32xf32>
    %650 = arith.addf %648, %649 : vector<8x32xf32>
    %651 = arith.mulf %644, %601 : vector<8x32xf32>
    %652 = arith.mulf %639, %645 : vector<8x32xf32>
    %653 = arith.addf %651, %652 : vector<8x32xf32>
    %654 = math.tanh %653 : vector<8x32xf32>
    %655 = arith.mulf %650, %654 : vector<8x32xf32>
    %656 = arith.select %52, %655, %600 : vector<8x32xi1>, vector<8x32xf32>
    %657 = arith.select %52, %653, %601 : vector<8x32xi1>, vector<8x32xf32>
    %c80_238 = arith.constant 80 : index
    %c0_239 = arith.constant 0 : index
    %658 = vector.load %arg15[%c80_238, %c0_239] : memref<96x64xf32, #tpu.memory_space<vmem>>, vector<8x32xf32>
    tpu.vector_store %arg15[%c80_238, %c0_239], %656 {strides = array<i32>} : memref<96x64xf32, #tpu.memory_space<vmem>>, vector<8x32xf32>,
    %c8_240 = arith.constant 8 : index
    %c128_241 = arith.constant 128 : index
    %659 = vector.load %arg14[%c8_240, %c128_241] : memref<96x256xf32, #tpu.memory_space<vmem>>, vector<8x128xf32>
    %cst_242 = arith.constant dense<0.000000e+00> : vector<8x128xf32>
    %660 = tpu.matmul %628, %66, %cst_242 {dimension_numbers = #tpu.dot_dimension_numbers<[1], [0], [0], [1], [0, 0, 1, 1], [], []>} : vector<8x32xf32>, vector<32x128xf32>, vector<8x128xf32> -> vector<8x128xf32>
    %661 = arith.addf %659, %660 : vector<8x128xf32>
    %662 = math.tanh %661 : vector<8x128xf32>
    %663 = vector.extract_strided_slice %662 {offsets = [0, 0], sizes = [8, 32], strides = [1, 1]} : vector<8x128xf32> to vector<8x32xf32>
    %cst_243 = arith.constant 5.000000e-01 : f32
    %664 = vector.broadcast %cst_243 : f32 to vector<8x32xf32>
    %665 = arith.mulf %664, %663 : vector<8x32xf32>
    %cst_244 = arith.constant 5.000000e-01 : f32
    %666 = vector.broadcast %cst_244 : f32 to vector<8x32xf32>
    %667 = arith.addf %665, %666 : vector<8x32xf32>
    %668 = vector.extract_strided_slice %662 {offsets = [0, 32], sizes = [8, 32], strides = [1, 1]} : vector<8x128xf32> to vector<8x32xf32>
    %cst_245 = arith.constant 5.000000e-01 : f32
    %669 = vector.broadcast %cst_245 : f32 to vector<8x32xf32>
    %670 = arith.mulf %669, %668 : vector<8x32xf32>
    %cst_246 = arith.constant 5.000000e-01 : f32
    %671 = vector.broadcast %cst_246 : f32 to vector<8x32xf32>
    %672 = arith.addf %670, %671 : vector<8x32xf32>
    %673 = vector.extract_strided_slice %662 {offsets = [0, 64], sizes = [8, 32], strides = [1, 1]} : vector<8x128xf32> to vector<8x32xf32>
    %674 = vector.extract_strided_slice %662 {offsets = [0, 96], sizes = [8, 32], strides = [1, 1]} : vector<8x128xf32> to vector<8x32xf32>
    %cst_247 = arith.constant 5.000000e-01 : f32
    %675 = vector.broadcast %cst_247 : f32 to vector<8x32xf32>
    %676 = arith.mulf %675, %674 : vector<8x32xf32>
    %cst_248 = arith.constant 5.000000e-01 : f32
    %677 = vector.broadcast %cst_248 : f32 to vector<8x32xf32>
    %678 = arith.addf %676, %677 : vector<8x32xf32>
    %679 = arith.mulf %672, %629 : vector<8x32xf32>
    %680 = arith.mulf %667, %673 : vector<8x32xf32>
    %681 = arith.addf %679, %680 : vector<8x32xf32>
    %682 = math.tanh %681 : vector<8x32xf32>
    %683 = arith.mulf %678, %682 : vector<8x32xf32>
    %684 = arith.select %16, %683, %628 : vector<8x32xi1>, vector<8x32xf32>
    %685 = arith.select %16, %681, %629 : vector<8x32xi1>, vector<8x32xf32>
    %c8_249 = arith.constant 8 : index
    %c32_250 = arith.constant 32 : index
    %686 = vector.load %arg15[%c8_249, %c32_250] : memref<96x64xf32, #tpu.memory_space<vmem>>, vector<8x32xf32>
    tpu.vector_store %arg15[%c8_249, %c32_250], %684 {strides = array<i32>} : memref<96x64xf32, #tpu.memory_space<vmem>>, vector<8x32xf32>,
    %c88_251 = arith.constant 88 : index
    %c0_252 = arith.constant 0 : index
    %687 = vector.load %arg14[%c88_251, %c0_252] : memref<96x256xf32, #tpu.memory_space<vmem>>, vector<8x128xf32>
    %cst_253 = arith.constant dense<0.000000e+00> : vector<8x128xf32>
    %688 = tpu.matmul %656, %64, %cst_253 {dimension_numbers = #tpu.dot_dimension_numbers<[1], [0], [0], [1], [0, 0, 1, 1], [], []>} : vector<8x32xf32>, vector<32x128xf32>, vector<8x128xf32> -> vector<8x128xf32>
    %689 = arith.addf %687, %688 : vector<8x128xf32>
    %690 = math.tanh %689 : vector<8x128xf32>
    %691 = vector.extract_strided_slice %690 {offsets = [0, 0], sizes = [8, 32], strides = [1, 1]} : vector<8x128xf32> to vector<8x32xf32>
    %cst_254 = arith.constant 5.000000e-01 : f32
    %692 = vector.broadcast %cst_254 : f32 to vector<8x32xf32>
    %693 = arith.mulf %692, %691 : vector<8x32xf32>
    %cst_255 = arith.constant 5.000000e-01 : f32
    %694 = vector.broadcast %cst_255 : f32 to vector<8x32xf32>
    %695 = arith.addf %693, %694 : vector<8x32xf32>
    %696 = vector.extract_strided_slice %690 {offsets = [0, 32], sizes = [8, 32], strides = [1, 1]} : vector<8x128xf32> to vector<8x32xf32>
    %cst_256 = arith.constant 5.000000e-01 : f32
    %697 = vector.broadcast %cst_256 : f32 to vector<8x32xf32>
    %698 = arith.mulf %697, %696 : vector<8x32xf32>
    %cst_257 = arith.constant 5.000000e-01 : f32
    %699 = vector.broadcast %cst_257 : f32 to vector<8x32xf32>
    %700 = arith.addf %698, %699 : vector<8x32xf32>
    %701 = vector.extract_strided_slice %690 {offsets = [0, 64], sizes = [8, 32], strides = [1, 1]} : vector<8x128xf32> to vector<8x32xf32>
    %702 = vector.extract_strided_slice %690 {offsets = [0, 96], sizes = [8, 32], strides = [1, 1]} : vector<8x128xf32> to vector<8x32xf32>
    %cst_258 = arith.constant 5.000000e-01 : f32
    %703 = vector.broadcast %cst_258 : f32 to vector<8x32xf32>
    %704 = arith.mulf %703, %702 : vector<8x32xf32>
    %cst_259 = arith.constant 5.000000e-01 : f32
    %705 = vector.broadcast %cst_259 : f32 to vector<8x32xf32>
    %706 = arith.addf %704, %705 : vector<8x32xf32>
    %707 = arith.mulf %700, %657 : vector<8x32xf32>
    %708 = arith.mulf %695, %701 : vector<8x32xf32>
    %709 = arith.addf %707, %708 : vector<8x32xf32>
    %710 = math.tanh %709 : vector<8x32xf32>
    %711 = arith.mulf %706, %710 : vector<8x32xf32>
    %712 = arith.select %56, %711, %656 : vector<8x32xi1>, vector<8x32xf32>
    %c88_260 = arith.constant 88 : index
    %c0_261 = arith.constant 0 : index
    %713 = vector.load %arg15[%c88_260, %c0_261] : memref<96x64xf32, #tpu.memory_space<vmem>>, vector<8x32xf32>
    tpu.vector_store %arg15[%c88_260, %c0_261], %712 {strides = array<i32>} : memref<96x64xf32, #tpu.memory_space<vmem>>, vector<8x32xf32>,
    %c0_262 = arith.constant 0 : index
    %c128_263 = arith.constant 128 : index
    %714 = vector.load %arg14[%c0_262, %c128_263] : memref<96x256xf32, #tpu.memory_space<vmem>>, vector<8x128xf32>
    %cst_264 = arith.constant dense<0.000000e+00> : vector<8x128xf32>
    %715 = tpu.matmul %684, %66, %cst_264 {dimension_numbers = #tpu.dot_dimension_numbers<[1], [0], [0], [1], [0, 0, 1, 1], [], []>} : vector<8x32xf32>, vector<32x128xf32>, vector<8x128xf32> -> vector<8x128xf32>
    %716 = arith.addf %714, %715 : vector<8x128xf32>
    %717 = math.tanh %716 : vector<8x128xf32>
    %718 = vector.extract_strided_slice %717 {offsets = [0, 0], sizes = [8, 32], strides = [1, 1]} : vector<8x128xf32> to vector<8x32xf32>
    %cst_265 = arith.constant 5.000000e-01 : f32
    %719 = vector.broadcast %cst_265 : f32 to vector<8x32xf32>
    %720 = arith.mulf %719, %718 : vector<8x32xf32>
    %cst_266 = arith.constant 5.000000e-01 : f32
    %721 = vector.broadcast %cst_266 : f32 to vector<8x32xf32>
    %722 = arith.addf %720, %721 : vector<8x32xf32>
    %723 = vector.extract_strided_slice %717 {offsets = [0, 32], sizes = [8, 32], strides = [1, 1]} : vector<8x128xf32> to vector<8x32xf32>
    %cst_267 = arith.constant 5.000000e-01 : f32
    %724 = vector.broadcast %cst_267 : f32 to vector<8x32xf32>
    %725 = arith.mulf %724, %723 : vector<8x32xf32>
    %cst_268 = arith.constant 5.000000e-01 : f32
    %726 = vector.broadcast %cst_268 : f32 to vector<8x32xf32>
    %727 = arith.addf %725, %726 : vector<8x32xf32>
    %728 = vector.extract_strided_slice %717 {offsets = [0, 64], sizes = [8, 32], strides = [1, 1]} : vector<8x128xf32> to vector<8x32xf32>
    %729 = vector.extract_strided_slice %717 {offsets = [0, 96], sizes = [8, 32], strides = [1, 1]} : vector<8x128xf32> to vector<8x32xf32>
    %cst_269 = arith.constant 5.000000e-01 : f32
    %730 = vector.broadcast %cst_269 : f32 to vector<8x32xf32>
    %731 = arith.mulf %730, %729 : vector<8x32xf32>
    %cst_270 = arith.constant 5.000000e-01 : f32
    %732 = vector.broadcast %cst_270 : f32 to vector<8x32xf32>
    %733 = arith.addf %731, %732 : vector<8x32xf32>
    %734 = arith.mulf %727, %685 : vector<8x32xf32>
    %735 = arith.mulf %722, %728 : vector<8x32xf32>
    %736 = arith.addf %734, %735 : vector<8x32xf32>
    %737 = math.tanh %736 : vector<8x32xf32>
    %738 = arith.mulf %733, %737 : vector<8x32xf32>
    %739 = arith.select %12, %738, %684 : vector<8x32xi1>, vector<8x32xf32>
    %c0_271 = arith.constant 0 : index
    %c32_272 = arith.constant 32 : index
    %740 = vector.load %arg15[%c0_271, %c32_272] : memref<96x64xf32, #tpu.memory_space<vmem>>, vector<8x32xf32>
    tpu.vector_store %arg15[%c0_271, %c32_272], %739 {strides = array<i32>} : memref<96x64xf32, #tpu.memory_space<vmem>>, vector<8x32xf32>,
    %c0_273 = arith.constant 0 : index
    %c0_274 = arith.constant 0 : index
    %741 = vector.load %arg15[%c0_273, %c0_274] : memref<96x64xf32, #tpu.memory_space<vmem>>, vector<96x64xf32>
    %c0_275 = arith.constant 0 : index
    %c0_276 = arith.constant 0 : index
    %742 = vector.load %arg6[%c0_275, %c0_276] : memref<64x256xf32, #tpu.memory_space<vmem>>, vector<64x256xf32>
    %cst_277 = arith.constant dense<0.000000e+00> : vector<96x256xf32>
    %743 = tpu.matmul %741, %742, %cst_277 {dimension_numbers = #tpu.dot_dimension_numbers<[1], [0], [0], [1], [0, 0, 1, 1], [], []>} : vector<96x64xf32>, vector<64x256xf32>, vector<96x256xf32> -> vector<96x256xf32>
    %c0_278 = arith.constant 0 : index
    %c0_279 = arith.constant 0 : index
    %744 = vector.load %arg8[%c0_278, %c0_279] : memref<1x256xf32, #tpu.memory_space<vmem>>, vector<1x256xf32>
    %745 = vector.broadcast %744 : vector<1x256xf32> to vector<96x256xf32>
    %746 = arith.addf %743, %745 : vector<96x256xf32>
    %c0_280 = arith.constant 0 : index
    %c0_281 = arith.constant 0 : index
    %747 = vector.load %arg14[%c0_280, %c0_281] : memref<96x256xf32, #tpu.memory_space<vmem>>, vector<96x256xf32>
    tpu.vector_store %arg14[%c0_280, %c0_281], %746 {strides = array<i32>} : memref<96x256xf32, #tpu.memory_space<vmem>>, vector<96x256xf32>,
    %c0_282 = arith.constant 0 : index
    %c0_283 = arith.constant 0 : index
    %c0_284 = arith.constant 0 : index
    %748 = vector.load %arg7[%c0_282, %c0_283, %c0_284] : memref<2x32x128xf32, #tpu.memory_space<vmem>>, vector<1x32x128xf32>
    %749 = vector.shape_cast %748 : vector<1x32x128xf32> to vector<32x128xf32>
    %c1_285 = arith.constant 1 : index
    %c0_286 = arith.constant 0 : index
    %c0_287 = arith.constant 0 : index
    %750 = vector.load %arg7[%c1_285, %c0_286, %c0_287] : memref<2x32x128xf32, #tpu.memory_space<vmem>>, vector<1x32x128xf32>
    %751 = vector.shape_cast %750 : vector<1x32x128xf32> to vector<32x128xf32>
    %cst_288 = arith.constant 0.000000e+00 : f32
    %752 = vector.broadcast %cst_288 : f32 to vector<8x32xf32>
    %cst_289 = arith.constant 0.000000e+00 : f32
    %753 = vector.broadcast %cst_289 : f32 to vector<8x32xf32>
    %cst_290 = arith.constant 0.000000e+00 : f32
    %754 = vector.broadcast %cst_290 : f32 to vector<8x32xf32>
    %cst_291 = arith.constant 0.000000e+00 : f32
    %755 = vector.broadcast %cst_291 : f32 to vector<8x32xf32>
    %c0_292 = arith.constant 0 : index
    %c0_293 = arith.constant 0 : index
    %756 = vector.load %arg14[%c0_292, %c0_293] : memref<96x256xf32, #tpu.memory_space<vmem>>, vector<8x128xf32>
    %cst_294 = arith.constant dense<0.000000e+00> : vector<8x128xf32>
    %757 = tpu.matmul %752, %749, %cst_294 {dimension_numbers = #tpu.dot_dimension_numbers<[1], [0], [0], [1], [0, 0, 1, 1], [], []>} : vector<8x32xf32>, vector<32x128xf32>, vector<8x128xf32> -> vector<8x128xf32>
    %758 = arith.addf %756, %757 : vector<8x128xf32>
    %759 = math.tanh %758 : vector<8x128xf32>
    %760 = vector.extract_strided_slice %759 {offsets = [0, 0], sizes = [8, 32], strides = [1, 1]} : vector<8x128xf32> to vector<8x32xf32>
    %cst_295 = arith.constant 5.000000e-01 : f32
    %761 = vector.broadcast %cst_295 : f32 to vector<8x32xf32>
    %762 = arith.mulf %761, %760 : vector<8x32xf32>
    %cst_296 = arith.constant 5.000000e-01 : f32
    %763 = vector.broadcast %cst_296 : f32 to vector<8x32xf32>
    %764 = arith.addf %762, %763 : vector<8x32xf32>
    %765 = vector.extract_strided_slice %759 {offsets = [0, 32], sizes = [8, 32], strides = [1, 1]} : vector<8x128xf32> to vector<8x32xf32>
    %cst_297 = arith.constant 5.000000e-01 : f32
    %766 = vector.broadcast %cst_297 : f32 to vector<8x32xf32>
    %767 = arith.mulf %766, %765 : vector<8x32xf32>
    %cst_298 = arith.constant 5.000000e-01 : f32
    %768 = vector.broadcast %cst_298 : f32 to vector<8x32xf32>
    %769 = arith.addf %767, %768 : vector<8x32xf32>
    %770 = vector.extract_strided_slice %759 {offsets = [0, 64], sizes = [8, 32], strides = [1, 1]} : vector<8x128xf32> to vector<8x32xf32>
    %771 = vector.extract_strided_slice %759 {offsets = [0, 96], sizes = [8, 32], strides = [1, 1]} : vector<8x128xf32> to vector<8x32xf32>
    %cst_299 = arith.constant 5.000000e-01 : f32
    %772 = vector.broadcast %cst_299 : f32 to vector<8x32xf32>
    %773 = arith.mulf %772, %771 : vector<8x32xf32>
    %cst_300 = arith.constant 5.000000e-01 : f32
    %774 = vector.broadcast %cst_300 : f32 to vector<8x32xf32>
    %775 = arith.addf %773, %774 : vector<8x32xf32>
    %776 = arith.mulf %769, %753 : vector<8x32xf32>
    %777 = arith.mulf %764, %770 : vector<8x32xf32>
    %778 = arith.addf %776, %777 : vector<8x32xf32>
    %779 = math.tanh %778 : vector<8x32xf32>
    %780 = arith.mulf %775, %779 : vector<8x32xf32>
    %781 = arith.select %12, %780, %752 : vector<8x32xi1>, vector<8x32xf32>
    %782 = arith.select %12, %778, %753 : vector<8x32xi1>, vector<8x32xf32>
    %c0_301 = arith.constant 0 : index
    %c0_302 = arith.constant 0 : index
    %783 = vector.load %arg15[%c0_301, %c0_302] : memref<96x64xf32, #tpu.memory_space<vmem>>, vector<8x32xf32>
    tpu.vector_store %arg15[%c0_301, %c0_302], %781 {strides = array<i32>} : memref<96x64xf32, #tpu.memory_space<vmem>>, vector<8x32xf32>,
    %c88_303 = arith.constant 88 : index
    %c128_304 = arith.constant 128 : index
    %784 = vector.load %arg14[%c88_303, %c128_304] : memref<96x256xf32, #tpu.memory_space<vmem>>, vector<8x128xf32>
    %cst_305 = arith.constant dense<0.000000e+00> : vector<8x128xf32>
    %785 = tpu.matmul %754, %751, %cst_305 {dimension_numbers = #tpu.dot_dimension_numbers<[1], [0], [0], [1], [0, 0, 1, 1], [], []>} : vector<8x32xf32>, vector<32x128xf32>, vector<8x128xf32> -> vector<8x128xf32>
    %786 = arith.addf %784, %785 : vector<8x128xf32>
    %787 = math.tanh %786 : vector<8x128xf32>
    %788 = vector.extract_strided_slice %787 {offsets = [0, 0], sizes = [8, 32], strides = [1, 1]} : vector<8x128xf32> to vector<8x32xf32>
    %cst_306 = arith.constant 5.000000e-01 : f32
    %789 = vector.broadcast %cst_306 : f32 to vector<8x32xf32>
    %790 = arith.mulf %789, %788 : vector<8x32xf32>
    %cst_307 = arith.constant 5.000000e-01 : f32
    %791 = vector.broadcast %cst_307 : f32 to vector<8x32xf32>
    %792 = arith.addf %790, %791 : vector<8x32xf32>
    %793 = vector.extract_strided_slice %787 {offsets = [0, 32], sizes = [8, 32], strides = [1, 1]} : vector<8x128xf32> to vector<8x32xf32>
    %cst_308 = arith.constant 5.000000e-01 : f32
    %794 = vector.broadcast %cst_308 : f32 to vector<8x32xf32>
    %795 = arith.mulf %794, %793 : vector<8x32xf32>
    %cst_309 = arith.constant 5.000000e-01 : f32
    %796 = vector.broadcast %cst_309 : f32 to vector<8x32xf32>
    %797 = arith.addf %795, %796 : vector<8x32xf32>
    %798 = vector.extract_strided_slice %787 {offsets = [0, 64], sizes = [8, 32], strides = [1, 1]} : vector<8x128xf32> to vector<8x32xf32>
    %799 = vector.extract_strided_slice %787 {offsets = [0, 96], sizes = [8, 32], strides = [1, 1]} : vector<8x128xf32> to vector<8x32xf32>
    %cst_310 = arith.constant 5.000000e-01 : f32
    %800 = vector.broadcast %cst_310 : f32 to vector<8x32xf32>
    %801 = arith.mulf %800, %799 : vector<8x32xf32>
    %cst_311 = arith.constant 5.000000e-01 : f32
    %802 = vector.broadcast %cst_311 : f32 to vector<8x32xf32>
    %803 = arith.addf %801, %802 : vector<8x32xf32>
    %804 = arith.mulf %797, %755 : vector<8x32xf32>
    %805 = arith.mulf %792, %798 : vector<8x32xf32>
    %806 = arith.addf %804, %805 : vector<8x32xf32>
    %807 = math.tanh %806 : vector<8x32xf32>
    %808 = arith.mulf %803, %807 : vector<8x32xf32>
    %809 = arith.select %56, %808, %754 : vector<8x32xi1>, vector<8x32xf32>
    %810 = arith.select %56, %806, %755 : vector<8x32xi1>, vector<8x32xf32>
    %c88_312 = arith.constant 88 : index
    %c32_313 = arith.constant 32 : index
    %811 = vector.load %arg15[%c88_312, %c32_313] : memref<96x64xf32, #tpu.memory_space<vmem>>, vector<8x32xf32>
    tpu.vector_store %arg15[%c88_312, %c32_313], %809 {strides = array<i32>} : memref<96x64xf32, #tpu.memory_space<vmem>>, vector<8x32xf32>,
    %c8_314 = arith.constant 8 : index
    %c0_315 = arith.constant 0 : index
    %812 = vector.load %arg14[%c8_314, %c0_315] : memref<96x256xf32, #tpu.memory_space<vmem>>, vector<8x128xf32>
    %cst_316 = arith.constant dense<0.000000e+00> : vector<8x128xf32>
    %813 = tpu.matmul %781, %749, %cst_316 {dimension_numbers = #tpu.dot_dimension_numbers<[1], [0], [0], [1], [0, 0, 1, 1], [], []>} : vector<8x32xf32>, vector<32x128xf32>, vector<8x128xf32> -> vector<8x128xf32>
    %814 = arith.addf %812, %813 : vector<8x128xf32>
    %815 = math.tanh %814 : vector<8x128xf32>
    %816 = vector.extract_strided_slice %815 {offsets = [0, 0], sizes = [8, 32], strides = [1, 1]} : vector<8x128xf32> to vector<8x32xf32>
    %cst_317 = arith.constant 5.000000e-01 : f32
    %817 = vector.broadcast %cst_317 : f32 to vector<8x32xf32>
    %818 = arith.mulf %817, %816 : vector<8x32xf32>
    %cst_318 = arith.constant 5.000000e-01 : f32
    %819 = vector.broadcast %cst_318 : f32 to vector<8x32xf32>
    %820 = arith.addf %818, %819 : vector<8x32xf32>
    %821 = vector.extract_strided_slice %815 {offsets = [0, 32], sizes = [8, 32], strides = [1, 1]} : vector<8x128xf32> to vector<8x32xf32>
    %cst_319 = arith.constant 5.000000e-01 : f32
    %822 = vector.broadcast %cst_319 : f32 to vector<8x32xf32>
    %823 = arith.mulf %822, %821 : vector<8x32xf32>
    %cst_320 = arith.constant 5.000000e-01 : f32
    %824 = vector.broadcast %cst_320 : f32 to vector<8x32xf32>
    %825 = arith.addf %823, %824 : vector<8x32xf32>
    %826 = vector.extract_strided_slice %815 {offsets = [0, 64], sizes = [8, 32], strides = [1, 1]} : vector<8x128xf32> to vector<8x32xf32>
    %827 = vector.extract_strided_slice %815 {offsets = [0, 96], sizes = [8, 32], strides = [1, 1]} : vector<8x128xf32> to vector<8x32xf32>
    %cst_321 = arith.constant 5.000000e-01 : f32
    %828 = vector.broadcast %cst_321 : f32 to vector<8x32xf32>
    %829 = arith.mulf %828, %827 : vector<8x32xf32>
    %cst_322 = arith.constant 5.000000e-01 : f32
    %830 = vector.broadcast %cst_322 : f32 to vector<8x32xf32>
    %831 = arith.addf %829, %830 : vector<8x32xf32>
    %832 = arith.mulf %825, %782 : vector<8x32xf32>
    %833 = arith.mulf %820, %826 : vector<8x32xf32>
    %834 = arith.addf %832, %833 : vector<8x32xf32>
    %835 = math.tanh %834 : vector<8x32xf32>
    %836 = arith.mulf %831, %835 : vector<8x32xf32>
    %837 = arith.select %16, %836, %781 : vector<8x32xi1>, vector<8x32xf32>
    %838 = arith.select %16, %834, %782 : vector<8x32xi1>, vector<8x32xf32>
    %c8_323 = arith.constant 8 : index
    %c0_324 = arith.constant 0 : index
    %839 = vector.load %arg15[%c8_323, %c0_324] : memref<96x64xf32, #tpu.memory_space<vmem>>, vector<8x32xf32>
    tpu.vector_store %arg15[%c8_323, %c0_324], %837 {strides = array<i32>} : memref<96x64xf32, #tpu.memory_space<vmem>>, vector<8x32xf32>,
    %c80_325 = arith.constant 80 : index
    %c128_326 = arith.constant 128 : index
    %840 = vector.load %arg14[%c80_325, %c128_326] : memref<96x256xf32, #tpu.memory_space<vmem>>, vector<8x128xf32>
    %cst_327 = arith.constant dense<0.000000e+00> : vector<8x128xf32>
    %841 = tpu.matmul %809, %751, %cst_327 {dimension_numbers = #tpu.dot_dimension_numbers<[1], [0], [0], [1], [0, 0, 1, 1], [], []>} : vector<8x32xf32>, vector<32x128xf32>, vector<8x128xf32> -> vector<8x128xf32>
    %842 = arith.addf %840, %841 : vector<8x128xf32>
    %843 = math.tanh %842 : vector<8x128xf32>
    %844 = vector.extract_strided_slice %843 {offsets = [0, 0], sizes = [8, 32], strides = [1, 1]} : vector<8x128xf32> to vector<8x32xf32>
    %cst_328 = arith.constant 5.000000e-01 : f32
    %845 = vector.broadcast %cst_328 : f32 to vector<8x32xf32>
    %846 = arith.mulf %845, %844 : vector<8x32xf32>
    %cst_329 = arith.constant 5.000000e-01 : f32
    %847 = vector.broadcast %cst_329 : f32 to vector<8x32xf32>
    %848 = arith.addf %846, %847 : vector<8x32xf32>
    %849 = vector.extract_strided_slice %843 {offsets = [0, 32], sizes = [8, 32], strides = [1, 1]} : vector<8x128xf32> to vector<8x32xf32>
    %cst_330 = arith.constant 5.000000e-01 : f32
    %850 = vector.broadcast %cst_330 : f32 to vector<8x32xf32>
    %851 = arith.mulf %850, %849 : vector<8x32xf32>
    %cst_331 = arith.constant 5.000000e-01 : f32
    %852 = vector.broadcast %cst_331 : f32 to vector<8x32xf32>
    %853 = arith.addf %851, %852 : vector<8x32xf32>
    %854 = vector.extract_strided_slice %843 {offsets = [0, 64], sizes = [8, 32], strides = [1, 1]} : vector<8x128xf32> to vector<8x32xf32>
    %855 = vector.extract_strided_slice %843 {offsets = [0, 96], sizes = [8, 32], strides = [1, 1]} : vector<8x128xf32> to vector<8x32xf32>
    %cst_332 = arith.constant 5.000000e-01 : f32
    %856 = vector.broadcast %cst_332 : f32 to vector<8x32xf32>
    %857 = arith.mulf %856, %855 : vector<8x32xf32>
    %cst_333 = arith.constant 5.000000e-01 : f32
    %858 = vector.broadcast %cst_333 : f32 to vector<8x32xf32>
    %859 = arith.addf %857, %858 : vector<8x32xf32>
    %860 = arith.mulf %853, %810 : vector<8x32xf32>
    %861 = arith.mulf %848, %854 : vector<8x32xf32>
    %862 = arith.addf %860, %861 : vector<8x32xf32>
    %863 = math.tanh %862 : vector<8x32xf32>
    %864 = arith.mulf %859, %863 : vector<8x32xf32>
    %865 = arith.select %52, %864, %809 : vector<8x32xi1>, vector<8x32xf32>
    %866 = arith.select %52, %862, %810 : vector<8x32xi1>, vector<8x32xf32>
    %c80_334 = arith.constant 80 : index
    %c32_335 = arith.constant 32 : index
    %867 = vector.load %arg15[%c80_334, %c32_335] : memref<96x64xf32, #tpu.memory_space<vmem>>, vector<8x32xf32>
    tpu.vector_store %arg15[%c80_334, %c32_335], %865 {strides = array<i32>} : memref<96x64xf32, #tpu.memory_space<vmem>>, vector<8x32xf32>,
    %c16_336 = arith.constant 16 : index
    %c0_337 = arith.constant 0 : index
    %868 = vector.load %arg14[%c16_336, %c0_337] : memref<96x256xf32, #tpu.memory_space<vmem>>, vector<8x128xf32>
    %cst_338 = arith.constant dense<0.000000e+00> : vector<8x128xf32>
    %869 = tpu.matmul %837, %749, %cst_338 {dimension_numbers = #tpu.dot_dimension_numbers<[1], [0], [0], [1], [0, 0, 1, 1], [], []>} : vector<8x32xf32>, vector<32x128xf32>, vector<8x128xf32> -> vector<8x128xf32>
    %870 = arith.addf %868, %869 : vector<8x128xf32>
    %871 = math.tanh %870 : vector<8x128xf32>
    %872 = vector.extract_strided_slice %871 {offsets = [0, 0], sizes = [8, 32], strides = [1, 1]} : vector<8x128xf32> to vector<8x32xf32>
    %cst_339 = arith.constant 5.000000e-01 : f32
    %873 = vector.broadcast %cst_339 : f32 to vector<8x32xf32>
    %874 = arith.mulf %873, %872 : vector<8x32xf32>
    %cst_340 = arith.constant 5.000000e-01 : f32
    %875 = vector.broadcast %cst_340 : f32 to vector<8x32xf32>
    %876 = arith.addf %874, %875 : vector<8x32xf32>
    %877 = vector.extract_strided_slice %871 {offsets = [0, 32], sizes = [8, 32], strides = [1, 1]} : vector<8x128xf32> to vector<8x32xf32>
    %cst_341 = arith.constant 5.000000e-01 : f32
    %878 = vector.broadcast %cst_341 : f32 to vector<8x32xf32>
    %879 = arith.mulf %878, %877 : vector<8x32xf32>
    %cst_342 = arith.constant 5.000000e-01 : f32
    %880 = vector.broadcast %cst_342 : f32 to vector<8x32xf32>
    %881 = arith.addf %879, %880 : vector<8x32xf32>
    %882 = vector.extract_strided_slice %871 {offsets = [0, 64], sizes = [8, 32], strides = [1, 1]} : vector<8x128xf32> to vector<8x32xf32>
    %883 = vector.extract_strided_slice %871 {offsets = [0, 96], sizes = [8, 32], strides = [1, 1]} : vector<8x128xf32> to vector<8x32xf32>
    %cst_343 = arith.constant 5.000000e-01 : f32
    %884 = vector.broadcast %cst_343 : f32 to vector<8x32xf32>
    %885 = arith.mulf %884, %883 : vector<8x32xf32>
    %cst_344 = arith.constant 5.000000e-01 : f32
    %886 = vector.broadcast %cst_344 : f32 to vector<8x32xf32>
    %887 = arith.addf %885, %886 : vector<8x32xf32>
    %888 = arith.mulf %881, %838 : vector<8x32xf32>
    %889 = arith.mulf %876, %882 : vector<8x32xf32>
    %890 = arith.addf %888, %889 : vector<8x32xf32>
    %891 = math.tanh %890 : vector<8x32xf32>
    %892 = arith.mulf %887, %891 : vector<8x32xf32>
    %893 = arith.select %20, %892, %837 : vector<8x32xi1>, vector<8x32xf32>
    %894 = arith.select %20, %890, %838 : vector<8x32xi1>, vector<8x32xf32>
    %c16_345 = arith.constant 16 : index
    %c0_346 = arith.constant 0 : index
    %895 = vector.load %arg15[%c16_345, %c0_346] : memref<96x64xf32, #tpu.memory_space<vmem>>, vector<8x32xf32>
    tpu.vector_store %arg15[%c16_345, %c0_346], %893 {strides = array<i32>} : memref<96x64xf32, #tpu.memory_space<vmem>>, vector<8x32xf32>,
    %c72_347 = arith.constant 72 : index
    %c128_348 = arith.constant 128 : index
    %896 = vector.load %arg14[%c72_347, %c128_348] : memref<96x256xf32, #tpu.memory_space<vmem>>, vector<8x128xf32>
    %cst_349 = arith.constant dense<0.000000e+00> : vector<8x128xf32>
    %897 = tpu.matmul %865, %751, %cst_349 {dimension_numbers = #tpu.dot_dimension_numbers<[1], [0], [0], [1], [0, 0, 1, 1], [], []>} : vector<8x32xf32>, vector<32x128xf32>, vector<8x128xf32> -> vector<8x128xf32>
    %898 = arith.addf %896, %897 : vector<8x128xf32>
    %899 = math.tanh %898 : vector<8x128xf32>
    %900 = vector.extract_strided_slice %899 {offsets = [0, 0], sizes = [8, 32], strides = [1, 1]} : vector<8x128xf32> to vector<8x32xf32>
    %cst_350 = arith.constant 5.000000e-01 : f32
    %901 = vector.broadcast %cst_350 : f32 to vector<8x32xf32>
    %902 = arith.mulf %901, %900 : vector<8x32xf32>
    %cst_351 = arith.constant 5.000000e-01 : f32
    %903 = vector.broadcast %cst_351 : f32 to vector<8x32xf32>
    %904 = arith.addf %902, %903 : vector<8x32xf32>
    %905 = vector.extract_strided_slice %899 {offsets = [0, 32], sizes = [8, 32], strides = [1, 1]} : vector<8x128xf32> to vector<8x32xf32>
    %cst_352 = arith.constant 5.000000e-01 : f32
    %906 = vector.broadcast %cst_352 : f32 to vector<8x32xf32>
    %907 = arith.mulf %906, %905 : vector<8x32xf32>
    %cst_353 = arith.constant 5.000000e-01 : f32
    %908 = vector.broadcast %cst_353 : f32 to vector<8x32xf32>
    %909 = arith.addf %907, %908 : vector<8x32xf32>
    %910 = vector.extract_strided_slice %899 {offsets = [0, 64], sizes = [8, 32], strides = [1, 1]} : vector<8x128xf32> to vector<8x32xf32>
    %911 = vector.extract_strided_slice %899 {offsets = [0, 96], sizes = [8, 32], strides = [1, 1]} : vector<8x128xf32> to vector<8x32xf32>
    %cst_354 = arith.constant 5.000000e-01 : f32
    %912 = vector.broadcast %cst_354 : f32 to vector<8x32xf32>
    %913 = arith.mulf %912, %911 : vector<8x32xf32>
    %cst_355 = arith.constant 5.000000e-01 : f32
    %914 = vector.broadcast %cst_355 : f32 to vector<8x32xf32>
    %915 = arith.addf %913, %914 : vector<8x32xf32>
    %916 = arith.mulf %909, %866 : vector<8x32xf32>
    %917 = arith.mulf %904, %910 : vector<8x32xf32>
    %918 = arith.addf %916, %917 : vector<8x32xf32>
    %919 = math.tanh %918 : vector<8x32xf32>
    %920 = arith.mulf %915, %919 : vector<8x32xf32>
    %921 = arith.select %48, %920, %865 : vector<8x32xi1>, vector<8x32xf32>
    %922 = arith.select %48, %918, %866 : vector<8x32xi1>, vector<8x32xf32>
    %c72_356 = arith.constant 72 : index
    %c32_357 = arith.constant 32 : index
    %923 = vector.load %arg15[%c72_356, %c32_357] : memref<96x64xf32, #tpu.memory_space<vmem>>, vector<8x32xf32>
    tpu.vector_store %arg15[%c72_356, %c32_357], %921 {strides = array<i32>} : memref<96x64xf32, #tpu.memory_space<vmem>>, vector<8x32xf32>,
    %c24_358 = arith.constant 24 : index
    %c0_359 = arith.constant 0 : index
    %924 = vector.load %arg14[%c24_358, %c0_359] : memref<96x256xf32, #tpu.memory_space<vmem>>, vector<8x128xf32>
    %cst_360 = arith.constant dense<0.000000e+00> : vector<8x128xf32>
    %925 = tpu.matmul %893, %749, %cst_360 {dimension_numbers = #tpu.dot_dimension_numbers<[1], [0], [0], [1], [0, 0, 1, 1], [], []>} : vector<8x32xf32>, vector<32x128xf32>, vector<8x128xf32> -> vector<8x128xf32>
    %926 = arith.addf %924, %925 : vector<8x128xf32>
    %927 = math.tanh %926 : vector<8x128xf32>
    %928 = vector.extract_strided_slice %927 {offsets = [0, 0], sizes = [8, 32], strides = [1, 1]} : vector<8x128xf32> to vector<8x32xf32>
    %cst_361 = arith.constant 5.000000e-01 : f32
    %929 = vector.broadcast %cst_361 : f32 to vector<8x32xf32>
    %930 = arith.mulf %929, %928 : vector<8x32xf32>
    %cst_362 = arith.constant 5.000000e-01 : f32
    %931 = vector.broadcast %cst_362 : f32 to vector<8x32xf32>
    %932 = arith.addf %930, %931 : vector<8x32xf32>
    %933 = vector.extract_strided_slice %927 {offsets = [0, 32], sizes = [8, 32], strides = [1, 1]} : vector<8x128xf32> to vector<8x32xf32>
    %cst_363 = arith.constant 5.000000e-01 : f32
    %934 = vector.broadcast %cst_363 : f32 to vector<8x32xf32>
    %935 = arith.mulf %934, %933 : vector<8x32xf32>
    %cst_364 = arith.constant 5.000000e-01 : f32
    %936 = vector.broadcast %cst_364 : f32 to vector<8x32xf32>
    %937 = arith.addf %935, %936 : vector<8x32xf32>
    %938 = vector.extract_strided_slice %927 {offsets = [0, 64], sizes = [8, 32], strides = [1, 1]} : vector<8x128xf32> to vector<8x32xf32>
    %939 = vector.extract_strided_slice %927 {offsets = [0, 96], sizes = [8, 32], strides = [1, 1]} : vector<8x128xf32> to vector<8x32xf32>
    %cst_365 = arith.constant 5.000000e-01 : f32
    %940 = vector.broadcast %cst_365 : f32 to vector<8x32xf32>
    %941 = arith.mulf %940, %939 : vector<8x32xf32>
    %cst_366 = arith.constant 5.000000e-01 : f32
    %942 = vector.broadcast %cst_366 : f32 to vector<8x32xf32>
    %943 = arith.addf %941, %942 : vector<8x32xf32>
    %944 = arith.mulf %937, %894 : vector<8x32xf32>
    %945 = arith.mulf %932, %938 : vector<8x32xf32>
    %946 = arith.addf %944, %945 : vector<8x32xf32>
    %947 = math.tanh %946 : vector<8x32xf32>
    %948 = arith.mulf %943, %947 : vector<8x32xf32>
    %949 = arith.select %24, %948, %893 : vector<8x32xi1>, vector<8x32xf32>
    %950 = arith.select %24, %946, %894 : vector<8x32xi1>, vector<8x32xf32>
    %c24_367 = arith.constant 24 : index
    %c0_368 = arith.constant 0 : index
    %951 = vector.load %arg15[%c24_367, %c0_368] : memref<96x64xf32, #tpu.memory_space<vmem>>, vector<8x32xf32>
    tpu.vector_store %arg15[%c24_367, %c0_368], %949 {strides = array<i32>} : memref<96x64xf32, #tpu.memory_space<vmem>>, vector<8x32xf32>,
    %c64_369 = arith.constant 64 : index
    %c128_370 = arith.constant 128 : index
    %952 = vector.load %arg14[%c64_369, %c128_370] : memref<96x256xf32, #tpu.memory_space<vmem>>, vector<8x128xf32>
    %cst_371 = arith.constant dense<0.000000e+00> : vector<8x128xf32>
    %953 = tpu.matmul %921, %751, %cst_371 {dimension_numbers = #tpu.dot_dimension_numbers<[1], [0], [0], [1], [0, 0, 1, 1], [], []>} : vector<8x32xf32>, vector<32x128xf32>, vector<8x128xf32> -> vector<8x128xf32>
    %954 = arith.addf %952, %953 : vector<8x128xf32>
    %955 = math.tanh %954 : vector<8x128xf32>
    %956 = vector.extract_strided_slice %955 {offsets = [0, 0], sizes = [8, 32], strides = [1, 1]} : vector<8x128xf32> to vector<8x32xf32>
    %cst_372 = arith.constant 5.000000e-01 : f32
    %957 = vector.broadcast %cst_372 : f32 to vector<8x32xf32>
    %958 = arith.mulf %957, %956 : vector<8x32xf32>
    %cst_373 = arith.constant 5.000000e-01 : f32
    %959 = vector.broadcast %cst_373 : f32 to vector<8x32xf32>
    %960 = arith.addf %958, %959 : vector<8x32xf32>
    %961 = vector.extract_strided_slice %955 {offsets = [0, 32], sizes = [8, 32], strides = [1, 1]} : vector<8x128xf32> to vector<8x32xf32>
    %cst_374 = arith.constant 5.000000e-01 : f32
    %962 = vector.broadcast %cst_374 : f32 to vector<8x32xf32>
    %963 = arith.mulf %962, %961 : vector<8x32xf32>
    %cst_375 = arith.constant 5.000000e-01 : f32
    %964 = vector.broadcast %cst_375 : f32 to vector<8x32xf32>
    %965 = arith.addf %963, %964 : vector<8x32xf32>
    %966 = vector.extract_strided_slice %955 {offsets = [0, 64], sizes = [8, 32], strides = [1, 1]} : vector<8x128xf32> to vector<8x32xf32>
    %967 = vector.extract_strided_slice %955 {offsets = [0, 96], sizes = [8, 32], strides = [1, 1]} : vector<8x128xf32> to vector<8x32xf32>
    %cst_376 = arith.constant 5.000000e-01 : f32
    %968 = vector.broadcast %cst_376 : f32 to vector<8x32xf32>
    %969 = arith.mulf %968, %967 : vector<8x32xf32>
    %cst_377 = arith.constant 5.000000e-01 : f32
    %970 = vector.broadcast %cst_377 : f32 to vector<8x32xf32>
    %971 = arith.addf %969, %970 : vector<8x32xf32>
    %972 = arith.mulf %965, %922 : vector<8x32xf32>
    %973 = arith.mulf %960, %966 : vector<8x32xf32>
    %974 = arith.addf %972, %973 : vector<8x32xf32>
    %975 = math.tanh %974 : vector<8x32xf32>
    %976 = arith.mulf %971, %975 : vector<8x32xf32>
    %977 = arith.select %44, %976, %921 : vector<8x32xi1>, vector<8x32xf32>
    %978 = arith.select %44, %974, %922 : vector<8x32xi1>, vector<8x32xf32>
    %c64_378 = arith.constant 64 : index
    %c32_379 = arith.constant 32 : index
    %979 = vector.load %arg15[%c64_378, %c32_379] : memref<96x64xf32, #tpu.memory_space<vmem>>, vector<8x32xf32>
    tpu.vector_store %arg15[%c64_378, %c32_379], %977 {strides = array<i32>} : memref<96x64xf32, #tpu.memory_space<vmem>>, vector<8x32xf32>,
    %c32_380 = arith.constant 32 : index
    %c0_381 = arith.constant 0 : index
    %980 = vector.load %arg14[%c32_380, %c0_381] : memref<96x256xf32, #tpu.memory_space<vmem>>, vector<8x128xf32>
    %cst_382 = arith.constant dense<0.000000e+00> : vector<8x128xf32>
    %981 = tpu.matmul %949, %749, %cst_382 {dimension_numbers = #tpu.dot_dimension_numbers<[1], [0], [0], [1], [0, 0, 1, 1], [], []>} : vector<8x32xf32>, vector<32x128xf32>, vector<8x128xf32> -> vector<8x128xf32>
    %982 = arith.addf %980, %981 : vector<8x128xf32>
    %983 = math.tanh %982 : vector<8x128xf32>
    %984 = vector.extract_strided_slice %983 {offsets = [0, 0], sizes = [8, 32], strides = [1, 1]} : vector<8x128xf32> to vector<8x32xf32>
    %cst_383 = arith.constant 5.000000e-01 : f32
    %985 = vector.broadcast %cst_383 : f32 to vector<8x32xf32>
    %986 = arith.mulf %985, %984 : vector<8x32xf32>
    %cst_384 = arith.constant 5.000000e-01 : f32
    %987 = vector.broadcast %cst_384 : f32 to vector<8x32xf32>
    %988 = arith.addf %986, %987 : vector<8x32xf32>
    %989 = vector.extract_strided_slice %983 {offsets = [0, 32], sizes = [8, 32], strides = [1, 1]} : vector<8x128xf32> to vector<8x32xf32>
    %cst_385 = arith.constant 5.000000e-01 : f32
    %990 = vector.broadcast %cst_385 : f32 to vector<8x32xf32>
    %991 = arith.mulf %990, %989 : vector<8x32xf32>
    %cst_386 = arith.constant 5.000000e-01 : f32
    %992 = vector.broadcast %cst_386 : f32 to vector<8x32xf32>
    %993 = arith.addf %991, %992 : vector<8x32xf32>
    %994 = vector.extract_strided_slice %983 {offsets = [0, 64], sizes = [8, 32], strides = [1, 1]} : vector<8x128xf32> to vector<8x32xf32>
    %995 = vector.extract_strided_slice %983 {offsets = [0, 96], sizes = [8, 32], strides = [1, 1]} : vector<8x128xf32> to vector<8x32xf32>
    %cst_387 = arith.constant 5.000000e-01 : f32
    %996 = vector.broadcast %cst_387 : f32 to vector<8x32xf32>
    %997 = arith.mulf %996, %995 : vector<8x32xf32>
    %cst_388 = arith.constant 5.000000e-01 : f32
    %998 = vector.broadcast %cst_388 : f32 to vector<8x32xf32>
    %999 = arith.addf %997, %998 : vector<8x32xf32>
    %1000 = arith.mulf %993, %950 : vector<8x32xf32>
    %1001 = arith.mulf %988, %994 : vector<8x32xf32>
    %1002 = arith.addf %1000, %1001 : vector<8x32xf32>
    %1003 = math.tanh %1002 : vector<8x32xf32>
    %1004 = arith.mulf %999, %1003 : vector<8x32xf32>
    %1005 = arith.select %28, %1004, %949 : vector<8x32xi1>, vector<8x32xf32>
    %1006 = arith.select %28, %1002, %950 : vector<8x32xi1>, vector<8x32xf32>
    %c32_389 = arith.constant 32 : index
    %c0_390 = arith.constant 0 : index
    %1007 = vector.load %arg15[%c32_389, %c0_390] : memref<96x64xf32, #tpu.memory_space<vmem>>, vector<8x32xf32>
    tpu.vector_store %arg15[%c32_389, %c0_390], %1005 {strides = array<i32>} : memref<96x64xf32, #tpu.memory_space<vmem>>, vector<8x32xf32>,
    %c56_391 = arith.constant 56 : index
    %c128_392 = arith.constant 128 : index
    %1008 = vector.load %arg14[%c56_391, %c128_392] : memref<96x256xf32, #tpu.memory_space<vmem>>, vector<8x128xf32>
    %cst_393 = arith.constant dense<0.000000e+00> : vector<8x128xf32>
    %1009 = tpu.matmul %977, %751, %cst_393 {dimension_numbers = #tpu.dot_dimension_numbers<[1], [0], [0], [1], [0, 0, 1, 1], [], []>} : vector<8x32xf32>, vector<32x128xf32>, vector<8x128xf32> -> vector<8x128xf32>
    %1010 = arith.addf %1008, %1009 : vector<8x128xf32>
    %1011 = math.tanh %1010 : vector<8x128xf32>
    %1012 = vector.extract_strided_slice %1011 {offsets = [0, 0], sizes = [8, 32], strides = [1, 1]} : vector<8x128xf32> to vector<8x32xf32>
    %cst_394 = arith.constant 5.000000e-01 : f32
    %1013 = vector.broadcast %cst_394 : f32 to vector<8x32xf32>
    %1014 = arith.mulf %1013, %1012 : vector<8x32xf32>
    %cst_395 = arith.constant 5.000000e-01 : f32
    %1015 = vector.broadcast %cst_395 : f32 to vector<8x32xf32>
    %1016 = arith.addf %1014, %1015 : vector<8x32xf32>
    %1017 = vector.extract_strided_slice %1011 {offsets = [0, 32], sizes = [8, 32], strides = [1, 1]} : vector<8x128xf32> to vector<8x32xf32>
    %cst_396 = arith.constant 5.000000e-01 : f32
    %1018 = vector.broadcast %cst_396 : f32 to vector<8x32xf32>
    %1019 = arith.mulf %1018, %1017 : vector<8x32xf32>
    %cst_397 = arith.constant 5.000000e-01 : f32
    %1020 = vector.broadcast %cst_397 : f32 to vector<8x32xf32>
    %1021 = arith.addf %1019, %1020 : vector<8x32xf32>
    %1022 = vector.extract_strided_slice %1011 {offsets = [0, 64], sizes = [8, 32], strides = [1, 1]} : vector<8x128xf32> to vector<8x32xf32>
    %1023 = vector.extract_strided_slice %1011 {offsets = [0, 96], sizes = [8, 32], strides = [1, 1]} : vector<8x128xf32> to vector<8x32xf32>
    %cst_398 = arith.constant 5.000000e-01 : f32
    %1024 = vector.broadcast %cst_398 : f32 to vector<8x32xf32>
    %1025 = arith.mulf %1024, %1023 : vector<8x32xf32>
    %cst_399 = arith.constant 5.000000e-01 : f32
    %1026 = vector.broadcast %cst_399 : f32 to vector<8x32xf32>
    %1027 = arith.addf %1025, %1026 : vector<8x32xf32>
    %1028 = arith.mulf %1021, %978 : vector<8x32xf32>
    %1029 = arith.mulf %1016, %1022 : vector<8x32xf32>
    %1030 = arith.addf %1028, %1029 : vector<8x32xf32>
    %1031 = math.tanh %1030 : vector<8x32xf32>
    %1032 = arith.mulf %1027, %1031 : vector<8x32xf32>
    %1033 = arith.select %40, %1032, %977 : vector<8x32xi1>, vector<8x32xf32>
    %1034 = arith.select %40, %1030, %978 : vector<8x32xi1>, vector<8x32xf32>
    %c56_400 = arith.constant 56 : index
    %c32_401 = arith.constant 32 : index
    %1035 = vector.load %arg15[%c56_400, %c32_401] : memref<96x64xf32, #tpu.memory_space<vmem>>, vector<8x32xf32>
    tpu.vector_store %arg15[%c56_400, %c32_401], %1033 {strides = array<i32>} : memref<96x64xf32, #tpu.memory_space<vmem>>, vector<8x32xf32>,
    %c40_402 = arith.constant 40 : index
    %c0_403 = arith.constant 0 : index
    %1036 = vector.load %arg14[%c40_402, %c0_403] : memref<96x256xf32, #tpu.memory_space<vmem>>, vector<8x128xf32>
    %cst_404 = arith.constant dense<0.000000e+00> : vector<8x128xf32>
    %1037 = tpu.matmul %1005, %749, %cst_404 {dimension_numbers = #tpu.dot_dimension_numbers<[1], [0], [0], [1], [0, 0, 1, 1], [], []>} : vector<8x32xf32>, vector<32x128xf32>, vector<8x128xf32> -> vector<8x128xf32>
    %1038 = arith.addf %1036, %1037 : vector<8x128xf32>
    %1039 = math.tanh %1038 : vector<8x128xf32>
    %1040 = vector.extract_strided_slice %1039 {offsets = [0, 0], sizes = [8, 32], strides = [1, 1]} : vector<8x128xf32> to vector<8x32xf32>
    %cst_405 = arith.constant 5.000000e-01 : f32
    %1041 = vector.broadcast %cst_405 : f32 to vector<8x32xf32>
    %1042 = arith.mulf %1041, %1040 : vector<8x32xf32>
    %cst_406 = arith.constant 5.000000e-01 : f32
    %1043 = vector.broadcast %cst_406 : f32 to vector<8x32xf32>
    %1044 = arith.addf %1042, %1043 : vector<8x32xf32>
    %1045 = vector.extract_strided_slice %1039 {offsets = [0, 32], sizes = [8, 32], strides = [1, 1]} : vector<8x128xf32> to vector<8x32xf32>
    %cst_407 = arith.constant 5.000000e-01 : f32
    %1046 = vector.broadcast %cst_407 : f32 to vector<8x32xf32>
    %1047 = arith.mulf %1046, %1045 : vector<8x32xf32>
    %cst_408 = arith.constant 5.000000e-01 : f32
    %1048 = vector.broadcast %cst_408 : f32 to vector<8x32xf32>
    %1049 = arith.addf %1047, %1048 : vector<8x32xf32>
    %1050 = vector.extract_strided_slice %1039 {offsets = [0, 64], sizes = [8, 32], strides = [1, 1]} : vector<8x128xf32> to vector<8x32xf32>
    %1051 = vector.extract_strided_slice %1039 {offsets = [0, 96], sizes = [8, 32], strides = [1, 1]} : vector<8x128xf32> to vector<8x32xf32>
    %cst_409 = arith.constant 5.000000e-01 : f32
    %1052 = vector.broadcast %cst_409 : f32 to vector<8x32xf32>
    %1053 = arith.mulf %1052, %1051 : vector<8x32xf32>
    %cst_410 = arith.constant 5.000000e-01 : f32
    %1054 = vector.broadcast %cst_410 : f32 to vector<8x32xf32>
    %1055 = arith.addf %1053, %1054 : vector<8x32xf32>
    %1056 = arith.mulf %1049, %1006 : vector<8x32xf32>
    %1057 = arith.mulf %1044, %1050 : vector<8x32xf32>
    %1058 = arith.addf %1056, %1057 : vector<8x32xf32>
    %1059 = math.tanh %1058 : vector<8x32xf32>
    %1060 = arith.mulf %1055, %1059 : vector<8x32xf32>
    %1061 = arith.select %32, %1060, %1005 : vector<8x32xi1>, vector<8x32xf32>
    %1062 = arith.select %32, %1058, %1006 : vector<8x32xi1>, vector<8x32xf32>
    %c40_411 = arith.constant 40 : index
    %c0_412 = arith.constant 0 : index
    %1063 = vector.load %arg15[%c40_411, %c0_412] : memref<96x64xf32, #tpu.memory_space<vmem>>, vector<8x32xf32>
    tpu.vector_store %arg15[%c40_411, %c0_412], %1061 {strides = array<i32>} : memref<96x64xf32, #tpu.memory_space<vmem>>, vector<8x32xf32>,
    %c48_413 = arith.constant 48 : index
    %c128_414 = arith.constant 128 : index
    %1064 = vector.load %arg14[%c48_413, %c128_414] : memref<96x256xf32, #tpu.memory_space<vmem>>, vector<8x128xf32>
    %cst_415 = arith.constant dense<0.000000e+00> : vector<8x128xf32>
    %1065 = tpu.matmul %1033, %751, %cst_415 {dimension_numbers = #tpu.dot_dimension_numbers<[1], [0], [0], [1], [0, 0, 1, 1], [], []>} : vector<8x32xf32>, vector<32x128xf32>, vector<8x128xf32> -> vector<8x128xf32>
    %1066 = arith.addf %1064, %1065 : vector<8x128xf32>
    %1067 = math.tanh %1066 : vector<8x128xf32>
    %1068 = vector.extract_strided_slice %1067 {offsets = [0, 0], sizes = [8, 32], strides = [1, 1]} : vector<8x128xf32> to vector<8x32xf32>
    %cst_416 = arith.constant 5.000000e-01 : f32
    %1069 = vector.broadcast %cst_416 : f32 to vector<8x32xf32>
    %1070 = arith.mulf %1069, %1068 : vector<8x32xf32>
    %cst_417 = arith.constant 5.000000e-01 : f32
    %1071 = vector.broadcast %cst_417 : f32 to vector<8x32xf32>
    %1072 = arith.addf %1070, %1071 : vector<8x32xf32>
    %1073 = vector.extract_strided_slice %1067 {offsets = [0, 32], sizes = [8, 32], strides = [1, 1]} : vector<8x128xf32> to vector<8x32xf32>
    %cst_418 = arith.constant 5.000000e-01 : f32
    %1074 = vector.broadcast %cst_418 : f32 to vector<8x32xf32>
    %1075 = arith.mulf %1074, %1073 : vector<8x32xf32>
    %cst_419 = arith.constant 5.000000e-01 : f32
    %1076 = vector.broadcast %cst_419 : f32 to vector<8x32xf32>
    %1077 = arith.addf %1075, %1076 : vector<8x32xf32>
    %1078 = vector.extract_strided_slice %1067 {offsets = [0, 64], sizes = [8, 32], strides = [1, 1]} : vector<8x128xf32> to vector<8x32xf32>
    %1079 = vector.extract_strided_slice %1067 {offsets = [0, 96], sizes = [8, 32], strides = [1, 1]} : vector<8x128xf32> to vector<8x32xf32>
    %cst_420 = arith.constant 5.000000e-01 : f32
    %1080 = vector.broadcast %cst_420 : f32 to vector<8x32xf32>
    %1081 = arith.mulf %1080, %1079 : vector<8x32xf32>
    %cst_421 = arith.constant 5.000000e-01 : f32
    %1082 = vector.broadcast %cst_421 : f32 to vector<8x32xf32>
    %1083 = arith.addf %1081, %1082 : vector<8x32xf32>
    %1084 = arith.mulf %1077, %1034 : vector<8x32xf32>
    %1085 = arith.mulf %1072, %1078 : vector<8x32xf32>
    %1086 = arith.addf %1084, %1085 : vector<8x32xf32>
    %1087 = math.tanh %1086 : vector<8x32xf32>
    %1088 = arith.mulf %1083, %1087 : vector<8x32xf32>
    %1089 = arith.select %36, %1088, %1033 : vector<8x32xi1>, vector<8x32xf32>
    %1090 = arith.select %36, %1086, %1034 : vector<8x32xi1>, vector<8x32xf32>
    %c48_422 = arith.constant 48 : index
    %c32_423 = arith.constant 32 : index
    %1091 = vector.load %arg15[%c48_422, %c32_423] : memref<96x64xf32, #tpu.memory_space<vmem>>, vector<8x32xf32>
    tpu.vector_store %arg15[%c48_422, %c32_423], %1089 {strides = array<i32>} : memref<96x64xf32, #tpu.memory_space<vmem>>, vector<8x32xf32>,
    %c48_424 = arith.constant 48 : index
    %c0_425 = arith.constant 0 : index
    %1092 = vector.load %arg14[%c48_424, %c0_425] : memref<96x256xf32, #tpu.memory_space<vmem>>, vector<8x128xf32>
    %cst_426 = arith.constant dense<0.000000e+00> : vector<8x128xf32>
    %1093 = tpu.matmul %1061, %749, %cst_426 {dimension_numbers = #tpu.dot_dimension_numbers<[1], [0], [0], [1], [0, 0, 1, 1], [], []>} : vector<8x32xf32>, vector<32x128xf32>, vector<8x128xf32> -> vector<8x128xf32>
    %1094 = arith.addf %1092, %1093 : vector<8x128xf32>
    %1095 = math.tanh %1094 : vector<8x128xf32>
    %1096 = vector.extract_strided_slice %1095 {offsets = [0, 0], sizes = [8, 32], strides = [1, 1]} : vector<8x128xf32> to vector<8x32xf32>
    %cst_427 = arith.constant 5.000000e-01 : f32
    %1097 = vector.broadcast %cst_427 : f32 to vector<8x32xf32>
    %1098 = arith.mulf %1097, %1096 : vector<8x32xf32>
    %cst_428 = arith.constant 5.000000e-01 : f32
    %1099 = vector.broadcast %cst_428 : f32 to vector<8x32xf32>
    %1100 = arith.addf %1098, %1099 : vector<8x32xf32>
    %1101 = vector.extract_strided_slice %1095 {offsets = [0, 32], sizes = [8, 32], strides = [1, 1]} : vector<8x128xf32> to vector<8x32xf32>
    %cst_429 = arith.constant 5.000000e-01 : f32
    %1102 = vector.broadcast %cst_429 : f32 to vector<8x32xf32>
    %1103 = arith.mulf %1102, %1101 : vector<8x32xf32>
    %cst_430 = arith.constant 5.000000e-01 : f32
    %1104 = vector.broadcast %cst_430 : f32 to vector<8x32xf32>
    %1105 = arith.addf %1103, %1104 : vector<8x32xf32>
    %1106 = vector.extract_strided_slice %1095 {offsets = [0, 64], sizes = [8, 32], strides = [1, 1]} : vector<8x128xf32> to vector<8x32xf32>
    %1107 = vector.extract_strided_slice %1095 {offsets = [0, 96], sizes = [8, 32], strides = [1, 1]} : vector<8x128xf32> to vector<8x32xf32>
    %cst_431 = arith.constant 5.000000e-01 : f32
    %1108 = vector.broadcast %cst_431 : f32 to vector<8x32xf32>
    %1109 = arith.mulf %1108, %1107 : vector<8x32xf32>
    %cst_432 = arith.constant 5.000000e-01 : f32
    %1110 = vector.broadcast %cst_432 : f32 to vector<8x32xf32>
    %1111 = arith.addf %1109, %1110 : vector<8x32xf32>
    %1112 = arith.mulf %1105, %1062 : vector<8x32xf32>
    %1113 = arith.mulf %1100, %1106 : vector<8x32xf32>
    %1114 = arith.addf %1112, %1113 : vector<8x32xf32>
    %1115 = math.tanh %1114 : vector<8x32xf32>
    %1116 = arith.mulf %1111, %1115 : vector<8x32xf32>
    %1117 = arith.select %36, %1116, %1061 : vector<8x32xi1>, vector<8x32xf32>
    %1118 = arith.select %36, %1114, %1062 : vector<8x32xi1>, vector<8x32xf32>
    %c48_433 = arith.constant 48 : index
    %c0_434 = arith.constant 0 : index
    %1119 = vector.load %arg15[%c48_433, %c0_434] : memref<96x64xf32, #tpu.memory_space<vmem>>, vector<8x32xf32>
    tpu.vector_store %arg15[%c48_433, %c0_434], %1117 {strides = array<i32>} : memref<96x64xf32, #tpu.memory_space<vmem>>, vector<8x32xf32>,
    %c40_435 = arith.constant 40 : index
    %c128_436 = arith.constant 128 : index
    %1120 = vector.load %arg14[%c40_435, %c128_436] : memref<96x256xf32, #tpu.memory_space<vmem>>, vector<8x128xf32>
    %cst_437 = arith.constant dense<0.000000e+00> : vector<8x128xf32>
    %1121 = tpu.matmul %1089, %751, %cst_437 {dimension_numbers = #tpu.dot_dimension_numbers<[1], [0], [0], [1], [0, 0, 1, 1], [], []>} : vector<8x32xf32>, vector<32x128xf32>, vector<8x128xf32> -> vector<8x128xf32>
    %1122 = arith.addf %1120, %1121 : vector<8x128xf32>
    %1123 = math.tanh %1122 : vector<8x128xf32>
    %1124 = vector.extract_strided_slice %1123 {offsets = [0, 0], sizes = [8, 32], strides = [1, 1]} : vector<8x128xf32> to vector<8x32xf32>
    %cst_438 = arith.constant 5.000000e-01 : f32
    %1125 = vector.broadcast %cst_438 : f32 to vector<8x32xf32>
    %1126 = arith.mulf %1125, %1124 : vector<8x32xf32>
    %cst_439 = arith.constant 5.000000e-01 : f32
    %1127 = vector.broadcast %cst_439 : f32 to vector<8x32xf32>
    %1128 = arith.addf %1126, %1127 : vector<8x32xf32>
    %1129 = vector.extract_strided_slice %1123 {offsets = [0, 32], sizes = [8, 32], strides = [1, 1]} : vector<8x128xf32> to vector<8x32xf32>
    %cst_440 = arith.constant 5.000000e-01 : f32
    %1130 = vector.broadcast %cst_440 : f32 to vector<8x32xf32>
    %1131 = arith.mulf %1130, %1129 : vector<8x32xf32>
    %cst_441 = arith.constant 5.000000e-01 : f32
    %1132 = vector.broadcast %cst_441 : f32 to vector<8x32xf32>
    %1133 = arith.addf %1131, %1132 : vector<8x32xf32>
    %1134 = vector.extract_strided_slice %1123 {offsets = [0, 64], sizes = [8, 32], strides = [1, 1]} : vector<8x128xf32> to vector<8x32xf32>
    %1135 = vector.extract_strided_slice %1123 {offsets = [0, 96], sizes = [8, 32], strides = [1, 1]} : vector<8x128xf32> to vector<8x32xf32>
    %cst_442 = arith.constant 5.000000e-01 : f32
    %1136 = vector.broadcast %cst_442 : f32 to vector<8x32xf32>
    %1137 = arith.mulf %1136, %1135 : vector<8x32xf32>
    %cst_443 = arith.constant 5.000000e-01 : f32
    %1138 = vector.broadcast %cst_443 : f32 to vector<8x32xf32>
    %1139 = arith.addf %1137, %1138 : vector<8x32xf32>
    %1140 = arith.mulf %1133, %1090 : vector<8x32xf32>
    %1141 = arith.mulf %1128, %1134 : vector<8x32xf32>
    %1142 = arith.addf %1140, %1141 : vector<8x32xf32>
    %1143 = math.tanh %1142 : vector<8x32xf32>
    %1144 = arith.mulf %1139, %1143 : vector<8x32xf32>
    %1145 = arith.select %32, %1144, %1089 : vector<8x32xi1>, vector<8x32xf32>
    %1146 = arith.select %32, %1142, %1090 : vector<8x32xi1>, vector<8x32xf32>
    %c40_444 = arith.constant 40 : index
    %c32_445 = arith.constant 32 : index
    %1147 = vector.load %arg15[%c40_444, %c32_445] : memref<96x64xf32, #tpu.memory_space<vmem>>, vector<8x32xf32>
    tpu.vector_store %arg15[%c40_444, %c32_445], %1145 {strides = array<i32>} : memref<96x64xf32, #tpu.memory_space<vmem>>, vector<8x32xf32>,
    %c56_446 = arith.constant 56 : index
    %c0_447 = arith.constant 0 : index
    %1148 = vector.load %arg14[%c56_446, %c0_447] : memref<96x256xf32, #tpu.memory_space<vmem>>, vector<8x128xf32>
    %cst_448 = arith.constant dense<0.000000e+00> : vector<8x128xf32>
    %1149 = tpu.matmul %1117, %749, %cst_448 {dimension_numbers = #tpu.dot_dimension_numbers<[1], [0], [0], [1], [0, 0, 1, 1], [], []>} : vector<8x32xf32>, vector<32x128xf32>, vector<8x128xf32> -> vector<8x128xf32>
    %1150 = arith.addf %1148, %1149 : vector<8x128xf32>
    %1151 = math.tanh %1150 : vector<8x128xf32>
    %1152 = vector.extract_strided_slice %1151 {offsets = [0, 0], sizes = [8, 32], strides = [1, 1]} : vector<8x128xf32> to vector<8x32xf32>
    %cst_449 = arith.constant 5.000000e-01 : f32
    %1153 = vector.broadcast %cst_449 : f32 to vector<8x32xf32>
    %1154 = arith.mulf %1153, %1152 : vector<8x32xf32>
    %cst_450 = arith.constant 5.000000e-01 : f32
    %1155 = vector.broadcast %cst_450 : f32 to vector<8x32xf32>
    %1156 = arith.addf %1154, %1155 : vector<8x32xf32>
    %1157 = vector.extract_strided_slice %1151 {offsets = [0, 32], sizes = [8, 32], strides = [1, 1]} : vector<8x128xf32> to vector<8x32xf32>
    %cst_451 = arith.constant 5.000000e-01 : f32
    %1158 = vector.broadcast %cst_451 : f32 to vector<8x32xf32>
    %1159 = arith.mulf %1158, %1157 : vector<8x32xf32>
    %cst_452 = arith.constant 5.000000e-01 : f32
    %1160 = vector.broadcast %cst_452 : f32 to vector<8x32xf32>
    %1161 = arith.addf %1159, %1160 : vector<8x32xf32>
    %1162 = vector.extract_strided_slice %1151 {offsets = [0, 64], sizes = [8, 32], strides = [1, 1]} : vector<8x128xf32> to vector<8x32xf32>
    %1163 = vector.extract_strided_slice %1151 {offsets = [0, 96], sizes = [8, 32], strides = [1, 1]} : vector<8x128xf32> to vector<8x32xf32>
    %cst_453 = arith.constant 5.000000e-01 : f32
    %1164 = vector.broadcast %cst_453 : f32 to vector<8x32xf32>
    %1165 = arith.mulf %1164, %1163 : vector<8x32xf32>
    %cst_454 = arith.constant 5.000000e-01 : f32
    %1166 = vector.broadcast %cst_454 : f32 to vector<8x32xf32>
    %1167 = arith.addf %1165, %1166 : vector<8x32xf32>
    %1168 = arith.mulf %1161, %1118 : vector<8x32xf32>
    %1169 = arith.mulf %1156, %1162 : vector<8x32xf32>
    %1170 = arith.addf %1168, %1169 : vector<8x32xf32>
    %1171 = math.tanh %1170 : vector<8x32xf32>
    %1172 = arith.mulf %1167, %1171 : vector<8x32xf32>
    %1173 = arith.select %40, %1172, %1117 : vector<8x32xi1>, vector<8x32xf32>
    %1174 = arith.select %40, %1170, %1118 : vector<8x32xi1>, vector<8x32xf32>
    %c56_455 = arith.constant 56 : index
    %c0_456 = arith.constant 0 : index
    %1175 = vector.load %arg15[%c56_455, %c0_456] : memref<96x64xf32, #tpu.memory_space<vmem>>, vector<8x32xf32>
    tpu.vector_store %arg15[%c56_455, %c0_456], %1173 {strides = array<i32>} : memref<96x64xf32, #tpu.memory_space<vmem>>, vector<8x32xf32>,
    %c32_457 = arith.constant 32 : index
    %c128_458 = arith.constant 128 : index
    %1176 = vector.load %arg14[%c32_457, %c128_458] : memref<96x256xf32, #tpu.memory_space<vmem>>, vector<8x128xf32>
    %cst_459 = arith.constant dense<0.000000e+00> : vector<8x128xf32>
    %1177 = tpu.matmul %1145, %751, %cst_459 {dimension_numbers = #tpu.dot_dimension_numbers<[1], [0], [0], [1], [0, 0, 1, 1], [], []>} : vector<8x32xf32>, vector<32x128xf32>, vector<8x128xf32> -> vector<8x128xf32>
    %1178 = arith.addf %1176, %1177 : vector<8x128xf32>
    %1179 = math.tanh %1178 : vector<8x128xf32>
    %1180 = vector.extract_strided_slice %1179 {offsets = [0, 0], sizes = [8, 32], strides = [1, 1]} : vector<8x128xf32> to vector<8x32xf32>
    %cst_460 = arith.constant 5.000000e-01 : f32
    %1181 = vector.broadcast %cst_460 : f32 to vector<8x32xf32>
    %1182 = arith.mulf %1181, %1180 : vector<8x32xf32>
    %cst_461 = arith.constant 5.000000e-01 : f32
    %1183 = vector.broadcast %cst_461 : f32 to vector<8x32xf32>
    %1184 = arith.addf %1182, %1183 : vector<8x32xf32>
    %1185 = vector.extract_strided_slice %1179 {offsets = [0, 32], sizes = [8, 32], strides = [1, 1]} : vector<8x128xf32> to vector<8x32xf32>
    %cst_462 = arith.constant 5.000000e-01 : f32
    %1186 = vector.broadcast %cst_462 : f32 to vector<8x32xf32>
    %1187 = arith.mulf %1186, %1185 : vector<8x32xf32>
    %cst_463 = arith.constant 5.000000e-01 : f32
    %1188 = vector.broadcast %cst_463 : f32 to vector<8x32xf32>
    %1189 = arith.addf %1187, %1188 : vector<8x32xf32>
    %1190 = vector.extract_strided_slice %1179 {offsets = [0, 64], sizes = [8, 32], strides = [1, 1]} : vector<8x128xf32> to vector<8x32xf32>
    %1191 = vector.extract_strided_slice %1179 {offsets = [0, 96], sizes = [8, 32], strides = [1, 1]} : vector<8x128xf32> to vector<8x32xf32>
    %cst_464 = arith.constant 5.000000e-01 : f32
    %1192 = vector.broadcast %cst_464 : f32 to vector<8x32xf32>
    %1193 = arith.mulf %1192, %1191 : vector<8x32xf32>
    %cst_465 = arith.constant 5.000000e-01 : f32
    %1194 = vector.broadcast %cst_465 : f32 to vector<8x32xf32>
    %1195 = arith.addf %1193, %1194 : vector<8x32xf32>
    %1196 = arith.mulf %1189, %1146 : vector<8x32xf32>
    %1197 = arith.mulf %1184, %1190 : vector<8x32xf32>
    %1198 = arith.addf %1196, %1197 : vector<8x32xf32>
    %1199 = math.tanh %1198 : vector<8x32xf32>
    %1200 = arith.mulf %1195, %1199 : vector<8x32xf32>
    %1201 = arith.select %28, %1200, %1145 : vector<8x32xi1>, vector<8x32xf32>
    %1202 = arith.select %28, %1198, %1146 : vector<8x32xi1>, vector<8x32xf32>
    %c32_466 = arith.constant 32 : index
    %c32_467 = arith.constant 32 : index
    %1203 = vector.load %arg15[%c32_466, %c32_467] : memref<96x64xf32, #tpu.memory_space<vmem>>, vector<8x32xf32>
    tpu.vector_store %arg15[%c32_466, %c32_467], %1201 {strides = array<i32>} : memref<96x64xf32, #tpu.memory_space<vmem>>, vector<8x32xf32>,
    %c64_468 = arith.constant 64 : index
    %c0_469 = arith.constant 0 : index
    %1204 = vector.load %arg14[%c64_468, %c0_469] : memref<96x256xf32, #tpu.memory_space<vmem>>, vector<8x128xf32>
    %cst_470 = arith.constant dense<0.000000e+00> : vector<8x128xf32>
    %1205 = tpu.matmul %1173, %749, %cst_470 {dimension_numbers = #tpu.dot_dimension_numbers<[1], [0], [0], [1], [0, 0, 1, 1], [], []>} : vector<8x32xf32>, vector<32x128xf32>, vector<8x128xf32> -> vector<8x128xf32>
    %1206 = arith.addf %1204, %1205 : vector<8x128xf32>
    %1207 = math.tanh %1206 : vector<8x128xf32>
    %1208 = vector.extract_strided_slice %1207 {offsets = [0, 0], sizes = [8, 32], strides = [1, 1]} : vector<8x128xf32> to vector<8x32xf32>
    %cst_471 = arith.constant 5.000000e-01 : f32
    %1209 = vector.broadcast %cst_471 : f32 to vector<8x32xf32>
    %1210 = arith.mulf %1209, %1208 : vector<8x32xf32>
    %cst_472 = arith.constant 5.000000e-01 : f32
    %1211 = vector.broadcast %cst_472 : f32 to vector<8x32xf32>
    %1212 = arith.addf %1210, %1211 : vector<8x32xf32>
    %1213 = vector.extract_strided_slice %1207 {offsets = [0, 32], sizes = [8, 32], strides = [1, 1]} : vector<8x128xf32> to vector<8x32xf32>
    %cst_473 = arith.constant 5.000000e-01 : f32
    %1214 = vector.broadcast %cst_473 : f32 to vector<8x32xf32>
    %1215 = arith.mulf %1214, %1213 : vector<8x32xf32>
    %cst_474 = arith.constant 5.000000e-01 : f32
    %1216 = vector.broadcast %cst_474 : f32 to vector<8x32xf32>
    %1217 = arith.addf %1215, %1216 : vector<8x32xf32>
    %1218 = vector.extract_strided_slice %1207 {offsets = [0, 64], sizes = [8, 32], strides = [1, 1]} : vector<8x128xf32> to vector<8x32xf32>
    %1219 = vector.extract_strided_slice %1207 {offsets = [0, 96], sizes = [8, 32], strides = [1, 1]} : vector<8x128xf32> to vector<8x32xf32>
    %cst_475 = arith.constant 5.000000e-01 : f32
    %1220 = vector.broadcast %cst_475 : f32 to vector<8x32xf32>
    %1221 = arith.mulf %1220, %1219 : vector<8x32xf32>
    %cst_476 = arith.constant 5.000000e-01 : f32
    %1222 = vector.broadcast %cst_476 : f32 to vector<8x32xf32>
    %1223 = arith.addf %1221, %1222 : vector<8x32xf32>
    %1224 = arith.mulf %1217, %1174 : vector<8x32xf32>
    %1225 = arith.mulf %1212, %1218 : vector<8x32xf32>
    %1226 = arith.addf %1224, %1225 : vector<8x32xf32>
    %1227 = math.tanh %1226 : vector<8x32xf32>
    %1228 = arith.mulf %1223, %1227 : vector<8x32xf32>
    %1229 = arith.select %44, %1228, %1173 : vector<8x32xi1>, vector<8x32xf32>
    %1230 = arith.select %44, %1226, %1174 : vector<8x32xi1>, vector<8x32xf32>
    %c64_477 = arith.constant 64 : index
    %c0_478 = arith.constant 0 : index
    %1231 = vector.load %arg15[%c64_477, %c0_478] : memref<96x64xf32, #tpu.memory_space<vmem>>, vector<8x32xf32>
    tpu.vector_store %arg15[%c64_477, %c0_478], %1229 {strides = array<i32>} : memref<96x64xf32, #tpu.memory_space<vmem>>, vector<8x32xf32>,
    %c24_479 = arith.constant 24 : index
    %c128_480 = arith.constant 128 : index
    %1232 = vector.load %arg14[%c24_479, %c128_480] : memref<96x256xf32, #tpu.memory_space<vmem>>, vector<8x128xf32>
    %cst_481 = arith.constant dense<0.000000e+00> : vector<8x128xf32>
    %1233 = tpu.matmul %1201, %751, %cst_481 {dimension_numbers = #tpu.dot_dimension_numbers<[1], [0], [0], [1], [0, 0, 1, 1], [], []>} : vector<8x32xf32>, vector<32x128xf32>, vector<8x128xf32> -> vector<8x128xf32>
    %1234 = arith.addf %1232, %1233 : vector<8x128xf32>
    %1235 = math.tanh %1234 : vector<8x128xf32>
    %1236 = vector.extract_strided_slice %1235 {offsets = [0, 0], sizes = [8, 32], strides = [1, 1]} : vector<8x128xf32> to vector<8x32xf32>
    %cst_482 = arith.constant 5.000000e-01 : f32
    %1237 = vector.broadcast %cst_482 : f32 to vector<8x32xf32>
    %1238 = arith.mulf %1237, %1236 : vector<8x32xf32>
    %cst_483 = arith.constant 5.000000e-01 : f32
    %1239 = vector.broadcast %cst_483 : f32 to vector<8x32xf32>
    %1240 = arith.addf %1238, %1239 : vector<8x32xf32>
    %1241 = vector.extract_strided_slice %1235 {offsets = [0, 32], sizes = [8, 32], strides = [1, 1]} : vector<8x128xf32> to vector<8x32xf32>
    %cst_484 = arith.constant 5.000000e-01 : f32
    %1242 = vector.broadcast %cst_484 : f32 to vector<8x32xf32>
    %1243 = arith.mulf %1242, %1241 : vector<8x32xf32>
    %cst_485 = arith.constant 5.000000e-01 : f32
    %1244 = vector.broadcast %cst_485 : f32 to vector<8x32xf32>
    %1245 = arith.addf %1243, %1244 : vector<8x32xf32>
    %1246 = vector.extract_strided_slice %1235 {offsets = [0, 64], sizes = [8, 32], strides = [1, 1]} : vector<8x128xf32> to vector<8x32xf32>
    %1247 = vector.extract_strided_slice %1235 {offsets = [0, 96], sizes = [8, 32], strides = [1, 1]} : vector<8x128xf32> to vector<8x32xf32>
    %cst_486 = arith.constant 5.000000e-01 : f32
    %1248 = vector.broadcast %cst_486 : f32 to vector<8x32xf32>
    %1249 = arith.mulf %1248, %1247 : vector<8x32xf32>
    %cst_487 = arith.constant 5.000000e-01 : f32
    %1250 = vector.broadcast %cst_487 : f32 to vector<8x32xf32>
    %1251 = arith.addf %1249, %1250 : vector<8x32xf32>
    %1252 = arith.mulf %1245, %1202 : vector<8x32xf32>
    %1253 = arith.mulf %1240, %1246 : vector<8x32xf32>
    %1254 = arith.addf %1252, %1253 : vector<8x32xf32>
    %1255 = math.tanh %1254 : vector<8x32xf32>
    %1256 = arith.mulf %1251, %1255 : vector<8x32xf32>
    %1257 = arith.select %24, %1256, %1201 : vector<8x32xi1>, vector<8x32xf32>
    %1258 = arith.select %24, %1254, %1202 : vector<8x32xi1>, vector<8x32xf32>
    %c24_488 = arith.constant 24 : index
    %c32_489 = arith.constant 32 : index
    %1259 = vector.load %arg15[%c24_488, %c32_489] : memref<96x64xf32, #tpu.memory_space<vmem>>, vector<8x32xf32>
    tpu.vector_store %arg15[%c24_488, %c32_489], %1257 {strides = array<i32>} : memref<96x64xf32, #tpu.memory_space<vmem>>, vector<8x32xf32>,
    %c72_490 = arith.constant 72 : index
    %c0_491 = arith.constant 0 : index
    %1260 = vector.load %arg14[%c72_490, %c0_491] : memref<96x256xf32, #tpu.memory_space<vmem>>, vector<8x128xf32>
    %cst_492 = arith.constant dense<0.000000e+00> : vector<8x128xf32>
    %1261 = tpu.matmul %1229, %749, %cst_492 {dimension_numbers = #tpu.dot_dimension_numbers<[1], [0], [0], [1], [0, 0, 1, 1], [], []>} : vector<8x32xf32>, vector<32x128xf32>, vector<8x128xf32> -> vector<8x128xf32>
    %1262 = arith.addf %1260, %1261 : vector<8x128xf32>
    %1263 = math.tanh %1262 : vector<8x128xf32>
    %1264 = vector.extract_strided_slice %1263 {offsets = [0, 0], sizes = [8, 32], strides = [1, 1]} : vector<8x128xf32> to vector<8x32xf32>
    %cst_493 = arith.constant 5.000000e-01 : f32
    %1265 = vector.broadcast %cst_493 : f32 to vector<8x32xf32>
    %1266 = arith.mulf %1265, %1264 : vector<8x32xf32>
    %cst_494 = arith.constant 5.000000e-01 : f32
    %1267 = vector.broadcast %cst_494 : f32 to vector<8x32xf32>
    %1268 = arith.addf %1266, %1267 : vector<8x32xf32>
    %1269 = vector.extract_strided_slice %1263 {offsets = [0, 32], sizes = [8, 32], strides = [1, 1]} : vector<8x128xf32> to vector<8x32xf32>
    %cst_495 = arith.constant 5.000000e-01 : f32
    %1270 = vector.broadcast %cst_495 : f32 to vector<8x32xf32>
    %1271 = arith.mulf %1270, %1269 : vector<8x32xf32>
    %cst_496 = arith.constant 5.000000e-01 : f32
    %1272 = vector.broadcast %cst_496 : f32 to vector<8x32xf32>
    %1273 = arith.addf %1271, %1272 : vector<8x32xf32>
    %1274 = vector.extract_strided_slice %1263 {offsets = [0, 64], sizes = [8, 32], strides = [1, 1]} : vector<8x128xf32> to vector<8x32xf32>
    %1275 = vector.extract_strided_slice %1263 {offsets = [0, 96], sizes = [8, 32], strides = [1, 1]} : vector<8x128xf32> to vector<8x32xf32>
    %cst_497 = arith.constant 5.000000e-01 : f32
    %1276 = vector.broadcast %cst_497 : f32 to vector<8x32xf32>
    %1277 = arith.mulf %1276, %1275 : vector<8x32xf32>
    %cst_498 = arith.constant 5.000000e-01 : f32
    %1278 = vector.broadcast %cst_498 : f32 to vector<8x32xf32>
    %1279 = arith.addf %1277, %1278 : vector<8x32xf32>
    %1280 = arith.mulf %1273, %1230 : vector<8x32xf32>
    %1281 = arith.mulf %1268, %1274 : vector<8x32xf32>
    %1282 = arith.addf %1280, %1281 : vector<8x32xf32>
    %1283 = math.tanh %1282 : vector<8x32xf32>
    %1284 = arith.mulf %1279, %1283 : vector<8x32xf32>
    %1285 = arith.select %48, %1284, %1229 : vector<8x32xi1>, vector<8x32xf32>
    %1286 = arith.select %48, %1282, %1230 : vector<8x32xi1>, vector<8x32xf32>
    %c72_499 = arith.constant 72 : index
    %c0_500 = arith.constant 0 : index
    %1287 = vector.load %arg15[%c72_499, %c0_500] : memref<96x64xf32, #tpu.memory_space<vmem>>, vector<8x32xf32>
    tpu.vector_store %arg15[%c72_499, %c0_500], %1285 {strides = array<i32>} : memref<96x64xf32, #tpu.memory_space<vmem>>, vector<8x32xf32>,
    %c16_501 = arith.constant 16 : index
    %c128_502 = arith.constant 128 : index
    %1288 = vector.load %arg14[%c16_501, %c128_502] : memref<96x256xf32, #tpu.memory_space<vmem>>, vector<8x128xf32>
    %cst_503 = arith.constant dense<0.000000e+00> : vector<8x128xf32>
    %1289 = tpu.matmul %1257, %751, %cst_503 {dimension_numbers = #tpu.dot_dimension_numbers<[1], [0], [0], [1], [0, 0, 1, 1], [], []>} : vector<8x32xf32>, vector<32x128xf32>, vector<8x128xf32> -> vector<8x128xf32>
    %1290 = arith.addf %1288, %1289 : vector<8x128xf32>
    %1291 = math.tanh %1290 : vector<8x128xf32>
    %1292 = vector.extract_strided_slice %1291 {offsets = [0, 0], sizes = [8, 32], strides = [1, 1]} : vector<8x128xf32> to vector<8x32xf32>
    %cst_504 = arith.constant 5.000000e-01 : f32
    %1293 = vector.broadcast %cst_504 : f32 to vector<8x32xf32>
    %1294 = arith.mulf %1293, %1292 : vector<8x32xf32>
    %cst_505 = arith.constant 5.000000e-01 : f32
    %1295 = vector.broadcast %cst_505 : f32 to vector<8x32xf32>
    %1296 = arith.addf %1294, %1295 : vector<8x32xf32>
    %1297 = vector.extract_strided_slice %1291 {offsets = [0, 32], sizes = [8, 32], strides = [1, 1]} : vector<8x128xf32> to vector<8x32xf32>
    %cst_506 = arith.constant 5.000000e-01 : f32
    %1298 = vector.broadcast %cst_506 : f32 to vector<8x32xf32>
    %1299 = arith.mulf %1298, %1297 : vector<8x32xf32>
    %cst_507 = arith.constant 5.000000e-01 : f32
    %1300 = vector.broadcast %cst_507 : f32 to vector<8x32xf32>
    %1301 = arith.addf %1299, %1300 : vector<8x32xf32>
    %1302 = vector.extract_strided_slice %1291 {offsets = [0, 64], sizes = [8, 32], strides = [1, 1]} : vector<8x128xf32> to vector<8x32xf32>
    %1303 = vector.extract_strided_slice %1291 {offsets = [0, 96], sizes = [8, 32], strides = [1, 1]} : vector<8x128xf32> to vector<8x32xf32>
    %cst_508 = arith.constant 5.000000e-01 : f32
    %1304 = vector.broadcast %cst_508 : f32 to vector<8x32xf32>
    %1305 = arith.mulf %1304, %1303 : vector<8x32xf32>
    %cst_509 = arith.constant 5.000000e-01 : f32
    %1306 = vector.broadcast %cst_509 : f32 to vector<8x32xf32>
    %1307 = arith.addf %1305, %1306 : vector<8x32xf32>
    %1308 = arith.mulf %1301, %1258 : vector<8x32xf32>
    %1309 = arith.mulf %1296, %1302 : vector<8x32xf32>
    %1310 = arith.addf %1308, %1309 : vector<8x32xf32>
    %1311 = math.tanh %1310 : vector<8x32xf32>
    %1312 = arith.mulf %1307, %1311 : vector<8x32xf32>
    %1313 = arith.select %20, %1312, %1257 : vector<8x32xi1>, vector<8x32xf32>
    %1314 = arith.select %20, %1310, %1258 : vector<8x32xi1>, vector<8x32xf32>
    %c16_510 = arith.constant 16 : index
    %c32_511 = arith.constant 32 : index
    %1315 = vector.load %arg15[%c16_510, %c32_511] : memref<96x64xf32, #tpu.memory_space<vmem>>, vector<8x32xf32>
    tpu.vector_store %arg15[%c16_510, %c32_511], %1313 {strides = array<i32>} : memref<96x64xf32, #tpu.memory_space<vmem>>, vector<8x32xf32>,
    %c80_512 = arith.constant 80 : index
    %c0_513 = arith.constant 0 : index
    %1316 = vector.load %arg14[%c80_512, %c0_513] : memref<96x256xf32, #tpu.memory_space<vmem>>, vector<8x128xf32>
    %cst_514 = arith.constant dense<0.000000e+00> : vector<8x128xf32>
    %1317 = tpu.matmul %1285, %749, %cst_514 {dimension_numbers = #tpu.dot_dimension_numbers<[1], [0], [0], [1], [0, 0, 1, 1], [], []>} : vector<8x32xf32>, vector<32x128xf32>, vector<8x128xf32> -> vector<8x128xf32>
    %1318 = arith.addf %1316, %1317 : vector<8x128xf32>
    %1319 = math.tanh %1318 : vector<8x128xf32>
    %1320 = vector.extract_strided_slice %1319 {offsets = [0, 0], sizes = [8, 32], strides = [1, 1]} : vector<8x128xf32> to vector<8x32xf32>
    %cst_515 = arith.constant 5.000000e-01 : f32
    %1321 = vector.broadcast %cst_515 : f32 to vector<8x32xf32>
    %1322 = arith.mulf %1321, %1320 : vector<8x32xf32>
    %cst_516 = arith.constant 5.000000e-01 : f32
    %1323 = vector.broadcast %cst_516 : f32 to vector<8x32xf32>
    %1324 = arith.addf %1322, %1323 : vector<8x32xf32>
    %1325 = vector.extract_strided_slice %1319 {offsets = [0, 32], sizes = [8, 32], strides = [1, 1]} : vector<8x128xf32> to vector<8x32xf32>
    %cst_517 = arith.constant 5.000000e-01 : f32
    %1326 = vector.broadcast %cst_517 : f32 to vector<8x32xf32>
    %1327 = arith.mulf %1326, %1325 : vector<8x32xf32>
    %cst_518 = arith.constant 5.000000e-01 : f32
    %1328 = vector.broadcast %cst_518 : f32 to vector<8x32xf32>
    %1329 = arith.addf %1327, %1328 : vector<8x32xf32>
    %1330 = vector.extract_strided_slice %1319 {offsets = [0, 64], sizes = [8, 32], strides = [1, 1]} : vector<8x128xf32> to vector<8x32xf32>
    %1331 = vector.extract_strided_slice %1319 {offsets = [0, 96], sizes = [8, 32], strides = [1, 1]} : vector<8x128xf32> to vector<8x32xf32>
    %cst_519 = arith.constant 5.000000e-01 : f32
    %1332 = vector.broadcast %cst_519 : f32 to vector<8x32xf32>
    %1333 = arith.mulf %1332, %1331 : vector<8x32xf32>
    %cst_520 = arith.constant 5.000000e-01 : f32
    %1334 = vector.broadcast %cst_520 : f32 to vector<8x32xf32>
    %1335 = arith.addf %1333, %1334 : vector<8x32xf32>
    %1336 = arith.mulf %1329, %1286 : vector<8x32xf32>
    %1337 = arith.mulf %1324, %1330 : vector<8x32xf32>
    %1338 = arith.addf %1336, %1337 : vector<8x32xf32>
    %1339 = math.tanh %1338 : vector<8x32xf32>
    %1340 = arith.mulf %1335, %1339 : vector<8x32xf32>
    %1341 = arith.select %52, %1340, %1285 : vector<8x32xi1>, vector<8x32xf32>
    %1342 = arith.select %52, %1338, %1286 : vector<8x32xi1>, vector<8x32xf32>
    %c80_521 = arith.constant 80 : index
    %c0_522 = arith.constant 0 : index
    %1343 = vector.load %arg15[%c80_521, %c0_522] : memref<96x64xf32, #tpu.memory_space<vmem>>, vector<8x32xf32>
    tpu.vector_store %arg15[%c80_521, %c0_522], %1341 {strides = array<i32>} : memref<96x64xf32, #tpu.memory_space<vmem>>, vector<8x32xf32>,
    %c8_523 = arith.constant 8 : index
    %c128_524 = arith.constant 128 : index
    %1344 = vector.load %arg14[%c8_523, %c128_524] : memref<96x256xf32, #tpu.memory_space<vmem>>, vector<8x128xf32>
    %cst_525 = arith.constant dense<0.000000e+00> : vector<8x128xf32>
    %1345 = tpu.matmul %1313, %751, %cst_525 {dimension_numbers = #tpu.dot_dimension_numbers<[1], [0], [0], [1], [0, 0, 1, 1], [], []>} : vector<8x32xf32>, vector<32x128xf32>, vector<8x128xf32> -> vector<8x128xf32>
    %1346 = arith.addf %1344, %1345 : vector<8x128xf32>
    %1347 = math.tanh %1346 : vector<8x128xf32>
    %1348 = vector.extract_strided_slice %1347 {offsets = [0, 0], sizes = [8, 32], strides = [1, 1]} : vector<8x128xf32> to vector<8x32xf32>
    %cst_526 = arith.constant 5.000000e-01 : f32
    %1349 = vector.broadcast %cst_526 : f32 to vector<8x32xf32>
    %1350 = arith.mulf %1349, %1348 : vector<8x32xf32>
    %cst_527 = arith.constant 5.000000e-01 : f32
    %1351 = vector.broadcast %cst_527 : f32 to vector<8x32xf32>
    %1352 = arith.addf %1350, %1351 : vector<8x32xf32>
    %1353 = vector.extract_strided_slice %1347 {offsets = [0, 32], sizes = [8, 32], strides = [1, 1]} : vector<8x128xf32> to vector<8x32xf32>
    %cst_528 = arith.constant 5.000000e-01 : f32
    %1354 = vector.broadcast %cst_528 : f32 to vector<8x32xf32>
    %1355 = arith.mulf %1354, %1353 : vector<8x32xf32>
    %cst_529 = arith.constant 5.000000e-01 : f32
    %1356 = vector.broadcast %cst_529 : f32 to vector<8x32xf32>
    %1357 = arith.addf %1355, %1356 : vector<8x32xf32>
    %1358 = vector.extract_strided_slice %1347 {offsets = [0, 64], sizes = [8, 32], strides = [1, 1]} : vector<8x128xf32> to vector<8x32xf32>
    %1359 = vector.extract_strided_slice %1347 {offsets = [0, 96], sizes = [8, 32], strides = [1, 1]} : vector<8x128xf32> to vector<8x32xf32>
    %cst_530 = arith.constant 5.000000e-01 : f32
    %1360 = vector.broadcast %cst_530 : f32 to vector<8x32xf32>
    %1361 = arith.mulf %1360, %1359 : vector<8x32xf32>
    %cst_531 = arith.constant 5.000000e-01 : f32
    %1362 = vector.broadcast %cst_531 : f32 to vector<8x32xf32>
    %1363 = arith.addf %1361, %1362 : vector<8x32xf32>
    %1364 = arith.mulf %1357, %1314 : vector<8x32xf32>
    %1365 = arith.mulf %1352, %1358 : vector<8x32xf32>
    %1366 = arith.addf %1364, %1365 : vector<8x32xf32>
    %1367 = math.tanh %1366 : vector<8x32xf32>
    %1368 = arith.mulf %1363, %1367 : vector<8x32xf32>
    %1369 = arith.select %16, %1368, %1313 : vector<8x32xi1>, vector<8x32xf32>
    %1370 = arith.select %16, %1366, %1314 : vector<8x32xi1>, vector<8x32xf32>
    %c8_532 = arith.constant 8 : index
    %c32_533 = arith.constant 32 : index
    %1371 = vector.load %arg15[%c8_532, %c32_533] : memref<96x64xf32, #tpu.memory_space<vmem>>, vector<8x32xf32>
    tpu.vector_store %arg15[%c8_532, %c32_533], %1369 {strides = array<i32>} : memref<96x64xf32, #tpu.memory_space<vmem>>, vector<8x32xf32>,
    %c88_534 = arith.constant 88 : index
    %c0_535 = arith.constant 0 : index
    %1372 = vector.load %arg14[%c88_534, %c0_535] : memref<96x256xf32, #tpu.memory_space<vmem>>, vector<8x128xf32>
    %cst_536 = arith.constant dense<0.000000e+00> : vector<8x128xf32>
    %1373 = tpu.matmul %1341, %749, %cst_536 {dimension_numbers = #tpu.dot_dimension_numbers<[1], [0], [0], [1], [0, 0, 1, 1], [], []>} : vector<8x32xf32>, vector<32x128xf32>, vector<8x128xf32> -> vector<8x128xf32>
    %1374 = arith.addf %1372, %1373 : vector<8x128xf32>
    %1375 = math.tanh %1374 : vector<8x128xf32>
    %1376 = vector.extract_strided_slice %1375 {offsets = [0, 0], sizes = [8, 32], strides = [1, 1]} : vector<8x128xf32> to vector<8x32xf32>
    %cst_537 = arith.constant 5.000000e-01 : f32
    %1377 = vector.broadcast %cst_537 : f32 to vector<8x32xf32>
    %1378 = arith.mulf %1377, %1376 : vector<8x32xf32>
    %cst_538 = arith.constant 5.000000e-01 : f32
    %1379 = vector.broadcast %cst_538 : f32 to vector<8x32xf32>
    %1380 = arith.addf %1378, %1379 : vector<8x32xf32>
    %1381 = vector.extract_strided_slice %1375 {offsets = [0, 32], sizes = [8, 32], strides = [1, 1]} : vector<8x128xf32> to vector<8x32xf32>
    %cst_539 = arith.constant 5.000000e-01 : f32
    %1382 = vector.broadcast %cst_539 : f32 to vector<8x32xf32>
    %1383 = arith.mulf %1382, %1381 : vector<8x32xf32>
    %cst_540 = arith.constant 5.000000e-01 : f32
    %1384 = vector.broadcast %cst_540 : f32 to vector<8x32xf32>
    %1385 = arith.addf %1383, %1384 : vector<8x32xf32>
    %1386 = vector.extract_strided_slice %1375 {offsets = [0, 64], sizes = [8, 32], strides = [1, 1]} : vector<8x128xf32> to vector<8x32xf32>
    %1387 = vector.extract_strided_slice %1375 {offsets = [0, 96], sizes = [8, 32], strides = [1, 1]} : vector<8x128xf32> to vector<8x32xf32>
    %cst_541 = arith.constant 5.000000e-01 : f32
    %1388 = vector.broadcast %cst_541 : f32 to vector<8x32xf32>
    %1389 = arith.mulf %1388, %1387 : vector<8x32xf32>
    %cst_542 = arith.constant 5.000000e-01 : f32
    %1390 = vector.broadcast %cst_542 : f32 to vector<8x32xf32>
    %1391 = arith.addf %1389, %1390 : vector<8x32xf32>
    %1392 = arith.mulf %1385, %1342 : vector<8x32xf32>
    %1393 = arith.mulf %1380, %1386 : vector<8x32xf32>
    %1394 = arith.addf %1392, %1393 : vector<8x32xf32>
    %1395 = math.tanh %1394 : vector<8x32xf32>
    %1396 = arith.mulf %1391, %1395 : vector<8x32xf32>
    %1397 = arith.select %56, %1396, %1341 : vector<8x32xi1>, vector<8x32xf32>
    %c88_543 = arith.constant 88 : index
    %c0_544 = arith.constant 0 : index
    %1398 = vector.load %arg15[%c88_543, %c0_544] : memref<96x64xf32, #tpu.memory_space<vmem>>, vector<8x32xf32>
    tpu.vector_store %arg15[%c88_543, %c0_544], %1397 {strides = array<i32>} : memref<96x64xf32, #tpu.memory_space<vmem>>, vector<8x32xf32>,
    %c0_545 = arith.constant 0 : index
    %c128_546 = arith.constant 128 : index
    %1399 = vector.load %arg14[%c0_545, %c128_546] : memref<96x256xf32, #tpu.memory_space<vmem>>, vector<8x128xf32>
    %cst_547 = arith.constant dense<0.000000e+00> : vector<8x128xf32>
    %1400 = tpu.matmul %1369, %751, %cst_547 {dimension_numbers = #tpu.dot_dimension_numbers<[1], [0], [0], [1], [0, 0, 1, 1], [], []>} : vector<8x32xf32>, vector<32x128xf32>, vector<8x128xf32> -> vector<8x128xf32>
    %1401 = arith.addf %1399, %1400 : vector<8x128xf32>
    %1402 = math.tanh %1401 : vector<8x128xf32>
    %1403 = vector.extract_strided_slice %1402 {offsets = [0, 0], sizes = [8, 32], strides = [1, 1]} : vector<8x128xf32> to vector<8x32xf32>
    %cst_548 = arith.constant 5.000000e-01 : f32
    %1404 = vector.broadcast %cst_548 : f32 to vector<8x32xf32>
    %1405 = arith.mulf %1404, %1403 : vector<8x32xf32>
    %cst_549 = arith.constant 5.000000e-01 : f32
    %1406 = vector.broadcast %cst_549 : f32 to vector<8x32xf32>
    %1407 = arith.addf %1405, %1406 : vector<8x32xf32>
    %1408 = vector.extract_strided_slice %1402 {offsets = [0, 32], sizes = [8, 32], strides = [1, 1]} : vector<8x128xf32> to vector<8x32xf32>
    %cst_550 = arith.constant 5.000000e-01 : f32
    %1409 = vector.broadcast %cst_550 : f32 to vector<8x32xf32>
    %1410 = arith.mulf %1409, %1408 : vector<8x32xf32>
    %cst_551 = arith.constant 5.000000e-01 : f32
    %1411 = vector.broadcast %cst_551 : f32 to vector<8x32xf32>
    %1412 = arith.addf %1410, %1411 : vector<8x32xf32>
    %1413 = vector.extract_strided_slice %1402 {offsets = [0, 64], sizes = [8, 32], strides = [1, 1]} : vector<8x128xf32> to vector<8x32xf32>
    %1414 = vector.extract_strided_slice %1402 {offsets = [0, 96], sizes = [8, 32], strides = [1, 1]} : vector<8x128xf32> to vector<8x32xf32>
    %cst_552 = arith.constant 5.000000e-01 : f32
    %1415 = vector.broadcast %cst_552 : f32 to vector<8x32xf32>
    %1416 = arith.mulf %1415, %1414 : vector<8x32xf32>
    %cst_553 = arith.constant 5.000000e-01 : f32
    %1417 = vector.broadcast %cst_553 : f32 to vector<8x32xf32>
    %1418 = arith.addf %1416, %1417 : vector<8x32xf32>
    %1419 = arith.mulf %1412, %1370 : vector<8x32xf32>
    %1420 = arith.mulf %1407, %1413 : vector<8x32xf32>
    %1421 = arith.addf %1419, %1420 : vector<8x32xf32>
    %1422 = math.tanh %1421 : vector<8x32xf32>
    %1423 = arith.mulf %1418, %1422 : vector<8x32xf32>
    %1424 = arith.select %12, %1423, %1369 : vector<8x32xi1>, vector<8x32xf32>
    %c0_554 = arith.constant 0 : index
    %c32_555 = arith.constant 32 : index
    %1425 = vector.load %arg15[%c0_554, %c32_555] : memref<96x64xf32, #tpu.memory_space<vmem>>, vector<8x32xf32>
    tpu.vector_store %arg15[%c0_554, %c32_555], %1424 {strides = array<i32>} : memref<96x64xf32, #tpu.memory_space<vmem>>, vector<8x32xf32>,
    %c0_556 = arith.constant 0 : index
    %c0_557 = arith.constant 0 : index
    %1426 = vector.load %arg15[%c0_556, %c0_557] : memref<96x64xf32, #tpu.memory_space<vmem>>, vector<96x64xf32>
    %c0_558 = arith.constant 0 : index
    %c0_559 = arith.constant 0 : index
    %1427 = vector.load %arg9[%c0_558, %c0_559] : memref<64x32xf32, #tpu.memory_space<vmem>>, vector<64x32xf32>
    %cst_560 = arith.constant dense<0.000000e+00> : vector<96x32xf32>
    %1428 = tpu.matmul %1426, %1427, %cst_560 {dimension_numbers = #tpu.dot_dimension_numbers<[1], [0], [0], [1], [0, 0, 1, 1], [], []>} : vector<96x64xf32>, vector<64x32xf32>, vector<96x32xf32> -> vector<96x32xf32>
    %c0_561 = arith.constant 0 : index
    %c0_562 = arith.constant 0 : index
    %1429 = vector.load %arg10[%c0_561, %c0_562] : memref<1x32xf32, #tpu.memory_space<vmem>>, vector<1x32xf32>
    %1430 = vector.broadcast %1429 : vector<1x32xf32> to vector<96x32xf32>
    %1431 = arith.addf %1428, %1430 : vector<96x32xf32>
    %1432 = math.tanh %1431 : vector<96x32xf32>
    %c0_563 = arith.constant 0 : index
    %c0_564 = arith.constant 0 : index
    %1433 = vector.load %arg11[%c0_563, %c0_564] : memref<32x8xf32, #tpu.memory_space<vmem>>, vector<32x8xf32>
    %cst_565 = arith.constant dense<0.000000e+00> : vector<96x8xf32>
    %1434 = tpu.matmul %1432, %1433, %cst_565 {dimension_numbers = #tpu.dot_dimension_numbers<[1], [0], [0], [1], [0, 0, 1, 1], [], []>} : vector<96x32xf32>, vector<32x8xf32>, vector<96x8xf32> -> vector<96x8xf32>
    %c0_566 = arith.constant 0 : index
    %c0_567 = arith.constant 0 : index
    %1435 = vector.load %arg12[%c0_566, %c0_567] : memref<1x8xf32, #tpu.memory_space<vmem>>, vector<1x8xf32>
    %1436 = vector.broadcast %1435 : vector<1x8xf32> to vector<96x8xf32>
    %1437 = arith.addf %1434, %1436 : vector<96x8xf32>
    %c0_568 = arith.constant 0 : index
    %c0_569 = arith.constant 0 : index
    %1438 = vector.load %arg13[%c0_568, %c0_569] : memref<96x8xf32, #tpu.memory_space<vmem>>, vector<96x8xf32>
    tpu.vector_store %arg13[%c0_568, %c0_569], %1437 {strides = array<i32>} : memref<96x8xf32, #tpu.memory_space<vmem>>, vector<96x8xf32>,
    return
  }
}

</mosaic_0001>

<llo_original>
// kernel: tpu_custom_call.1
$region0: #{tpu_custom_call.1}
  #allocation0 [shape = 'u32[]', space=smem, size = 0x4, offset = 0x4, fixed_abs, tag = 'smem constant byte address 0x4 - core index']
  #allocation1 [shape = 'u32[144,128]{1,0:T(1,128)}', space=vmem, size = 0x12000, scoped, tag = 'internal scratch']
  #allocation2 [shape = 'f32[96,256]{1,0:T(8,128)}', space=vmem, size = 0x18000, scoped, tag = 'scratch operand']
  #allocation3 [shape = 'f32[96,64]{1,0:T(8,128)}', space=vmem, size = 0xc000, scoped, tag = 'scratch operand']
  %s0 = inlined_call_operand.vmem [shape: s32[8,1], index: 0, kind: input, shape index: {}]
  %s1 = inlined_call_operand.vmem [shape: s32[96,1], index: 1, kind: input, shape index: {}]
  %s2 = inlined_call_operand.vmem [shape: f32[128,32], index: 2, kind: input, shape index: {}]
  %s3 = inlined_call_operand.vmem [shape: f32[32,256], index: 3, kind: input, shape index: {}]
  %s4 = inlined_call_operand.vmem [shape: f32[2,32,128], index: 4, kind: input, shape index: {}]
  %s5 = inlined_call_operand.vmem [shape: f32[1,256], index: 5, kind: input, shape index: {}]
  %s6 = inlined_call_operand.vmem [shape: f32[64,256], index: 6, kind: input, shape index: {}]
  %s7 = inlined_call_operand.vmem [shape: f32[2,32,128], index: 7, kind: input, shape index: {}]
  %s8 = inlined_call_operand.vmem [shape: f32[1,256], index: 8, kind: input, shape index: {}]
  %s9 = inlined_call_operand.vmem [shape: f32[64,32], index: 9, kind: input, shape index: {}]
  %s10 = inlined_call_operand.vmem [shape: f32[1,32], index: 10, kind: input, shape index: {}]
  %s11 = inlined_call_operand.vmem [shape: f32[32,8], index: 11, kind: input, shape index: {}]
  %s12 = inlined_call_operand.vmem [shape: f32[1,8], index: 12, kind: input, shape index: {}]
  %s13 = inlined_call_operand.vmem [shape: f32[96,8], index: 13, kind: output, shape index: {}]
  %s14 = sld [smem:[#allocation0]]
  $region62: #{tpu_custom_call.1} parent=0
    _
  %s16 = ssub.s32 1, %s14
  %s17 = scalar_select 0, %s16, %s14
  // Predicated region
  $region2: #{tpu_custom_call.1} parent=0 // pred_check
    _
  $region3: #{tpu_custom_call.1} parent=0 // pred_check_branch
    %19 = sbr.rel (0) target = $region5
  $region4: #{tpu_custom_call.1} parent=0 // pred_region
    _
  $region5: #{tpu_custom_call.1} parent=0 // pred_fallthru
    _
  // Predicated region
  $region6: #{tpu_custom_call.1} parent=0 // pred_check
    _
  $region7: #{tpu_custom_call.1} parent=0 // pred_check_branch
    %21 = sbr.rel (0) target = $region9
  $region8: #{tpu_custom_call.1} parent=0 // pred_region
    _
  $region9: #{tpu_custom_call.1} parent=0 // pred_fallthru
    _
  // Predicated region
  $region10: #{tpu_custom_call.1} parent=0 // pred_check
    _
  $region11: #{tpu_custom_call.1} parent=0 // pred_check_branch
    %23 = sbr.rel (0) target = $region13
  $region12: #{tpu_custom_call.1} parent=0 // pred_region
    _
  $region13: #{tpu_custom_call.1} parent=0 // pred_fallthru
    _
  // Predicated region
  $region14: #{tpu_custom_call.1} parent=0 // pred_check
    _
  $region15: #{tpu_custom_call.1} parent=0 // pred_check_branch
    %25 = sbr.rel (0) target = $region17
  $region16: #{tpu_custom_call.1} parent=0 // pred_region
    _
  $region17: #{tpu_custom_call.1} parent=0 // pred_fallthru
    _
  // Predicated region
  $region18: #{tpu_custom_call.1} parent=0 // pred_check
    _
  $region19: #{tpu_custom_call.1} parent=0 // pred_check_branch
    %27 = sbr.rel (0) target = $region21
  $region20: #{tpu_custom_call.1} parent=0 // pred_region
    _
  $region21: #{tpu_custom_call.1} parent=0 // pred_fallthru
    _
  // Predicated region
  $region22: #{tpu_custom_call.1} parent=0 // pred_check
    _
  $region23: #{tpu_custom_call.1} parent=0 // pred_check_branch
    %29 = sbr.rel (0) target = $region25
  $region24: #{tpu_custom_call.1} parent=0 // pred_region
    _
  $region25: #{tpu_custom_call.1} parent=0 // pred_fallthru
    _
  // Predicated region
  $region26: #{tpu_custom_call.1} parent=0 // pred_check
    _
  $region27: #{tpu_custom_call.1} parent=0 // pred_check_branch
    %31 = sbr.rel (0) target = $region29
  $region28: #{tpu_custom_call.1} parent=0 // pred_region
    _
  $region29: #{tpu_custom_call.1} parent=0 // pred_fallthru
    _
  // Predicated region
  $region30: #{tpu_custom_call.1} parent=0 // pred_check
    _
  $region31: #{tpu_custom_call.1} parent=0 // pred_check_branch
    %33 = sbr.rel (0) target = $region33
  $region32: #{tpu_custom_call.1} parent=0 // pred_region
    _
  $region33: #{tpu_custom_call.1} parent=0 // pred_fallthru
    _
  // Predicated region
  $region34: #{tpu_custom_call.1} parent=0 // pred_check
    _
  $region35: #{tpu_custom_call.1} parent=0 // pred_check_branch
    %35 = sbr.rel (0) target = $region37
  $region36: #{tpu_custom_call.1} parent=0 // pred_region
    _
  $region37: #{tpu_custom_call.1} parent=0 // pred_fallthru
    _
  // Predicated region
  $region38: #{tpu_custom_call.1} parent=0 // pred_check
    _
  $region39: #{tpu_custom_call.1} parent=0 // pred_check_branch
    %37 = sbr.rel (0) target = $region41
  $region40: #{tpu_custom_call.1} parent=0 // pred_region
    _
  $region41: #{tpu_custom_call.1} parent=0 // pred_fallthru
    _
  // Predicated region
  $region42: #{tpu_custom_call.1} parent=0 // pred_check
    _
  $region43: #{tpu_custom_call.1} parent=0 // pred_check_branch
    %39 = sbr.rel (0) target = $region45
  $region44: #{tpu_custom_call.1} parent=0 // pred_region
    _
  $region45: #{tpu_custom_call.1} parent=0 // pred_fallthru
    _
  // Predicated region
  $region46: #{tpu_custom_call.1} parent=0 // pred_check
    _
  $region47: #{tpu_custom_call.1} parent=0 // pred_check_branch
    %41 = sbr.rel (0) target = $region49
  $region48: #{tpu_custom_call.1} parent=0 // pred_region
    _
  $region49: #{tpu_custom_call.1} parent=0 // pred_fallthru
    _
  // Predicated region
  $region50: #{tpu_custom_call.1} parent=0 // pred_check
    _
  $region51: #{tpu_custom_call.1} parent=0 // pred_check_branch
    %43 = sbr.rel (0) target = $region53
  $region52: #{tpu_custom_call.1} parent=0 // pred_region
    _
  $region53: #{tpu_custom_call.1} parent=0 // pred_fallthru
    _
  %v44 = vld [vmem:[%s0] sm:$0xff]
  %v45 = vld [vmem:[%s1] sm:$0xff]
  %v46 = vld [vmem:[%s1 + $0x8] sm:$0xff]
  %v47 = vld [vmem:[%s1 + $0x10] sm:$0xff]
  %v48 = vld [vmem:[%s1 + $0x18] sm:$0xff]
  %v49 = vld [vmem:[%s1 + $0x20] sm:$0xff]
  %v50 = vld [vmem:[%s1 + $0x28] sm:$0xff]
  %v51 = vld [vmem:[%s1 + $0x30] sm:$0xff]
  %v52 = vld [vmem:[%s1 + $0x38] sm:$0xff]
  %v53 = vld [vmem:[%s1 + $0x40] sm:$0xff]
  %v54 = vld [vmem:[%s1 + $0x48] sm:$0xff]
  %v55 = vld [vmem:[%s1 + $0x50] sm:$0xff]
  %v56 = vld [vmem:[%s1 + $0x58] sm:$0xff]
  %v57 = vlaneseq
  %v58 = vand.u32 %v57, 127
  %59 = vset.pattern.permute.xlu0 0
  %60 = vperm.xlu0 %59, %v45
  %v61 = vpop.permute.xlu0 %60
  %62 = vset.pattern.permute.xlu0 0
  %63 = vperm.xlu0 %62, %v46
  %v64 = vpop.permute.xlu0 %63
  %65 = vset.pattern.permute.xlu0 0
  %66 = vperm.xlu0 %65, %v47
  %v67 = vpop.permute.xlu0 %66
  %68 = vset.pattern.permute.xlu0 0
  %69 = vperm.xlu0 %68, %v48
  %v70 = vpop.permute.xlu0 %69
  %71 = vset.pattern.permute.xlu0 0
  %72 = vperm.xlu0 %71, %v49
  %v73 = vpop.permute.xlu0 %72
  %74 = vset.pattern.permute.xlu0 0
  %75 = vperm.xlu0 %74, %v50
  %v76 = vpop.permute.xlu0 %75
  %77 = vset.pattern.permute.xlu0 0
  %78 = vperm.xlu0 %77, %v51
  %v79 = vpop.permute.xlu0 %78
  %80 = vset.pattern.permute.xlu0 0
  %81 = vperm.xlu0 %80, %v52
  %v82 = vpop.permute.xlu0 %81
  %83 = vset.pattern.permute.xlu0 0
  %84 = vperm.xlu0 %83, %v53
  %v85 = vpop.permute.xlu0 %84
  %86 = vset.pattern.permute.xlu0 0
  %87 = vperm.xlu0 %86, %v54
  %v88 = vpop.permute.xlu0 %87
  %89 = vset.pattern.permute.xlu0 0
  %90 = vperm.xlu0 %89, %v55
  %v91 = vpop.permute.xlu0 %90
  %92 = vset.pattern.permute.xlu0 0
  %93 = vperm.xlu0 %92, %v56
  %v94 = vpop.permute.xlu0 %93
  %vm95 = vcmp.eq.s32.totalorder %v61, %v58
  %vm96 = vcmp.eq.s32.totalorder %v64, %v58
  %vm97 = vcmp.eq.s32.totalorder %v67, %v58
  %vm98 = vcmp.eq.s32.totalorder %v70, %v58
  %vm99 = vcmp.eq.s32.totalorder %v73, %v58
  %vm100 = vcmp.eq.s32.totalorder %v76, %v58
  %vm101 = vcmp.eq.s32.totalorder %v79, %v58
  %vm102 = vcmp.eq.s32.totalorder %v82, %v58
  %vm103 = vcmp.eq.s32.totalorder %v85, %v58
  %vm104 = vcmp.eq.s32.totalorder %v88, %v58
  %vm105 = vcmp.eq.s32.totalorder %v91, %v58
  %vm106 = vcmp.eq.s32.totalorder %v94, %v58
  %v107 = vsel %vm95, 1, 0
  %v108 = vsel %vm96, 1, 0
  %v109 = vsel %vm97, 1, 0
  %v110 = vsel %vm98, 1, 0
  %v111 = vsel %vm99, 1, 0
  %v112 = vsel %vm100, 1, 0
  %v113 = vsel %vm101, 1, 0
  %v114 = vsel %vm102, 1, 0
  %v115 = vsel %vm103, 1, 0
  %v116 = vsel %vm104, 1, 0
  %v117 = vsel %vm105, 1, 0
  %v118 = vsel %vm106, 1, 0
  %v119 = vcvt.s32.f32 %v107
  %v120 = vcvt.s32.f32 %v108
  %v121 = vcvt.s32.f32 %v109
  %v122 = vcvt.s32.f32 %v110
  %v123 = vcvt.s32.f32 %v111
  %v124 = vcvt.s32.f32 %v112
  %v125 = vcvt.s32.f32 %v113
  %v126 = vcvt.s32.f32 %v114
  %v127 = vcvt.s32.f32 %v115
  %v128 = vcvt.s32.f32 %v116
  %v129 = vcvt.s32.f32 %v117
  %v130 = vcvt.s32.f32 %v118
  %v131 = vld [vmem:[%s2] sm:$0xff]
  %v132 = vld [vmem:[%s2 + $0x8] sm:$0xff]
  %v133 = vld [vmem:[%s2 + $0x10] sm:$0xff]
  %v134 = vld [vmem:[%s2 + $0x18] sm:$0xff]
  %v135 = vld [vmem:[%s2 + $0x20] sm:$0xff]
  %v136 = vld [vmem:[%s2 + $0x28] sm:$0xff]
  %v137 = vld [vmem:[%s2 + $0x30] sm:$0xff]
  %v138 = vld [vmem:[%s2 + $0x38] sm:$0xff]
  %v139 = vld [vmem:[%s2 + $0x40] sm:$0xff]
  %v140 = vld [vmem:[%s2 + $0x48] sm:$0xff]
  %v141 = vld [vmem:[%s2 + $0x50] sm:$0xff]
  %v142 = vld [vmem:[%s2 + $0x58] sm:$0xff]
  %v143 = vld [vmem:[%s2 + $0x60] sm:$0xff]
  %v144 = vld [vmem:[%s2 + $0x68] sm:$0xff]
  %v145 = vld [vmem:[%s2 + $0x70] sm:$0xff]
  %v146 = vld [vmem:[%s2 + $0x78] sm:$0xff]
  %147 = vmatprep.subr.mxu0 0.0
  %148 = vmatpush1.msra.mxu0 %v146
  %149 = vmatprep.subr.mxu0 0.0
  %150 = vmatpush1.msra.mxu0 %v145
  %151 = vmatprep.subr.mxu0 0.0
  %152 = vmatpush1.msra.mxu0 %v144
  %153 = vmatprep.subr.mxu0 0.0
  %154 = vmatpush1.msra.mxu0 %v143
  %155 = vmatprep.subr.mxu0 0.0
  %156 = vmatpush1.msra.mxu0 %v142
  %157 = vmatprep.subr.mxu0 0.0
  %158 = vmatpush1.msra.mxu0 %v141
  %159 = vmatprep.subr.mxu0 0.0
  %160 = vmatpush1.msra.mxu0 %v140
  %161 = vmatprep.subr.mxu0 0.0
  %162 = vmatpush1.msra.mxu0 %v139
  %163 = vmatprep.subr.mxu0 0.0
  %164 = vmatpush1.msra.mxu0 %v138
  %165 = vmatprep.subr.mxu0 0.0
  %166 = vmatpush1.msra.mxu0 %v137
  %167 = vmatprep.subr.mxu0 0.0
  %168 = vmatpush1.msra.mxu0 %v136
  %169 = vmatprep.subr.mxu0 0.0
  %170 = vmatpush1.msra.mxu0 %v135
  %171 = vmatprep.subr.mxu0 0.0
  %172 = vmatpush1.msra.mxu0 %v134
  %173 = vmatprep.subr.mxu0 0.0
  %174 = vmatpush1.msra.mxu0 %v133
  %175 = vmatprep.subr.mxu0 0.0
  %176 = vmatpush1.msra.mxu0 %v132
  %177 = vmatprep.subr.mxu0 0.0
  %178 = vmatpush1.msra.mxu0 %v131
  %179 = vmatprep.subr.mxu0 0.0
  %180 = vmatpush2.msra.mxu0 0.0
  %181 = vmatprep.subr.mxu0 0.0
  %182 = vmatpush2.msra.mxu0 0.0
  %183 = vmatprep.subr.mxu0 0.0
  %184 = vmatpush2.msra.mxu0 0.0
  %185 = vmatprep.subr.mxu0 0.0
  %186 = vmatpush2.msra.mxu0 0.0
  %187 = vmatprep.subr.mxu0 0.0
  %188 = vmatpush2.msra.mxu0 0.0
  %189 = vmatprep.subr.mxu0 0.0
  %190 = vmatpush2.msra.mxu0 0.0
  %191 = vmatprep.subr.mxu0 0.0
  %192 = vmatpush2.msra.mxu0 0.0
  %193 = vmatprep.subr.mxu0 0.0
  %194 = vmatpush2.msra.mxu0 0.0
  %195 = vmatprep.subr.mxu0 0.0
  %196 = vmatpush2.msra.mxu0 0.0
  %197 = vmatprep.subr.mxu0 0.0
  %198 = vmatpush2.msra.mxu0 0.0
  %199 = vmatprep.subr.mxu0 0.0
  %200 = vmatpush2.msra.mxu0 0.0
  %201 = vmatprep.subr.mxu0 0.0
  %202 = vmatpush2.msra.mxu0 0.0
  %203 = vmatprep.subr.mxu0 0.0
  %204 = vmatpush2.msra.mxu0 0.0
  %205 = vmatprep.subr.mxu0 0.0
  %206 = vmatpush2.msra.mxu0 0.0
  %207 = vmatprep.subr.mxu0 0.0
  %208 = vmatpush2.msra.mxu0 0.0
  %209 = vmatprep.subr.mxu0 0.0
  %210 = vmatpush2.msra.mxu0 0.0
  %211 = vmatprep.mubr.f32.mxu0 0.0
  %212 = vmatmul.mubr.f32.gmra.mxu0 %v119
  %v213 = vpop.f32.mrf.mxu0
  %v214 = vadd.f32 0.0, %v213
  %v215 = vpop.f32.mrf.mxu0
  %216 = vmatprep.mubr.f32.mxu0 0.0
  %217 = vmatmul.mubr.f32.gmra.mxu0 %v120
  %v218 = vpop.f32.mrf.mxu0
  %v219 = vadd.f32 0.0, %v218
  %v220 = vpop.f32.mrf.mxu0
  %221 = vmatprep.mubr.f32.mxu0 0.0
  %222 = vmatmul.mubr.f32.gmra.mxu0 %v121
  %v223 = vpop.f32.mrf.mxu0
  %v224 = vadd.f32 0.0, %v223
  %v225 = vpop.f32.mrf.mxu0
  %226 = vmatprep.mubr.f32.mxu0 0.0
  %227 = vmatmul.mubr.f32.gmra.mxu0 %v122
  %v228 = vpop.f32.mrf.mxu0
  %v229 = vadd.f32 0.0, %v228
  %v230 = vpop.f32.mrf.mxu0
  %231 = vmatprep.mubr.f32.mxu0 0.0
  %232 = vmatmul.mubr.f32.gmra.mxu0 %v123
  %v233 = vpop.f32.mrf.mxu0
  %v234 = vadd.f32 0.0, %v233
  %v235 = vpop.f32.mrf.mxu0
  %236 = vmatprep.mubr.f32.mxu0 0.0
  %237 = vmatmul.mubr.f32.gmra.mxu0 %v124
  %v238 = vpop.f32.mrf.mxu0
  %v239 = vadd.f32 0.0, %v238
  %v240 = vpop.f32.mrf.mxu0
  %241 = vmatprep.mubr.f32.mxu0 0.0
  %242 = vmatmul.mubr.f32.gmra.mxu0 %v125
  %v243 = vpop.f32.mrf.mxu0
  %v244 = vadd.f32 0.0, %v243
  %v245 = vpop.f32.mrf.mxu0
  %246 = vmatprep.mubr.f32.mxu0 0.0
  %247 = vmatmul.mubr.f32.gmra.mxu0 %v126
  %v248 = vpop.f32.mrf.mxu0
  %v249 = vadd.f32 0.0, %v248
  %v250 = vpop.f32.mrf.mxu0
  %251 = vmatprep.mubr.f32.mxu0 0.0
  %252 = vmatmul.mubr.f32.gmra.mxu0 %v127
  %v253 = vpop.f32.mrf.mxu0
  %v254 = vadd.f32 0.0, %v253
  %v255 = vpop.f32.mrf.mxu0
  %256 = vmatprep.mubr.f32.mxu0 0.0
  %257 = vmatmul.mubr.f32.gmra.mxu0 %v128
  %v258 = vpop.f32.mrf.mxu0
  %v259 = vadd.f32 0.0, %v258
  %v260 = vpop.f32.mrf.mxu0
  %261 = vmatprep.mubr.f32.mxu0 0.0
  %262 = vmatmul.mubr.f32.gmra.mxu0 %v129
  %v263 = vpop.f32.mrf.mxu0
  %v264 = vadd.f32 0.0, %v263
  %v265 = vpop.f32.mrf.mxu0
  %266 = vmatprep.mubr.f32.mxu0 0.0
  %267 = vmatmul.mubr.f32.gmra.mxu0 %v130
  %v268 = vpop.f32.mrf.mxu0
  %v269 = vadd.f32 0.0, %v268
  %v270 = vpop.f32.mrf.mxu0
  %271 = vdwg.mxu0
  %vm272 = vcmp.gt.s32.totalorder %v44, 0
  %v273 = vsel %vm272, 1, 0
  %274 = vset.pattern.permute.xlu0 0
  %275 = vperm.xlu0 %274, %v273
  %v276 = vpop.permute.xlu0 %275
  %vm277 = vcmp.eq.s32.totalorder %v276, 1
  %vm278 = vcmp.gt.s32.totalorder %v44, 1
  %v279 = vsel %vm278, 1, 0
  %280 = vset.pattern.permute.xlu0 0
  %281 = vperm.xlu0 %280, %v279
  %v282 = vpop.permute.xlu0 %281
  %vm283 = vcmp.eq.s32.totalorder %v282, 1
  %vm284 = vcmp.gt.s32.totalorder %v44, 2
  %v285 = vsel %vm284, 1, 0
  %286 = vset.pattern.permute.xlu0 0
  %287 = vperm.xlu0 %286, %v285
  %v288 = vpop.permute.xlu0 %287
  %vm289 = vcmp.eq.s32.totalorder %v288, 1
  %vm290 = vcmp.gt.s32.totalorder %v44, 3
  %v291 = vsel %vm290, 1, 0
  %292 = vset.pattern.permute.xlu0 0
  %293 = vperm.xlu0 %292, %v291
  %v294 = vpop.permute.xlu0 %293
  %vm295 = vcmp.eq.s32.totalorder %v294, 1
  %vm296 = vcmp.gt.s32.totalorder %v44, 4
  %v297 = vsel %vm296, 1, 0
  %298 = vset.pattern.permute.xlu0 0
  %299 = vperm.xlu0 %298, %v297
  %v300 = vpop.permute.xlu0 %299
  %vm301 = vcmp.eq.s32.totalorder %v300, 1
  %vm302 = vcmp.gt.s32.totalorder %v44, 5
  %v303 = vsel %vm302, 1, 0
  %304 = vset.pattern.permute.xlu0 0
  %305 = vperm.xlu0 %304, %v303
  %v306 = vpop.permute.xlu0 %305
  %vm307 = vcmp.eq.s32.totalorder %v306, 1
  %vm308 = vcmp.gt.s32.totalorder %v44, 6
  %v309 = vsel %vm308, 1, 0
  %310 = vset.pattern.permute.xlu0 0
  %311 = vperm.xlu0 %310, %v309
  %v312 = vpop.permute.xlu0 %311
  %vm313 = vcmp.eq.s32.totalorder %v312, 1
  %vm314 = vcmp.gt.s32.totalorder %v44, 7
  %v315 = vsel %vm314, 1, 0
  %316 = vset.pattern.permute.xlu0 0
  %317 = vperm.xlu0 %316, %v315
  %v318 = vpop.permute.xlu0 %317
  %vm319 = vcmp.eq.s32.totalorder %v318, 1
  %vm320 = vcmp.gt.s32.totalorder %v44, 8
  %v321 = vsel %vm320, 1, 0
  %322 = vset.pattern.permute.xlu0 0
  %323 = vperm.xlu0 %322, %v321
  %v324 = vpop.permute.xlu0 %323
  %vm325 = vcmp.eq.s32.totalorder %v324, 1
  %vm326 = vcmp.gt.s32.totalorder %v44, 9
  %v327 = vsel %vm326, 1, 0
  %328 = vset.pattern.permute.xlu0 0
  %329 = vperm.xlu0 %328, %v327
  %v330 = vpop.permute.xlu0 %329
  %vm331 = vcmp.eq.s32.totalorder %v330, 1
  %vm332 = vcmp.gt.s32.totalorder %v44, 10
  %v333 = vsel %vm332, 1, 0
  %334 = vset.pattern.permute.xlu0 0
  %335 = vperm.xlu0 %334, %v333
  %v336 = vpop.permute.xlu0 %335
  %vm337 = vcmp.eq.s32.totalorder %v336, 1
  %vm338 = vcmp.gt.s32.totalorder %v44, 11
  %v339 = vsel %vm338, 1, 0
  %340 = vset.pattern.permute.xlu0 0
  %341 = vperm.xlu0 %340, %v339
  %v342 = vpop.permute.xlu0 %341
  %vm343 = vcmp.eq.s32.totalorder %v342, 1
  %v344 = vld [vmem:[%s3] sm:$0xff]
  %v345 = vld [vmem:[%s3 + $0x8] sm:$0xff]
  %v346 = vld [vmem:[%s3 + $0x10] sm:$0xff]
  %v347 = vld [vmem:[%s3 + $0x18] sm:$0xff]
  %v348 = vld [vmem:[%s3 + $0x20] sm:$0xff]
  %v349 = vld [vmem:[%s3 + $0x28] sm:$0xff]
  %v350 = vld [vmem:[%s3 + $0x30] sm:$0xff]
  %v351 = vld [vmem:[%s3 + $0x38] sm:$0xff]
  %v352 = vld [vmem:[%s5] sm:$0x3]
  %v354 = vlaneseq
  %v355 = vshrl.u32 %v354, 7
  %v356 = vsub.s32 0, %v355
  %v357 = vrot.slane %v352, %v356
  %v358 = vlaneseq
  %v359 = vshrl.u32 %v358, 7
  %v360 = vsub.s32 1, %v359
  %v361 = vrot.slane %v352, %v360
  %vm364 = vcmask 261120
  %v366 = vsel %vm364, %v214, 0
  %v369 = vsel %vm364, %v219, 0
  %v372 = vsel %vm364, %v224, 0
  %v375 = vsel %vm364, %v229, 0
  %v378 = vsel %vm364, %v234, 0
  %v381 = vsel %vm364, %v239, 0
  %v384 = vsel %vm364, %v244, 0
  %v387 = vsel %vm364, %v249, 0
  %v390 = vsel %vm364, %v254, 0
  %v393 = vsel %vm364, %v259, 0
  %v396 = vsel %vm364, %v264, 0
  %v399 = vsel %vm364, %v269, 0
  %401 = vmatprep.subr.mxu0 0.0
  %402 = vmatpush1.msra.mxu0 0.0
  %403 = vmatprep.subr.mxu0 0.0
  %404 = vmatpush1.msra.mxu0 0.0
  %405 = vmatprep.subr.mxu0 0.0
  %406 = vmatpush1.msra.mxu0 0.0
  %407 = vmatprep.subr.mxu0 0.0
  %408 = vmatpush1.msra.mxu0 0.0
  %409 = vmatprep.subr.mxu0 0.0
  %410 = vmatpush1.msra.mxu0 0.0
  %411 = vmatprep.subr.mxu0 0.0
  %412 = vmatpush1.msra.mxu0 0.0
  %413 = vmatprep.subr.mxu0 0.0
  %414 = vmatpush1.msra.mxu0 0.0
  %415 = vmatprep.subr.mxu0 0.0
  %416 = vmatpush1.msra.mxu0 0.0
  %417 = vmatprep.subr.mxu0 0.0
  %418 = vmatpush1.msra.mxu0 0.0
  %419 = vmatprep.subr.mxu0 0.0
  %420 = vmatpush1.msra.mxu0 0.0
  %421 = vmatprep.subr.mxu0 0.0
  %422 = vmatpush1.msra.mxu0 0.0
  %423 = vmatprep.subr.mxu0 0.0
  %424 = vmatpush1.msra.mxu0 0.0
  %425 = vmatprep.subr.mxu0 %v351
  %426 = vmatpush1.msra.mxu0 %v350
  %427 = vmatprep.subr.mxu0 %v349
  %428 = vmatpush1.msra.mxu0 %v348
  %429 = vmatprep.subr.mxu0 %v347
  %430 = vmatpush1.msra.mxu0 %v346
  %431 = vmatprep.subr.mxu0 %v345
  %432 = vmatpush1.msra.mxu0 %v344
  %433 = vmatprep.subr.mxu0 0.0
  %434 = vmatpush2.msra.mxu0 0.0
  %435 = vmatprep.subr.mxu0 0.0
  %436 = vmatpush2.msra.mxu0 0.0
  %437 = vmatprep.subr.mxu0 0.0
  %438 = vmatpush2.msra.mxu0 0.0
  %439 = vmatprep.subr.mxu0 0.0
  %440 = vmatpush2.msra.mxu0 0.0
  %441 = vmatprep.subr.mxu0 0.0
  %442 = vmatpush2.msra.mxu0 0.0
  %443 = vmatprep.subr.mxu0 0.0
  %444 = vmatpush2.msra.mxu0 0.0
  %445 = vmatprep.subr.mxu0 0.0
  %446 = vmatpush2.msra.mxu0 0.0
  %447 = vmatprep.subr.mxu0 0.0
  %448 = vmatpush2.msra.mxu0 0.0
  %449 = vmatprep.subr.mxu0 0.0
  %450 = vmatpush2.msra.mxu0 0.0
  %451 = vmatprep.subr.mxu0 0.0
  %452 = vmatpush2.msra.mxu0 0.0
  %453 = vmatprep.subr.mxu0 0.0
  %454 = vmatpush2.msra.mxu0 0.0
  %455 = vmatprep.subr.mxu0 0.0
  %456 = vmatpush2.msra.mxu0 0.0
  %457 = vmatprep.subr.mxu0 0.0
  %458 = vmatpush2.msra.mxu0 0.0
  %459 = vmatprep.subr.mxu0 0.0
  %460 = vmatpush2.msra.mxu0 0.0
  %461 = vmatprep.subr.mxu0 0.0
  %462 = vmatpush2.msra.mxu0 0.0
  %463 = vmatprep.subr.mxu0 0.0
  %464 = vmatpush2.msra.mxu0 0.0
  %465 = vmatprep.mubr.f32.mxu0 0.0
  %466 = vmatmul.mubr.f32.gmra.mxu0 %v366
  %v467 = vpop.f32.mrf.mxu0
  %v468 = vadd.f32 %v357, %v467
  %v469 = vpop.f32.mrf.mxu0
  %v470 = vadd.f32 %v361, %v469
  %471 = vmatprep.mubr.f32.mxu0 0.0
  %472 = vmatmul.mubr.f32.gmra.mxu0 %v369
  %v473 = vpop.f32.mrf.mxu0
  %v474 = vadd.f32 %v357, %v473
  %v475 = vpop.f32.mrf.mxu0
  %v476 = vadd.f32 %v361, %v475
  %477 = vmatprep.mubr.f32.mxu0 0.0
  %478 = vmatmul.mubr.f32.gmra.mxu0 %v372
  %v479 = vpop.f32.mrf.mxu0
  %v480 = vadd.f32 %v357, %v479
  %v481 = vpop.f32.mrf.mxu0
  %v482 = vadd.f32 %v361, %v481
  %483 = vmatprep.mubr.f32.mxu0 0.0
  %484 = vmatmul.mubr.f32.gmra.mxu0 %v375
  %v485 = vpop.f32.mrf.mxu0
  %v486 = vadd.f32 %v357, %v485
  %v487 = vpop.f32.mrf.mxu0
  %v488 = vadd.f32 %v361, %v487
  %489 = vmatprep.mubr.f32.mxu0 0.0
  %490 = vmatmul.mubr.f32.gmra.mxu0 %v378
  %v491 = vpop.f32.mrf.mxu0
  %v492 = vadd.f32 %v357, %v491
  %v493 = vpop.f32.mrf.mxu0
  %v494 = vadd.f32 %v361, %v493
  %495 = vmatprep.mubr.f32.mxu0 0.0
  %496 = vmatmul.mubr.f32.gmra.mxu0 %v381
  %v497 = vpop.f32.mrf.mxu0
  %v498 = vadd.f32 %v357, %v497
  %v499 = vpop.f32.mrf.mxu0
  %v500 = vadd.f32 %v361, %v499
  %501 = vmatprep.mubr.f32.mxu0 0.0
  %502 = vmatmul.mubr.f32.gmra.mxu0 %v384
  %v503 = vpop.f32.mrf.mxu0
  %v504 = vadd.f32 %v357, %v503
  %v505 = vpop.f32.mrf.mxu0
  %v506 = vadd.f32 %v361, %v505
  %507 = vmatprep.mubr.f32.mxu0 0.0
  %508 = vmatmul.mubr.f32.gmra.mxu0 %v387
  %v509 = vpop.f32.mrf.mxu0
  %v510 = vadd.f32 %v357, %v509
  %v511 = vpop.f32.mrf.mxu0
  %v512 = vadd.f32 %v361, %v511
  %513 = vmatprep.mubr.f32.mxu0 0.0
  %514 = vmatmul.mubr.f32.gmra.mxu0 %v390
  %v515 = vpop.f32.mrf.mxu0
  %v516 = vadd.f32 %v357, %v515
  %v517 = vpop.f32.mrf.mxu0
  %v518 = vadd.f32 %v361, %v517
  %519 = vmatprep.mubr.f32.mxu0 0.0
  %520 = vmatmul.mubr.f32.gmra.mxu0 %v393
  %v521 = vpop.f32.mrf.mxu0
  %v522 = vadd.f32 %v357, %v521
  %v523 = vpop.f32.mrf.mxu0
  %v524 = vadd.f32 %v361, %v523
  %525 = vmatprep.mubr.f32.mxu0 0.0
  %526 = vmatmul.mubr.f32.gmra.mxu0 %v396
  %v527 = vpop.f32.mrf.mxu0
  %v528 = vadd.f32 %v357, %v527
  %v529 = vpop.f32.mrf.mxu0
  %v530 = vadd.f32 %v361, %v529
  %531 = vmatprep.mubr.f32.mxu0 0.0
  %532 = vmatmul.mubr.f32.gmra.mxu0 %v399
  %v533 = vpop.f32.mrf.mxu0
  %v534 = vadd.f32 %v357, %v533
  %v535 = vpop.f32.mrf.mxu0
  %v536 = vadd.f32 %v361, %v535
  %537 = vdwg.mxu0
  %538 = vst [vmem:[#allocation2] sm:$0xff] %v468
  %539 = vst [vmem:[#allocation2 + $0x8] sm:$0xff] %v470
  %540 = vst [vmem:[#allocation2 + $0x10] sm:$0xff] %v474
  %541 = vst [vmem:[#allocation2 + $0x18] sm:$0xff] %v476
  %542 = vst [vmem:[#allocation2 + $0x20] sm:$0xff] %v480
  %543 = vst [vmem:[#allocation2 + $0x28] sm:$0xff] %v482
  %544 = vst [vmem:[#allocation2 + $0x30] sm:$0xff] %v486
  %545 = vst [vmem:[#allocation2 + $0x38] sm:$0xff] %v488
  %546 = vst [vmem:[#allocation2 + $0x40] sm:$0xff] %v492
  %547 = vst [vmem:[#allocation2 + $0x48] sm:$0xff] %v494
  %548 = vst [vmem:[#allocation2 + $0x50] sm:$0xff] %v498
  %549 = vst [vmem:[#allocation2 + $0x58] sm:$0xff] %v500
  %550 = vst [vmem:[#allocation2 + $0x60] sm:$0xff] %v504
  %551 = vst [vmem:[#allocation2 + $0x68] sm:$0xff] %v506
  %552 = vst [vmem:[#allocation2 + $0x70] sm:$0xff] %v510
  %553 = vst [vmem:[#allocation2 + $0x78] sm:$0xff] %v512
  %554 = vst [vmem:[#allocation2 + $0x80] sm:$0xff] %v516
  %555 = vst [vmem:[#allocation2 + $0x88] sm:$0xff] %v518
  %556 = vst [vmem:[#allocation2 + $0x90] sm:$0xff] %v522
  %557 = vst [vmem:[#allocation2 + $0x98] sm:$0xff] %v524
  %558 = vst [vmem:[#allocation2 + $0xa0] sm:$0xff] %v528
  %559 = vst [vmem:[#allocation2 + $0xa8] sm:$0xff] %v530
  %560 = vst [vmem:[#allocation2 + $0xb0] sm:$0xff] %v534
  %561 = vst [vmem:[#allocation2 + $0xb8] sm:$0xff] %v536
  %v562 = vld [vmem:[%s4] sm:$0xff]
  %v563 = vld [vmem:[%s4 + $0x8] sm:$0xff]
  %v564 = vld [vmem:[%s4 + $0x10] sm:$0xff]
  %v565 = vld [vmem:[%s4 + $0x18] sm:$0xff]
  %s566 = scalar_lea.vmem %s4, 32
  %v567 = vld [vmem:[%s566] sm:$0xff]
  %v568 = vld [vmem:[%s566 + $0x8] sm:$0xff]
  %v569 = vld [vmem:[%s566 + $0x10] sm:$0xff]
  %v570 = vld [vmem:[%s566 + $0x18] sm:$0xff]
  %v571 = vld [vmem:[#allocation2] sm:$0xff]
  %v573 = vsel %vm364, 0.0, 0
  %575 = vmatprep.subr.mxu0 0.0
  %576 = vmatpush1.msra.mxu0 0.0
  %577 = vmatprep.subr.mxu0 0.0
  %578 = vmatpush1.msra.mxu0 0.0
  %579 = vmatprep.subr.mxu0 0.0
  %580 = vmatpush1.msra.mxu0 0.0
  %581 = vmatprep.subr.mxu0 0.0
  %582 = vmatpush1.msra.mxu0 0.0
  %583 = vmatprep.subr.mxu0 0.0
  %584 = vmatpush1.msra.mxu0 0.0
  %585 = vmatprep.subr.mxu0 0.0
  %586 = vmatpush1.msra.mxu0 0.0
  %587 = vmatprep.subr.mxu0 0.0
  %588 = vmatpush1.msra.mxu0 0.0
  %589 = vmatprep.subr.mxu0 0.0
  %590 = vmatpush1.msra.mxu0 0.0
  %591 = vmatprep.subr.mxu0 0.0
  %592 = vmatpush1.msra.mxu0 0.0
  %593 = vmatprep.subr.mxu0 0.0
  %594 = vmatpush1.msra.mxu0 0.0
  %595 = vmatprep.subr.mxu0 0.0
  %596 = vmatpush1.msra.mxu0 0.0
  %597 = vmatprep.subr.mxu0 0.0
  %598 = vmatpush1.msra.mxu0 0.0
  %599 = vmatprep.subr.mxu0 0.0
  %600 = vmatpush1.msra.mxu0 %v565
  %601 = vmatprep.subr.mxu0 0.0
  %602 = vmatpush1.msra.mxu0 %v564
  %603 = vmatprep.subr.mxu0 0.0
  %604 = vmatpush1.msra.mxu0 %v563
  %605 = vmatprep.subr.mxu0 0.0
  %606 = vmatpush1.msra.mxu0 %v562
  %607 = vmatprep.subr.mxu0 0.0
  %608 = vmatpush2.msra.mxu0 0.0
  %609 = vmatprep.subr.mxu0 0.0
  %610 = vmatpush2.msra.mxu0 0.0
  %611 = vmatprep.subr.mxu0 0.0
  %612 = vmatpush2.msra.mxu0 0.0
  %613 = vmatprep.subr.mxu0 0.0
  %614 = vmatpush2.msra.mxu0 0.0
  %615 = vmatprep.subr.mxu0 0.0
  %616 = vmatpush2.msra.mxu0 0.0
  %617 = vmatprep.subr.mxu0 0.0
  %618 = vmatpush2.msra.mxu0 0.0
  %619 = vmatprep.subr.mxu0 0.0
  %620 = vmatpush2.msra.mxu0 0.0
  %621 = vmatprep.subr.mxu0 0.0
  %622 = vmatpush2.msra.mxu0 0.0
  %623 = vmatprep.subr.mxu0 0.0
  %624 = vmatpush2.msra.mxu0 0.0
  %625 = vmatprep.subr.mxu0 0.0
  %626 = vmatpush2.msra.mxu0 0.0
  %627 = vmatprep.subr.mxu0 0.0
  %628 = vmatpush2.msra.mxu0 0.0
  %629 = vmatprep.subr.mxu0 0.0
  %630 = vmatpush2.msra.mxu0 0.0
  %631 = vmatprep.subr.mxu0 0.0
  %632 = vmatpush2.msra.mxu0 0.0
  %633 = vmatprep.subr.mxu0 0.0
  %634 = vmatpush2.msra.mxu0 0.0
  %635 = vmatprep.subr.mxu0 0.0
  %636 = vmatpush2.msra.mxu0 0.0
  %637 = vmatprep.subr.mxu0 0.0
  %638 = vmatpush2.msra.mxu0 0.0
  %639 = vmatprep.mubr.f32.mxu0 0.0
  %640 = vmatmul.mubr.f32.gmra.mxu0 %v573
  %v641 = vpop.f32.mrf.mxu0
  %v642 = vadd.f32 0.0, %v641
  %v643 = vpop.f32.mrf.mxu0
  %644 = vdwg.mxu0
  %v645 = vadd.f32 %v571, %v642
  %v646 = vtanh.pop %v645
  %v647 = vmul.f32 %v646, 0.5
  %v648 = vadd.f32 %v647, 0.5
  %v649 = vmul.f32 %v648, 0.0
  %651 = vrot.lane.b32.xlu0 %v646, 64
  %v652 = vpop.permute.xlu0 %651
  %v654 = vmul.f32 %v648, %v652
  %656 = vrot.lane.b32.xlu0 %v654, 32
  %v657 = vpop.permute.xlu0 %656
  %v659 = vadd.f32 %v649, %v657
  %v660 = vtanh.pop %v659
  %662 = vrot.lane.b32.xlu0 %v660, 64
  %v663 = vpop.permute.xlu0 %662
  %v665 = vmul.f32 %v648, %v663
  %v666 = vsel %vm277, %v665, 0.0
  %v667 = vsel %vm277, %v659, 0.0
  %669 = vrot.lane.b32.xlu0 %v666, 32
  %v670 = vpop.permute.xlu0 %669
  %672 = vst.msk [vmem:[#allocation3] sm:$0xff] %vm364, %v670
  %v673 = vld [vmem:[#allocation2 + $0xb8] sm:$0xff]
  %674 = vmatprep.subr.mxu0 0.0
  %675 = vmatpush1.msra.mxu0 0.0
  %676 = vmatprep.subr.mxu0 0.0
  %677 = vmatpush1.msra.mxu0 0.0
  %678 = vmatprep.subr.mxu0 0.0
  %679 = vmatpush1.msra.mxu0 0.0
  %680 = vmatprep.subr.mxu0 0.0
  %681 = vmatpush1.msra.mxu0 0.0
  %682 = vmatprep.subr.mxu0 0.0
  %683 = vmatpush1.msra.mxu0 0.0
  %684 = vmatprep.subr.mxu0 0.0
  %685 = vmatpush1.msra.mxu0 0.0
  %686 = vmatprep.subr.mxu0 0.0
  %687 = vmatpush1.msra.mxu0 0.0
  %688 = vmatprep.subr.mxu0 0.0
  %689 = vmatpush1.msra.mxu0 0.0
  %690 = vmatprep.subr.mxu0 0.0
  %691 = vmatpush1.msra.mxu0 0.0
  %692 = vmatprep.subr.mxu0 0.0
  %693 = vmatpush1.msra.mxu0 0.0
  %694 = vmatprep.subr.mxu0 0.0
  %695 = vmatpush1.msra.mxu0 0.0
  %696 = vmatprep.subr.mxu0 0.0
  %697 = vmatpush1.msra.mxu0 0.0
  %698 = vmatprep.subr.mxu0 0.0
  %699 = vmatpush1.msra.mxu0 %v570
  %700 = vmatprep.subr.mxu0 0.0
  %701 = vmatpush1.msra.mxu0 %v569
  %702 = vmatprep.subr.mxu0 0.0
  %703 = vmatpush1.msra.mxu0 %v568
  %704 = vmatprep.subr.mxu0 0.0
  %705 = vmatpush1.msra.mxu0 %v567
  %706 = vmatprep.subr.mxu0 0.0
  %707 = vmatpush2.msra.mxu0 0.0
  %708 = vmatprep.subr.mxu0 0.0
  %709 = vmatpush2.msra.mxu0 0.0
  %710 = vmatprep.subr.mxu0 0.0
  %711 = vmatpush2.msra.mxu0 0.0
  %712 = vmatprep.subr.mxu0 0.0
  %713 = vmatpush2.msra.mxu0 0.0
  %714 = vmatprep.subr.mxu0 0.0
  %715 = vmatpush2.msra.mxu0 0.0
  %716 = vmatprep.subr.mxu0 0.0
  %717 = vmatpush2.msra.mxu0 0.0
  %718 = vmatprep.subr.mxu0 0.0
  %719 = vmatpush2.msra.mxu0 0.0
  %720 = vmatprep.subr.mxu0 0.0
  %721 = vmatpush2.msra.mxu0 0.0
  %722 = vmatprep.subr.mxu0 0.0
  %723 = vmatpush2.msra.mxu0 0.0
  %724 = vmatprep.subr.mxu0 0.0
  %725 = vmatpush2.msra.mxu0 0.0
  %726 = vmatprep.subr.mxu0 0.0
  %727 = vmatpush2.msra.mxu0 0.0
  %728 = vmatprep.subr.mxu0 0.0
  %729 = vmatpush2.msra.mxu0 0.0
  %730 = vmatprep.subr.mxu0 0.0
  %731 = vmatpush2.msra.mxu0 0.0
  %732 = vmatprep.subr.mxu0 0.0
  %733 = vmatpush2.msra.mxu0 0.0
  %734 = vmatprep.subr.mxu0 0.0
  %735 = vmatpush2.msra.mxu0 0.0
  %736 = vmatprep.subr.mxu0 0.0
  %737 = vmatpush2.msra.mxu0 0.0
  %738 = vmatprep.mubr.f32.mxu0 0.0
  %739 = vmatmul.mubr.f32.gmra.mxu0 %v573
  %v740 = vpop.f32.mrf.mxu0
  %v741 = vadd.f32 0.0, %v740
  %v742 = vpop.f32.mrf.mxu0
  %743 = vdwg.mxu0
  %v744 = vadd.f32 %v673, %v741
  %v745 = vtanh.pop %v744
  %v746 = vmul.f32 %v745, 0.5
  %v747 = vadd.f32 %v746, 0.5
  %v748 = vmul.f32 %v747, 0.0
  %750 = vrot.lane.b32.xlu0 %v745, 64
  %v751 = vpop.permute.xlu0 %750
  %v753 = vmul.f32 %v747, %v751
  %755 = vrot.lane.b32.xlu0 %v753, 32
  %v756 = vpop.permute.xlu0 %755
  %v758 = vadd.f32 %v748, %v756
  %v759 = vtanh.pop %v758
  %761 = vrot.lane.b32.xlu0 %v759, 64
  %v762 = vpop.permute.xlu0 %761
  %v764 = vmul.f32 %v747, %v762
  %v765 = vsel %vm343, %v764, 0.0
  %v766 = vsel %vm343, %v758, 0.0
  %768 = vrot.lane.b32.xlu0 %v765, 64
  %v769 = vpop.permute.xlu0 %768
  %vm771 = vcmask 523520
  %772 = vst.msk [vmem:[#allocation3 + $0x58] sm:$0xff] %vm771, %v769
  %v773 = vld [vmem:[#allocation2 + $0x10] sm:$0xff]
  %v774 = vsel %vm364, %v670, 0
  %776 = vmatprep.subr.mxu0 0.0
  %777 = vmatpush1.msra.mxu0 0.0
  %778 = vmatprep.subr.mxu0 0.0
  %779 = vmatpush1.msra.mxu0 0.0
  %780 = vmatprep.subr.mxu0 0.0
  %781 = vmatpush1.msra.mxu0 0.0
  %782 = vmatprep.subr.mxu0 0.0
  %783 = vmatpush1.msra.mxu0 0.0
  %784 = vmatprep.subr.mxu0 0.0
  %785 = vmatpush1.msra.mxu0 0.0
  %786 = vmatprep.subr.mxu0 0.0
  %787 = vmatpush1.msra.mxu0 0.0
  %788 = vmatprep.subr.mxu0 0.0
  %789 = vmatpush1.msra.mxu0 0.0
  %790 = vmatprep.subr.mxu0 0.0
  %791 = vmatpush1.msra.mxu0 0.0
  %792 = vmatprep.subr.mxu0 0.0
  %793 = vmatpush1.msra.mxu0 0.0
  %794 = vmatprep.subr.mxu0 0.0
  %795 = vmatpush1.msra.mxu0 0.0
  %796 = vmatprep.subr.mxu0 0.0
  %797 = vmatpush1.msra.mxu0 0.0
  %798 = vmatprep.subr.mxu0 0.0
  %799 = vmatpush1.msra.mxu0 0.0
  %800 = vmatprep.subr.mxu0 0.0
  %801 = vmatpush1.msra.mxu0 %v565
  %802 = vmatprep.subr.mxu0 0.0
  %803 = vmatpush1.msra.mxu0 %v564
  %804 = vmatprep.subr.mxu0 0.0
  %805 = vmatpush1.msra.mxu0 %v563
  %806 = vmatprep.subr.mxu0 0.0
  %807 = vmatpush1.msra.mxu0 %v562
  %808 = vmatprep.subr.mxu0 0.0
  %809 = vmatpush2.msra.mxu0 0.0
  %810 = vmatprep.subr.mxu0 0.0
  %811 = vmatpush2.msra.mxu0 0.0
  %812 = vmatprep.subr.mxu0 0.0
  %813 = vmatpush2.msra.mxu0 0.0
  %814 = vmatprep.subr.mxu0 0.0
  %815 = vmatpush2.msra.mxu0 0.0
  %816 = vmatprep.subr.mxu0 0.0
  %817 = vmatpush2.msra.mxu0 0.0
  %818 = vmatprep.subr.mxu0 0.0
  %819 = vmatpush2.msra.mxu0 0.0
  %820 = vmatprep.subr.mxu0 0.0
  %821 = vmatpush2.msra.mxu0 0.0
  %822 = vmatprep.subr.mxu0 0.0
  %823 = vmatpush2.msra.mxu0 0.0
  %824 = vmatprep.subr.mxu0 0.0
  %825 = vmatpush2.msra.mxu0 0.0
  %826 = vmatprep.subr.mxu0 0.0
  %827 = vmatpush2.msra.mxu0 0.0
  %828 = vmatprep.subr.mxu0 0.0
  %829 = vmatpush2.msra.mxu0 0.0
  %830 = vmatprep.subr.mxu0 0.0
  %831 = vmatpush2.msra.mxu0 0.0
  %832 = vmatprep.subr.mxu0 0.0
  %833 = vmatpush2.msra.mxu0 0.0
  %834 = vmatprep.subr.mxu0 0.0
  %835 = vmatpush2.msra.mxu0 0.0
  %836 = vmatprep.subr.mxu0 0.0
  %837 = vmatpush2.msra.mxu0 0.0
  %838 = vmatprep.subr.mxu0 0.0
  %839 = vmatpush2.msra.mxu0 0.0
  %840 = vmatprep.mubr.f32.mxu0 0.0
  %841 = vmatmul.mubr.f32.gmra.mxu0 %v774
  %v842 = vpop.f32.mrf.mxu0
  %v843 = vadd.f32 0.0, %v842
  %v844 = vpop.f32.mrf.mxu0
  %845 = vdwg.mxu0
  %v846 = vadd.f32 %v773, %v843
  %v847 = vtanh.pop %v846
  %v848 = vmul.f32 %v847, 0.5
  %v849 = vadd.f32 %v848, 0.5
  %v850 = vmul.f32 %v849, %v667
  %852 = vrot.lane.b32.xlu0 %v847, 64
  %v853 = vpop.permute.xlu0 %852
  %v855 = vmul.f32 %v849, %v853
  %857 = vrot.lane.b32.xlu0 %v855, 32
  %v858 = vpop.permute.xlu0 %857
  %v860 = vadd.f32 %v850, %v858
  %v861 = vtanh.pop %v860
  %863 = vrot.lane.b32.xlu0 %v861, 64
  %v864 = vpop.permute.xlu0 %863
  %v866 = vmul.f32 %v849, %v864
  %v867 = vsel %vm283, %v866, %v666
  %v868 = vsel %vm283, %v860, %v667
  %870 = vrot.lane.b32.xlu0 %v867, 32
  %v871 = vpop.permute.xlu0 %870
  %873 = vst.msk [vmem:[#allocation3 + $0x8] sm:$0xff] %vm364, %v871
  %v874 = vld [vmem:[#allocation2 + $0xa8] sm:$0xff]
  %875 = vrot.lane.b32.xlu0 %v765, 32
  %v876 = vpop.permute.xlu0 %875
  %v877 = vsel %vm364, %v876, 0
  %879 = vmatprep.subr.mxu0 0.0
  %880 = vmatpush1.msra.mxu0 0.0
  %881 = vmatprep.subr.mxu0 0.0
  %882 = vmatpush1.msra.mxu0 0.0
  %883 = vmatprep.subr.mxu0 0.0
  %884 = vmatpush1.msra.mxu0 0.0
  %885 = vmatprep.subr.mxu0 0.0
  %886 = vmatpush1.msra.mxu0 0.0
  %887 = vmatprep.subr.mxu0 0.0
  %888 = vmatpush1.msra.mxu0 0.0
  %889 = vmatprep.subr.mxu0 0.0
  %890 = vmatpush1.msra.mxu0 0.0
  %891 = vmatprep.subr.mxu0 0.0
  %892 = vmatpush1.msra.mxu0 0.0
  %893 = vmatprep.subr.mxu0 0.0
  %894 = vmatpush1.msra.mxu0 0.0
  %895 = vmatprep.subr.mxu0 0.0
  %896 = vmatpush1.msra.mxu0 0.0
  %897 = vmatprep.subr.mxu0 0.0
  %898 = vmatpush1.msra.mxu0 0.0
  %899 = vmatprep.subr.mxu0 0.0
  %900 = vmatpush1.msra.mxu0 0.0
  %901 = vmatprep.subr.mxu0 0.0
  %902 = vmatpush1.msra.mxu0 0.0
  %903 = vmatprep.subr.mxu0 0.0
  %904 = vmatpush1.msra.mxu0 %v570
  %905 = vmatprep.subr.mxu0 0.0
  %906 = vmatpush1.msra.mxu0 %v569
  %907 = vmatprep.subr.mxu0 0.0
  %908 = vmatpush1.msra.mxu0 %v568
  %909 = vmatprep.subr.mxu0 0.0
  %910 = vmatpush1.msra.mxu0 %v567
  %911 = vmatprep.subr.mxu0 0.0
  %912 = vmatpush2.msra.mxu0 0.0
  %913 = vmatprep.subr.mxu0 0.0
  %914 = vmatpush2.msra.mxu0 0.0
  %915 = vmatprep.subr.mxu0 0.0
  %916 = vmatpush2.msra.mxu0 0.0
  %917 = vmatprep.subr.mxu0 0.0
  %918 = vmatpush2.msra.mxu0 0.0
  %919 = vmatprep.subr.mxu0 0.0
  %920 = vmatpush2.msra.mxu0 0.0
  %921 = vmatprep.subr.mxu0 0.0
  %922 = vmatpush2.msra.mxu0 0.0
  %923 = vmatprep.subr.mxu0 0.0
  %924 = vmatpush2.msra.mxu0 0.0
  %925 = vmatprep.subr.mxu0 0.0
  %926 = vmatpush2.msra.mxu0 0.0
  %927 = vmatprep.subr.mxu0 0.0
  %928 = vmatpush2.msra.mxu0 0.0
  %929 = vmatprep.subr.mxu0 0.0
  %930 = vmatpush2.msra.mxu0 0.0
  %931 = vmatprep.subr.mxu0 0.0
  %932 = vmatpush2.msra.mxu0 0.0
  %933 = vmatprep.subr.mxu0 0.0
  %934 = vmatpush2.msra.mxu0 0.0
  %935 = vmatprep.subr.mxu0 0.0
  %936 = vmatpush2.msra.mxu0 0.0
  %937 = vmatprep.subr.mxu0 0.0
  %938 = vmatpush2.msra.mxu0 0.0
  %939 = vmatprep.subr.mxu0 0.0
  %940 = vmatpush2.msra.mxu0 0.0
  %941 = vmatprep.subr.mxu0 0.0
  %942 = vmatpush2.msra.mxu0 0.0
  %943 = vmatprep.mubr.f32.mxu0 0.0
  %944 = vmatmul.mubr.f32.gmra.mxu0 %v877
  %v945 = vpop.f32.mrf.mxu0
  %v946 = vadd.f32 0.0, %v945
  %v947 = vpop.f32.mrf.mxu0
  %948 = vdwg.mxu0
  %v949 = vadd.f32 %v874, %v946
  %v950 = vtanh.pop %v949
  %v951 = vmul.f32 %v950, 0.5
  %v952 = vadd.f32 %v951, 0.5
  %v953 = vmul.f32 %v952, %v766
  %955 = vrot.lane.b32.xlu0 %v950, 64
  %v956 = vpop.permute.xlu0 %955
  %v958 = vmul.f32 %v952, %v956
  %960 = vrot.lane.b32.xlu0 %v958, 32
  %v961 = vpop.permute.xlu0 %960
  %v963 = vadd.f32 %v953, %v961
  %v964 = vtanh.pop %v963
  %966 = vrot.lane.b32.xlu0 %v964, 64
  %v967 = vpop.permute.xlu0 %966
  %v969 = vmul.f32 %v952, %v967
  %v970 = vsel %vm337, %v969, %v765
  %v971 = vsel %vm337, %v963, %v766
  %973 = vrot.lane.b32.xlu0 %v970, 64
  %v974 = vpop.permute.xlu0 %973
  %976 = vst.msk [vmem:[#allocation3 + $0x50] sm:$0xff] %vm771, %v974
  %v977 = vld [vmem:[#allocation2 + $0x20] sm:$0xff]
  %v978 = vsel %vm364, %v871, 0
  %980 = vmatprep.subr.mxu0 0.0
  %981 = vmatpush1.msra.mxu0 0.0
  %982 = vmatprep.subr.mxu0 0.0
  %983 = vmatpush1.msra.mxu0 0.0
  %984 = vmatprep.subr.mxu0 0.0
  %985 = vmatpush1.msra.mxu0 0.0
  %986 = vmatprep.subr.mxu0 0.0
  %987 = vmatpush1.msra.mxu0 0.0
  %988 = vmatprep.subr.mxu0 0.0
  %989 = vmatpush1.msra.mxu0 0.0
  %990 = vmatprep.subr.mxu0 0.0
  %991 = vmatpush1.msra.mxu0 0.0
  %992 = vmatprep.subr.mxu0 0.0
  %993 = vmatpush1.msra.mxu0 0.0
  %994 = vmatprep.subr.mxu0 0.0
  %995 = vmatpush1.msra.mxu0 0.0
  %996 = vmatprep.subr.mxu0 0.0
  %997 = vmatpush1.msra.mxu0 0.0
  %998 = vmatprep.subr.mxu0 0.0
  %999 = vmatpush1.msra.mxu0 0.0
  %1000 = vmatprep.subr.mxu0 0.0
  %1001 = vmatpush1.msra.mxu0 0.0
  %1002 = vmatprep.subr.mxu0 0.0
  %1003 = vmatpush1.msra.mxu0 0.0
  %1004 = vmatprep.subr.mxu0 0.0
  %1005 = vmatpush1.msra.mxu0 %v565
  %1006 = vmatprep.subr.mxu0 0.0
  %1007 = vmatpush1.msra.mxu0 %v564
  %1008 = vmatprep.subr.mxu0 0.0
  %1009 = vmatpush1.msra.mxu0 %v563
  %1010 = vmatprep.subr.mxu0 0.0
  %1011 = vmatpush1.msra.mxu0 %v562
  %1012 = vmatprep.subr.mxu0 0.0
  %1013 = vmatpush2.msra.mxu0 0.0
  %1014 = vmatprep.subr.mxu0 0.0
  %1015 = vmatpush2.msra.mxu0 0.0
  %1016 = vmatprep.subr.mxu0 0.0
  %1017 = vmatpush2.msra.mxu0 0.0
  %1018 = vmatprep.subr.mxu0 0.0
  %1019 = vmatpush2.msra.mxu0 0.0
  %1020 = vmatprep.subr.mxu0 0.0
  %1021 = vmatpush2.msra.mxu0 0.0
  %1022 = vmatprep.subr.mxu0 0.0
  %1023 = vmatpush2.msra.mxu0 0.0
  %1024 = vmatprep.subr.mxu0 0.0
  %1025 = vmatpush2.msra.mxu0 0.0
  %1026 = vmatprep.subr.mxu0 0.0
  %1027 = vmatpush2.msra.mxu0 0.0
  %1028 = vmatprep.subr.mxu0 0.0
  %1029 = vmatpush2.msra.mxu0 0.0
  %1030 = vmatprep.subr.mxu0 0.0
  %1031 = vmatpush2.msra.mxu0 0.0
  %1032 = vmatprep.subr.mxu0 0.0
  %1033 = vmatpush2.msra.mxu0 0.0
  %1034 = vmatprep.subr.mxu0 0.0
  %1035 = vmatpush2.msra.mxu0 0.0
  %1036 = vmatprep.subr.mxu0 0.0
  %1037 = vmatpush2.msra.mxu0 0.0
  %1038 = vmatprep.subr.mxu0 0.0
  %1039 = vmatpush2.msra.mxu0 0.0
  %1040 = vmatprep.subr.mxu0 0.0
  %1041 = vmatpush2.msra.mxu0 0.0
  %1042 = vmatprep.subr.mxu0 0.0
  %1043 = vmatpush2.msra.mxu0 0.0
  %1044 = vmatprep.mubr.f32.mxu0 0.0
  %1045 = vmatmul.mubr.f32.gmra.mxu0 %v978
  %v1046 = vpop.f32.mrf.mxu0
  %v1047 = vadd.f32 0.0, %v1046
  %v1048 = vpop.f32.mrf.mxu0
  %1049 = vdwg.mxu0
  %v1050 = vadd.f32 %v977, %v1047
  %v1051 = vtanh.pop %v1050
  %v1052 = vmul.f32 %v1051, 0.5
  %v1053 = vadd.f32 %v1052, 0.5
  %v1054 = vmul.f32 %v1053, %v868
  %1056 = vrot.lane.b32.xlu0 %v1051, 64
  %v1057 = vpop.permute.xlu0 %1056
  %v1059 = vmul.f32 %v1053, %v1057
  %1061 = vrot.lane.b32.xlu0 %v1059, 32
  %v1062 = vpop.permute.xlu0 %1061
  %v1064 = vadd.f32 %v1054, %v1062
  %v1065 = vtanh.pop %v1064
  %1067 = vrot.lane.b32.xlu0 %v1065, 64
  %v1068 = vpop.permute.xlu0 %1067
  %v1070 = vmul.f32 %v1053, %v1068
  %v1071 = vsel %vm289, %v1070, %v867
  %v1072 = vsel %vm289, %v1064, %v868
  %1074 = vrot.lane.b32.xlu0 %v1071, 32
  %v1075 = vpop.permute.xlu0 %1074
  %1077 = vst.msk [vmem:[#allocation3 + $0x10] sm:$0xff] %vm364, %v1075
  %v1078 = vld [vmem:[#allocation2 + $0x98] sm:$0xff]
  %1079 = vrot.lane.b32.xlu0 %v970, 32
  %v1080 = vpop.permute.xlu0 %1079
  %v1081 = vsel %vm364, %v1080, 0
  %1083 = vmatprep.subr.mxu0 0.0
  %1084 = vmatpush1.msra.mxu0 0.0
  %1085 = vmatprep.subr.mxu0 0.0
  %1086 = vmatpush1.msra.mxu0 0.0
  %1087 = vmatprep.subr.mxu0 0.0
  %1088 = vmatpush1.msra.mxu0 0.0
  %1089 = vmatprep.subr.mxu0 0.0
  %1090 = vmatpush1.msra.mxu0 0.0
  %1091 = vmatprep.subr.mxu0 0.0
  %1092 = vmatpush1.msra.mxu0 0.0
  %1093 = vmatprep.subr.mxu0 0.0
  %1094 = vmatpush1.msra.mxu0 0.0
  %1095 = vmatprep.subr.mxu0 0.0
  %1096 = vmatpush1.msra.mxu0 0.0
  %1097 = vmatprep.subr.mxu0 0.0
  %1098 = vmatpush1.msra.mxu0 0.0
  %1099 = vmatprep.subr.mxu0 0.0
  %1100 = vmatpush1.msra.mxu0 0.0
  %1101 = vmatprep.subr.mxu0 0.0
  %1102 = vmatpush1.msra.mxu0 0.0
  %1103 = vmatprep.subr.mxu0 0.0
  %1104 = vmatpush1.msra.mxu0 0.0
  %1105 = vmatprep.subr.mxu0 0.0
  %1106 = vmatpush1.msra.mxu0 0.0
  %1107 = vmatprep.subr.mxu0 0.0
  %1108 = vmatpush1.msra.mxu0 %v570
  %1109 = vmatprep.subr.mxu0 0.0
  %1110 = vmatpush1.msra.mxu0 %v569
  %1111 = vmatprep.subr.mxu0 0.0
  %1112 = vmatpush1.msra.mxu0 %v568
  %1113 = vmatprep.subr.mxu0 0.0
  %1114 = vmatpush1.msra.mxu0 %v567
  %1115 = vmatprep.subr.mxu0 0.0
  %1116 = vmatpush2.msra.mxu0 0.0
  %1117 = vmatprep.subr.mxu0 0.0
  %1118 = vmatpush2.msra.mxu0 0.0
  %1119 = vmatprep.subr.mxu0 0.0
  %1120 = vmatpush2.msra.mxu0 0.0
  %1121 = vmatprep.subr.mxu0 0.0
  %1122 = vmatpush2.msra.mxu0 0.0
  %1123 = vmatprep.subr.mxu0 0.0
  %1124 = vmatpush2.msra.mxu0 0.0
  %1125 = vmatprep.subr.mxu0 0.0
  %1126 = vmatpush2.msra.mxu0 0.0
  %1127 = vmatprep.subr.mxu0 0.0
  %1128 = vmatpush2.msra.mxu0 0.0
  %1129 = vmatprep.subr.mxu0 0.0
  %1130 = vmatpush2.msra.mxu0 0.0
  %1131 = vmatprep.subr.mxu0 0.0
  %1132 = vmatpush2.msra.mxu0 0.0
  %1133 = vmatprep.subr.mxu0 0.0
  %1134 = vmatpush2.msra.mxu0 0.0
  %1135 = vmatprep.subr.mxu0 0.0
  %1136 = vmatpush2.msra.mxu0 0.0
  %1137 = vmatprep.subr.mxu0 0.0
  %1138 = vmatpush2.msra.mxu0 0.0
  %1139 = vmatprep.subr.mxu0 0.0
  %1140 = vmatpush2.msra.mxu0 0.0
  %1141 = vmatprep.subr.mxu0 0.0
  %1142 = vmatpush2.msra.mxu0 0.0
  %1143 = vmatprep.subr.mxu0 0.0
  %1144 = vmatpush2.msra.mxu0 0.0
  %1145 = vmatprep.subr.mxu0 0.0
  %1146 = vmatpush2.msra.mxu0 0.0
  %1147 = vmatprep.mubr.f32.mxu0 0.0
  %1148 = vmatmul.mubr.f32.gmra.mxu0 %v1081
  %v1149 = vpop.f32.mrf.mxu0
  %v1150 = vadd.f32 0.0, %v1149
  %v1151 = vpop.f32.mrf.mxu0
  %1152 = vdwg.mxu0
  %v1153 = vadd.f32 %v1078, %v1150
  %v1154 = vtanh.pop %v1153
  %v1155 = vmul.f32 %v1154, 0.5
  %v1156 = vadd.f32 %v1155, 0.5
  %v1157 = vmul.f32 %v1156, %v971
  %1159 = vrot.lane.b32.xlu0 %v1154, 64
  %v1160 = vpop.permute.xlu0 %1159
  %v1162 = vmul.f32 %v1156, %v1160
  %1164 = vrot.lane.b32.xlu0 %v1162, 32
  %v1165 = vpop.permute.xlu0 %1164
  %v1167 = vadd.f32 %v1157, %v1165
  %v1168 = vtanh.pop %v1167
  %1170 = vrot.lane.b32.xlu0 %v1168, 64
  %v1171 = vpop.permute.xlu0 %1170
  %v1173 = vmul.f32 %v1156, %v1171
  %v1174 = vsel %vm331, %v1173, %v970
  %v1175 = vsel %vm331, %v1167, %v971
  %1177 = vrot.lane.b32.xlu0 %v1174, 64
  %v1178 = vpop.permute.xlu0 %1177
  %1180 = vst.msk [vmem:[#allocation3 + $0x48] sm:$0xff] %vm771, %v1178
  %v1181 = vld [vmem:[#allocation2 + $0x30] sm:$0xff]
  %v1182 = vsel %vm364, %v1075, 0
  %1184 = vmatprep.subr.mxu0 0.0
  %1185 = vmatpush1.msra.mxu0 0.0
  %1186 = vmatprep.subr.mxu0 0.0
  %1187 = vmatpush1.msra.mxu0 0.0
  %1188 = vmatprep.subr.mxu0 0.0
  %1189 = vmatpush1.msra.mxu0 0.0
  %1190 = vmatprep.subr.mxu0 0.0
  %1191 = vmatpush1.msra.mxu0 0.0
  %1192 = vmatprep.subr.mxu0 0.0
  %1193 = vmatpush1.msra.mxu0 0.0
  %1194 = vmatprep.subr.mxu0 0.0
  %1195 = vmatpush1.msra.mxu0 0.0
  %1196 = vmatprep.subr.mxu0 0.0
  %1197 = vmatpush1.msra.mxu0 0.0
  %1198 = vmatprep.subr.mxu0 0.0
  %1199 = vmatpush1.msra.mxu0 0.0
  %1200 = vmatprep.subr.mxu0 0.0
  %1201 = vmatpush1.msra.mxu0 0.0
  %1202 = vmatprep.subr.mxu0 0.0
  %1203 = vmatpush1.msra.mxu0 0.0
  %1204 = vmatprep.subr.mxu0 0.0
  %1205 = vmatpush1.msra.mxu0 0.0
  %1206 = vmatprep.subr.mxu0 0.0
  %1207 = vmatpush1.msra.mxu0 0.0
  %1208 = vmatprep.subr.mxu0 0.0
  %1209 = vmatpush1.msra.mxu0 %v565
  %1210 = vmatprep.subr.mxu0 0.0
  %1211 = vmatpush1.msra.mxu0 %v564
  %1212 = vmatprep.subr.mxu0 0.0
  %1213 = vmatpush1.msra.mxu0 %v563
  %1214 = vmatprep.subr.mxu0 0.0
  %1215 = vmatpush1.msra.mxu0 %v562
  %1216 = vmatprep.subr.mxu0 0.0
  %1217 = vmatpush2.msra.mxu0 0.0
  %1218 = vmatprep.subr.mxu0 0.0
  %1219 = vmatpush2.msra.mxu0 0.0
  %1220 = vmatprep.subr.mxu0 0.0
  %1221 = vmatpush2.msra.mxu0 0.0
  %1222 = vmatprep.subr.mxu0 0.0
  %1223 = vmatpush2.msra.mxu0 0.0
  %1224 = vmatprep.subr.mxu0 0.0
  %1225 = vmatpush2.msra.mxu0 0.0
  %1226 = vmatprep.subr.mxu0 0.0
  %1227 = vmatpush2.msra.mxu0 0.0
  %1228 = vmatprep.subr.mxu0 0.0
  %1229 = vmatpush2.msra.mxu0 0.0
  %1230 = vmatprep.subr.mxu0 0.0
  %1231 = vmatpush2.msra.mxu0 0.0
  %1232 = vmatprep.subr.mxu0 0.0
  %1233 = vmatpush2.msra.mxu0 0.0
  %1234 = vmatprep.subr.mxu0 0.0
  %1235 = vmatpush2.msra.mxu0 0.0
  %1236 = vmatprep.subr.mxu0 0.0
  %1237 = vmatpush2.msra.mxu0 0.0
  %1238 = vmatprep.subr.mxu0 0.0
  %1239 = vmatpush2.msra.mxu0 0.0
  %1240 = vmatprep.subr.mxu0 0.0
  %1241 = vmatpush2.msra.mxu0 0.0
  %1242 = vmatprep.subr.mxu0 0.0
  %1243 = vmatpush2.msra.mxu0 0.0
  %1244 = vmatprep.subr.mxu0 0.0
  %1245 = vmatpush2.msra.mxu0 0.0
  %1246 = vmatprep.subr.mxu0 0.0
  %1247 = vmatpush2.msra.mxu0 0.0
  %1248 = vmatprep.mubr.f32.mxu0 0.0
  %1249 = vmatmul.mubr.f32.gmra.mxu0 %v1182
  %v1250 = vpop.f32.mrf.mxu0
  %v1251 = vadd.f32 0.0, %v1250
  %v1252 = vpop.f32.mrf.mxu0
  %1253 = vdwg.mxu0
  %v1254 = vadd.f32 %v1181, %v1251
  %v1255 = vtanh.pop %v1254
  %v1256 = vmul.f32 %v1255, 0.5
  %v1257 = vadd.f32 %v1256, 0.5
  %v1258 = vmul.f32 %v1257, %v1072
  %1260 = vrot.lane.b32.xlu0 %v1255, 64
  %v1261 = vpop.permute.xlu0 %1260
  %v1263 = vmul.f32 %v1257, %v1261
  %1265 = vrot.lane.b32.xlu0 %v1263, 32
  %v1266 = vpop.permute.xlu0 %1265
  %v1268 = vadd.f32 %v1258, %v1266
  %v1269 = vtanh.pop %v1268
  %1271 = vrot.lane.b32.xlu0 %v1269, 64
  %v1272 = vpop.permute.xlu0 %1271
  %v1274 = vmul.f32 %v1257, %v1272
  %v1275 = vsel %vm295, %v1274, %v1071
  %v1276 = vsel %vm295, %v1268, %v1072
  %1278 = vrot.lane.b32.xlu0 %v1275, 32
  %v1279 = vpop.permute.xlu0 %1278
  %1281 = vst.msk [vmem:[#allocation3 + $0x18] sm:$0xff] %vm364, %v1279
  %v1282 = vld [vmem:[#allocation2 + $0x88] sm:$0xff]
  %1283 = vrot.lane.b32.xlu0 %v1174, 32
  %v1284 = vpop.permute.xlu0 %1283
  %v1285 = vsel %vm364, %v1284, 0
  %1287 = vmatprep.subr.mxu0 0.0
  %1288 = vmatpush1.msra.mxu0 0.0
  %1289 = vmatprep.subr.mxu0 0.0
  %1290 = vmatpush1.msra.mxu0 0.0
  %1291 = vmatprep.subr.mxu0 0.0
  %1292 = vmatpush1.msra.mxu0 0.0
  %1293 = vmatprep.subr.mxu0 0.0
  %1294 = vmatpush1.msra.mxu0 0.0
  %1295 = vmatprep.subr.mxu0 0.0
  %1296 = vmatpush1.msra.mxu0 0.0
  %1297 = vmatprep.subr.mxu0 0.0
  %1298 = vmatpush1.msra.mxu0 0.0
  %1299 = vmatprep.subr.mxu0 0.0
  %1300 = vmatpush1.msra.mxu0 0.0
  %1301 = vmatprep.subr.mxu0 0.0
  %1302 = vmatpush1.msra.mxu0 0.0
  %1303 = vmatprep.subr.mxu0 0.0
  %1304 = vmatpush1.msra.mxu0 0.0
  %1305 = vmatprep.subr.mxu0 0.0
  %1306 = vmatpush1.msra.mxu0 0.0
  %1307 = vmatprep.subr.mxu0 0.0
  %1308 = vmatpush1.msra.mxu0 0.0
  %1309 = vmatprep.subr.mxu0 0.0
  %1310 = vmatpush1.msra.mxu0 0.0
  %1311 = vmatprep.subr.mxu0 0.0
  %1312 = vmatpush1.msra.mxu0 %v570
  %1313 = vmatprep.subr.mxu0 0.0
  %1314 = vmatpush1.msra.mxu0 %v569
  %1315 = vmatprep.subr.mxu0 0.0
  %1316 = vmatpush1.msra.mxu0 %v568
  %1317 = vmatprep.subr.mxu0 0.0
  %1318 = vmatpush1.msra.mxu0 %v567
  %1319 = vmatprep.subr.mxu0 0.0
  %1320 = vmatpush2.msra.mxu0 0.0
  %1321 = vmatprep.subr.mxu0 0.0
  %1322 = vmatpush2.msra.mxu0 0.0
  %1323 = vmatprep.subr.mxu0 0.0
  %1324 = vmatpush2.msra.mxu0 0.0
  %1325 = vmatprep.subr.mxu0 0.0
  %1326 = vmatpush2.msra.mxu0 0.0
  %1327 = vmatprep.subr.mxu0 0.0
  %1328 = vmatpush2.msra.mxu0 0.0
  %1329 = vmatprep.subr.mxu0 0.0
  %1330 = vmatpush2.msra.mxu0 0.0
  %1331 = vmatprep.subr.mxu0 0.0
  %1332 = vmatpush2.msra.mxu0 0.0
  %1333 = vmatprep.subr.mxu0 0.0
  %1334 = vmatpush2.msra.mxu0 0.0
  %1335 = vmatprep.subr.mxu0 0.0
  %1336 = vmatpush2.msra.mxu0 0.0
  %1337 = vmatprep.subr.mxu0 0.0
  %1338 = vmatpush2.msra.mxu0 0.0
  %1339 = vmatprep.subr.mxu0 0.0
  %1340 = vmatpush2.msra.mxu0 0.0
  %1341 = vmatprep.subr.mxu0 0.0
  %1342 = vmatpush2.msra.mxu0 0.0
  %1343 = vmatprep.subr.mxu0 0.0
  %1344 = vmatpush2.msra.mxu0 0.0
  %1345 = vmatprep.subr.mxu0 0.0
  %1346 = vmatpush2.msra.mxu0 0.0
  %1347 = vmatprep.subr.mxu0 0.0
  %1348 = vmatpush2.msra.mxu0 0.0
  %1349 = vmatprep.subr.mxu0 0.0
  %1350 = vmatpush2.msra.mxu0 0.0
  %1351 = vmatprep.mubr.f32.mxu0 0.0
  %1352 = vmatmul.mubr.f32.gmra.mxu0 %v1285
  %v1353 = vpop.f32.mrf.mxu0
  %v1354 = vadd.f32 0.0, %v1353
  %v1355 = vpop.f32.mrf.mxu0
  %1356 = vdwg.mxu0
  %v1357 = vadd.f32 %v1282, %v1354
  %v1358 = vtanh.pop %v1357
  %v1359 = vmul.f32 %v1358, 0.5
  %v1360 = vadd.f32 %v1359, 0.5
  %v1361 = vmul.f32 %v1360, %v1175
  %1363 = vrot.lane.b32.xlu0 %v1358, 64
  %v1364 = vpop.permute.xlu0 %1363
  %v1366 = vmul.f32 %v1360, %v1364
  %1368 = vrot.lane.b32.xlu0 %v1366, 32
  %v1369 = vpop.permute.xlu0 %1368
  %v1371 = vadd.f32 %v1361, %v1369
  %v1372 = vtanh.pop %v1371
  %1374 = vrot.lane.b32.xlu0 %v1372, 64
  %v1375 = vpop.permute.xlu0 %1374
  %v1377 = vmul.f32 %v1360, %v1375
  %v1378 = vsel %vm325, %v1377, %v1174
  %v1379 = vsel %vm325, %v1371, %v1175
  %1381 = vrot.lane.b32.xlu0 %v1378, 64
  %v1382 = vpop.permute.xlu0 %1381
  %1384 = vst.msk [vmem:[#allocation3 + $0x40] sm:$0xff] %vm771, %v1382
  %v1385 = vld [vmem:[#allocation2 + $0x40] sm:$0xff]
  %v1386 = vsel %vm364, %v1279, 0
  %1388 = vmatprep.subr.mxu0 0.0
  %1389 = vmatpush1.msra.mxu0 0.0
  %1390 = vmatprep.subr.mxu0 0.0
  %1391 = vmatpush1.msra.mxu0 0.0
  %1392 = vmatprep.subr.mxu0 0.0
  %1393 = vmatpush1.msra.mxu0 0.0
  %1394 = vmatprep.subr.mxu0 0.0
  %1395 = vmatpush1.msra.mxu0 0.0
  %1396 = vmatprep.subr.mxu0 0.0
  %1397 = vmatpush1.msra.mxu0 0.0
  %1398 = vmatprep.subr.mxu0 0.0
  %1399 = vmatpush1.msra.mxu0 0.0
  %1400 = vmatprep.subr.mxu0 0.0
  %1401 = vmatpush1.msra.mxu0 0.0
  %1402 = vmatprep.subr.mxu0 0.0
  %1403 = vmatpush1.msra.mxu0 0.0
  %1404 = vmatprep.subr.mxu0 0.0
  %1405 = vmatpush1.msra.mxu0 0.0
  %1406 = vmatprep.subr.mxu0 0.0
  %1407 = vmatpush1.msra.mxu0 0.0
  %1408 = vmatprep.subr.mxu0 0.0
  %1409 = vmatpush1.msra.mxu0 0.0
  %1410 = vmatprep.subr.mxu0 0.0
  %1411 = vmatpush1.msra.mxu0 0.0
  %1412 = vmatprep.subr.mxu0 0.0
  %1413 = vmatpush1.msra.mxu0 %v565
  %1414 = vmatprep.subr.mxu0 0.0
  %1415 = vmatpush1.msra.mxu0 %v564
  %1416 = vmatprep.subr.mxu0 0.0
  %1417 = vmatpush1.msra.mxu0 %v563
  %1418 = vmatprep.subr.mxu0 0.0
  %1419 = vmatpush1.msra.mxu0 %v562
  %1420 = vmatprep.subr.mxu0 0.0
  %1421 = vmatpush2.msra.mxu0 0.0
  %1422 = vmatprep.subr.mxu0 0.0
  %1423 = vmatpush2.msra.mxu0 0.0
  %1424 = vmatprep.subr.mxu0 0.0
  %1425 = vmatpush2.msra.mxu0 0.0
  %1426 = vmatprep.subr.mxu0 0.0
  %1427 = vmatpush2.msra.mxu0 0.0
  %1428 = vmatprep.subr.mxu0 0.0
  %1429 = vmatpush2.msra.mxu0 0.0
  %1430 = vmatprep.subr.mxu0 0.0
  %1431 = vmatpush2.msra.mxu0 0.0
  %1432 = vmatprep.subr.mxu0 0.0
  %1433 = vmatpush2.msra.mxu0 0.0
  %1434 = vmatprep.subr.mxu0 0.0
  %1435 = vmatpush2.msra.mxu0 0.0
  %1436 = vmatprep.subr.mxu0 0.0
  %1437 = vmatpush2.msra.mxu0 0.0
  %1438 = vmatprep.subr.mxu0 0.0
  %1439 = vmatpush2.msra.mxu0 0.0
  %1440 = vmatprep.subr.mxu0 0.0
  %1441 = vmatpush2.msra.mxu0 0.0
  %1442 = vmatprep.subr.mxu0 0.0
  %1443 = vmatpush2.msra.mxu0 0.0
  %1444 = vmatprep.subr.mxu0 0.0
  %1445 = vmatpush2.msra.mxu0 0.0
  %1446 = vmatprep.subr.mxu0 0.0
  %1447 = vmatpush2.msra.mxu0 0.0
  %1448 = vmatprep.subr.mxu0 0.0
  %1449 = vmatpush2.msra.mxu0 0.0
  %1450 = vmatprep.subr.mxu0 0.0
  %1451 = vmatpush2.msra.mxu0 0.0
  %1452 = vmatprep.mubr.f32.mxu0 0.0
  %1453 = vmatmul.mubr.f32.gmra.mxu0 %v1386
  %v1454 = vpop.f32.mrf.mxu0
  %v1455 = vadd.f32 0.0, %v1454
  %v1456 = vpop.f32.mrf.mxu0
  %1457 = vdwg.mxu0
  %v1458 = vadd.f32 %v1385, %v1455
  %v1459 = vtanh.pop %v1458
  %v1460 = vmul.f32 %v1459, 0.5
  %v1461 = vadd.f32 %v1460, 0.5
  %v1462 = vmul.f32 %v1461, %v1276
  %1464 = vrot.lane.b32.xlu0 %v1459, 64
  %v1465 = vpop.permute.xlu0 %1464
  %v1467 = vmul.f32 %v1461, %v1465
  %1469 = vrot.lane.b32.xlu0 %v1467, 32
  %v1470 = vpop.permute.xlu0 %1469
  %v1472 = vadd.f32 %v1462, %v1470
  %v1473 = vtanh.pop %v1472
  %1475 = vrot.lane.b32.xlu0 %v1473, 64
  %v1476 = vpop.permute.xlu0 %1475
  %v1478 = vmul.f32 %v1461, %v1476
  %v1479 = vsel %vm301, %v1478, %v1275
  %v1480 = vsel %vm301, %v1472, %v1276
  %1482 = vrot.lane.b32.xlu0 %v1479, 32
  %v1483 = vpop.permute.xlu0 %1482
  %1485 = vst.msk [vmem:[#allocation3 + $0x20] sm:$0xff] %vm364, %v1483
  %v1486 = vld [vmem:[#allocation2 + $0x78] sm:$0xff]
  %1487 = vrot.lane.b32.xlu0 %v1378, 32
  %v1488 = vpop.permute.xlu0 %1487
  %v1489 = vsel %vm364, %v1488, 0
  %1491 = vmatprep.subr.mxu0 0.0
  %1492 = vmatpush1.msra.mxu0 0.0
  %1493 = vmatprep.subr.mxu0 0.0
  %1494 = vmatpush1.msra.mxu0 0.0
  %1495 = vmatprep.subr.mxu0 0.0
  %1496 = vmatpush1.msra.mxu0 0.0
  %1497 = vmatprep.subr.mxu0 0.0
  %1498 = vmatpush1.msra.mxu0 0.0
  %1499 = vmatprep.subr.mxu0 0.0
  %1500 = vmatpush1.msra.mxu0 0.0
  %1501 = vmatprep.subr.mxu0 0.0
  %1502 = vmatpush1.msra.mxu0 0.0
  %1503 = vmatprep.subr.mxu0 0.0
  %1504 = vmatpush1.msra.mxu0 0.0
  %1505 = vmatprep.subr.mxu0 0.0
  %1506 = vmatpush1.msra.mxu0 0.0
  %1507 = vmatprep.subr.mxu0 0.0
  %1508 = vmatpush1.msra.mxu0 0.0
  %1509 = vmatprep.subr.mxu0 0.0
  %1510 = vmatpush1.msra.mxu0 0.0
  %1511 = vmatprep.subr.mxu0 0.0
  %1512 = vmatpush1.msra.mxu0 0.0
  %1513 = vmatprep.subr.mxu0 0.0
  %1514 = vmatpush1.msra.mxu0 0.0
  %1515 = vmatprep.subr.mxu0 0.0
  %1516 = vmatpush1.msra.mxu0 %v570
  %1517 = vmatprep.subr.mxu0 0.0
  %1518 = vmatpush1.msra.mxu0 %v569
  %1519 = vmatprep.subr.mxu0 0.0
  %1520 = vmatpush1.msra.mxu0 %v568
  %1521 = vmatprep.subr.mxu0 0.0
  %1522 = vmatpush1.msra.mxu0 %v567
  %1523 = vmatprep.subr.mxu0 0.0
  %1524 = vmatpush2.msra.mxu0 0.0
  %1525 = vmatprep.subr.mxu0 0.0
  %1526 = vmatpush2.msra.mxu0 0.0
  %1527 = vmatprep.subr.mxu0 0.0
  %1528 = vmatpush2.msra.mxu0 0.0
  %1529 = vmatprep.subr.mxu0 0.0
  %1530 = vmatpush2.msra.mxu0 0.0
  %1531 = vmatprep.subr.mxu0 0.0
  %1532 = vmatpush2.msra.mxu0 0.0
  %1533 = vmatprep.subr.mxu0 0.0
  %1534 = vmatpush2.msra.mxu0 0.0
  %1535 = vmatprep.subr.mxu0 0.0
  %1536 = vmatpush2.msra.mxu0 0.0
  %1537 = vmatprep.subr.mxu0 0.0
  %1538 = vmatpush2.msra.mxu0 0.0
  %1539 = vmatprep.subr.mxu0 0.0
  %1540 = vmatpush2.msra.mxu0 0.0
  %1541 = vmatprep.subr.mxu0 0.0
  %1542 = vmatpush2.msra.mxu0 0.0
  %1543 = vmatprep.subr.mxu0 0.0
  %1544 = vmatpush2.msra.mxu0 0.0
  %1545 = vmatprep.subr.mxu0 0.0
  %1546 = vmatpush2.msra.mxu0 0.0
  %1547 = vmatprep.subr.mxu0 0.0
  %1548 = vmatpush2.msra.mxu0 0.0
  %1549 = vmatprep.subr.mxu0 0.0
  %1550 = vmatpush2.msra.mxu0 0.0
  %1551 = vmatprep.subr.mxu0 0.0
  %1552 = vmatpush2.msra.mxu0 0.0
  %1553 = vmatprep.subr.mxu0 0.0
  %1554 = vmatpush2.msra.mxu0 0.0
  %1555 = vmatprep.mubr.f32.mxu0 0.0
  %1556 = vmatmul.mubr.f32.gmra.mxu0 %v1489
  %v1557 = vpop.f32.mrf.mxu0
  %v1558 = vadd.f32 0.0, %v1557
  %v1559 = vpop.f32.mrf.mxu0
  %1560 = vdwg.mxu0
  %v1561 = vadd.f32 %v1486, %v1558
  %v1562 = vtanh.pop %v1561
  %v1563 = vmul.f32 %v1562, 0.5
  %v1564 = vadd.f32 %v1563, 0.5
  %v1565 = vmul.f32 %v1564, %v1379
  %1567 = vrot.lane.b32.xlu0 %v1562, 64
  %v1568 = vpop.permute.xlu0 %1567
  %v1570 = vmul.f32 %v1564, %v1568
  %1572 = vrot.lane.b32.xlu0 %v1570, 32
  %v1573 = vpop.permute.xlu0 %1572
  %v1575 = vadd.f32 %v1565, %v1573
  %v1576 = vtanh.pop %v1575
  %1578 = vrot.lane.b32.xlu0 %v1576, 64
  %v1579 = vpop.permute.xlu0 %1578
  %v1581 = vmul.f32 %v1564, %v1579
  %v1582 = vsel %vm319, %v1581, %v1378
  %v1583 = vsel %vm319, %v1575, %v1379
  %1585 = vrot.lane.b32.xlu0 %v1582, 64
  %v1586 = vpop.permute.xlu0 %1585
  %1588 = vst.msk [vmem:[#allocation3 + $0x38] sm:$0xff] %vm771, %v1586
  %v1589 = vld [vmem:[#allocation2 + $0x50] sm:$0xff]
  %v1590 = vsel %vm364, %v1483, 0
  %1592 = vmatprep.subr.mxu0 0.0
  %1593 = vmatpush1.msra.mxu0 0.0
  %1594 = vmatprep.subr.mxu0 0.0
  %1595 = vmatpush1.msra.mxu0 0.0
  %1596 = vmatprep.subr.mxu0 0.0
  %1597 = vmatpush1.msra.mxu0 0.0
  %1598 = vmatprep.subr.mxu0 0.0
  %1599 = vmatpush1.msra.mxu0 0.0
  %1600 = vmatprep.subr.mxu0 0.0
  %1601 = vmatpush1.msra.mxu0 0.0
  %1602 = vmatprep.subr.mxu0 0.0
  %1603 = vmatpush1.msra.mxu0 0.0
  %1604 = vmatprep.subr.mxu0 0.0
  %1605 = vmatpush1.msra.mxu0 0.0
  %1606 = vmatprep.subr.mxu0 0.0
  %1607 = vmatpush1.msra.mxu0 0.0
  %1608 = vmatprep.subr.mxu0 0.0
  %1609 = vmatpush1.msra.mxu0 0.0
  %1610 = vmatprep.subr.mxu0 0.0
  %1611 = vmatpush1.msra.mxu0 0.0
  %1612 = vmatprep.subr.mxu0 0.0
  %1613 = vmatpush1.msra.mxu0 0.0
  %1614 = vmatprep.subr.mxu0 0.0
  %1615 = vmatpush1.msra.mxu0 0.0
  %1616 = vmatprep.subr.mxu0 0.0
  %1617 = vmatpush1.msra.mxu0 %v565
  %1618 = vmatprep.subr.mxu0 0.0
  %1619 = vmatpush1.msra.mxu0 %v564
  %1620 = vmatprep.subr.mxu0 0.0
  %1621 = vmatpush1.msra.mxu0 %v563
  %1622 = vmatprep.subr.mxu0 0.0
  %1623 = vmatpush1.msra.mxu0 %v562
  %1624 = vmatprep.subr.mxu0 0.0
  %1625 = vmatpush2.msra.mxu0 0.0
  %1626 = vmatprep.subr.mxu0 0.0
  %1627 = vmatpush2.msra.mxu0 0.0
  %1628 = vmatprep.subr.mxu0 0.0
  %1629 = vmatpush2.msra.mxu0 0.0
  %1630 = vmatprep.subr.mxu0 0.0
  %1631 = vmatpush2.msra.mxu0 0.0
  %1632 = vmatprep.subr.mxu0 0.0
  %1633 = vmatpush2.msra.mxu0 0.0
  %1634 = vmatprep.subr.mxu0 0.0
  %1635 = vmatpush2.msra.mxu0 0.0
  %1636 = vmatprep.subr.mxu0 0.0
  %1637 = vmatpush2.msra.mxu0 0.0
  %1638 = vmatprep.subr.mxu0 0.0
  %1639 = vmatpush2.msra.mxu0 0.0
  %1640 = vmatprep.subr.mxu0 0.0
  %1641 = vmatpush2.msra.mxu0 0.0
  %1642 = vmatprep.subr.mxu0 0.0
  %1643 = vmatpush2.msra.mxu0 0.0
  %1644 = vmatprep.subr.mxu0 0.0
  %1645 = vmatpush2.msra.mxu0 0.0
  %1646 = vmatprep.subr.mxu0 0.0
  %1647 = vmatpush2.msra.mxu0 0.0
  %1648 = vmatprep.subr.mxu0 0.0
  %1649 = vmatpush2.msra.mxu0 0.0
  %1650 = vmatprep.subr.mxu0 0.0
  %1651 = vmatpush2.msra.mxu0 0.0
  %1652 = vmatprep.subr.mxu0 0.0
  %1653 = vmatpush2.msra.mxu0 0.0
  %1654 = vmatprep.subr.mxu0 0.0
  %1655 = vmatpush2.msra.mxu0 0.0
  %1656 = vmatprep.mubr.f32.mxu0 0.0
  %1657 = vmatmul.mubr.f32.gmra.mxu0 %v1590
  %v1658 = vpop.f32.mrf.mxu0
  %v1659 = vadd.f32 0.0, %v1658
  %v1660 = vpop.f32.mrf.mxu0
  %1661 = vdwg.mxu0
  %v1662 = vadd.f32 %v1589, %v1659
  %v1663 = vtanh.pop %v1662
  %v1664 = vmul.f32 %v1663, 0.5
  %v1665 = vadd.f32 %v1664, 0.5
  %v1666 = vmul.f32 %v1665, %v1480
  %1668 = vrot.lane.b32.xlu0 %v1663, 64
  %v1669 = vpop.permute.xlu0 %1668
  %v1671 = vmul.f32 %v1665, %v1669
  %1673 = vrot.lane.b32.xlu0 %v1671, 32
  %v1674 = vpop.permute.xlu0 %1673
  %v1676 = vadd.f32 %v1666, %v1674
  %v1677 = vtanh.pop %v1676
  %1679 = vrot.lane.b32.xlu0 %v1677, 64
  %v1680 = vpop.permute.xlu0 %1679
  %v1682 = vmul.f32 %v1665, %v1680
  %v1683 = vsel %vm307, %v1682, %v1479
  %v1684 = vsel %vm307, %v1676, %v1480
  %1686 = vrot.lane.b32.xlu0 %v1683, 32
  %v1687 = vpop.permute.xlu0 %1686
  %1689 = vst.msk [vmem:[#allocation3 + $0x28] sm:$0xff] %vm364, %v1687
  %v1690 = vld [vmem:[#allocation2 + $0x68] sm:$0xff]
  %1691 = vrot.lane.b32.xlu0 %v1582, 32
  %v1692 = vpop.permute.xlu0 %1691
  %v1693 = vsel %vm364, %v1692, 0
  %1695 = vmatprep.subr.mxu0 0.0
  %1696 = vmatpush1.msra.mxu0 0.0
  %1697 = vmatprep.subr.mxu0 0.0
  %1698 = vmatpush1.msra.mxu0 0.0
  %1699 = vmatprep.subr.mxu0 0.0
  %1700 = vmatpush1.msra.mxu0 0.0
  %1701 = vmatprep.subr.mxu0 0.0
  %1702 = vmatpush1.msra.mxu0 0.0
  %1703 = vmatprep.subr.mxu0 0.0
  %1704 = vmatpush1.msra.mxu0 0.0
  %1705 = vmatprep.subr.mxu0 0.0
  %1706 = vmatpush1.msra.mxu0 0.0
  %1707 = vmatprep.subr.mxu0 0.0
  %1708 = vmatpush1.msra.mxu0 0.0
  %1709 = vmatprep.subr.mxu0 0.0
  %1710 = vmatpush1.msra.mxu0 0.0
  %1711 = vmatprep.subr.mxu0 0.0
  %1712 = vmatpush1.msra.mxu0 0.0
  %1713 = vmatprep.subr.mxu0 0.0
  %1714 = vmatpush1.msra.mxu0 0.0
  %1715 = vmatprep.subr.mxu0 0.0
  %1716 = vmatpush1.msra.mxu0 0.0
  %1717 = vmatprep.subr.mxu0 0.0
  %1718 = vmatpush1.msra.mxu0 0.0
  %1719 = vmatprep.subr.mxu0 0.0
  %1720 = vmatpush1.msra.mxu0 %v570
  %1721 = vmatprep.subr.mxu0 0.0
  %1722 = vmatpush1.msra.mxu0 %v569
  %1723 = vmatprep.subr.mxu0 0.0
  %1724 = vmatpush1.msra.mxu0 %v568
  %1725 = vmatprep.subr.mxu0 0.0
  %1726 = vmatpush1.msra.mxu0 %v567
  %1727 = vmatprep.subr.mxu0 0.0
  %1728 = vmatpush2.msra.mxu0 0.0
  %1729 = vmatprep.subr.mxu0 0.0
  %1730 = vmatpush2.msra.mxu0 0.0
  %1731 = vmatprep.subr.mxu0 0.0
  %1732 = vmatpush2.msra.mxu0 0.0
  %1733 = vmatprep.subr.mxu0 0.0
  %1734 = vmatpush2.msra.mxu0 0.0
  %1735 = vmatprep.subr.mxu0 0.0
  %1736 = vmatpush2.msra.mxu0 0.0
  %1737 = vmatprep.subr.mxu0 0.0
  %1738 = vmatpush2.msra.mxu0 0.0
  %1739 = vmatprep.subr.mxu0 0.0
  %1740 = vmatpush2.msra.mxu0 0.0
  %1741 = vmatprep.subr.mxu0 0.0
  %1742 = vmatpush2.msra.mxu0 0.0
  %1743 = vmatprep.subr.mxu0 0.0
  %1744 = vmatpush2.msra.mxu0 0.0
  %1745 = vmatprep.subr.mxu0 0.0
  %1746 = vmatpush2.msra.mxu0 0.0
  %1747 = vmatprep.subr.mxu0 0.0
  %1748 = vmatpush2.msra.mxu0 0.0
  %1749 = vmatprep.subr.mxu0 0.0
  %1750 = vmatpush2.msra.mxu0 0.0
  %1751 = vmatprep.subr.mxu0 0.0
  %1752 = vmatpush2.msra.mxu0 0.0
  %1753 = vmatprep.subr.mxu0 0.0
  %1754 = vmatpush2.msra.mxu0 0.0
  %1755 = vmatprep.subr.mxu0 0.0
  %1756 = vmatpush2.msra.mxu0 0.0
  %1757 = vmatprep.subr.mxu0 0.0
  %1758 = vmatpush2.msra.mxu0 0.0
  %1759 = vmatprep.mubr.f32.mxu0 0.0
  %1760 = vmatmul.mubr.f32.gmra.mxu0 %v1693
  %v1761 = vpop.f32.mrf.mxu0
  %v1762 = vadd.f32 0.0, %v1761
  %v1763 = vpop.f32.mrf.mxu0
  %1764 = vdwg.mxu0
  %v1765 = vadd.f32 %v1690, %v1762
  %v1766 = vtanh.pop %v1765
  %v1767 = vmul.f32 %v1766, 0.5
  %v1768 = vadd.f32 %v1767, 0.5
  %v1769 = vmul.f32 %v1768, %v1583
  %1771 = vrot.lane.b32.xlu0 %v1766, 64
  %v1772 = vpop.permute.xlu0 %1771
  %v1774 = vmul.f32 %v1768, %v1772
  %1776 = vrot.lane.b32.xlu0 %v1774, 32
  %v1777 = vpop.permute.xlu0 %1776
  %v1779 = vadd.f32 %v1769, %v1777
  %v1780 = vtanh.pop %v1779
  %1782 = vrot.lane.b32.xlu0 %v1780, 64
  %v1783 = vpop.permute.xlu0 %1782
  %v1785 = vmul.f32 %v1768, %v1783
  %v1786 = vsel %vm313, %v1785, %v1582
  %v1787 = vsel %vm313, %v1779, %v1583
  %1789 = vrot.lane.b32.xlu0 %v1786, 64
  %v1790 = vpop.permute.xlu0 %1789
  %1792 = vst.msk [vmem:[#allocation3 + $0x30] sm:$0xff] %vm771, %v1790
  %v1793 = vld [vmem:[#allocation2 + $0x60] sm:$0xff]
  %v1794 = vsel %vm364, %v1687, 0
  %1796 = vmatprep.subr.mxu0 0.0
  %1797 = vmatpush1.msra.mxu0 0.0
  %1798 = vmatprep.subr.mxu0 0.0
  %1799 = vmatpush1.msra.mxu0 0.0
  %1800 = vmatprep.subr.mxu0 0.0
  %1801 = vmatpush1.msra.mxu0 0.0
  %1802 = vmatprep.subr.mxu0 0.0
  %1803 = vmatpush1.msra.mxu0 0.0
  %1804 = vmatprep.subr.mxu0 0.0
  %1805 = vmatpush1.msra.mxu0 0.0
  %1806 = vmatprep.subr.mxu0 0.0
  %1807 = vmatpush1.msra.mxu0 0.0
  %1808 = vmatprep.subr.mxu0 0.0
  %1809 = vmatpush1.msra.mxu0 0.0
  %1810 = vmatprep.subr.mxu0 0.0
  %1811 = vmatpush1.msra.mxu0 0.0
  %1812 = vmatprep.subr.mxu0 0.0
  %1813 = vmatpush1.msra.mxu0 0.0
  %1814 = vmatprep.subr.mxu0 0.0
  %1815 = vmatpush1.msra.mxu0 0.0
  %1816 = vmatprep.subr.mxu0 0.0
  %1817 = vmatpush1.msra.mxu0 0.0
  %1818 = vmatprep.subr.mxu0 0.0
  %1819 = vmatpush1.msra.mxu0 0.0
  %1820 = vmatprep.subr.mxu0 0.0
  %1821 = vmatpush1.msra.mxu0 %v565
  %1822 = vmatprep.subr.mxu0 0.0
  %1823 = vmatpush1.msra.mxu0 %v564
  %1824 = vmatprep.subr.mxu0 0.0
  %1825 = vmatpush1.msra.mxu0 %v563
  %1826 = vmatprep.subr.mxu0 0.0
  %1827 = vmatpush1.msra.mxu0 %v562
  %1828 = vmatprep.subr.mxu0 0.0
  %1829 = vmatpush2.msra.mxu0 0.0
  %1830 = vmatprep.subr.mxu0 0.0
  %1831 = vmatpush2.msra.mxu0 0.0
  %1832 = vmatprep.subr.mxu0 0.0
  %1833 = vmatpush2.msra.mxu0 0.0
  %1834 = vmatprep.subr.mxu0 0.0
  %1835 = vmatpush2.msra.mxu0 0.0
  %1836 = vmatprep.subr.mxu0 0.0
  %1837 = vmatpush2.msra.mxu0 0.0
  %1838 = vmatprep.subr.mxu0 0.0
  %1839 = vmatpush2.msra.mxu0 0.0
  %1840 = vmatprep.subr.mxu0 0.0
  %1841 = vmatpush2.msra.mxu0 0.0
  %1842 = vmatprep.subr.mxu0 0.0
  %1843 = vmatpush2.msra.mxu0 0.0
  %1844 = vmatprep.subr.mxu0 0.0
  %1845 = vmatpush2.msra.mxu0 0.0
  %1846 = vmatprep.subr.mxu0 0.0
  %1847 = vmatpush2.msra.mxu0 0.0
  %1848 = vmatprep.subr.mxu0 0.0
  %1849 = vmatpush2.msra.mxu0 0.0
  %1850 = vmatprep.subr.mxu0 0.0
  %1851 = vmatpush2.msra.mxu0 0.0
  %1852 = vmatprep.subr.mxu0 0.0
  %1853 = vmatpush2.msra.mxu0 0.0
  %1854 = vmatprep.subr.mxu0 0.0
  %1855 = vmatpush2.msra.mxu0 0.0
  %1856 = vmatprep.subr.mxu0 0.0
  %1857 = vmatpush2.msra.mxu0 0.0
  %1858 = vmatprep.subr.mxu0 0.0
  %1859 = vmatpush2.msra.mxu0 0.0
  %1860 = vmatprep.mubr.f32.mxu0 0.0
  %1861 = vmatmul.mubr.f32.gmra.mxu0 %v1794
  %v1862 = vpop.f32.mrf.mxu0
  %v1863 = vadd.f32 0.0, %v1862
  %v1864 = vpop.f32.mrf.mxu0
  %1865 = vdwg.mxu0
  %v1866 = vadd.f32 %v1793, %v1863
  %v1867 = vtanh.pop %v1866
  %v1868 = vmul.f32 %v1867, 0.5
  %v1869 = vadd.f32 %v1868, 0.5
  %v1870 = vmul.f32 %v1869, %v1684
  %1872 = vrot.lane.b32.xlu0 %v1867, 64
  %v1873 = vpop.permute.xlu0 %1872
  %v1875 = vmul.f32 %v1869, %v1873
  %1877 = vrot.lane.b32.xlu0 %v1875, 32
  %v1878 = vpop.permute.xlu0 %1877
  %v1880 = vadd.f32 %v1870, %v1878
  %v1881 = vtanh.pop %v1880
  %1883 = vrot.lane.b32.xlu0 %v1881, 64
  %v1884 = vpop.permute.xlu0 %1883
  %v1886 = vmul.f32 %v1869, %v1884
  %v1887 = vsel %vm313, %v1886, %v1683
  %v1888 = vsel %vm313, %v1880, %v1684
  %1890 = vrot.lane.b32.xlu0 %v1887, 32
  %v1891 = vpop.permute.xlu0 %1890
  %1893 = vst.msk [vmem:[#allocation3 + $0x30] sm:$0xff] %vm364, %v1891
  %v1894 = vld [vmem:[#allocation2 + $0x58] sm:$0xff]
  %1895 = vrot.lane.b32.xlu0 %v1786, 32
  %v1896 = vpop.permute.xlu0 %1895
  %v1897 = vsel %vm364, %v1896, 0
  %1899 = vmatprep.subr.mxu0 0.0
  %1900 = vmatpush1.msra.mxu0 0.0
  %1901 = vmatprep.subr.mxu0 0.0
  %1902 = vmatpush1.msra.mxu0 0.0
  %1903 = vmatprep.subr.mxu0 0.0
  %1904 = vmatpush1.msra.mxu0 0.0
  %1905 = vmatprep.subr.mxu0 0.0
  %1906 = vmatpush1.msra.mxu0 0.0
  %1907 = vmatprep.subr.mxu0 0.0
  %1908 = vmatpush1.msra.mxu0 0.0
  %1909 = vmatprep.subr.mxu0 0.0
  %1910 = vmatpush1.msra.mxu0 0.0
  %1911 = vmatprep.subr.mxu0 0.0
  %1912 = vmatpush1.msra.mxu0 0.0
  %1913 = vmatprep.subr.mxu0 0.0
  %1914 = vmatpush1.msra.mxu0 0.0
  %1915 = vmatprep.subr.mxu0 0.0
  %1916 = vmatpush1.msra.mxu0 0.0
  %1917 = vmatprep.subr.mxu0 0.0
  %1918 = vmatpush1.msra.mxu0 0.0
  %1919 = vmatprep.subr.mxu0 0.0
  %1920 = vmatpush1.msra.mxu0 0.0
  %1921 = vmatprep.subr.mxu0 0.0
  %1922 = vmatpush1.msra.mxu0 0.0
  %1923 = vmatprep.subr.mxu0 0.0
  %1924 = vmatpush1.msra.mxu0 %v570
  %1925 = vmatprep.subr.mxu0 0.0
  %1926 = vmatpush1.msra.mxu0 %v569
  %1927 = vmatprep.subr.mxu0 0.0
  %1928 = vmatpush1.msra.mxu0 %v568
  %1929 = vmatprep.subr.mxu0 0.0
  %1930 = vmatpush1.msra.mxu0 %v567
  %1931 = vmatprep.subr.mxu0 0.0
  %1932 = vmatpush2.msra.mxu0 0.0
  %1933 = vmatprep.subr.mxu0 0.0
  %1934 = vmatpush2.msra.mxu0 0.0
  %1935 = vmatprep.subr.mxu0 0.0
  %1936 = vmatpush2.msra.mxu0 0.0
  %1937 = vmatprep.subr.mxu0 0.0
  %1938 = vmatpush2.msra.mxu0 0.0
  %1939 = vmatprep.subr.mxu0 0.0
  %1940 = vmatpush2.msra.mxu0 0.0
  %1941 = vmatprep.subr.mxu0 0.0
  %1942 = vmatpush2.msra.mxu0 0.0
  %1943 = vmatprep.subr.mxu0 0.0
  %1944 = vmatpush2.msra.mxu0 0.0
  %1945 = vmatprep.subr.mxu0 0.0
  %1946 = vmatpush2.msra.mxu0 0.0
  %1947 = vmatprep.subr.mxu0 0.0
  %1948 = vmatpush2.msra.mxu0 0.0
  %1949 = vmatprep.subr.mxu0 0.0
  %1950 = vmatpush2.msra.mxu0 0.0
  %1951 = vmatprep.subr.mxu0 0.0
  %1952 = vmatpush2.msra.mxu0 0.0
  %1953 = vmatprep.subr.mxu0 0.0
  %1954 = vmatpush2.msra.mxu0 0.0
  %1955 = vmatprep.subr.mxu0 0.0
  %1956 = vmatpush2.msra.mxu0 0.0
  %1957 = vmatprep.subr.mxu0 0.0
  %1958 = vmatpush2.msra.mxu0 0.0
  %1959 = vmatprep.subr.mxu0 0.0
  %1960 = vmatpush2.msra.mxu0 0.0
  %1961 = vmatprep.subr.mxu0 0.0
  %1962 = vmatpush2.msra.mxu0 0.0
  %1963 = vmatprep.mubr.f32.mxu0 0.0
  %1964 = vmatmul.mubr.f32.gmra.mxu0 %v1897
  %v1965 = vpop.f32.mrf.mxu0
  %v1966 = vadd.f32 0.0, %v1965
  %v1967 = vpop.f32.mrf.mxu0
  %1968 = vdwg.mxu0
  %v1969 = vadd.f32 %v1894, %v1966
  %v1970 = vtanh.pop %v1969
  %v1971 = vmul.f32 %v1970, 0.5
  %v1972 = vadd.f32 %v1971, 0.5
  %v1973 = vmul.f32 %v1972, %v1787
  %1975 = vrot.lane.b32.xlu0 %v1970, 64
  %v1976 = vpop.permute.xlu0 %1975
  %v1978 = vmul.f32 %v1972, %v1976
  %1980 = vrot.lane.b32.xlu0 %v1978, 32
  %v1981 = vpop.permute.xlu0 %1980
  %v1983 = vadd.f32 %v1973, %v1981
  %v1984 = vtanh.pop %v1983
  %1986 = vrot.lane.b32.xlu0 %v1984, 64
  %v1987 = vpop.permute.xlu0 %1986
  %v1989 = vmul.f32 %v1972, %v1987
  %v1990 = vsel %vm307, %v1989, %v1786
  %v1991 = vsel %vm307, %v1983, %v1787
  %1993 = vrot.lane.b32.xlu0 %v1990, 64
  %v1994 = vpop.permute.xlu0 %1993
  %1996 = vst.msk [vmem:[#allocation3 + $0x28] sm:$0xff] %vm771, %v1994
  %v1997 = vld [vmem:[#allocation2 + $0x70] sm:$0xff]
  %v1998 = vsel %vm364, %v1891, 0
  %2000 = vmatprep.subr.mxu0 0.0
  %2001 = vmatpush1.msra.mxu0 0.0
  %2002 = vmatprep.subr.mxu0 0.0
  %2003 = vmatpush1.msra.mxu0 0.0
  %2004 = vmatprep.subr.mxu0 0.0
  %2005 = vmatpush1.msra.mxu0 0.0
  %2006 = vmatprep.subr.mxu0 0.0
  %2007 = vmatpush1.msra.mxu0 0.0
  %2008 = vmatprep.subr.mxu0 0.0
  %2009 = vmatpush1.msra.mxu0 0.0
  %2010 = vmatprep.subr.mxu0 0.0
  %2011 = vmatpush1.msra.mxu0 0.0
  %2012 = vmatprep.subr.mxu0 0.0
  %2013 = vmatpush1.msra.mxu0 0.0
  %2014 = vmatprep.subr.mxu0 0.0
  %2015 = vmatpush1.msra.mxu0 0.0
  %2016 = vmatprep.subr.mxu0 0.0
  %2017 = vmatpush1.msra.mxu0 0.0
  %2018 = vmatprep.subr.mxu0 0.0
  %2019 = vmatpush1.msra.mxu0 0.0
  %2020 = vmatprep.subr.mxu0 0.0
  %2021 = vmatpush1.msra.mxu0 0.0
  %2022 = vmatprep.subr.mxu0 0.0
  %2023 = vmatpush1.msra.mxu0 0.0
  %2024 = vmatprep.subr.mxu0 0.0
  %2025 = vmatpush1.msra.mxu0 %v565
  %2026 = vmatprep.subr.mxu0 0.0
  %2027 = vmatpush1.msra.mxu0 %v564
  %2028 = vmatprep.subr.mxu0 0.0
  %2029 = vmatpush1.msra.mxu0 %v563
  %2030 = vmatprep.subr.mxu0 0.0
  %2031 = vmatpush1.msra.mxu0 %v562
  %2032 = vmatprep.subr.mxu0 0.0
  %2033 = vmatpush2.msra.mxu0 0.0
  %2034 = vmatprep.subr.mxu0 0.0
  %2035 = vmatpush2.msra.mxu0 0.0
  %2036 = vmatprep.subr.mxu0 0.0
  %2037 = vmatpush2.msra.mxu0 0.0
  %2038 = vmatprep.subr.mxu0 0.0
  %2039 = vmatpush2.msra.mxu0 0.0
  %2040 = vmatprep.subr.mxu0 0.0
  %2041 = vmatpush2.msra.mxu0 0.0
  %2042 = vmatprep.subr.mxu0 0.0
  %2043 = vmatpush2.msra.mxu0 0.0
  %2044 = vmatprep.subr.mxu0 0.0
  %2045 = vmatpush2.msra.mxu0 0.0
  %2046 = vmatprep.subr.mxu0 0.0
  %2047 = vmatpush2.msra.mxu0 0.0
  %2048 = vmatprep.subr.mxu0 0.0
  %2049 = vmatpush2.msra.mxu0 0.0
  %2050 = vmatprep.subr.mxu0 0.0
  %2051 = vmatpush2.msra.mxu0 0.0
  %2052 = vmatprep.subr.mxu0 0.0
  %2053 = vmatpush2.msra.mxu0 0.0
  %2054 = vmatprep.subr.mxu0 0.0
  %2055 = vmatpush2.msra.mxu0 0.0
  %2056 = vmatprep.subr.mxu0 0.0
  %2057 = vmatpush2.msra.mxu0 0.0
  %2058 = vmatprep.subr.mxu0 0.0
  %2059 = vmatpush2.msra.mxu0 0.0
  %2060 = vmatprep.subr.mxu0 0.0
  %2061 = vmatpush2.msra.mxu0 0.0
  %2062 = vmatprep.subr.mxu0 0.0
  %2063 = vmatpush2.msra.mxu0 0.0
  %2064 = vmatprep.mubr.f32.mxu0 0.0
  %2065 = vmatmul.mubr.f32.gmra.mxu0 %v1998
  %v2066 = vpop.f32.mrf.mxu0
  %v2067 = vadd.f32 0.0, %v2066
  %v2068 = vpop.f32.mrf.mxu0
  %2069 = vdwg.mxu0
  %v2070 = vadd.f32 %v1997, %v2067
  %v2071 = vtanh.pop %v2070
  %v2072 = vmul.f32 %v2071, 0.5
  %v2073 = vadd.f32 %v2072, 0.5
  %v2074 = vmul.f32 %v2073, %v1888
  %2076 = vrot.lane.b32.xlu0 %v2071, 64
  %v2077 = vpop.permute.xlu0 %2076
  %v2079 = vmul.f32 %v2073, %v2077
  %2081 = vrot.lane.b32.xlu0 %v2079, 32
  %v2082 = vpop.permute.xlu0 %2081
  %v2084 = vadd.f32 %v2074, %v2082
  %v2085 = vtanh.pop %v2084
  %2087 = vrot.lane.b32.xlu0 %v2085, 64
  %v2088 = vpop.permute.xlu0 %2087
  %v2090 = vmul.f32 %v2073, %v2088
  %v2091 = vsel %vm319, %v2090, %v1887
  %v2092 = vsel %vm319, %v2084, %v1888
  %2094 = vrot.lane.b32.xlu0 %v2091, 32
  %v2095 = vpop.permute.xlu0 %2094
  %2097 = vst.msk [vmem:[#allocation3 + $0x38] sm:$0xff] %vm364, %v2095
  %v2098 = vld [vmem:[#allocation2 + $0x48] sm:$0xff]
  %2099 = vrot.lane.b32.xlu0 %v1990, 32
  %v2100 = vpop.permute.xlu0 %2099
  %v2101 = vsel %vm364, %v2100, 0
  %2103 = vmatprep.subr.mxu0 0.0
  %2104 = vmatpush1.msra.mxu0 0.0
  %2105 = vmatprep.subr.mxu0 0.0
  %2106 = vmatpush1.msra.mxu0 0.0
  %2107 = vmatprep.subr.mxu0 0.0
  %2108 = vmatpush1.msra.mxu0 0.0
  %2109 = vmatprep.subr.mxu0 0.0
  %2110 = vmatpush1.msra.mxu0 0.0
  %2111 = vmatprep.subr.mxu0 0.0
  %2112 = vmatpush1.msra.mxu0 0.0
  %2113 = vmatprep.subr.mxu0 0.0
  %2114 = vmatpush1.msra.mxu0 0.0
  %2115 = vmatprep.subr.mxu0 0.0
  %2116 = vmatpush1.msra.mxu0 0.0
  %2117 = vmatprep.subr.mxu0 0.0
  %2118 = vmatpush1.msra.mxu0 0.0
  %2119 = vmatprep.subr.mxu0 0.0
  %2120 = vmatpush1.msra.mxu0 0.0
  %2121 = vmatprep.subr.mxu0 0.0
  %2122 = vmatpush1.msra.mxu0 0.0
  %2123 = vmatprep.subr.mxu0 0.0
  %2124 = vmatpush1.msra.mxu0 0.0
  %2125 = vmatprep.subr.mxu0 0.0
  %2126 = vmatpush1.msra.mxu0 0.0
  %2127 = vmatprep.subr.mxu0 0.0
  %2128 = vmatpush1.msra.mxu0 %v570
  %2129 = vmatprep.subr.mxu0 0.0
  %2130 = vmatpush1.msra.mxu0 %v569
  %2131 = vmatprep.subr.mxu0 0.0
  %2132 = vmatpush1.msra.mxu0 %v568
  %2133 = vmatprep.subr.mxu0 0.0
  %2134 = vmatpush1.msra.mxu0 %v567
  %2135 = vmatprep.subr.mxu0 0.0
  %2136 = vmatpush2.msra.mxu0 0.0
  %2137 = vmatprep.subr.mxu0 0.0
  %2138 = vmatpush2.msra.mxu0 0.0
  %2139 = vmatprep.subr.mxu0 0.0
  %2140 = vmatpush2.msra.mxu0 0.0
  %2141 = vmatprep.subr.mxu0 0.0
  %2142 = vmatpush2.msra.mxu0 0.0
  %2143 = vmatprep.subr.mxu0 0.0
  %2144 = vmatpush2.msra.mxu0 0.0
  %2145 = vmatprep.subr.mxu0 0.0
  %2146 = vmatpush2.msra.mxu0 0.0
  %2147 = vmatprep.subr.mxu0 0.0
  %2148 = vmatpush2.msra.mxu0 0.0
  %2149 = vmatprep.subr.mxu0 0.0
  %2150 = vmatpush2.msra.mxu0 0.0
  %2151 = vmatprep.subr.mxu0 0.0
  %2152 = vmatpush2.msra.mxu0 0.0
  %2153 = vmatprep.subr.mxu0 0.0
  %2154 = vmatpush2.msra.mxu0 0.0
  %2155 = vmatprep.subr.mxu0 0.0
  %2156 = vmatpush2.msra.mxu0 0.0
  %2157 = vmatprep.subr.mxu0 0.0
  %2158 = vmatpush2.msra.mxu0 0.0
  %2159 = vmatprep.subr.mxu0 0.0
  %2160 = vmatpush2.msra.mxu0 0.0
  %2161 = vmatprep.subr.mxu0 0.0
  %2162 = vmatpush2.msra.mxu0 0.0
  %2163 = vmatprep.subr.mxu0 0.0
  %2164 = vmatpush2.msra.mxu0 0.0
  %2165 = vmatprep.subr.mxu0 0.0
  %2166 = vmatpush2.msra.mxu0 0.0
  %2167 = vmatprep.mubr.f32.mxu0 0.0
  %2168 = vmatmul.mubr.f32.gmra.mxu0 %v2101
  %v2169 = vpop.f32.mrf.mxu0
  %v2170 = vadd.f32 0.0, %v2169
  %v2171 = vpop.f32.mrf.mxu0
  %2172 = vdwg.mxu0
  %v2173 = vadd.f32 %v2098, %v2170
  %v2174 = vtanh.pop %v2173
  %v2175 = vmul.f32 %v2174, 0.5
  %v2176 = vadd.f32 %v2175, 0.5
  %v2177 = vmul.f32 %v2176, %v1991
  %2179 = vrot.lane.b32.xlu0 %v2174, 64
  %v2180 = vpop.permute.xlu0 %2179
  %v2182 = vmul.f32 %v2176, %v2180
  %2184 = vrot.lane.b32.xlu0 %v2182, 32
  %v2185 = vpop.permute.xlu0 %2184
  %v2187 = vadd.f32 %v2177, %v2185
  %v2188 = vtanh.pop %v2187
  %2190 = vrot.lane.b32.xlu0 %v2188, 64
  %v2191 = vpop.permute.xlu0 %2190
  %v2193 = vmul.f32 %v2176, %v2191
  %v2194 = vsel %vm301, %v2193, %v1990
  %v2195 = vsel %vm301, %v2187, %v1991
  %2197 = vrot.lane.b32.xlu0 %v2194, 64
  %v2198 = vpop.permute.xlu0 %2197
  %2200 = vst.msk [vmem:[#allocation3 + $0x20] sm:$0xff] %vm771, %v2198
  %v2201 = vld [vmem:[#allocation2 + $0x80] sm:$0xff]
  %v2202 = vsel %vm364, %v2095, 0
  %2204 = vmatprep.subr.mxu0 0.0
  %2205 = vmatpush1.msra.mxu0 0.0
  %2206 = vmatprep.subr.mxu0 0.0
  %2207 = vmatpush1.msra.mxu0 0.0
  %2208 = vmatprep.subr.mxu0 0.0
  %2209 = vmatpush1.msra.mxu0 0.0
  %2210 = vmatprep.subr.mxu0 0.0
  %2211 = vmatpush1.msra.mxu0 0.0
  %2212 = vmatprep.subr.mxu0 0.0
  %2213 = vmatpush1.msra.mxu0 0.0
  %2214 = vmatprep.subr.mxu0 0.0
  %2215 = vmatpush1.msra.mxu0 0.0
  %2216 = vmatprep.subr.mxu0 0.0
  %2217 = vmatpush1.msra.mxu0 0.0
  %2218 = vmatprep.subr.mxu0 0.0
  %2219 = vmatpush1.msra.mxu0 0.0
  %2220 = vmatprep.subr.mxu0 0.0
  %2221 = vmatpush1.msra.mxu0 0.0
  %2222 = vmatprep.subr.mxu0 0.0
  %2223 = vmatpush1.msra.mxu0 0.0
  %2224 = vmatprep.subr.mxu0 0.0
  %2225 = vmatpush1.msra.mxu0 0.0
  %2226 = vmatprep.subr.mxu0 0.0
  %2227 = vmatpush1.msra.mxu0 0.0
  %2228 = vmatprep.subr.mxu0 0.0
  %2229 = vmatpush1.msra.mxu0 %v565
  %2230 = vmatprep.subr.mxu0 0.0
  %2231 = vmatpush1.msra.mxu0 %v564
  %2232 = vmatprep.subr.mxu0 0.0
  %2233 = vmatpush1.msra.mxu0 %v563
  %2234 = vmatprep.subr.mxu0 0.0
  %2235 = vmatpush1.msra.mxu0 %v562
  %2236 = vmatprep.subr.mxu0 0.0
  %2237 = vmatpush2.msra.mxu0 0.0
  %2238 = vmatprep.subr.mxu0 0.0
  %2239 = vmatpush2.msra.mxu0 0.0
  %2240 = vmatprep.subr.mxu0 0.0
  %2241 = vmatpush2.msra.mxu0 0.0
  %2242 = vmatprep.subr.mxu0 0.0
  %2243 = vmatpush2.msra.mxu0 0.0
  %2244 = vmatprep.subr.mxu0 0.0
  %2245 = vmatpush2.msra.mxu0 0.0
  %2246 = vmatprep.subr.mxu0 0.0
  %2247 = vmatpush2.msra.mxu0 0.0
  %2248 = vmatprep.subr.mxu0 0.0
  %2249 = vmatpush2.msra.mxu0 0.0
  %2250 = vmatprep.subr.mxu0 0.0
  %2251 = vmatpush2.msra.mxu0 0.0
  %2252 = vmatprep.subr.mxu0 0.0
  %2253 = vmatpush2.msra.mxu0 0.0
  %2254 = vmatprep.subr.mxu0 0.0
  %2255 = vmatpush2.msra.mxu0 0.0
  %2256 = vmatprep.subr.mxu0 0.0
  %2257 = vmatpush2.msra.mxu0 0.0
  %2258 = vmatprep.subr.mxu0 0.0
  %2259 = vmatpush2.msra.mxu0 0.0
  %2260 = vmatprep.subr.mxu0 0.0
  %2261 = vmatpush2.msra.mxu0 0.0
  %2262 = vmatprep.subr.mxu0 0.0
  %2263 = vmatpush2.msra.mxu0 0.0
  %2264 = vmatprep.subr.mxu0 0.0
  %2265 = vmatpush2.msra.mxu0 0.0
  %2266 = vmatprep.subr.mxu0 0.0
  %2267 = vmatpush2.msra.mxu0 0.0
  %2268 = vmatprep.mubr.f32.mxu0 0.0
  %2269 = vmatmul.mubr.f32.gmra.mxu0 %v2202
  %v2270 = vpop.f32.mrf.mxu0
  %v2271 = vadd.f32 0.0, %v2270
  %v2272 = vpop.f32.mrf.mxu0
  %2273 = vdwg.mxu0
  %v2274 = vadd.f32 %v2201, %v2271
  %v2275 = vtanh.pop %v2274
  %v2276 = vmul.f32 %v2275, 0.5
  %v2277 = vadd.f32 %v2276, 0.5
  %v2278 = vmul.f32 %v2277, %v2092
  %2280 = vrot.lane.b32.xlu0 %v2275, 64
  %v2281 = vpop.permute.xlu0 %2280
  %v2283 = vmul.f32 %v2277, %v2281
  %2285 = vrot.lane.b32.xlu0 %v2283, 32
  %v2286 = vpop.permute.xlu0 %2285
  %v2288 = vadd.f32 %v2278, %v2286
  %v2289 = vtanh.pop %v2288
  %2291 = vrot.lane.b32.xlu0 %v2289, 64
  %v2292 = vpop.permute.xlu0 %2291
  %v2294 = vmul.f32 %v2277, %v2292
  %v2295 = vsel %vm325, %v2294, %v2091
  %v2296 = vsel %vm325, %v2288, %v2092
  %2298 = vrot.lane.b32.xlu0 %v2295, 32
  %v2299 = vpop.permute.xlu0 %2298
  %2301 = vst.msk [vmem:[#allocation3 + $0x40] sm:$0xff] %vm364, %v2299
  %v2302 = vld [vmem:[#allocation2 + $0x38] sm:$0xff]
  %2303 = vrot.lane.b32.xlu0 %v2194, 32
  %v2304 = vpop.permute.xlu0 %2303
  %v2305 = vsel %vm364, %v2304, 0
  %2307 = vmatprep.subr.mxu0 0.0
  %2308 = vmatpush1.msra.mxu0 0.0
  %2309 = vmatprep.subr.mxu0 0.0
  %2310 = vmatpush1.msra.mxu0 0.0
  %2311 = vmatprep.subr.mxu0 0.0
  %2312 = vmatpush1.msra.mxu0 0.0
  %2313 = vmatprep.subr.mxu0 0.0
  %2314 = vmatpush1.msra.mxu0 0.0
  %2315 = vmatprep.subr.mxu0 0.0
  %2316 = vmatpush1.msra.mxu0 0.0
  %2317 = vmatprep.subr.mxu0 0.0
  %2318 = vmatpush1.msra.mxu0 0.0
  %2319 = vmatprep.subr.mxu0 0.0
  %2320 = vmatpush1.msra.mxu0 0.0
  %2321 = vmatprep.subr.mxu0 0.0
  %2322 = vmatpush1.msra.mxu0 0.0
  %2323 = vmatprep.subr.mxu0 0.0
  %2324 = vmatpush1.msra.mxu0 0.0
  %2325 = vmatprep.subr.mxu0 0.0
  %2326 = vmatpush1.msra.mxu0 0.0
  %2327 = vmatprep.subr.mxu0 0.0
  %2328 = vmatpush1.msra.mxu0 0.0
  %2329 = vmatprep.subr.mxu0 0.0
  %2330 = vmatpush1.msra.mxu0 0.0
  %2331 = vmatprep.subr.mxu0 0.0
  %2332 = vmatpush1.msra.mxu0 %v570
  %2333 = vmatprep.subr.mxu0 0.0
  %2334 = vmatpush1.msra.mxu0 %v569
  %2335 = vmatprep.subr.mxu0 0.0
  %2336 = vmatpush1.msra.mxu0 %v568
  %2337 = vmatprep.subr.mxu0 0.0
  %2338 = vmatpush1.msra.mxu0 %v567
  %2339 = vmatprep.subr.mxu0 0.0
  %2340 = vmatpush2.msra.mxu0 0.0
  %2341 = vmatprep.subr.mxu0 0.0
  %2342 = vmatpush2.msra.mxu0 0.0
  %2343 = vmatprep.subr.mxu0 0.0
  %2344 = vmatpush2.msra.mxu0 0.0
  %2345 = vmatprep.subr.mxu0 0.0
  %2346 = vmatpush2.msra.mxu0 0.0
  %2347 = vmatprep.subr.mxu0 0.0
  %2348 = vmatpush2.msra.mxu0 0.0
  %2349 = vmatprep.subr.mxu0 0.0
  %2350 = vmatpush2.msra.mxu0 0.0
  %2351 = vmatprep.subr.mxu0 0.0
  %2352 = vmatpush2.msra.mxu0 0.0
  %2353 = vmatprep.subr.mxu0 0.0
  %2354 = vmatpush2.msra.mxu0 0.0
  %2355 = vmatprep.subr.mxu0 0.0
  %2356 = vmatpush2.msra.mxu0 0.0
  %2357 = vmatprep.subr.mxu0 0.0
  %2358 = vmatpush2.msra.mxu0 0.0
  %2359 = vmatprep.subr.mxu0 0.0
  %2360 = vmatpush2.msra.mxu0 0.0
  %2361 = vmatprep.subr.mxu0 0.0
  %2362 = vmatpush2.msra.mxu0 0.0
  %2363 = vmatprep.subr.mxu0 0.0
  %2364 = vmatpush2.msra.mxu0 0.0
  %2365 = vmatprep.subr.mxu0 0.0
  %2366 = vmatpush2.msra.mxu0 0.0
  %2367 = vmatprep.subr.mxu0 0.0
  %2368 = vmatpush2.msra.mxu0 0.0
  %2369 = vmatprep.subr.mxu0 0.0
  %2370 = vmatpush2.msra.mxu0 0.0
  %2371 = vmatprep.mubr.f32.mxu0 0.0
  %2372 = vmatmul.mubr.f32.gmra.mxu0 %v2305
  %v2373 = vpop.f32.mrf.mxu0
  %v2374 = vadd.f32 0.0, %v2373
  %v2375 = vpop.f32.mrf.mxu0
  %2376 = vdwg.mxu0
  %v2377 = vadd.f32 %v2302, %v2374
  %v2378 = vtanh.pop %v2377
  %v2379 = vmul.f32 %v2378, 0.5
  %v2380 = vadd.f32 %v2379, 0.5
  %v2381 = vmul.f32 %v2380, %v2195
  %2383 = vrot.lane.b32.xlu0 %v2378, 64
  %v2384 = vpop.permute.xlu0 %2383
  %v2386 = vmul.f32 %v2380, %v2384
  %2388 = vrot.lane.b32.xlu0 %v2386, 32
  %v2389 = vpop.permute.xlu0 %2388
  %v2391 = vadd.f32 %v2381, %v2389
  %v2392 = vtanh.pop %v2391
  %2394 = vrot.lane.b32.xlu0 %v2392, 64
  %v2395 = vpop.permute.xlu0 %2394
  %v2397 = vmul.f32 %v2380, %v2395
  %v2398 = vsel %vm295, %v2397, %v2194
  %v2399 = vsel %vm295, %v2391, %v2195
  %2401 = vrot.lane.b32.xlu0 %v2398, 64
  %v2402 = vpop.permute.xlu0 %2401
  %2404 = vst.msk [vmem:[#allocation3 + $0x18] sm:$0xff] %vm771, %v2402
  %v2405 = vld [vmem:[#allocation2 + $0x90] sm:$0xff]
  %v2406 = vsel %vm364, %v2299, 0
  %2408 = vmatprep.subr.mxu0 0.0
  %2409 = vmatpush1.msra.mxu0 0.0
  %2410 = vmatprep.subr.mxu0 0.0
  %2411 = vmatpush1.msra.mxu0 0.0
  %2412 = vmatprep.subr.mxu0 0.0
  %2413 = vmatpush1.msra.mxu0 0.0
  %2414 = vmatprep.subr.mxu0 0.0
  %2415 = vmatpush1.msra.mxu0 0.0
  %2416 = vmatprep.subr.mxu0 0.0
  %2417 = vmatpush1.msra.mxu0 0.0
  %2418 = vmatprep.subr.mxu0 0.0
  %2419 = vmatpush1.msra.mxu0 0.0
  %2420 = vmatprep.subr.mxu0 0.0
  %2421 = vmatpush1.msra.mxu0 0.0
  %2422 = vmatprep.subr.mxu0 0.0
  %2423 = vmatpush1.msra.mxu0 0.0
  %2424 = vmatprep.subr.mxu0 0.0
  %2425 = vmatpush1.msra.mxu0 0.0
  %2426 = vmatprep.subr.mxu0 0.0
  %2427 = vmatpush1.msra.mxu0 0.0
  %2428 = vmatprep.subr.mxu0 0.0
  %2429 = vmatpush1.msra.mxu0 0.0
  %2430 = vmatprep.subr.mxu0 0.0
  %2431 = vmatpush1.msra.mxu0 0.0
  %2432 = vmatprep.subr.mxu0 0.0
  %2433 = vmatpush1.msra.mxu0 %v565
  %2434 = vmatprep.subr.mxu0 0.0
  %2435 = vmatpush1.msra.mxu0 %v564
  %2436 = vmatprep.subr.mxu0 0.0
  %2437 = vmatpush1.msra.mxu0 %v563
  %2438 = vmatprep.subr.mxu0 0.0
  %2439 = vmatpush1.msra.mxu0 %v562
  %2440 = vmatprep.subr.mxu0 0.0
  %2441 = vmatpush2.msra.mxu0 0.0
  %2442 = vmatprep.subr.mxu0 0.0
  %2443 = vmatpush2.msra.mxu0 0.0
  %2444 = vmatprep.subr.mxu0 0.0
  %2445 = vmatpush2.msra.mxu0 0.0
  %2446 = vmatprep.subr.mxu0 0.0
  %2447 = vmatpush2.msra.mxu0 0.0
  %2448 = vmatprep.subr.mxu0 0.0
  %2449 = vmatpush2.msra.mxu0 0.0
  %2450 = vmatprep.subr.mxu0 0.0
  %2451 = vmatpush2.msra.mxu0 0.0
  %2452 = vmatprep.subr.mxu0 0.0
  %2453 = vmatpush2.msra.mxu0 0.0
  %2454 = vmatprep.subr.mxu0 0.0
  %2455 = vmatpush2.msra.mxu0 0.0
  %2456 = vmatprep.subr.mxu0 0.0
  %2457 = vmatpush2.msra.mxu0 0.0
  %2458 = vmatprep.subr.mxu0 0.0
  %2459 = vmatpush2.msra.mxu0 0.0
  %2460 = vmatprep.subr.mxu0 0.0
  %2461 = vmatpush2.msra.mxu0 0.0
  %2462 = vmatprep.subr.mxu0 0.0
  %2463 = vmatpush2.msra.mxu0 0.0
  %2464 = vmatprep.subr.mxu0 0.0
  %2465 = vmatpush2.msra.mxu0 0.0
  %2466 = vmatprep.subr.mxu0 0.0
  %2467 = vmatpush2.msra.mxu0 0.0
  %2468 = vmatprep.subr.mxu0 0.0
  %2469 = vmatpush2.msra.mxu0 0.0
  %2470 = vmatprep.subr.mxu0 0.0
  %2471 = vmatpush2.msra.mxu0 0.0
  %2472 = vmatprep.mubr.f32.mxu0 0.0
  %2473 = vmatmul.mubr.f32.gmra.mxu0 %v2406
  %v2474 = vpop.f32.mrf.mxu0
  %v2475 = vadd.f32 0.0, %v2474
  %v2476 = vpop.f32.mrf.mxu0
  %2477 = vdwg.mxu0
  %v2478 = vadd.f32 %v2405, %v2475
  %v2479 = vtanh.pop %v2478
  %v2480 = vmul.f32 %v2479, 0.5
  %v2481 = vadd.f32 %v2480, 0.5
  %v2482 = vmul.f32 %v2481, %v2296
  %2484 = vrot.lane.b32.xlu0 %v2479, 64
  %v2485 = vpop.permute.xlu0 %2484
  %v2487 = vmul.f32 %v2481, %v2485
  %2489 = vrot.lane.b32.xlu0 %v2487, 32
  %v2490 = vpop.permute.xlu0 %2489
  %v2492 = vadd.f32 %v2482, %v2490
  %v2493 = vtanh.pop %v2492
  %2495 = vrot.lane.b32.xlu0 %v2493, 64
  %v2496 = vpop.permute.xlu0 %2495
  %v2498 = vmul.f32 %v2481, %v2496
  %v2499 = vsel %vm331, %v2498, %v2295
  %v2500 = vsel %vm331, %v2492, %v2296
  %2502 = vrot.lane.b32.xlu0 %v2499, 32
  %v2503 = vpop.permute.xlu0 %2502
  %2505 = vst.msk [vmem:[#allocation3 + $0x48] sm:$0xff] %vm364, %v2503
  %v2506 = vld [vmem:[#allocation2 + $0x28] sm:$0xff]
  %2507 = vrot.lane.b32.xlu0 %v2398, 32
  %v2508 = vpop.permute.xlu0 %2507
  %v2509 = vsel %vm364, %v2508, 0
  %2511 = vmatprep.subr.mxu0 0.0
  %2512 = vmatpush1.msra.mxu0 0.0
  %2513 = vmatprep.subr.mxu0 0.0
  %2514 = vmatpush1.msra.mxu0 0.0
  %2515 = vmatprep.subr.mxu0 0.0
  %2516 = vmatpush1.msra.mxu0 0.0
  %2517 = vmatprep.subr.mxu0 0.0
  %2518 = vmatpush1.msra.mxu0 0.0
  %2519 = vmatprep.subr.mxu0 0.0
  %2520 = vmatpush1.msra.mxu0 0.0
  %2521 = vmatprep.subr.mxu0 0.0
  %2522 = vmatpush1.msra.mxu0 0.0
  %2523 = vmatprep.subr.mxu0 0.0
  %2524 = vmatpush1.msra.mxu0 0.0
  %2525 = vmatprep.subr.mxu0 0.0
  %2526 = vmatpush1.msra.mxu0 0.0
  %2527 = vmatprep.subr.mxu0 0.0
  %2528 = vmatpush1.msra.mxu0 0.0
  %2529 = vmatprep.subr.mxu0 0.0
  %2530 = vmatpush1.msra.mxu0 0.0
  %2531 = vmatprep.subr.mxu0 0.0
  %2532 = vmatpush1.msra.mxu0 0.0
  %2533 = vmatprep.subr.mxu0 0.0
  %2534 = vmatpush1.msra.mxu0 0.0
  %2535 = vmatprep.subr.mxu0 0.0
  %2536 = vmatpush1.msra.mxu0 %v570
  %2537 = vmatprep.subr.mxu0 0.0
  %2538 = vmatpush1.msra.mxu0 %v569
  %2539 = vmatprep.subr.mxu0 0.0
  %2540 = vmatpush1.msra.mxu0 %v568
  %2541 = vmatprep.subr.mxu0 0.0
  %2542 = vmatpush1.msra.mxu0 %v567
  %2543 = vmatprep.subr.mxu0 0.0
  %2544 = vmatpush2.msra.mxu0 0.0
  %2545 = vmatprep.subr.mxu0 0.0
  %2546 = vmatpush2.msra.mxu0 0.0
  %2547 = vmatprep.subr.mxu0 0.0
  %2548 = vmatpush2.msra.mxu0 0.0
  %2549 = vmatprep.subr.mxu0 0.0
  %2550 = vmatpush2.msra.mxu0 0.0
  %2551 = vmatprep.subr.mxu0 0.0
  %2552 = vmatpush2.msra.mxu0 0.0
  %2553 = vmatprep.subr.mxu0 0.0
  %2554 = vmatpush2.msra.mxu0 0.0
  %2555 = vmatprep.subr.mxu0 0.0
  %2556 = vmatpush2.msra.mxu0 0.0
  %2557 = vmatprep.subr.mxu0 0.0
  %2558 = vmatpush2.msra.mxu0 0.0
  %2559 = vmatprep.subr.mxu0 0.0
  %2560 = vmatpush2.msra.mxu0 0.0
  %2561 = vmatprep.subr.mxu0 0.0
  %2562 = vmatpush2.msra.mxu0 0.0
  %2563 = vmatprep.subr.mxu0 0.0
  %2564 = vmatpush2.msra.mxu0 0.0
  %2565 = vmatprep.subr.mxu0 0.0
  %2566 = vmatpush2.msra.mxu0 0.0
  %2567 = vmatprep.subr.mxu0 0.0
  %2568 = vmatpush2.msra.mxu0 0.0
  %2569 = vmatprep.subr.mxu0 0.0
  %2570 = vmatpush2.msra.mxu0 0.0
  %2571 = vmatprep.subr.mxu0 0.0
  %2572 = vmatpush2.msra.mxu0 0.0
  %2573 = vmatprep.subr.mxu0 0.0
  %2574 = vmatpush2.msra.mxu0 0.0
  %2575 = vmatprep.mubr.f32.mxu0 0.0
  %2576 = vmatmul.mubr.f32.gmra.mxu0 %v2509
  %v2577 = vpop.f32.mrf.mxu0
  %v2578 = vadd.f32 0.0, %v2577
  %v2579 = vpop.f32.mrf.mxu0
  %2580 = vdwg.mxu0
  %v2581 = vadd.f32 %v2506, %v2578
  %v2582 = vtanh.pop %v2581
  %v2583 = vmul.f32 %v2582, 0.5
  %v2584 = vadd.f32 %v2583, 0.5
  %v2585 = vmul.f32 %v2584, %v2399
  %2587 = vrot.lane.b32.xlu0 %v2582, 64
  %v2588 = vpop.permute.xlu0 %2587
  %v2590 = vmul.f32 %v2584, %v2588
  %2592 = vrot.lane.b32.xlu0 %v2590, 32
  %v2593 = vpop.permute.xlu0 %2592
  %v2595 = vadd.f32 %v2585, %v2593
  %v2596 = vtanh.pop %v2595
  %2598 = vrot.lane.b32.xlu0 %v2596, 64
  %v2599 = vpop.permute.xlu0 %2598
  %v2601 = vmul.f32 %v2584, %v2599
  %v2602 = vsel %vm289, %v2601, %v2398
  %v2603 = vsel %vm289, %v2595, %v2399
  %2605 = vrot.lane.b32.xlu0 %v2602, 64
  %v2606 = vpop.permute.xlu0 %2605
  %2608 = vst.msk [vmem:[#allocation3 + $0x10] sm:$0xff] %vm771, %v2606
  %v2609 = vld [vmem:[#allocation2 + $0xa0] sm:$0xff]
  %v2610 = vsel %vm364, %v2503, 0
  %2612 = vmatprep.subr.mxu0 0.0
  %2613 = vmatpush1.msra.mxu0 0.0
  %2614 = vmatprep.subr.mxu0 0.0
  %2615 = vmatpush1.msra.mxu0 0.0
  %2616 = vmatprep.subr.mxu0 0.0
  %2617 = vmatpush1.msra.mxu0 0.0
  %2618 = vmatprep.subr.mxu0 0.0
  %2619 = vmatpush1.msra.mxu0 0.0
  %2620 = vmatprep.subr.mxu0 0.0
  %2621 = vmatpush1.msra.mxu0 0.0
  %2622 = vmatprep.subr.mxu0 0.0
  %2623 = vmatpush1.msra.mxu0 0.0
  %2624 = vmatprep.subr.mxu0 0.0
  %2625 = vmatpush1.msra.mxu0 0.0
  %2626 = vmatprep.subr.mxu0 0.0
  %2627 = vmatpush1.msra.mxu0 0.0
  %2628 = vmatprep.subr.mxu0 0.0
  %2629 = vmatpush1.msra.mxu0 0.0
  %2630 = vmatprep.subr.mxu0 0.0
  %2631 = vmatpush1.msra.mxu0 0.0
  %2632 = vmatprep.subr.mxu0 0.0
  %2633 = vmatpush1.msra.mxu0 0.0
  %2634 = vmatprep.subr.mxu0 0.0
  %2635 = vmatpush1.msra.mxu0 0.0
  %2636 = vmatprep.subr.mxu0 0.0
  %2637 = vmatpush1.msra.mxu0 %v565
  %2638 = vmatprep.subr.mxu0 0.0
  %2639 = vmatpush1.msra.mxu0 %v564
  %2640 = vmatprep.subr.mxu0 0.0
  %2641 = vmatpush1.msra.mxu0 %v563
  %2642 = vmatprep.subr.mxu0 0.0
  %2643 = vmatpush1.msra.mxu0 %v562
  %2644 = vmatprep.subr.mxu0 0.0
  %2645 = vmatpush2.msra.mxu0 0.0
  %2646 = vmatprep.subr.mxu0 0.0
  %2647 = vmatpush2.msra.mxu0 0.0
  %2648 = vmatprep.subr.mxu0 0.0
  %2649 = vmatpush2.msra.mxu0 0.0
  %2650 = vmatprep.subr.mxu0 0.0
  %2651 = vmatpush2.msra.mxu0 0.0
  %2652 = vmatprep.subr.mxu0 0.0
  %2653 = vmatpush2.msra.mxu0 0.0
  %2654 = vmatprep.subr.mxu0 0.0
  %2655 = vmatpush2.msra.mxu0 0.0
  %2656 = vmatprep.subr.mxu0 0.0
  %2657 = vmatpush2.msra.mxu0 0.0
  %2658 = vmatprep.subr.mxu0 0.0
  %2659 = vmatpush2.msra.mxu0 0.0
  %2660 = vmatprep.subr.mxu0 0.0
  %2661 = vmatpush2.msra.mxu0 0.0
  %2662 = vmatprep.subr.mxu0 0.0
  %2663 = vmatpush2.msra.mxu0 0.0
  %2664 = vmatprep.subr.mxu0 0.0
  %2665 = vmatpush2.msra.mxu0 0.0
  %2666 = vmatprep.subr.mxu0 0.0
  %2667 = vmatpush2.msra.mxu0 0.0
  %2668 = vmatprep.subr.mxu0 0.0
  %2669 = vmatpush2.msra.mxu0 0.0
  %2670 = vmatprep.subr.mxu0 0.0
  %2671 = vmatpush2.msra.mxu0 0.0
  %2672 = vmatprep.subr.mxu0 0.0
  %2673 = vmatpush2.msra.mxu0 0.0
  %2674 = vmatprep.subr.mxu0 0.0
  %2675 = vmatpush2.msra.mxu0 0.0
  %2676 = vmatprep.mubr.f32.mxu0 0.0
  %2677 = vmatmul.mubr.f32.gmra.mxu0 %v2610
  %v2678 = vpop.f32.mrf.mxu0
  %v2679 = vadd.f32 0.0, %v2678
  %v2680 = vpop.f32.mrf.mxu0
  %2681 = vdwg.mxu0
  %v2682 = vadd.f32 %v2609, %v2679
  %v2683 = vtanh.pop %v2682
  %v2684 = vmul.f32 %v2683, 0.5
  %v2685 = vadd.f32 %v2684, 0.5
  %v2686 = vmul.f32 %v2685, %v2500
  %2688 = vrot.lane.b32.xlu0 %v2683, 64
  %v2689 = vpop.permute.xlu0 %2688
  %v2691 = vmul.f32 %v2685, %v2689
  %2693 = vrot.lane.b32.xlu0 %v2691, 32
  %v2694 = vpop.permute.xlu0 %2693
  %v2696 = vadd.f32 %v2686, %v2694
  %v2697 = vtanh.pop %v2696
  %2699 = vrot.lane.b32.xlu0 %v2697, 64
  %v2700 = vpop.permute.xlu0 %2699
  %v2702 = vmul.f32 %v2685, %v2700
  %v2703 = vsel %vm337, %v2702, %v2499
  %v2704 = vsel %vm337, %v2696, %v2500
  %2706 = vrot.lane.b32.xlu0 %v2703, 32
  %v2707 = vpop.permute.xlu0 %2706
  %2709 = vst.msk [vmem:[#allocation3 + $0x50] sm:$0xff] %vm364, %v2707
  %v2710 = vld [vmem:[#allocation2 + $0x18] sm:$0xff]
  %2711 = vrot.lane.b32.xlu0 %v2602, 32
  %v2712 = vpop.permute.xlu0 %2711
  %v2713 = vsel %vm364, %v2712, 0
  %2715 = vmatprep.subr.mxu0 0.0
  %2716 = vmatpush1.msra.mxu0 0.0
  %2717 = vmatprep.subr.mxu0 0.0
  %2718 = vmatpush1.msra.mxu0 0.0
  %2719 = vmatprep.subr.mxu0 0.0
  %2720 = vmatpush1.msra.mxu0 0.0
  %2721 = vmatprep.subr.mxu0 0.0
  %2722 = vmatpush1.msra.mxu0 0.0
  %2723 = vmatprep.subr.mxu0 0.0
  %2724 = vmatpush1.msra.mxu0 0.0
  %2725 = vmatprep.subr.mxu0 0.0
  %2726 = vmatpush1.msra.mxu0 0.0
  %2727 = vmatprep.subr.mxu0 0.0
  %2728 = vmatpush1.msra.mxu0 0.0
  %2729 = vmatprep.subr.mxu0 0.0
  %2730 = vmatpush1.msra.mxu0 0.0
  %2731 = vmatprep.subr.mxu0 0.0
  %2732 = vmatpush1.msra.mxu0 0.0
  %2733 = vmatprep.subr.mxu0 0.0
  %2734 = vmatpush1.msra.mxu0 0.0
  %2735 = vmatprep.subr.mxu0 0.0
  %2736 = vmatpush1.msra.mxu0 0.0
  %2737 = vmatprep.subr.mxu0 0.0
  %2738 = vmatpush1.msra.mxu0 0.0
  %2739 = vmatprep.subr.mxu0 0.0
  %2740 = vmatpush1.msra.mxu0 %v570
  %2741 = vmatprep.subr.mxu0 0.0
  %2742 = vmatpush1.msra.mxu0 %v569
  %2743 = vmatprep.subr.mxu0 0.0
  %2744 = vmatpush1.msra.mxu0 %v568
  %2745 = vmatprep.subr.mxu0 0.0
  %2746 = vmatpush1.msra.mxu0 %v567
  %2747 = vmatprep.subr.mxu0 0.0
  %2748 = vmatpush2.msra.mxu0 0.0
  %2749 = vmatprep.subr.mxu0 0.0
  %2750 = vmatpush2.msra.mxu0 0.0
  %2751 = vmatprep.subr.mxu0 0.0
  %2752 = vmatpush2.msra.mxu0 0.0
  %2753 = vmatprep.subr.mxu0 0.0
  %2754 = vmatpush2.msra.mxu0 0.0
  %2755 = vmatprep.subr.mxu0 0.0
  %2756 = vmatpush2.msra.mxu0 0.0
  %2757 = vmatprep.subr.mxu0 0.0
  %2758 = vmatpush2.msra.mxu0 0.0
  %2759 = vmatprep.subr.mxu0 0.0
  %2760 = vmatpush2.msra.mxu0 0.0
  %2761 = vmatprep.subr.mxu0 0.0
  %2762 = vmatpush2.msra.mxu0 0.0
  %2763 = vmatprep.subr.mxu0 0.0
  %2764 = vmatpush2.msra.mxu0 0.0
  %2765 = vmatprep.subr.mxu0 0.0
  %2766 = vmatpush2.msra.mxu0 0.0
  %2767 = vmatprep.subr.mxu0 0.0
  %2768 = vmatpush2.msra.mxu0 0.0
  %2769 = vmatprep.subr.mxu0 0.0
  %2770 = vmatpush2.msra.mxu0 0.0
  %2771 = vmatprep.subr.mxu0 0.0
  %2772 = vmatpush2.msra.mxu0 0.0
  %2773 = vmatprep.subr.mxu0 0.0
  %2774 = vmatpush2.msra.mxu0 0.0
  %2775 = vmatprep.subr.mxu0 0.0
  %2776 = vmatpush2.msra.mxu0 0.0
  %2777 = vmatprep.subr.mxu0 0.0
  %2778 = vmatpush2.msra.mxu0 0.0
  %2779 = vmatprep.mubr.f32.mxu0 0.0
  %2780 = vmatmul.mubr.f32.gmra.mxu0 %v2713
  %v2781 = vpop.f32.mrf.mxu0
  %v2782 = vadd.f32 0.0, %v2781
  %v2783 = vpop.f32.mrf.mxu0
  %2784 = vdwg.mxu0
  %v2785 = vadd.f32 %v2710, %v2782
  %v2786 = vtanh.pop %v2785
  %v2787 = vmul.f32 %v2786, 0.5
  %v2788 = vadd.f32 %v2787, 0.5
  %v2789 = vmul.f32 %v2788, %v2603
  %2791 = vrot.lane.b32.xlu0 %v2786, 64
  %v2792 = vpop.permute.xlu0 %2791
  %v2794 = vmul.f32 %v2788, %v2792
  %2796 = vrot.lane.b32.xlu0 %v2794, 32
  %v2797 = vpop.permute.xlu0 %2796
  %v2799 = vadd.f32 %v2789, %v2797
  %v2800 = vtanh.pop %v2799
  %2802 = vrot.lane.b32.xlu0 %v2800, 64
  %v2803 = vpop.permute.xlu0 %2802
  %v2805 = vmul.f32 %v2788, %v2803
  %v2806 = vsel %vm283, %v2805, %v2602
  %v2807 = vsel %vm283, %v2799, %v2603
  %2809 = vrot.lane.b32.xlu0 %v2806, 64
  %v2810 = vpop.permute.xlu0 %2809
  %2812 = vst.msk [vmem:[#allocation3 + $0x8] sm:$0xff] %vm771, %v2810
  %v2813 = vld [vmem:[#allocation2 + $0xb0] sm:$0xff]
  %v2814 = vsel %vm364, %v2707, 0
  %2816 = vmatprep.subr.mxu0 0.0
  %2817 = vmatpush1.msra.mxu0 0.0
  %2818 = vmatprep.subr.mxu0 0.0
  %2819 = vmatpush1.msra.mxu0 0.0
  %2820 = vmatprep.subr.mxu0 0.0
  %2821 = vmatpush1.msra.mxu0 0.0
  %2822 = vmatprep.subr.mxu0 0.0
  %2823 = vmatpush1.msra.mxu0 0.0
  %2824 = vmatprep.subr.mxu0 0.0
  %2825 = vmatpush1.msra.mxu0 0.0
  %2826 = vmatprep.subr.mxu0 0.0
  %2827 = vmatpush1.msra.mxu0 0.0
  %2828 = vmatprep.subr.mxu0 0.0
  %2829 = vmatpush1.msra.mxu0 0.0
  %2830 = vmatprep.subr.mxu0 0.0
  %2831 = vmatpush1.msra.mxu0 0.0
  %2832 = vmatprep.subr.mxu0 0.0
  %2833 = vmatpush1.msra.mxu0 0.0
  %2834 = vmatprep.subr.mxu0 0.0
  %2835 = vmatpush1.msra.mxu0 0.0
  %2836 = vmatprep.subr.mxu0 0.0
  %2837 = vmatpush1.msra.mxu0 0.0
  %2838 = vmatprep.subr.mxu0 0.0
  %2839 = vmatpush1.msra.mxu0 0.0
  %2840 = vmatprep.subr.mxu0 0.0
  %2841 = vmatpush1.msra.mxu0 %v565
  %2842 = vmatprep.subr.mxu0 0.0
  %2843 = vmatpush1.msra.mxu0 %v564
  %2844 = vmatprep.subr.mxu0 0.0
  %2845 = vmatpush1.msra.mxu0 %v563
  %2846 = vmatprep.subr.mxu0 0.0
  %2847 = vmatpush1.msra.mxu0 %v562
  %2848 = vmatprep.subr.mxu0 0.0
  %2849 = vmatpush2.msra.mxu0 0.0
  %2850 = vmatprep.subr.mxu0 0.0
  %2851 = vmatpush2.msra.mxu0 0.0
  %2852 = vmatprep.subr.mxu0 0.0
  %2853 = vmatpush2.msra.mxu0 0.0
  %2854 = vmatprep.subr.mxu0 0.0
  %2855 = vmatpush2.msra.mxu0 0.0
  %2856 = vmatprep.subr.mxu0 0.0
  %2857 = vmatpush2.msra.mxu0 0.0
  %2858 = vmatprep.subr.mxu0 0.0
  %2859 = vmatpush2.msra.mxu0 0.0
  %2860 = vmatprep.subr.mxu0 0.0
  %2861 = vmatpush2.msra.mxu0 0.0
  %2862 = vmatprep.subr.mxu0 0.0
  %2863 = vmatpush2.msra.mxu0 0.0
  %2864 = vmatprep.subr.mxu0 0.0
  %2865 = vmatpush2.msra.mxu0 0.0
  %2866 = vmatprep.subr.mxu0 0.0
  %2867 = vmatpush2.msra.mxu0 0.0
  %2868 = vmatprep.subr.mxu0 0.0
  %2869 = vmatpush2.msra.mxu0 0.0
  %2870 = vmatprep.subr.mxu0 0.0
  %2871 = vmatpush2.msra.mxu0 0.0
  %2872 = vmatprep.subr.mxu0 0.0
  %2873 = vmatpush2.msra.mxu0 0.0
  %2874 = vmatprep.subr.mxu0 0.0
  %2875 = vmatpush2.msra.mxu0 0.0
  %2876 = vmatprep.subr.mxu0 0.0
  %2877 = vmatpush2.msra.mxu0 0.0
  %2878 = vmatprep.subr.mxu0 0.0
  %2879 = vmatpush2.msra.mxu0 0.0
  %2880 = vmatprep.mubr.f32.mxu0 0.0
  %2881 = vmatmul.mubr.f32.gmra.mxu0 %v2814
  %v2882 = vpop.f32.mrf.mxu0
  %v2883 = vadd.f32 0.0, %v2882
  %v2884 = vpop.f32.mrf.mxu0
  %2885 = vdwg.mxu0
  %v2886 = vadd.f32 %v2813, %v2883
  %v2887 = vtanh.pop %v2886
  %v2888 = vmul.f32 %v2887, 0.5
  %v2889 = vadd.f32 %v2888, 0.5
  %v2890 = vmul.f32 %v2889, %v2704
  %2892 = vrot.lane.b32.xlu0 %v2887, 64
  %v2893 = vpop.permute.xlu0 %2892
  %v2895 = vmul.f32 %v2889, %v2893
  %2897 = vrot.lane.b32.xlu0 %v2895, 32
  %v2898 = vpop.permute.xlu0 %2897
  %v2900 = vadd.f32 %v2890, %v2898
  %v2901 = vtanh.pop %v2900
  %2903 = vrot.lane.b32.xlu0 %v2901, 64
  %v2904 = vpop.permute.xlu0 %2903
  %v2906 = vmul.f32 %v2889, %v2904
  %v2907 = vsel %vm343, %v2906, %v2703
  %2909 = vrot.lane.b32.xlu0 %v2907, 32
  %v2910 = vpop.permute.xlu0 %2909
  %2912 = vst.msk [vmem:[#allocation3 + $0x58] sm:$0xff] %vm364, %v2910
  %v2913 = vld [vmem:[#allocation2 + $0x8] sm:$0xff]
  %2914 = vrot.lane.b32.xlu0 %v2806, 32
  %v2915 = vpop.permute.xlu0 %2914
  %v2916 = vsel %vm364, %v2915, 0
  %2918 = vmatprep.subr.mxu0 0.0
  %2919 = vmatpush1.msra.mxu0 0.0
  %2920 = vmatprep.subr.mxu0 0.0
  %2921 = vmatpush1.msra.mxu0 0.0
  %2922 = vmatprep.subr.mxu0 0.0
  %2923 = vmatpush1.msra.mxu0 0.0
  %2924 = vmatprep.subr.mxu0 0.0
  %2925 = vmatpush1.msra.mxu0 0.0
  %2926 = vmatprep.subr.mxu0 0.0
  %2927 = vmatpush1.msra.mxu0 0.0
  %2928 = vmatprep.subr.mxu0 0.0
  %2929 = vmatpush1.msra.mxu0 0.0
  %2930 = vmatprep.subr.mxu0 0.0
  %2931 = vmatpush1.msra.mxu0 0.0
  %2932 = vmatprep.subr.mxu0 0.0
  %2933 = vmatpush1.msra.mxu0 0.0
  %2934 = vmatprep.subr.mxu0 0.0
  %2935 = vmatpush1.msra.mxu0 0.0
  %2936 = vmatprep.subr.mxu0 0.0
  %2937 = vmatpush1.msra.mxu0 0.0
  %2938 = vmatprep.subr.mxu0 0.0
  %2939 = vmatpush1.msra.mxu0 0.0
  %2940 = vmatprep.subr.mxu0 0.0
  %2941 = vmatpush1.msra.mxu0 0.0
  %2942 = vmatprep.subr.mxu0 0.0
  %2943 = vmatpush1.msra.mxu0 %v570
  %2944 = vmatprep.subr.mxu0 0.0
  %2945 = vmatpush1.msra.mxu0 %v569
  %2946 = vmatprep.subr.mxu0 0.0
  %2947 = vmatpush1.msra.mxu0 %v568
  %2948 = vmatprep.subr.mxu0 0.0
  %2949 = vmatpush1.msra.mxu0 %v567
  %2950 = vmatprep.subr.mxu0 0.0
  %2951 = vmatpush2.msra.mxu0 0.0
  %2952 = vmatprep.subr.mxu0 0.0
  %2953 = vmatpush2.msra.mxu0 0.0
  %2954 = vmatprep.subr.mxu0 0.0
  %2955 = vmatpush2.msra.mxu0 0.0
  %2956 = vmatprep.subr.mxu0 0.0
  %2957 = vmatpush2.msra.mxu0 0.0
  %2958 = vmatprep.subr.mxu0 0.0
  %2959 = vmatpush2.msra.mxu0 0.0
  %2960 = vmatprep.subr.mxu0 0.0
  %2961 = vmatpush2.msra.mxu0 0.0
  %2962 = vmatprep.subr.mxu0 0.0
  %2963 = vmatpush2.msra.mxu0 0.0
  %2964 = vmatprep.subr.mxu0 0.0
  %2965 = vmatpush2.msra.mxu0 0.0
  %2966 = vmatprep.subr.mxu0 0.0
  %2967 = vmatpush2.msra.mxu0 0.0
  %2968 = vmatprep.subr.mxu0 0.0
  %2969 = vmatpush2.msra.mxu0 0.0
  %2970 = vmatprep.subr.mxu0 0.0
  %2971 = vmatpush2.msra.mxu0 0.0
  %2972 = vmatprep.subr.mxu0 0.0
  %2973 = vmatpush2.msra.mxu0 0.0
  %2974 = vmatprep.subr.mxu0 0.0
  %2975 = vmatpush2.msra.mxu0 0.0
  %2976 = vmatprep.subr.mxu0 0.0
  %2977 = vmatpush2.msra.mxu0 0.0
  %2978 = vmatprep.subr.mxu0 0.0
  %2979 = vmatpush2.msra.mxu0 0.0
  %2980 = vmatprep.subr.mxu0 0.0
  %2981 = vmatpush2.msra.mxu0 0.0
  %2982 = vmatprep.mubr.f32.mxu0 0.0
  %2983 = vmatmul.mubr.f32.gmra.mxu0 %v2916
  %v2984 = vpop.f32.mrf.mxu0
  %v2985 = vadd.f32 0.0, %v2984
  %v2986 = vpop.f32.mrf.mxu0
  %2987 = vdwg.mxu0
  %v2988 = vadd.f32 %v2913, %v2985
  %v2989 = vtanh.pop %v2988
  %v2990 = vmul.f32 %v2989, 0.5
  %v2991 = vadd.f32 %v2990, 0.5
  %v2992 = vmul.f32 %v2991, %v2807
  %2994 = vrot.lane.b32.xlu0 %v2989, 64
  %v2995 = vpop.permute.xlu0 %2994
  %v2997 = vmul.f32 %v2991, %v2995
  %2999 = vrot.lane.b32.xlu0 %v2997, 32
  %v3000 = vpop.permute.xlu0 %2999
  %v3002 = vadd.f32 %v2992, %v3000
  %v3003 = vtanh.pop %v3002
  %3005 = vrot.lane.b32.xlu0 %v3003, 64
  %v3006 = vpop.permute.xlu0 %3005
  %v3008 = vmul.f32 %v2991, %v3006
  %v3009 = vsel %vm277, %v3008, %v2806
  %3011 = vrot.lane.b32.xlu0 %v3009, 64
  %v3012 = vpop.permute.xlu0 %3011
  %3014 = vst.msk [vmem:[#allocation3] sm:$0xff] %vm771, %v3012
  %v3015 = vld [vmem:[#allocation3] sm:$0xff]
  %v3016 = vld [vmem:[#allocation3 + $0x8] sm:$0xff]
  %v3017 = vld [vmem:[#allocation3 + $0x10] sm:$0xff]
  %v3018 = vld [vmem:[#allocation3 + $0x18] sm:$0xff]
  %v3019 = vld [vmem:[#allocation3 + $0x20] sm:$0xff]
  %v3020 = vld [vmem:[#allocation3 + $0x28] sm:$0xff]
  %v3021 = vld [vmem:[#allocation3 + $0x30] sm:$0xff]
  %v3022 = vld [vmem:[#allocation3 + $0x38] sm:$0xff]
  %v3023 = vld [vmem:[#allocation3 + $0x40] sm:$0xff]
  %v3024 = vld [vmem:[#allocation3 + $0x48] sm:$0xff]
  %v3025 = vld [vmem:[#allocation3 + $0x50] sm:$0xff]
  %v3026 = vld [vmem:[#allocation3 + $0x58] sm:$0xff]
  %v3027 = vld [vmem:[%s6] sm:$0xff]
  %v3028 = vld [vmem:[%s6 + $0x8] sm:$0xff]
  %v3029 = vld [vmem:[%s6 + $0x10] sm:$0xff]
  %v3030 = vld [vmem:[%s6 + $0x18] sm:$0xff]
  %v3031 = vld [vmem:[%s6 + $0x20] sm:$0xff]
  %v3032 = vld [vmem:[%s6 + $0x28] sm:$0xff]
  %v3033 = vld [vmem:[%s6 + $0x30] sm:$0xff]
  %v3034 = vld [vmem:[%s6 + $0x38] sm:$0xff]
  %v3035 = vld [vmem:[%s6 + $0x40] sm:$0xff]
  %v3036 = vld [vmem:[%s6 + $0x48] sm:$0xff]
  %v3037 = vld [vmem:[%s6 + $0x50] sm:$0xff]
  %v3038 = vld [vmem:[%s6 + $0x58] sm:$0xff]
  %v3039 = vld [vmem:[%s6 + $0x60] sm:$0xff]
  %v3040 = vld [vmem:[%s6 + $0x68] sm:$0xff]
  %v3041 = vld [vmem:[%s6 + $0x70] sm:$0xff]
  %v3042 = vld [vmem:[%s6 + $0x78] sm:$0xff]
  %v3043 = vld [vmem:[%s8] sm:$0x3]
  %v3045 = vlaneseq
  %v3046 = vshrl.u32 %v3045, 7
  %v3047 = vsub.s32 0, %v3046
  %v3048 = vrot.slane %v3043, %v3047
  %v3049 = vlaneseq
  %v3050 = vshrl.u32 %v3049, 7
  %v3051 = vsub.s32 1, %v3050
  %v3052 = vrot.slane %v3043, %v3051
  %vm3055 = vcmask 523264
  %v3057 = vsel %vm3055, %v3015, 0
  %v3060 = vsel %vm3055, %v3016, 0
  %v3063 = vsel %vm3055, %v3017, 0
  %v3066 = vsel %vm3055, %v3018, 0
  %v3069 = vsel %vm3055, %v3019, 0
  %v3072 = vsel %vm3055, %v3020, 0
  %v3075 = vsel %vm3055, %v3021, 0
  %v3078 = vsel %vm3055, %v3022, 0
  %v3081 = vsel %vm3055, %v3023, 0
  %v3084 = vsel %vm3055, %v3024, 0
  %v3087 = vsel %vm3055, %v3025, 0
  %v3090 = vsel %vm3055, %v3026, 0
  %3092 = vmatprep.subr.mxu0 0.0
  %3093 = vmatpush1.msra.mxu0 0.0
  %3094 = vmatprep.subr.mxu0 0.0
  %3095 = vmatpush1.msra.mxu0 0.0
  %3096 = vmatprep.subr.mxu0 0.0
  %3097 = vmatpush1.msra.mxu0 0.0
  %3098 = vmatprep.subr.mxu0 0.0
  %3099 = vmatpush1.msra.mxu0 0.0
  %3100 = vmatprep.subr.mxu0 0.0
  %3101 = vmatpush1.msra.mxu0 0.0
  %3102 = vmatprep.subr.mxu0 0.0
  %3103 = vmatpush1.msra.mxu0 0.0
  %3104 = vmatprep.subr.mxu0 0.0
  %3105 = vmatpush1.msra.mxu0 0.0
  %3106 = vmatprep.subr.mxu0 0.0
  %3107 = vmatpush1.msra.mxu0 0.0
  %3108 = vmatprep.subr.mxu0 %v3042
  %3109 = vmatpush1.msra.mxu0 %v3041
  %3110 = vmatprep.subr.mxu0 %v3040
  %3111 = vmatpush1.msra.mxu0 %v3039
  %3112 = vmatprep.subr.mxu0 %v3038
  %3113 = vmatpush1.msra.mxu0 %v3037
  %3114 = vmatprep.subr.mxu0 %v3036
  %3115 = vmatpush1.msra.mxu0 %v3035
  %3116 = vmatprep.subr.mxu0 %v3034
  %3117 = vmatpush1.msra.mxu0 %v3033
  %3118 = vmatprep.subr.mxu0 %v3032
  %3119 = vmatpush1.msra.mxu0 %v3031
  %3120 = vmatprep.subr.mxu0 %v3030
  %3121 = vmatpush1.msra.mxu0 %v3029
  %3122 = vmatprep.subr.mxu0 %v3028
  %3123 = vmatpush1.msra.mxu0 %v3027
  %3124 = vmatprep.subr.mxu0 0.0
  %3125 = vmatpush2.msra.mxu0 0.0
  %3126 = vmatprep.subr.mxu0 0.0
  %3127 = vmatpush2.msra.mxu0 0.0
  %3128 = vmatprep.subr.mxu0 0.0
  %3129 = vmatpush2.msra.mxu0 0.0
  %3130 = vmatprep.subr.mxu0 0.0
  %3131 = vmatpush2.msra.mxu0 0.0
  %3132 = vmatprep.subr.mxu0 0.0
  %3133 = vmatpush2.msra.mxu0 0.0
  %3134 = vmatprep.subr.mxu0 0.0
  %3135 = vmatpush2.msra.mxu0 0.0
  %3136 = vmatprep.subr.mxu0 0.0
  %3137 = vmatpush2.msra.mxu0 0.0
  %3138 = vmatprep.subr.mxu0 0.0
  %3139 = vmatpush2.msra.mxu0 0.0
  %3140 = vmatprep.subr.mxu0 0.0
  %3141 = vmatpush2.msra.mxu0 0.0
  %3142 = vmatprep.subr.mxu0 0.0
  %3143 = vmatpush2.msra.mxu0 0.0
  %3144 = vmatprep.subr.mxu0 0.0
  %3145 = vmatpush2.msra.mxu0 0.0
  %3146 = vmatprep.subr.mxu0 0.0
  %3147 = vmatpush2.msra.mxu0 0.0
  %3148 = vmatprep.subr.mxu0 0.0
  %3149 = vmatpush2.msra.mxu0 0.0
  %3150 = vmatprep.subr.mxu0 0.0
  %3151 = vmatpush2.msra.mxu0 0.0
  %3152 = vmatprep.subr.mxu0 0.0
  %3153 = vmatpush2.msra.mxu0 0.0
  %3154 = vmatprep.subr.mxu0 0.0
  %3155 = vmatpush2.msra.mxu0 0.0
  %3156 = vmatprep.mubr.f32.mxu0 0.0
  %3157 = vmatmul.mubr.f32.gmra.mxu0 %v3057
  %v3158 = vpop.f32.mrf.mxu0
  %v3159 = vadd.f32 %v3048, %v3158
  %v3160 = vpop.f32.mrf.mxu0
  %v3161 = vadd.f32 %v3052, %v3160
  %3162 = vmatprep.mubr.f32.mxu0 0.0
  %3163 = vmatmul.mubr.f32.gmra.mxu0 %v3060
  %v3164 = vpop.f32.mrf.mxu0
  %v3165 = vadd.f32 %v3048, %v3164
  %v3166 = vpop.f32.mrf.mxu0
  %v3167 = vadd.f32 %v3052, %v3166
  %3168 = vmatprep.mubr.f32.mxu0 0.0
  %3169 = vmatmul.mubr.f32.gmra.mxu0 %v3063
  %v3170 = vpop.f32.mrf.mxu0
  %v3171 = vadd.f32 %v3048, %v3170
  %v3172 = vpop.f32.mrf.mxu0
  %v3173 = vadd.f32 %v3052, %v3172
  %3174 = vmatprep.mubr.f32.mxu0 0.0
  %3175 = vmatmul.mubr.f32.gmra.mxu0 %v3066
  %v3176 = vpop.f32.mrf.mxu0
  %v3177 = vadd.f32 %v3048, %v3176
  %v3178 = vpop.f32.mrf.mxu0
  %v3179 = vadd.f32 %v3052, %v3178
  %3180 = vmatprep.mubr.f32.mxu0 0.0
  %3181 = vmatmul.mubr.f32.gmra.mxu0 %v3069
  %v3182 = vpop.f32.mrf.mxu0
  %v3183 = vadd.f32 %v3048, %v3182
  %v3184 = vpop.f32.mrf.mxu0
  %v3185 = vadd.f32 %v3052, %v3184
  %3186 = vmatprep.mubr.f32.mxu0 0.0
  %3187 = vmatmul.mubr.f32.gmra.mxu0 %v3072
  %v3188 = vpop.f32.mrf.mxu0
  %v3189 = vadd.f32 %v3048, %v3188
  %v3190 = vpop.f32.mrf.mxu0
  %v3191 = vadd.f32 %v3052, %v3190
  %3192 = vmatprep.mubr.f32.mxu0 0.0
  %3193 = vmatmul.mubr.f32.gmra.mxu0 %v3075
  %v3194 = vpop.f32.mrf.mxu0
  %v3195 = vadd.f32 %v3048, %v3194
  %v3196 = vpop.f32.mrf.mxu0
  %v3197 = vadd.f32 %v3052, %v3196
  %3198 = vmatprep.mubr.f32.mxu0 0.0
  %3199 = vmatmul.mubr.f32.gmra.mxu0 %v3078
  %v3200 = vpop.f32.mrf.mxu0
  %v3201 = vadd.f32 %v3048, %v3200
  %v3202 = vpop.f32.mrf.mxu0
  %v3203 = vadd.f32 %v3052, %v3202
  %3204 = vmatprep.mubr.f32.mxu0 0.0
  %3205 = vmatmul.mubr.f32.gmra.mxu0 %v3081
  %v3206 = vpop.f32.mrf.mxu0
  %v3207 = vadd.f32 %v3048, %v3206
  %v3208 = vpop.f32.mrf.mxu0
  %v3209 = vadd.f32 %v3052, %v3208
  %3210 = vmatprep.mubr.f32.mxu0 0.0
  %3211 = vmatmul.mubr.f32.gmra.mxu0 %v3084
  %v3212 = vpop.f32.mrf.mxu0
  %v3213 = vadd.f32 %v3048, %v3212
  %v3214 = vpop.f32.mrf.mxu0
  %v3215 = vadd.f32 %v3052, %v3214
  %3216 = vmatprep.mubr.f32.mxu0 0.0
  %3217 = vmatmul.mubr.f32.gmra.mxu0 %v3087
  %v3218 = vpop.f32.mrf.mxu0
  %v3219 = vadd.f32 %v3048, %v3218
  %v3220 = vpop.f32.mrf.mxu0
  %v3221 = vadd.f32 %v3052, %v3220
  %3222 = vmatprep.mubr.f32.mxu0 0.0
  %3223 = vmatmul.mubr.f32.gmra.mxu0 %v3090
  %v3224 = vpop.f32.mrf.mxu0
  %v3225 = vadd.f32 %v3048, %v3224
  %v3226 = vpop.f32.mrf.mxu0
  %v3227 = vadd.f32 %v3052, %v3226
  %3228 = vdwg.mxu0
  %3229 = vst [vmem:[#allocation2] sm:$0xff] %v3159
  %3230 = vst [vmem:[#allocation2 + $0x8] sm:$0xff] %v3161
  %3231 = vst [vmem:[#allocation2 + $0x10] sm:$0xff] %v3165
  %3232 = vst [vmem:[#allocation2 + $0x18] sm:$0xff] %v3167
  %3233 = vst [vmem:[#allocation2 + $0x20] sm:$0xff] %v3171
  %3234 = vst [vmem:[#allocation2 + $0x28] sm:$0xff] %v3173
  %3235 = vst [vmem:[#allocation2 + $0x30] sm:$0xff] %v3177
  %3236 = vst [vmem:[#allocation2 + $0x38] sm:$0xff] %v3179
  %3237 = vst [vmem:[#allocation2 + $0x40] sm:$0xff] %v3183
  %3238 = vst [vmem:[#allocation2 + $0x48] sm:$0xff] %v3185
  %3239 = vst [vmem:[#allocation2 + $0x50] sm:$0xff] %v3189
  %3240 = vst [vmem:[#allocation2 + $0x58] sm:$0xff] %v3191
  %3241 = vst [vmem:[#allocation2 + $0x60] sm:$0xff] %v3195
  %3242 = vst [vmem:[#allocation2 + $0x68] sm:$0xff] %v3197
  %3243 = vst [vmem:[#allocation2 + $0x70] sm:$0xff] %v3201
  %3244 = vst [vmem:[#allocation2 + $0x78] sm:$0xff] %v3203
  %3245 = vst [vmem:[#allocation2 + $0x80] sm:$0xff] %v3207
  %3246 = vst [vmem:[#allocation2 + $0x88] sm:$0xff] %v3209
  %3247 = vst [vmem:[#allocation2 + $0x90] sm:$0xff] %v3213
  %3248 = vst [vmem:[#allocation2 + $0x98] sm:$0xff] %v3215
  %3249 = vst [vmem:[#allocation2 + $0xa0] sm:$0xff] %v3219
  %3250 = vst [vmem:[#allocation2 + $0xa8] sm:$0xff] %v3221
  %3251 = vst [vmem:[#allocation2 + $0xb0] sm:$0xff] %v3225
  %3252 = vst [vmem:[#allocation2 + $0xb8] sm:$0xff] %v3227
  %v3253 = vld [vmem:[%s7] sm:$0xff]
  %v3254 = vld [vmem:[%s7 + $0x8] sm:$0xff]
  %v3255 = vld [vmem:[%s7 + $0x10] sm:$0xff]
  %v3256 = vld [vmem:[%s7 + $0x18] sm:$0xff]
  %s3257 = scalar_lea.vmem %s7, 32
  %v3258 = vld [vmem:[%s3257] sm:$0xff]
  %v3259 = vld [vmem:[%s3257 + $0x8] sm:$0xff]
  %v3260 = vld [vmem:[%s3257 + $0x10] sm:$0xff]
  %v3261 = vld [vmem:[%s3257 + $0x18] sm:$0xff]
  %v3262 = vld [vmem:[#allocation2] sm:$0xff]
  %3263 = vmatprep.subr.mxu0 0.0
  %3264 = vmatpush1.msra.mxu0 0.0
  %3265 = vmatprep.subr.mxu0 0.0
  %3266 = vmatpush1.msra.mxu0 0.0
  %3267 = vmatprep.subr.mxu0 0.0
  %3268 = vmatpush1.msra.mxu0 0.0
  %3269 = vmatprep.subr.mxu0 0.0
  %3270 = vmatpush1.msra.mxu0 0.0
  %3271 = vmatprep.subr.mxu0 0.0
  %3272 = vmatpush1.msra.mxu0 0.0
  %3273 = vmatprep.subr.mxu0 0.0
  %3274 = vmatpush1.msra.mxu0 0.0
  %3275 = vmatprep.subr.mxu0 0.0
  %3276 = vmatpush1.msra.mxu0 0.0
  %3277 = vmatprep.subr.mxu0 0.0
  %3278 = vmatpush1.msra.mxu0 0.0
  %3279 = vmatprep.subr.mxu0 0.0
  %3280 = vmatpush1.msra.mxu0 0.0
  %3281 = vmatprep.subr.mxu0 0.0
  %3282 = vmatpush1.msra.mxu0 0.0
  %3283 = vmatprep.subr.mxu0 0.0
  %3284 = vmatpush1.msra.mxu0 0.0
  %3285 = vmatprep.subr.mxu0 0.0
  %3286 = vmatpush1.msra.mxu0 0.0
  %3287 = vmatprep.subr.mxu0 0.0
  %3288 = vmatpush1.msra.mxu0 %v3256
  %3289 = vmatprep.subr.mxu0 0.0
  %3290 = vmatpush1.msra.mxu0 %v3255
  %3291 = vmatprep.subr.mxu0 0.0
  %3292 = vmatpush1.msra.mxu0 %v3254
  %3293 = vmatprep.subr.mxu0 0.0
  %3294 = vmatpush1.msra.mxu0 %v3253
  %3295 = vmatprep.subr.mxu0 0.0
  %3296 = vmatpush2.msra.mxu0 0.0
  %3297 = vmatprep.subr.mxu0 0.0
  %3298 = vmatpush2.msra.mxu0 0.0
  %3299 = vmatprep.subr.mxu0 0.0
  %3300 = vmatpush2.msra.mxu0 0.0
  %3301 = vmatprep.subr.mxu0 0.0
  %3302 = vmatpush2.msra.mxu0 0.0
  %3303 = vmatprep.subr.mxu0 0.0
  %3304 = vmatpush2.msra.mxu0 0.0
  %3305 = vmatprep.subr.mxu0 0.0
  %3306 = vmatpush2.msra.mxu0 0.0
  %3307 = vmatprep.subr.mxu0 0.0
  %3308 = vmatpush2.msra.mxu0 0.0
  %3309 = vmatprep.subr.mxu0 0.0
  %3310 = vmatpush2.msra.mxu0 0.0
  %3311 = vmatprep.subr.mxu0 0.0
  %3312 = vmatpush2.msra.mxu0 0.0
  %3313 = vmatprep.subr.mxu0 0.0
  %3314 = vmatpush2.msra.mxu0 0.0
  %3315 = vmatprep.subr.mxu0 0.0
  %3316 = vmatpush2.msra.mxu0 0.0
  %3317 = vmatprep.subr.mxu0 0.0
  %3318 = vmatpush2.msra.mxu0 0.0
  %3319 = vmatprep.subr.mxu0 0.0
  %3320 = vmatpush2.msra.mxu0 0.0
  %3321 = vmatprep.subr.mxu0 0.0
  %3322 = vmatpush2.msra.mxu0 0.0
  %3323 = vmatprep.subr.mxu0 0.0
  %3324 = vmatpush2.msra.mxu0 0.0
  %3325 = vmatprep.subr.mxu0 0.0
  %3326 = vmatpush2.msra.mxu0 0.0
  %3327 = vmatprep.mubr.f32.mxu0 0.0
  %3328 = vmatmul.mubr.f32.gmra.mxu0 %v573
  %v3329 = vpop.f32.mrf.mxu0
  %v3330 = vadd.f32 0.0, %v3329
  %v3331 = vpop.f32.mrf.mxu0
  %3332 = vdwg.mxu0
  %v3333 = vadd.f32 %v3262, %v3330
  %v3334 = vtanh.pop %v3333
  %v3335 = vmul.f32 %v3334, 0.5
  %v3336 = vadd.f32 %v3335, 0.5
  %v3337 = vmul.f32 %v3336, 0.0
  %3339 = vrot.lane.b32.xlu0 %v3334, 64
  %v3340 = vpop.permute.xlu0 %3339
  %v3342 = vmul.f32 %v3336, %v3340
  %3344 = vrot.lane.b32.xlu0 %v3342, 32
  %v3345 = vpop.permute.xlu0 %3344
  %v3347 = vadd.f32 %v3337, %v3345
  %v3348 = vtanh.pop %v3347
  %3350 = vrot.lane.b32.xlu0 %v3348, 64
  %v3351 = vpop.permute.xlu0 %3350
  %v3353 = vmul.f32 %v3336, %v3351
  %v3354 = vsel %vm277, %v3353, 0.0
  %v3355 = vsel %vm277, %v3347, 0.0
  %3357 = vrot.lane.b32.xlu0 %v3354, 32
  %v3358 = vpop.permute.xlu0 %3357
  %3360 = vst.msk [vmem:[#allocation3] sm:$0xff] %vm364, %v3358
  %v3361 = vld [vmem:[#allocation2 + $0xb8] sm:$0xff]
  %3362 = vmatprep.subr.mxu0 0.0
  %3363 = vmatpush1.msra.mxu0 0.0
  %3364 = vmatprep.subr.mxu0 0.0
  %3365 = vmatpush1.msra.mxu0 0.0
  %3366 = vmatprep.subr.mxu0 0.0
  %3367 = vmatpush1.msra.mxu0 0.0
  %3368 = vmatprep.subr.mxu0 0.0
  %3369 = vmatpush1.msra.mxu0 0.0
  %3370 = vmatprep.subr.mxu0 0.0
  %3371 = vmatpush1.msra.mxu0 0.0
  %3372 = vmatprep.subr.mxu0 0.0
  %3373 = vmatpush1.msra.mxu0 0.0
  %3374 = vmatprep.subr.mxu0 0.0
  %3375 = vmatpush1.msra.mxu0 0.0
  %3376 = vmatprep.subr.mxu0 0.0
  %3377 = vmatpush1.msra.mxu0 0.0
  %3378 = vmatprep.subr.mxu0 0.0
  %3379 = vmatpush1.msra.mxu0 0.0
  %3380 = vmatprep.subr.mxu0 0.0
  %3381 = vmatpush1.msra.mxu0 0.0
  %3382 = vmatprep.subr.mxu0 0.0
  %3383 = vmatpush1.msra.mxu0 0.0
  %3384 = vmatprep.subr.mxu0 0.0
  %3385 = vmatpush1.msra.mxu0 0.0
  %3386 = vmatprep.subr.mxu0 0.0
  %3387 = vmatpush1.msra.mxu0 %v3261
  %3388 = vmatprep.subr.mxu0 0.0
  %3389 = vmatpush1.msra.mxu0 %v3260
  %3390 = vmatprep.subr.mxu0 0.0
  %3391 = vmatpush1.msra.mxu0 %v3259
  %3392 = vmatprep.subr.mxu0 0.0
  %3393 = vmatpush1.msra.mxu0 %v3258
  %3394 = vmatprep.subr.mxu0 0.0
  %3395 = vmatpush2.msra.mxu0 0.0
  %3396 = vmatprep.subr.mxu0 0.0
  %3397 = vmatpush2.msra.mxu0 0.0
  %3398 = vmatprep.subr.mxu0 0.0
  %3399 = vmatpush2.msra.mxu0 0.0
  %3400 = vmatprep.subr.mxu0 0.0
  %3401 = vmatpush2.msra.mxu0 0.0
  %3402 = vmatprep.subr.mxu0 0.0
  %3403 = vmatpush2.msra.mxu0 0.0
  %3404 = vmatprep.subr.mxu0 0.0
  %3405 = vmatpush2.msra.mxu0 0.0
  %3406 = vmatprep.subr.mxu0 0.0
  %3407 = vmatpush2.msra.mxu0 0.0
  %3408 = vmatprep.subr.mxu0 0.0
  %3409 = vmatpush2.msra.mxu0 0.0
  %3410 = vmatprep.subr.mxu0 0.0
  %3411 = vmatpush2.msra.mxu0 0.0
  %3412 = vmatprep.subr.mxu0 0.0
  %3413 = vmatpush2.msra.mxu0 0.0
  %3414 = vmatprep.subr.mxu0 0.0
  %3415 = vmatpush2.msra.mxu0 0.0
  %3416 = vmatprep.subr.mxu0 0.0
  %3417 = vmatpush2.msra.mxu0 0.0
  %3418 = vmatprep.subr.mxu0 0.0
  %3419 = vmatpush2.msra.mxu0 0.0
  %3420 = vmatprep.subr.mxu0 0.0
  %3421 = vmatpush2.msra.mxu0 0.0
  %3422 = vmatprep.subr.mxu0 0.0
  %3423 = vmatpush2.msra.mxu0 0.0
  %3424 = vmatprep.subr.mxu0 0.0
  %3425 = vmatpush2.msra.mxu0 0.0
  %3426 = vmatprep.mubr.f32.mxu0 0.0
  %3427 = vmatmul.mubr.f32.gmra.mxu0 %v573
  %v3428 = vpop.f32.mrf.mxu0
  %v3429 = vadd.f32 0.0, %v3428
  %v3430 = vpop.f32.mrf.mxu0
  %3431 = vdwg.mxu0
  %v3432 = vadd.f32 %v3361, %v3429
  %v3433 = vtanh.pop %v3432
  %v3434 = vmul.f32 %v3433, 0.5
  %v3435 = vadd.f32 %v3434, 0.5
  %v3436 = vmul.f32 %v3435, 0.0
  %3438 = vrot.lane.b32.xlu0 %v3433, 64
  %v3439 = vpop.permute.xlu0 %3438
  %v3441 = vmul.f32 %v3435, %v3439
  %3443 = vrot.lane.b32.xlu0 %v3441, 32
  %v3444 = vpop.permute.xlu0 %3443
  %v3446 = vadd.f32 %v3436, %v3444
  %v3447 = vtanh.pop %v3446
  %3449 = vrot.lane.b32.xlu0 %v3447, 64
  %v3450 = vpop.permute.xlu0 %3449
  %v3452 = vmul.f32 %v3435, %v3450
  %v3453 = vsel %vm343, %v3452, 0.0
  %v3454 = vsel %vm343, %v3446, 0.0
  %3456 = vrot.lane.b32.xlu0 %v3453, 64
  %v3457 = vpop.permute.xlu0 %3456
  %3459 = vst.msk [vmem:[#allocation3 + $0x58] sm:$0xff] %vm771, %v3457
  %v3460 = vld [vmem:[#allocation2 + $0x10] sm:$0xff]
  %v3461 = vsel %vm364, %v3358, 0
  %3463 = vmatprep.subr.mxu0 0.0
  %3464 = vmatpush1.msra.mxu0 0.0
  %3465 = vmatprep.subr.mxu0 0.0
  %3466 = vmatpush1.msra.mxu0 0.0
  %3467 = vmatprep.subr.mxu0 0.0
  %3468 = vmatpush1.msra.mxu0 0.0
  %3469 = vmatprep.subr.mxu0 0.0
  %3470 = vmatpush1.msra.mxu0 0.0
  %3471 = vmatprep.subr.mxu0 0.0
  %3472 = vmatpush1.msra.mxu0 0.0
  %3473 = vmatprep.subr.mxu0 0.0
  %3474 = vmatpush1.msra.mxu0 0.0
  %3475 = vmatprep.subr.mxu0 0.0
  %3476 = vmatpush1.msra.mxu0 0.0
  %3477 = vmatprep.subr.mxu0 0.0
  %3478 = vmatpush1.msra.mxu0 0.0
  %3479 = vmatprep.subr.mxu0 0.0
  %3480 = vmatpush1.msra.mxu0 0.0
  %3481 = vmatprep.subr.mxu0 0.0
  %3482 = vmatpush1.msra.mxu0 0.0
  %3483 = vmatprep.subr.mxu0 0.0
  %3484 = vmatpush1.msra.mxu0 0.0
  %3485 = vmatprep.subr.mxu0 0.0
  %3486 = vmatpush1.msra.mxu0 0.0
  %3487 = vmatprep.subr.mxu0 0.0
  %3488 = vmatpush1.msra.mxu0 %v3256
  %3489 = vmatprep.subr.mxu0 0.0
  %3490 = vmatpush1.msra.mxu0 %v3255
  %3491 = vmatprep.subr.mxu0 0.0
  %3492 = vmatpush1.msra.mxu0 %v3254
  %3493 = vmatprep.subr.mxu0 0.0
  %3494 = vmatpush1.msra.mxu0 %v3253
  %3495 = vmatprep.subr.mxu0 0.0
  %3496 = vmatpush2.msra.mxu0 0.0
  %3497 = vmatprep.subr.mxu0 0.0
  %3498 = vmatpush2.msra.mxu0 0.0
  %3499 = vmatprep.subr.mxu0 0.0
  %3500 = vmatpush2.msra.mxu0 0.0
  %3501 = vmatprep.subr.mxu0 0.0
  %3502 = vmatpush2.msra.mxu0 0.0
  %3503 = vmatprep.subr.mxu0 0.0
  %3504 = vmatpush2.msra.mxu0 0.0
  %3505 = vmatprep.subr.mxu0 0.0
  %3506 = vmatpush2.msra.mxu0 0.0
  %3507 = vmatprep.subr.mxu0 0.0
  %3508 = vmatpush2.msra.mxu0 0.0
  %3509 = vmatprep.subr.mxu0 0.0
  %3510 = vmatpush2.msra.mxu0 0.0
  %3511 = vmatprep.subr.mxu0 0.0
  %3512 = vmatpush2.msra.mxu0 0.0
  %3513 = vmatprep.subr.mxu0 0.0
  %3514 = vmatpush2.msra.mxu0 0.0
  %3515 = vmatprep.subr.mxu0 0.0
  %3516 = vmatpush2.msra.mxu0 0.0
  %3517 = vmatprep.subr.mxu0 0.0
  %3518 = vmatpush2.msra.mxu0 0.0
  %3519 = vmatprep.subr.mxu0 0.0
  %3520 = vmatpush2.msra.mxu0 0.0
  %3521 = vmatprep.subr.mxu0 0.0
  %3522 = vmatpush2.msra.mxu0 0.0
  %3523 = vmatprep.subr.mxu0 0.0
  %3524 = vmatpush2.msra.mxu0 0.0
  %3525 = vmatprep.subr.mxu0 0.0
  %3526 = vmatpush2.msra.mxu0 0.0
  %3527 = vmatprep.mubr.f32.mxu0 0.0
  %3528 = vmatmul.mubr.f32.gmra.mxu0 %v3461
  %v3529 = vpop.f32.mrf.mxu0
  %v3530 = vadd.f32 0.0, %v3529
  %v3531 = vpop.f32.mrf.mxu0
  %3532 = vdwg.mxu0
  %v3533 = vadd.f32 %v3460, %v3530
  %v3534 = vtanh.pop %v3533
  %v3535 = vmul.f32 %v3534, 0.5
  %v3536 = vadd.f32 %v3535, 0.5
  %v3537 = vmul.f32 %v3536, %v3355
  %3539 = vrot.lane.b32.xlu0 %v3534, 64
  %v3540 = vpop.permute.xlu0 %3539
  %v3542 = vmul.f32 %v3536, %v3540
  %3544 = vrot.lane.b32.xlu0 %v3542, 32
  %v3545 = vpop.permute.xlu0 %3544
  %v3547 = vadd.f32 %v3537, %v3545
  %v3548 = vtanh.pop %v3547
  %3550 = vrot.lane.b32.xlu0 %v3548, 64
  %v3551 = vpop.permute.xlu0 %3550
  %v3553 = vmul.f32 %v3536, %v3551
  %v3554 = vsel %vm283, %v3553, %v3354
  %v3555 = vsel %vm283, %v3547, %v3355
  %3557 = vrot.lane.b32.xlu0 %v3554, 32
  %v3558 = vpop.permute.xlu0 %3557
  %3560 = vst.msk [vmem:[#allocation3 + $0x8] sm:$0xff] %vm364, %v3558
  %v3561 = vld [vmem:[#allocation2 + $0xa8] sm:$0xff]
  %3562 = vrot.lane.b32.xlu0 %v3453, 32
  %v3563 = vpop.permute.xlu0 %3562
  %v3564 = vsel %vm364, %v3563, 0
  %3566 = vmatprep.subr.mxu0 0.0
  %3567 = vmatpush1.msra.mxu0 0.0
  %3568 = vmatprep.subr.mxu0 0.0
  %3569 = vmatpush1.msra.mxu0 0.0
  %3570 = vmatprep.subr.mxu0 0.0
  %3571 = vmatpush1.msra.mxu0 0.0
  %3572 = vmatprep.subr.mxu0 0.0
  %3573 = vmatpush1.msra.mxu0 0.0
  %3574 = vmatprep.subr.mxu0 0.0
  %3575 = vmatpush1.msra.mxu0 0.0
  %3576 = vmatprep.subr.mxu0 0.0
  %3577 = vmatpush1.msra.mxu0 0.0
  %3578 = vmatprep.subr.mxu0 0.0
  %3579 = vmatpush1.msra.mxu0 0.0
  %3580 = vmatprep.subr.mxu0 0.0
  %3581 = vmatpush1.msra.mxu0 0.0
  %3582 = vmatprep.subr.mxu0 0.0
  %3583 = vmatpush1.msra.mxu0 0.0
  %3584 = vmatprep.subr.mxu0 0.0
  %3585 = vmatpush1.msra.mxu0 0.0
  %3586 = vmatprep.subr.mxu0 0.0
  %3587 = vmatpush1.msra.mxu0 0.0
  %3588 = vmatprep.subr.mxu0 0.0
  %3589 = vmatpush1.msra.mxu0 0.0
  %3590 = vmatprep.subr.mxu0 0.0
  %3591 = vmatpush1.msra.mxu0 %v3261
  %3592 = vmatprep.subr.mxu0 0.0
  %3593 = vmatpush1.msra.mxu0 %v3260
  %3594 = vmatprep.subr.mxu0 0.0
  %3595 = vmatpush1.msra.mxu0 %v3259
  %3596 = vmatprep.subr.mxu0 0.0
  %3597 = vmatpush1.msra.mxu0 %v3258
  %3598 = vmatprep.subr.mxu0 0.0
  %3599 = vmatpush2.msra.mxu0 0.0
  %3600 = vmatprep.subr.mxu0 0.0
  %3601 = vmatpush2.msra.mxu0 0.0
  %3602 = vmatprep.subr.mxu0 0.0
  %3603 = vmatpush2.msra.mxu0 0.0
  %3604 = vmatprep.subr.mxu0 0.0
  %3605 = vmatpush2.msra.mxu0 0.0
  %3606 = vmatprep.subr.mxu0 0.0
  %3607 = vmatpush2.msra.mxu0 0.0
  %3608 = vmatprep.subr.mxu0 0.0
  %3609 = vmatpush2.msra.mxu0 0.0
  %3610 = vmatprep.subr.mxu0 0.0
  %3611 = vmatpush2.msra.mxu0 0.0
  %3612 = vmatprep.subr.mxu0 0.0
  %3613 = vmatpush2.msra.mxu0 0.0
  %3614 = vmatprep.subr.mxu0 0.0
  %3615 = vmatpush2.msra.mxu0 0.0
  %3616 = vmatprep.subr.mxu0 0.0
  %3617 = vmatpush2.msra.mxu0 0.0
  %3618 = vmatprep.subr.mxu0 0.0
  %3619 = vmatpush2.msra.mxu0 0.0
  %3620 = vmatprep.subr.mxu0 0.0
  %3621 = vmatpush2.msra.mxu0 0.0
  %3622 = vmatprep.subr.mxu0 0.0
  %3623 = vmatpush2.msra.mxu0 0.0
  %3624 = vmatprep.subr.mxu0 0.0
  %3625 = vmatpush2.msra.mxu0 0.0
  %3626 = vmatprep.subr.mxu0 0.0
  %3627 = vmatpush2.msra.mxu0 0.0
  %3628 = vmatprep.subr.mxu0 0.0
  %3629 = vmatpush2.msra.mxu0 0.0
  %3630 = vmatprep.mubr.f32.mxu0 0.0
  %3631 = vmatmul.mubr.f32.gmra.mxu0 %v3564
  %v3632 = vpop.f32.mrf.mxu0
  %v3633 = vadd.f32 0.0, %v3632
  %v3634 = vpop.f32.mrf.mxu0
  %3635 = vdwg.mxu0
  %v3636 = vadd.f32 %v3561, %v3633
  %v3637 = vtanh.pop %v3636
  %v3638 = vmul.f32 %v3637, 0.5
  %v3639 = vadd.f32 %v3638, 0.5
  %v3640 = vmul.f32 %v3639, %v3454
  %3642 = vrot.lane.b32.xlu0 %v3637, 64
  %v3643 = vpop.permute.xlu0 %3642
  %v3645 = vmul.f32 %v3639, %v3643
  %3647 = vrot.lane.b32.xlu0 %v3645, 32
  %v3648 = vpop.permute.xlu0 %3647
  %v3650 = vadd.f32 %v3640, %v3648
  %v3651 = vtanh.pop %v3650
  %3653 = vrot.lane.b32.xlu0 %v3651, 64
  %v3654 = vpop.permute.xlu0 %3653
  %v3656 = vmul.f32 %v3639, %v3654
  %v3657 = vsel %vm337, %v3656, %v3453
  %v3658 = vsel %vm337, %v3650, %v3454
  %3660 = vrot.lane.b32.xlu0 %v3657, 64
  %v3661 = vpop.permute.xlu0 %3660
  %3663 = vst.msk [vmem:[#allocation3 + $0x50] sm:$0xff] %vm771, %v3661
  %v3664 = vld [vmem:[#allocation2 + $0x20] sm:$0xff]
  %v3665 = vsel %vm364, %v3558, 0
  %3667 = vmatprep.subr.mxu0 0.0
  %3668 = vmatpush1.msra.mxu0 0.0
  %3669 = vmatprep.subr.mxu0 0.0
  %3670 = vmatpush1.msra.mxu0 0.0
  %3671 = vmatprep.subr.mxu0 0.0
  %3672 = vmatpush1.msra.mxu0 0.0
  %3673 = vmatprep.subr.mxu0 0.0
  %3674 = vmatpush1.msra.mxu0 0.0
  %3675 = vmatprep.subr.mxu0 0.0
  %3676 = vmatpush1.msra.mxu0 0.0
  %3677 = vmatprep.subr.mxu0 0.0
  %3678 = vmatpush1.msra.mxu0 0.0
  %3679 = vmatprep.subr.mxu0 0.0
  %3680 = vmatpush1.msra.mxu0 0.0
  %3681 = vmatprep.subr.mxu0 0.0
  %3682 = vmatpush1.msra.mxu0 0.0
  %3683 = vmatprep.subr.mxu0 0.0
  %3684 = vmatpush1.msra.mxu0 0.0
  %3685 = vmatprep.subr.mxu0 0.0
  %3686 = vmatpush1.msra.mxu0 0.0
  %3687 = vmatprep.subr.mxu0 0.0
  %3688 = vmatpush1.msra.mxu0 0.0
  %3689 = vmatprep.subr.mxu0 0.0
  %3690 = vmatpush1.msra.mxu0 0.0
  %3691 = vmatprep.subr.mxu0 0.0
  %3692 = vmatpush1.msra.mxu0 %v3256
  %3693 = vmatprep.subr.mxu0 0.0
  %3694 = vmatpush1.msra.mxu0 %v3255
  %3695 = vmatprep.subr.mxu0 0.0
  %3696 = vmatpush1.msra.mxu0 %v3254
  %3697 = vmatprep.subr.mxu0 0.0
  %3698 = vmatpush1.msra.mxu0 %v3253
  %3699 = vmatprep.subr.mxu0 0.0
  %3700 = vmatpush2.msra.mxu0 0.0
  %3701 = vmatprep.subr.mxu0 0.0
  %3702 = vmatpush2.msra.mxu0 0.0
  %3703 = vmatprep.subr.mxu0 0.0
  %3704 = vmatpush2.msra.mxu0 0.0
  %3705 = vmatprep.subr.mxu0 0.0
  %3706 = vmatpush2.msra.mxu0 0.0
  %3707 = vmatprep.subr.mxu0 0.0
  %3708 = vmatpush2.msra.mxu0 0.0
  %3709 = vmatprep.subr.mxu0 0.0
  %3710 = vmatpush2.msra.mxu0 0.0
  %3711 = vmatprep.subr.mxu0 0.0
  %3712 = vmatpush2.msra.mxu0 0.0
  %3713 = vmatprep.subr.mxu0 0.0
  %3714 = vmatpush2.msra.mxu0 0.0
  %3715 = vmatprep.subr.mxu0 0.0
  %3716 = vmatpush2.msra.mxu0 0.0
  %3717 = vmatprep.subr.mxu0 0.0
  %3718 = vmatpush2.msra.mxu0 0.0
  %3719 = vmatprep.subr.mxu0 0.0
  %3720 = vmatpush2.msra.mxu0 0.0
  %3721 = vmatprep.subr.mxu0 0.0
  %3722 = vmatpush2.msra.mxu0 0.0
  %3723 = vmatprep.subr.mxu0 0.0
  %3724 = vmatpush2.msra.mxu0 0.0
  %3725 = vmatprep.subr.mxu0 0.0
  %3726 = vmatpush2.msra.mxu0 0.0
  %3727 = vmatprep.subr.mxu0 0.0
  %3728 = vmatpush2.msra.mxu0 0.0
  %3729 = vmatprep.subr.mxu0 0.0
  %3730 = vmatpush2.msra.mxu0 0.0
  %3731 = vmatprep.mubr.f32.mxu0 0.0
  %3732 = vmatmul.mubr.f32.gmra.mxu0 %v3665
  %v3733 = vpop.f32.mrf.mxu0
  %v3734 = vadd.f32 0.0, %v3733
  %v3735 = vpop.f32.mrf.mxu0
  %3736 = vdwg.mxu0
  %v3737 = vadd.f32 %v3664, %v3734
  %v3738 = vtanh.pop %v3737
  %v3739 = vmul.f32 %v3738, 0.5
  %v3740 = vadd.f32 %v3739, 0.5
  %v3741 = vmul.f32 %v3740, %v3555
  %3743 = vrot.lane.b32.xlu0 %v3738, 64
  %v3744 = vpop.permute.xlu0 %3743
  %v3746 = vmul.f32 %v3740, %v3744
  %3748 = vrot.lane.b32.xlu0 %v3746, 32
  %v3749 = vpop.permute.xlu0 %3748
  %v3751 = vadd.f32 %v3741, %v3749
  %v3752 = vtanh.pop %v3751
  %3754 = vrot.lane.b32.xlu0 %v3752, 64
  %v3755 = vpop.permute.xlu0 %3754
  %v3757 = vmul.f32 %v3740, %v3755
  %v3758 = vsel %vm289, %v3757, %v3554
  %v3759 = vsel %vm289, %v3751, %v3555
  %3761 = vrot.lane.b32.xlu0 %v3758, 32
  %v3762 = vpop.permute.xlu0 %3761
  %3764 = vst.msk [vmem:[#allocation3 + $0x10] sm:$0xff] %vm364, %v3762
  %v3765 = vld [vmem:[#allocation2 + $0x98] sm:$0xff]
  %3766 = vrot.lane.b32.xlu0 %v3657, 32
  %v3767 = vpop.permute.xlu0 %3766
  %v3768 = vsel %vm364, %v3767, 0
  %3770 = vmatprep.subr.mxu0 0.0
  %3771 = vmatpush1.msra.mxu0 0.0
  %3772 = vmatprep.subr.mxu0 0.0
  %3773 = vmatpush1.msra.mxu0 0.0
  %3774 = vmatprep.subr.mxu0 0.0
  %3775 = vmatpush1.msra.mxu0 0.0
  %3776 = vmatprep.subr.mxu0 0.0
  %3777 = vmatpush1.msra.mxu0 0.0
  %3778 = vmatprep.subr.mxu0 0.0
  %3779 = vmatpush1.msra.mxu0 0.0
  %3780 = vmatprep.subr.mxu0 0.0
  %3781 = vmatpush1.msra.mxu0 0.0
  %3782 = vmatprep.subr.mxu0 0.0
  %3783 = vmatpush1.msra.mxu0 0.0
  %3784 = vmatprep.subr.mxu0 0.0
  %3785 = vmatpush1.msra.mxu0 0.0
  %3786 = vmatprep.subr.mxu0 0.0
  %3787 = vmatpush1.msra.mxu0 0.0
  %3788 = vmatprep.subr.mxu0 0.0
  %3789 = vmatpush1.msra.mxu0 0.0
  %3790 = vmatprep.subr.mxu0 0.0
  %3791 = vmatpush1.msra.mxu0 0.0
  %3792 = vmatprep.subr.mxu0 0.0
  %3793 = vmatpush1.msra.mxu0 0.0
  %3794 = vmatprep.subr.mxu0 0.0
  %3795 = vmatpush1.msra.mxu0 %v3261
  %3796 = vmatprep.subr.mxu0 0.0
  %3797 = vmatpush1.msra.mxu0 %v3260
  %3798 = vmatprep.subr.mxu0 0.0
  %3799 = vmatpush1.msra.mxu0 %v3259
  %3800 = vmatprep.subr.mxu0 0.0
  %3801 = vmatpush1.msra.mxu0 %v3258
  %3802 = vmatprep.subr.mxu0 0.0
  %3803 = vmatpush2.msra.mxu0 0.0
  %3804 = vmatprep.subr.mxu0 0.0
  %3805 = vmatpush2.msra.mxu0 0.0
  %3806 = vmatprep.subr.mxu0 0.0
  %3807 = vmatpush2.msra.mxu0 0.0
  %3808 = vmatprep.subr.mxu0 0.0
  %3809 = vmatpush2.msra.mxu0 0.0
  %3810 = vmatprep.subr.mxu0 0.0
  %3811 = vmatpush2.msra.mxu0 0.0
  %3812 = vmatprep.subr.mxu0 0.0
  %3813 = vmatpush2.msra.mxu0 0.0
  %3814 = vmatprep.subr.mxu0 0.0
  %3815 = vmatpush2.msra.mxu0 0.0
  %3816 = vmatprep.subr.mxu0 0.0
  %3817 = vmatpush2.msra.mxu0 0.0
  %3818 = vmatprep.subr.mxu0 0.0
  %3819 = vmatpush2.msra.mxu0 0.0
  %3820 = vmatprep.subr.mxu0 0.0
  %3821 = vmatpush2.msra.mxu0 0.0
  %3822 = vmatprep.subr.mxu0 0.0
  %3823 = vmatpush2.msra.mxu0 0.0
  %3824 = vmatprep.subr.mxu0 0.0
  %3825 = vmatpush2.msra.mxu0 0.0
  %3826 = vmatprep.subr.mxu0 0.0
  %3827 = vmatpush2.msra.mxu0 0.0
  %3828 = vmatprep.subr.mxu0 0.0
  %3829 = vmatpush2.msra.mxu0 0.0
  %3830 = vmatprep.subr.mxu0 0.0
  %3831 = vmatpush2.msra.mxu0 0.0
  %3832 = vmatprep.subr.mxu0 0.0
  %3833 = vmatpush2.msra.mxu0 0.0
  %3834 = vmatprep.mubr.f32.mxu0 0.0
  %3835 = vmatmul.mubr.f32.gmra.mxu0 %v3768
  %v3836 = vpop.f32.mrf.mxu0
  %v3837 = vadd.f32 0.0, %v3836
  %v3838 = vpop.f32.mrf.mxu0
  %3839 = vdwg.mxu0
  %v3840 = vadd.f32 %v3765, %v3837
  %v3841 = vtanh.pop %v3840
  %v3842 = vmul.f32 %v3841, 0.5
  %v3843 = vadd.f32 %v3842, 0.5
  %v3844 = vmul.f32 %v3843, %v3658
  %3846 = vrot.lane.b32.xlu0 %v3841, 64
  %v3847 = vpop.permute.xlu0 %3846
  %v3849 = vmul.f32 %v3843, %v3847
  %3851 = vrot.lane.b32.xlu0 %v3849, 32
  %v3852 = vpop.permute.xlu0 %3851
  %v3854 = vadd.f32 %v3844, %v3852
  %v3855 = vtanh.pop %v3854
  %3857 = vrot.lane.b32.xlu0 %v3855, 64
  %v3858 = vpop.permute.xlu0 %3857
  %v3860 = vmul.f32 %v3843, %v3858
  %v3861 = vsel %vm331, %v3860, %v3657
  %v3862 = vsel %vm331, %v3854, %v3658
  %3864 = vrot.lane.b32.xlu0 %v3861, 64
  %v3865 = vpop.permute.xlu0 %3864
  %3867 = vst.msk [vmem:[#allocation3 + $0x48] sm:$0xff] %vm771, %v3865
  %v3868 = vld [vmem:[#allocation2 + $0x30] sm:$0xff]
  %v3869 = vsel %vm364, %v3762, 0
  %3871 = vmatprep.subr.mxu0 0.0
  %3872 = vmatpush1.msra.mxu0 0.0
  %3873 = vmatprep.subr.mxu0 0.0
  %3874 = vmatpush1.msra.mxu0 0.0
  %3875 = vmatprep.subr.mxu0 0.0
  %3876 = vmatpush1.msra.mxu0 0.0
  %3877 = vmatprep.subr.mxu0 0.0
  %3878 = vmatpush1.msra.mxu0 0.0
  %3879 = vmatprep.subr.mxu0 0.0
  %3880 = vmatpush1.msra.mxu0 0.0
  %3881 = vmatprep.subr.mxu0 0.0
  %3882 = vmatpush1.msra.mxu0 0.0
  %3883 = vmatprep.subr.mxu0 0.0
  %3884 = vmatpush1.msra.mxu0 0.0
  %3885 = vmatprep.subr.mxu0 0.0
  %3886 = vmatpush1.msra.mxu0 0.0
  %3887 = vmatprep.subr.mxu0 0.0
  %3888 = vmatpush1.msra.mxu0 0.0
  %3889 = vmatprep.subr.mxu0 0.0
  %3890 = vmatpush1.msra.mxu0 0.0
  %3891 = vmatprep.subr.mxu0 0.0
  %3892 = vmatpush1.msra.mxu0 0.0
  %3893 = vmatprep.subr.mxu0 0.0
  %3894 = vmatpush1.msra.mxu0 0.0
  %3895 = vmatprep.subr.mxu0 0.0
  %3896 = vmatpush1.msra.mxu0 %v3256
  %3897 = vmatprep.subr.mxu0 0.0
  %3898 = vmatpush1.msra.mxu0 %v3255
  %3899 = vmatprep.subr.mxu0 0.0
  %3900 = vmatpush1.msra.mxu0 %v3254
  %3901 = vmatprep.subr.mxu0 0.0
  %3902 = vmatpush1.msra.mxu0 %v3253
  %3903 = vmatprep.subr.mxu0 0.0
  %3904 = vmatpush2.msra.mxu0 0.0
  %3905 = vmatprep.subr.mxu0 0.0
  %3906 = vmatpush2.msra.mxu0 0.0
  %3907 = vmatprep.subr.mxu0 0.0
  %3908 = vmatpush2.msra.mxu0 0.0
  %3909 = vmatprep.subr.mxu0 0.0
  %3910 = vmatpush2.msra.mxu0 0.0
  %3911 = vmatprep.subr.mxu0 0.0
  %3912 = vmatpush2.msra.mxu0 0.0
  %3913 = vmatprep.subr.mxu0 0.0
  %3914 = vmatpush2.msra.mxu0 0.0
  %3915 = vmatprep.subr.mxu0 0.0
  %3916 = vmatpush2.msra.mxu0 0.0
  %3917 = vmatprep.subr.mxu0 0.0
  %3918 = vmatpush2.msra.mxu0 0.0
  %3919 = vmatprep.subr.mxu0 0.0
  %3920 = vmatpush2.msra.mxu0 0.0
  %3921 = vmatprep.subr.mxu0 0.0
  %3922 = vmatpush2.msra.mxu0 0.0
  %3923 = vmatprep.subr.mxu0 0.0
  %3924 = vmatpush2.msra.mxu0 0.0
  %3925 = vmatprep.subr.mxu0 0.0
  %3926 = vmatpush2.msra.mxu0 0.0
  %3927 = vmatprep.subr.mxu0 0.0
  %3928 = vmatpush2.msra.mxu0 0.0
  %3929 = vmatprep.subr.mxu0 0.0
  %3930 = vmatpush2.msra.mxu0 0.0
  %3931 = vmatprep.subr.mxu0 0.0
  %3932 = vmatpush2.msra.mxu0 0.0
  %3933 = vmatprep.subr.mxu0 0.0
  %3934 = vmatpush2.msra.mxu0 0.0
  %3935 = vmatprep.mubr.f32.mxu0 0.0
  %3936 = vmatmul.mubr.f32.gmra.mxu0 %v3869
  %v3937 = vpop.f32.mrf.mxu0
  %v3938 = vadd.f32 0.0, %v3937
  %v3939 = vpop.f32.mrf.mxu0
  %3940 = vdwg.mxu0
  %v3941 = vadd.f32 %v3868, %v3938
  %v3942 = vtanh.pop %v3941
  %v3943 = vmul.f32 %v3942, 0.5
  %v3944 = vadd.f32 %v3943, 0.5
  %v3945 = vmul.f32 %v3944, %v3759
  %3947 = vrot.lane.b32.xlu0 %v3942, 64
  %v3948 = vpop.permute.xlu0 %3947
  %v3950 = vmul.f32 %v3944, %v3948
  %3952 = vrot.lane.b32.xlu0 %v3950, 32
  %v3953 = vpop.permute.xlu0 %3952
  %v3955 = vadd.f32 %v3945, %v3953
  %v3956 = vtanh.pop %v3955
  %3958 = vrot.lane.b32.xlu0 %v3956, 64
  %v3959 = vpop.permute.xlu0 %3958
  %v3961 = vmul.f32 %v3944, %v3959
  %v3962 = vsel %vm295, %v3961, %v3758
  %v3963 = vsel %vm295, %v3955, %v3759
  %3965 = vrot.lane.b32.xlu0 %v3962, 32
  %v3966 = vpop.permute.xlu0 %3965
  %3968 = vst.msk [vmem:[#allocation3 + $0x18] sm:$0xff] %vm364, %v3966
  %v3969 = vld [vmem:[#allocation2 + $0x88] sm:$0xff]
  %3970 = vrot.lane.b32.xlu0 %v3861, 32
  %v3971 = vpop.permute.xlu0 %3970
  %v3972 = vsel %vm364, %v3971, 0
  %3974 = vmatprep.subr.mxu0 0.0
  %3975 = vmatpush1.msra.mxu0 0.0
  %3976 = vmatprep.subr.mxu0 0.0
  %3977 = vmatpush1.msra.mxu0 0.0
  %3978 = vmatprep.subr.mxu0 0.0
  %3979 = vmatpush1.msra.mxu0 0.0
  %3980 = vmatprep.subr.mxu0 0.0
  %3981 = vmatpush1.msra.mxu0 0.0
  %3982 = vmatprep.subr.mxu0 0.0
  %3983 = vmatpush1.msra.mxu0 0.0
  %3984 = vmatprep.subr.mxu0 0.0
  %3985 = vmatpush1.msra.mxu0 0.0
  %3986 = vmatprep.subr.mxu0 0.0
  %3987 = vmatpush1.msra.mxu0 0.0
  %3988 = vmatprep.subr.mxu0 0.0
  %3989 = vmatpush1.msra.mxu0 0.0
  %3990 = vmatprep.subr.mxu0 0.0
  %3991 = vmatpush1.msra.mxu0 0.0
  %3992 = vmatprep.subr.mxu0 0.0
  %3993 = vmatpush1.msra.mxu0 0.0
  %3994 = vmatprep.subr.mxu0 0.0
  %3995 = vmatpush1.msra.mxu0 0.0
  %3996 = vmatprep.subr.mxu0 0.0
  %3997 = vmatpush1.msra.mxu0 0.0
  %3998 = vmatprep.subr.mxu0 0.0
  %3999 = vmatpush1.msra.mxu0 %v3261
  %4000 = vmatprep.subr.mxu0 0.0
  %4001 = vmatpush1.msra.mxu0 %v3260
  %4002 = vmatprep.subr.mxu0 0.0
  %4003 = vmatpush1.msra.mxu0 %v3259
  %4004 = vmatprep.subr.mxu0 0.0
  %4005 = vmatpush1.msra.mxu0 %v3258
  %4006 = vmatprep.subr.mxu0 0.0
  %4007 = vmatpush2.msra.mxu0 0.0
  %4008 = vmatprep.subr.mxu0 0.0
  %4009 = vmatpush2.msra.mxu0 0.0
  %4010 = vmatprep.subr.mxu0 0.0
  %4011 = vmatpush2.msra.mxu0 0.0
  %4012 = vmatprep.subr.mxu0 0.0
  %4013 = vmatpush2.msra.mxu0 0.0
  %4014 = vmatprep.subr.mxu0 0.0
  %4015 = vmatpush2.msra.mxu0 0.0
  %4016 = vmatprep.subr.mxu0 0.0
  %4017 = vmatpush2.msra.mxu0 0.0
  %4018 = vmatprep.subr.mxu0 0.0
  %4019 = vmatpush2.msra.mxu0 0.0
  %4020 = vmatprep.subr.mxu0 0.0
  %4021 = vmatpush2.msra.mxu0 0.0
  %4022 = vmatprep.subr.mxu0 0.0
  %4023 = vmatpush2.msra.mxu0 0.0
  %4024 = vmatprep.subr.mxu0 0.0
  %4025 = vmatpush2.msra.mxu0 0.0
  %4026 = vmatprep.subr.mxu0 0.0
  %4027 = vmatpush2.msra.mxu0 0.0
  %4028 = vmatprep.subr.mxu0 0.0
  %4029 = vmatpush2.msra.mxu0 0.0
  %4030 = vmatprep.subr.mxu0 0.0
  %4031 = vmatpush2.msra.mxu0 0.0
  %4032 = vmatprep.subr.mxu0 0.0
  %4033 = vmatpush2.msra.mxu0 0.0
  %4034 = vmatprep.subr.mxu0 0.0
  %4035 = vmatpush2.msra.mxu0 0.0
  %4036 = vmatprep.subr.mxu0 0.0
  %4037 = vmatpush2.msra.mxu0 0.0
  %4038 = vmatprep.mubr.f32.mxu0 0.0
  %4039 = vmatmul.mubr.f32.gmra.mxu0 %v3972
  %v4040 = vpop.f32.mrf.mxu0
  %v4041 = vadd.f32 0.0, %v4040
  %v4042 = vpop.f32.mrf.mxu0
  %4043 = vdwg.mxu0
  %v4044 = vadd.f32 %v3969, %v4041
  %v4045 = vtanh.pop %v4044
  %v4046 = vmul.f32 %v4045, 0.5
  %v4047 = vadd.f32 %v4046, 0.5
  %v4048 = vmul.f32 %v4047, %v3862
  %4050 = vrot.lane.b32.xlu0 %v4045, 64
  %v4051 = vpop.permute.xlu0 %4050
  %v4053 = vmul.f32 %v4047, %v4051
  %4055 = vrot.lane.b32.xlu0 %v4053, 32
  %v4056 = vpop.permute.xlu0 %4055
  %v4058 = vadd.f32 %v4048, %v4056
  %v4059 = vtanh.pop %v4058
  %4061 = vrot.lane.b32.xlu0 %v4059, 64
  %v4062 = vpop.permute.xlu0 %4061
  %v4064 = vmul.f32 %v4047, %v4062
  %v4065 = vsel %vm325, %v4064, %v3861
  %v4066 = vsel %vm325, %v4058, %v3862
  %4068 = vrot.lane.b32.xlu0 %v4065, 64
  %v4069 = vpop.permute.xlu0 %4068
  %4071 = vst.msk [vmem:[#allocation3 + $0x40] sm:$0xff] %vm771, %v4069
  %v4072 = vld [vmem:[#allocation2 + $0x40] sm:$0xff]
  %v4073 = vsel %vm364, %v3966, 0
  %4075 = vmatprep.subr.mxu0 0.0
  %4076 = vmatpush1.msra.mxu0 0.0
  %4077 = vmatprep.subr.mxu0 0.0
  %4078 = vmatpush1.msra.mxu0 0.0
  %4079 = vmatprep.subr.mxu0 0.0
  %4080 = vmatpush1.msra.mxu0 0.0
  %4081 = vmatprep.subr.mxu0 0.0
  %4082 = vmatpush1.msra.mxu0 0.0
  %4083 = vmatprep.subr.mxu0 0.0
  %4084 = vmatpush1.msra.mxu0 0.0
  %4085 = vmatprep.subr.mxu0 0.0
  %4086 = vmatpush1.msra.mxu0 0.0
  %4087 = vmatprep.subr.mxu0 0.0
  %4088 = vmatpush1.msra.mxu0 0.0
  %4089 = vmatprep.subr.mxu0 0.0
  %4090 = vmatpush1.msra.mxu0 0.0
  %4091 = vmatprep.subr.mxu0 0.0
  %4092 = vmatpush1.msra.mxu0 0.0
  %4093 = vmatprep.subr.mxu0 0.0
  %4094 = vmatpush1.msra.mxu0 0.0
  %4095 = vmatprep.subr.mxu0 0.0
  %4096 = vmatpush1.msra.mxu0 0.0
  %4097 = vmatprep.subr.mxu0 0.0
  %4098 = vmatpush1.msra.mxu0 0.0
  %4099 = vmatprep.subr.mxu0 0.0
  %4100 = vmatpush1.msra.mxu0 %v3256
  %4101 = vmatprep.subr.mxu0 0.0
  %4102 = vmatpush1.msra.mxu0 %v3255
  %4103 = vmatprep.subr.mxu0 0.0
  %4104 = vmatpush1.msra.mxu0 %v3254
  %4105 = vmatprep.subr.mxu0 0.0
  %4106 = vmatpush1.msra.mxu0 %v3253
  %4107 = vmatprep.subr.mxu0 0.0
  %4108 = vmatpush2.msra.mxu0 0.0
  %4109 = vmatprep.subr.mxu0 0.0
  %4110 = vmatpush2.msra.mxu0 0.0
  %4111 = vmatprep.subr.mxu0 0.0
  %4112 = vmatpush2.msra.mxu0 0.0
  %4113 = vmatprep.subr.mxu0 0.0
  %4114 = vmatpush2.msra.mxu0 0.0
  %4115 = vmatprep.subr.mxu0 0.0
  %4116 = vmatpush2.msra.mxu0 0.0
  %4117 = vmatprep.subr.mxu0 0.0
  %4118 = vmatpush2.msra.mxu0 0.0
  %4119 = vmatprep.subr.mxu0 0.0
  %4120 = vmatpush2.msra.mxu0 0.0
  %4121 = vmatprep.subr.mxu0 0.0
  %4122 = vmatpush2.msra.mxu0 0.0
  %4123 = vmatprep.subr.mxu0 0.0
  %4124 = vmatpush2.msra.mxu0 0.0
  %4125 = vmatprep.subr.mxu0 0.0
  %4126 = vmatpush2.msra.mxu0 0.0
  %4127 = vmatprep.subr.mxu0 0.0
  %4128 = vmatpush2.msra.mxu0 0.0
  %4129 = vmatprep.subr.mxu0 0.0
  %4130 = vmatpush2.msra.mxu0 0.0
  %4131 = vmatprep.subr.mxu0 0.0
  %4132 = vmatpush2.msra.mxu0 0.0
  %4133 = vmatprep.subr.mxu0 0.0
  %4134 = vmatpush2.msra.mxu0 0.0
  %4135 = vmatprep.subr.mxu0 0.0
  %4136 = vmatpush2.msra.mxu0 0.0
  %4137 = vmatprep.subr.mxu0 0.0
  %4138 = vmatpush2.msra.mxu0 0.0
  %4139 = vmatprep.mubr.f32.mxu0 0.0
  %4140 = vmatmul.mubr.f32.gmra.mxu0 %v4073
  %v4141 = vpop.f32.mrf.mxu0
  %v4142 = vadd.f32 0.0, %v4141
  %v4143 = vpop.f32.mrf.mxu0
  %4144 = vdwg.mxu0
  %v4145 = vadd.f32 %v4072, %v4142
  %v4146 = vtanh.pop %v4145
  %v4147 = vmul.f32 %v4146, 0.5
  %v4148 = vadd.f32 %v4147, 0.5
  %v4149 = vmul.f32 %v4148, %v3963
  %4151 = vrot.lane.b32.xlu0 %v4146, 64
  %v4152 = vpop.permute.xlu0 %4151
  %v4154 = vmul.f32 %v4148, %v4152
  %4156 = vrot.lane.b32.xlu0 %v4154, 32
  %v4157 = vpop.permute.xlu0 %4156
  %v4159 = vadd.f32 %v4149, %v4157
  %v4160 = vtanh.pop %v4159
  %4162 = vrot.lane.b32.xlu0 %v4160, 64
  %v4163 = vpop.permute.xlu0 %4162
  %v4165 = vmul.f32 %v4148, %v4163
  %v4166 = vsel %vm301, %v4165, %v3962
  %v4167 = vsel %vm301, %v4159, %v3963
  %4169 = vrot.lane.b32.xlu0 %v4166, 32
  %v4170 = vpop.permute.xlu0 %4169
  %4172 = vst.msk [vmem:[#allocation3 + $0x20] sm:$0xff] %vm364, %v4170
  %v4173 = vld [vmem:[#allocation2 + $0x78] sm:$0xff]
  %4174 = vrot.lane.b32.xlu0 %v4065, 32
  %v4175 = vpop.permute.xlu0 %4174
  %v4176 = vsel %vm364, %v4175, 0
  %4178 = vmatprep.subr.mxu0 0.0
  %4179 = vmatpush1.msra.mxu0 0.0
  %4180 = vmatprep.subr.mxu0 0.0
  %4181 = vmatpush1.msra.mxu0 0.0
  %4182 = vmatprep.subr.mxu0 0.0
  %4183 = vmatpush1.msra.mxu0 0.0
  %4184 = vmatprep.subr.mxu0 0.0
  %4185 = vmatpush1.msra.mxu0 0.0
  %4186 = vmatprep.subr.mxu0 0.0
  %4187 = vmatpush1.msra.mxu0 0.0
  %4188 = vmatprep.subr.mxu0 0.0
  %4189 = vmatpush1.msra.mxu0 0.0
  %4190 = vmatprep.subr.mxu0 0.0
  %4191 = vmatpush1.msra.mxu0 0.0
  %4192 = vmatprep.subr.mxu0 0.0
  %4193 = vmatpush1.msra.mxu0 0.0
  %4194 = vmatprep.subr.mxu0 0.0
  %4195 = vmatpush1.msra.mxu0 0.0
  %4196 = vmatprep.subr.mxu0 0.0
  %4197 = vmatpush1.msra.mxu0 0.0
  %4198 = vmatprep.subr.mxu0 0.0
  %4199 = vmatpush1.msra.mxu0 0.0
  %4200 = vmatprep.subr.mxu0 0.0
  %4201 = vmatpush1.msra.mxu0 0.0
  %4202 = vmatprep.subr.mxu0 0.0
  %4203 = vmatpush1.msra.mxu0 %v3261
  %4204 = vmatprep.subr.mxu0 0.0
  %4205 = vmatpush1.msra.mxu0 %v3260
  %4206 = vmatprep.subr.mxu0 0.0
  %4207 = vmatpush1.msra.mxu0 %v3259
  %4208 = vmatprep.subr.mxu0 0.0
  %4209 = vmatpush1.msra.mxu0 %v3258
  %4210 = vmatprep.subr.mxu0 0.0
  %4211 = vmatpush2.msra.mxu0 0.0
  %4212 = vmatprep.subr.mxu0 0.0
  %4213 = vmatpush2.msra.mxu0 0.0
  %4214 = vmatprep.subr.mxu0 0.0
  %4215 = vmatpush2.msra.mxu0 0.0
  %4216 = vmatprep.subr.mxu0 0.0
  %4217 = vmatpush2.msra.mxu0 0.0
  %4218 = vmatprep.subr.mxu0 0.0
  %4219 = vmatpush2.msra.mxu0 0.0
  %4220 = vmatprep.subr.mxu0 0.0
  %4221 = vmatpush2.msra.mxu0 0.0
  %4222 = vmatprep.subr.mxu0 0.0
  %4223 = vmatpush2.msra.mxu0 0.0
  %4224 = vmatprep.subr.mxu0 0.0
  %4225 = vmatpush2.msra.mxu0 0.0
  %4226 = vmatprep.subr.mxu0 0.0
  %4227 = vmatpush2.msra.mxu0 0.0
  %4228 = vmatprep.subr.mxu0 0.0
  %4229 = vmatpush2.msra.mxu0 0.0
  %4230 = vmatprep.subr.mxu0 0.0
  %4231 = vmatpush2.msra.mxu0 0.0
  %4232 = vmatprep.subr.mxu0 0.0
  %4233 = vmatpush2.msra.mxu0 0.0
  %4234 = vmatprep.subr.mxu0 0.0
  %4235 = vmatpush2.msra.mxu0 0.0
  %4236 = vmatprep.subr.mxu0 0.0
  %4237 = vmatpush2.msra.mxu0 0.0
  %4238 = vmatprep.subr.mxu0 0.0
  %4239 = vmatpush2.msra.mxu0 0.0
  %4240 = vmatprep.subr.mxu0 0.0
  %4241 = vmatpush2.msra.mxu0 0.0
  %4242 = vmatprep.mubr.f32.mxu0 0.0
  %4243 = vmatmul.mubr.f32.gmra.mxu0 %v4176
  %v4244 = vpop.f32.mrf.mxu0
  %v4245 = vadd.f32 0.0, %v4244
  %v4246 = vpop.f32.mrf.mxu0
  %4247 = vdwg.mxu0
  %v4248 = vadd.f32 %v4173, %v4245
  %v4249 = vtanh.pop %v4248
  %v4250 = vmul.f32 %v4249, 0.5
  %v4251 = vadd.f32 %v4250, 0.5
  %v4252 = vmul.f32 %v4251, %v4066
  %4254 = vrot.lane.b32.xlu0 %v4249, 64
  %v4255 = vpop.permute.xlu0 %4254
  %v4257 = vmul.f32 %v4251, %v4255
  %4259 = vrot.lane.b32.xlu0 %v4257, 32
  %v4260 = vpop.permute.xlu0 %4259
  %v4262 = vadd.f32 %v4252, %v4260
  %v4263 = vtanh.pop %v4262
  %4265 = vrot.lane.b32.xlu0 %v4263, 64
  %v4266 = vpop.permute.xlu0 %4265
  %v4268 = vmul.f32 %v4251, %v4266
  %v4269 = vsel %vm319, %v4268, %v4065
  %v4270 = vsel %vm319, %v4262, %v4066
  %4272 = vrot.lane.b32.xlu0 %v4269, 64
  %v4273 = vpop.permute.xlu0 %4272
  %4275 = vst.msk [vmem:[#allocation3 + $0x38] sm:$0xff] %vm771, %v4273
  %v4276 = vld [vmem:[#allocation2 + $0x50] sm:$0xff]
  %v4277 = vsel %vm364, %v4170, 0
  %4279 = vmatprep.subr.mxu0 0.0
  %4280 = vmatpush1.msra.mxu0 0.0
  %4281 = vmatprep.subr.mxu0 0.0
  %4282 = vmatpush1.msra.mxu0 0.0
  %4283 = vmatprep.subr.mxu0 0.0
  %4284 = vmatpush1.msra.mxu0 0.0
  %4285 = vmatprep.subr.mxu0 0.0
  %4286 = vmatpush1.msra.mxu0 0.0
  %4287 = vmatprep.subr.mxu0 0.0
  %4288 = vmatpush1.msra.mxu0 0.0
  %4289 = vmatprep.subr.mxu0 0.0
  %4290 = vmatpush1.msra.mxu0 0.0
  %4291 = vmatprep.subr.mxu0 0.0
  %4292 = vmatpush1.msra.mxu0 0.0
  %4293 = vmatprep.subr.mxu0 0.0
  %4294 = vmatpush1.msra.mxu0 0.0
  %4295 = vmatprep.subr.mxu0 0.0
  %4296 = vmatpush1.msra.mxu0 0.0
  %4297 = vmatprep.subr.mxu0 0.0
  %4298 = vmatpush1.msra.mxu0 0.0
  %4299 = vmatprep.subr.mxu0 0.0
  %4300 = vmatpush1.msra.mxu0 0.0
  %4301 = vmatprep.subr.mxu0 0.0
  %4302 = vmatpush1.msra.mxu0 0.0
  %4303 = vmatprep.subr.mxu0 0.0
  %4304 = vmatpush1.msra.mxu0 %v3256
  %4305 = vmatprep.subr.mxu0 0.0
  %4306 = vmatpush1.msra.mxu0 %v3255
  %4307 = vmatprep.subr.mxu0 0.0
  %4308 = vmatpush1.msra.mxu0 %v3254
  %4309 = vmatprep.subr.mxu0 0.0
  %4310 = vmatpush1.msra.mxu0 %v3253
  %4311 = vmatprep.subr.mxu0 0.0
  %4312 = vmatpush2.msra.mxu0 0.0
  %4313 = vmatprep.subr.mxu0 0.0
  %4314 = vmatpush2.msra.mxu0 0.0
  %4315 = vmatprep.subr.mxu0 0.0
  %4316 = vmatpush2.msra.mxu0 0.0
  %4317 = vmatprep.subr.mxu0 0.0
  %4318 = vmatpush2.msra.mxu0 0.0
  %4319 = vmatprep.subr.mxu0 0.0
  %4320 = vmatpush2.msra.mxu0 0.0
  %4321 = vmatprep.subr.mxu0 0.0
  %4322 = vmatpush2.msra.mxu0 0.0
  %4323 = vmatprep.subr.mxu0 0.0
  %4324 = vmatpush2.msra.mxu0 0.0
  %4325 = vmatprep.subr.mxu0 0.0
  %4326 = vmatpush2.msra.mxu0 0.0
  %4327 = vmatprep.subr.mxu0 0.0
  %4328 = vmatpush2.msra.mxu0 0.0
  %4329 = vmatprep.subr.mxu0 0.0
  %4330 = vmatpush2.msra.mxu0 0.0
  %4331 = vmatprep.subr.mxu0 0.0
  %4332 = vmatpush2.msra.mxu0 0.0
  %4333 = vmatprep.subr.mxu0 0.0
  %4334 = vmatpush2.msra.mxu0 0.0
  %4335 = vmatprep.subr.mxu0 0.0
  %4336 = vmatpush2.msra.mxu0 0.0
  %4337 = vmatprep.subr.mxu0 0.0
  %4338 = vmatpush2.msra.mxu0 0.0
  %4339 = vmatprep.subr.mxu0 0.0
  %4340 = vmatpush2.msra.mxu0 0.0
  %4341 = vmatprep.subr.mxu0 0.0
  %4342 = vmatpush2.msra.mxu0 0.0
  %4343 = vmatprep.mubr.f32.mxu0 0.0
  %4344 = vmatmul.mubr.f32.gmra.mxu0 %v4277
  %v4345 = vpop.f32.mrf.mxu0
  %v4346 = vadd.f32 0.0, %v4345
  %v4347 = vpop.f32.mrf.mxu0
  %4348 = vdwg.mxu0
  %v4349 = vadd.f32 %v4276, %v4346
  %v4350 = vtanh.pop %v4349
  %v4351 = vmul.f32 %v4350, 0.5
  %v4352 = vadd.f32 %v4351, 0.5
  %v4353 = vmul.f32 %v4352, %v4167
  %4355 = vrot.lane.b32.xlu0 %v4350, 64
  %v4356 = vpop.permute.xlu0 %4355
  %v4358 = vmul.f32 %v4352, %v4356
  %4360 = vrot.lane.b32.xlu0 %v4358, 32
  %v4361 = vpop.permute.xlu0 %4360
  %v4363 = vadd.f32 %v4353, %v4361
  %v4364 = vtanh.pop %v4363
  %4366 = vrot.lane.b32.xlu0 %v4364, 64
  %v4367 = vpop.permute.xlu0 %4366
  %v4369 = vmul.f32 %v4352, %v4367
  %v4370 = vsel %vm307, %v4369, %v4166
  %v4371 = vsel %vm307, %v4363, %v4167
  %4373 = vrot.lane.b32.xlu0 %v4370, 32
  %v4374 = vpop.permute.xlu0 %4373
  %4376 = vst.msk [vmem:[#allocation3 + $0x28] sm:$0xff] %vm364, %v4374
  %v4377 = vld [vmem:[#allocation2 + $0x68] sm:$0xff]
  %4378 = vrot.lane.b32.xlu0 %v4269, 32
  %v4379 = vpop.permute.xlu0 %4378
  %v4380 = vsel %vm364, %v4379, 0
  %4382 = vmatprep.subr.mxu0 0.0
  %4383 = vmatpush1.msra.mxu0 0.0
  %4384 = vmatprep.subr.mxu0 0.0
  %4385 = vmatpush1.msra.mxu0 0.0
  %4386 = vmatprep.subr.mxu0 0.0
  %4387 = vmatpush1.msra.mxu0 0.0
  %4388 = vmatprep.subr.mxu0 0.0
  %4389 = vmatpush1.msra.mxu0 0.0
  %4390 = vmatprep.subr.mxu0 0.0
  %4391 = vmatpush1.msra.mxu0 0.0
  %4392 = vmatprep.subr.mxu0 0.0
  %4393 = vmatpush1.msra.mxu0 0.0
  %4394 = vmatprep.subr.mxu0 0.0
  %4395 = vmatpush1.msra.mxu0 0.0
  %4396 = vmatprep.subr.mxu0 0.0
  %4397 = vmatpush1.msra.mxu0 0.0
  %4398 = vmatprep.subr.mxu0 0.0
  %4399 = vmatpush1.msra.mxu0 0.0
  %4400 = vmatprep.subr.mxu0 0.0
  %4401 = vmatpush1.msra.mxu0 0.0
  %4402 = vmatprep.subr.mxu0 0.0
  %4403 = vmatpush1.msra.mxu0 0.0
  %4404 = vmatprep.subr.mxu0 0.0
  %4405 = vmatpush1.msra.mxu0 0.0
  %4406 = vmatprep.subr.mxu0 0.0
  %4407 = vmatpush1.msra.mxu0 %v3261
  %4408 = vmatprep.subr.mxu0 0.0
  %4409 = vmatpush1.msra.mxu0 %v3260
  %4410 = vmatprep.subr.mxu0 0.0
  %4411 = vmatpush1.msra.mxu0 %v3259
  %4412 = vmatprep.subr.mxu0 0.0
  %4413 = vmatpush1.msra.mxu0 %v3258
  %4414 = vmatprep.subr.mxu0 0.0
  %4415 = vmatpush2.msra.mxu0 0.0
  %4416 = vmatprep.subr.mxu0 0.0
  %4417 = vmatpush2.msra.mxu0 0.0
  %4418 = vmatprep.subr.mxu0 0.0
  %4419 = vmatpush2.msra.mxu0 0.0
  %4420 = vmatprep.subr.mxu0 0.0
  %4421 = vmatpush2.msra.mxu0 0.0
  %4422 = vmatprep.subr.mxu0 0.0
  %4423 = vmatpush2.msra.mxu0 0.0
  %4424 = vmatprep.subr.mxu0 0.0
  %4425 = vmatpush2.msra.mxu0 0.0
  %4426 = vmatprep.subr.mxu0 0.0
  %4427 = vmatpush2.msra.mxu0 0.0
  %4428 = vmatprep.subr.mxu0 0.0
  %4429 = vmatpush2.msra.mxu0 0.0
  %4430 = vmatprep.subr.mxu0 0.0
  %4431 = vmatpush2.msra.mxu0 0.0
  %4432 = vmatprep.subr.mxu0 0.0
  %4433 = vmatpush2.msra.mxu0 0.0
  %4434 = vmatprep.subr.mxu0 0.0
  %4435 = vmatpush2.msra.mxu0 0.0
  %4436 = vmatprep.subr.mxu0 0.0
  %4437 = vmatpush2.msra.mxu0 0.0
  %4438 = vmatprep.subr.mxu0 0.0
  %4439 = vmatpush2.msra.mxu0 0.0
  %4440 = vmatprep.subr.mxu0 0.0
  %4441 = vmatpush2.msra.mxu0 0.0
  %4442 = vmatprep.subr.mxu0 0.0
  %4443 = vmatpush2.msra.mxu0 0.0
  %4444 = vmatprep.subr.mxu0 0.0
  %4445 = vmatpush2.msra.mxu0 0.0
  %4446 = vmatprep.mubr.f32.mxu0 0.0
  %4447 = vmatmul.mubr.f32.gmra.mxu0 %v4380
  %v4448 = vpop.f32.mrf.mxu0
  %v4449 = vadd.f32 0.0, %v4448
  %v4450 = vpop.f32.mrf.mxu0
  %4451 = vdwg.mxu0
  %v4452 = vadd.f32 %v4377, %v4449
  %v4453 = vtanh.pop %v4452
  %v4454 = vmul.f32 %v4453, 0.5
  %v4455 = vadd.f32 %v4454, 0.5
  %v4456 = vmul.f32 %v4455, %v4270
  %4458 = vrot.lane.b32.xlu0 %v4453, 64
  %v4459 = vpop.permute.xlu0 %4458
  %v4461 = vmul.f32 %v4455, %v4459
  %4463 = vrot.lane.b32.xlu0 %v4461, 32
  %v4464 = vpop.permute.xlu0 %4463
  %v4466 = vadd.f32 %v4456, %v4464
  %v4467 = vtanh.pop %v4466
  %4469 = vrot.lane.b32.xlu0 %v4467, 64
  %v4470 = vpop.permute.xlu0 %4469
  %v4472 = vmul.f32 %v4455, %v4470
  %v4473 = vsel %vm313, %v4472, %v4269
  %v4474 = vsel %vm313, %v4466, %v4270
  %4476 = vrot.lane.b32.xlu0 %v4473, 64
  %v4477 = vpop.permute.xlu0 %4476
  %4479 = vst.msk [vmem:[#allocation3 + $0x30] sm:$0xff] %vm771, %v4477
  %v4480 = vld [vmem:[#allocation2 + $0x60] sm:$0xff]
  %v4481 = vsel %vm364, %v4374, 0
  %4483 = vmatprep.subr.mxu0 0.0
  %4484 = vmatpush1.msra.mxu0 0.0
  %4485 = vmatprep.subr.mxu0 0.0
  %4486 = vmatpush1.msra.mxu0 0.0
  %4487 = vmatprep.subr.mxu0 0.0
  %4488 = vmatpush1.msra.mxu0 0.0
  %4489 = vmatprep.subr.mxu0 0.0
  %4490 = vmatpush1.msra.mxu0 0.0
  %4491 = vmatprep.subr.mxu0 0.0
  %4492 = vmatpush1.msra.mxu0 0.0
  %4493 = vmatprep.subr.mxu0 0.0
  %4494 = vmatpush1.msra.mxu0 0.0
  %4495 = vmatprep.subr.mxu0 0.0
  %4496 = vmatpush1.msra.mxu0 0.0
  %4497 = vmatprep.subr.mxu0 0.0
  %4498 = vmatpush1.msra.mxu0 0.0
  %4499 = vmatprep.subr.mxu0 0.0
  %4500 = vmatpush1.msra.mxu0 0.0
  %4501 = vmatprep.subr.mxu0 0.0
  %4502 = vmatpush1.msra.mxu0 0.0
  %4503 = vmatprep.subr.mxu0 0.0
  %4504 = vmatpush1.msra.mxu0 0.0
  %4505 = vmatprep.subr.mxu0 0.0
  %4506 = vmatpush1.msra.mxu0 0.0
  %4507 = vmatprep.subr.mxu0 0.0
  %4508 = vmatpush1.msra.mxu0 %v3256
  %4509 = vmatprep.subr.mxu0 0.0
  %4510 = vmatpush1.msra.mxu0 %v3255
  %4511 = vmatprep.subr.mxu0 0.0
  %4512 = vmatpush1.msra.mxu0 %v3254
  %4513 = vmatprep.subr.mxu0 0.0
  %4514 = vmatpush1.msra.mxu0 %v3253
  %4515 = vmatprep.subr.mxu0 0.0
  %4516 = vmatpush2.msra.mxu0 0.0
  %4517 = vmatprep.subr.mxu0 0.0
  %4518 = vmatpush2.msra.mxu0 0.0
  %4519 = vmatprep.subr.mxu0 0.0
  %4520 = vmatpush2.msra.mxu0 0.0
  %4521 = vmatprep.subr.mxu0 0.0
  %4522 = vmatpush2.msra.mxu0 0.0
  %4523 = vmatprep.subr.mxu0 0.0
  %4524 = vmatpush2.msra.mxu0 0.0
  %4525 = vmatprep.subr.mxu0 0.0
  %4526 = vmatpush2.msra.mxu0 0.0
  %4527 = vmatprep.subr.mxu0 0.0
  %4528 = vmatpush2.msra.mxu0 0.0
  %4529 = vmatprep.subr.mxu0 0.0
  %4530 = vmatpush2.msra.mxu0 0.0
  %4531 = vmatprep.subr.mxu0 0.0
  %4532 = vmatpush2.msra.mxu0 0.0
  %4533 = vmatprep.subr.mxu0 0.0
  %4534 = vmatpush2.msra.mxu0 0.0
  %4535 = vmatprep.subr.mxu0 0.0
  %4536 = vmatpush2.msra.mxu0 0.0
  %4537 = vmatprep.subr.mxu0 0.0
  %4538 = vmatpush2.msra.mxu0 0.0
  %4539 = vmatprep.subr.mxu0 0.0
  %4540 = vmatpush2.msra.mxu0 0.0
  %4541 = vmatprep.subr.mxu0 0.0
  %4542 = vmatpush2.msra.mxu0 0.0
  %4543 = vmatprep.subr.mxu0 0.0
  %4544 = vmatpush2.msra.mxu0 0.0
  %4545 = vmatprep.subr.mxu0 0.0
  %4546 = vmatpush2.msra.mxu0 0.0
  %4547 = vmatprep.mubr.f32.mxu0 0.0
  %4548 = vmatmul.mubr.f32.gmra.mxu0 %v4481
  %v4549 = vpop.f32.mrf.mxu0
  %v4550 = vadd.f32 0.0, %v4549
  %v4551 = vpop.f32.mrf.mxu0
  %4552 = vdwg.mxu0
  %v4553 = vadd.f32 %v4480, %v4550
  %v4554 = vtanh.pop %v4553
  %v4555 = vmul.f32 %v4554, 0.5
  %v4556 = vadd.f32 %v4555, 0.5
  %v4557 = vmul.f32 %v4556, %v4371
  %4559 = vrot.lane.b32.xlu0 %v4554, 64
  %v4560 = vpop.permute.xlu0 %4559
  %v4562 = vmul.f32 %v4556, %v4560
  %4564 = vrot.lane.b32.xlu0 %v4562, 32
  %v4565 = vpop.permute.xlu0 %4564
  %v4567 = vadd.f32 %v4557, %v4565
  %v4568 = vtanh.pop %v4567
  %4570 = vrot.lane.b32.xlu0 %v4568, 64
  %v4571 = vpop.permute.xlu0 %4570
  %v4573 = vmul.f32 %v4556, %v4571
  %v4574 = vsel %vm313, %v4573, %v4370
  %v4575 = vsel %vm313, %v4567, %v4371
  %4577 = vrot.lane.b32.xlu0 %v4574, 32
  %v4578 = vpop.permute.xlu0 %4577
  %4580 = vst.msk [vmem:[#allocation3 + $0x30] sm:$0xff] %vm364, %v4578
  %v4581 = vld [vmem:[#allocation2 + $0x58] sm:$0xff]
  %4582 = vrot.lane.b32.xlu0 %v4473, 32
  %v4583 = vpop.permute.xlu0 %4582
  %v4584 = vsel %vm364, %v4583, 0
  %4586 = vmatprep.subr.mxu0 0.0
  %4587 = vmatpush1.msra.mxu0 0.0
  %4588 = vmatprep.subr.mxu0 0.0
  %4589 = vmatpush1.msra.mxu0 0.0
  %4590 = vmatprep.subr.mxu0 0.0
  %4591 = vmatpush1.msra.mxu0 0.0
  %4592 = vmatprep.subr.mxu0 0.0
  %4593 = vmatpush1.msra.mxu0 0.0
  %4594 = vmatprep.subr.mxu0 0.0
  %4595 = vmatpush1.msra.mxu0 0.0
  %4596 = vmatprep.subr.mxu0 0.0
  %4597 = vmatpush1.msra.mxu0 0.0
  %4598 = vmatprep.subr.mxu0 0.0
  %4599 = vmatpush1.msra.mxu0 0.0
  %4600 = vmatprep.subr.mxu0 0.0
  %4601 = vmatpush1.msra.mxu0 0.0
  %4602 = vmatprep.subr.mxu0 0.0
  %4603 = vmatpush1.msra.mxu0 0.0
  %4604 = vmatprep.subr.mxu0 0.0
  %4605 = vmatpush1.msra.mxu0 0.0
  %4606 = vmatprep.subr.mxu0 0.0
  %4607 = vmatpush1.msra.mxu0 0.0
  %4608 = vmatprep.subr.mxu0 0.0
  %4609 = vmatpush1.msra.mxu0 0.0
  %4610 = vmatprep.subr.mxu0 0.0
  %4611 = vmatpush1.msra.mxu0 %v3261
  %4612 = vmatprep.subr.mxu0 0.0
  %4613 = vmatpush1.msra.mxu0 %v3260
  %4614 = vmatprep.subr.mxu0 0.0
  %4615 = vmatpush1.msra.mxu0 %v3259
  %4616 = vmatprep.subr.mxu0 0.0
  %4617 = vmatpush1.msra.mxu0 %v3258
  %4618 = vmatprep.subr.mxu0 0.0
  %4619 = vmatpush2.msra.mxu0 0.0
  %4620 = vmatprep.subr.mxu0 0.0
  %4621 = vmatpush2.msra.mxu0 0.0
  %4622 = vmatprep.subr.mxu0 0.0
  %4623 = vmatpush2.msra.mxu0 0.0
  %4624 = vmatprep.subr.mxu0 0.0
  %4625 = vmatpush2.msra.mxu0 0.0
  %4626 = vmatprep.subr.mxu0 0.0
  %4627 = vmatpush2.msra.mxu0 0.0
  %4628 = vmatprep.subr.mxu0 0.0
  %4629 = vmatpush2.msra.mxu0 0.0
  %4630 = vmatprep.subr.mxu0 0.0
  %4631 = vmatpush2.msra.mxu0 0.0
  %4632 = vmatprep.subr.mxu0 0.0
  %4633 = vmatpush2.msra.mxu0 0.0
  %4634 = vmatprep.subr.mxu0 0.0
  %4635 = vmatpush2.msra.mxu0 0.0
  %4636 = vmatprep.subr.mxu0 0.0
  %4637 = vmatpush2.msra.mxu0 0.0
  %4638 = vmatprep.subr.mxu0 0.0
  %4639 = vmatpush2.msra.mxu0 0.0
  %4640 = vmatprep.subr.mxu0 0.0
  %4641 = vmatpush2.msra.mxu0 0.0
  %4642 = vmatprep.subr.mxu0 0.0
  %4643 = vmatpush2.msra.mxu0 0.0
  %4644 = vmatprep.subr.mxu0 0.0
  %4645 = vmatpush2.msra.mxu0 0.0
  %4646 = vmatprep.subr.mxu0 0.0
  %4647 = vmatpush2.msra.mxu0 0.0
  %4648 = vmatprep.subr.mxu0 0.0
  %4649 = vmatpush2.msra.mxu0 0.0
  %4650 = vmatprep.mubr.f32.mxu0 0.0
  %4651 = vmatmul.mubr.f32.gmra.mxu0 %v4584
  %v4652 = vpop.f32.mrf.mxu0
  %v4653 = vadd.f32 0.0, %v4652
  %v4654 = vpop.f32.mrf.mxu0
  %4655 = vdwg.mxu0
  %v4656 = vadd.f32 %v4581, %v4653
  %v4657 = vtanh.pop %v4656
  %v4658 = vmul.f32 %v4657, 0.5
  %v4659 = vadd.f32 %v4658, 0.5
  %v4660 = vmul.f32 %v4659, %v4474
  %4662 = vrot.lane.b32.xlu0 %v4657, 64
  %v4663 = vpop.permute.xlu0 %4662
  %v4665 = vmul.f32 %v4659, %v4663
  %4667 = vrot.lane.b32.xlu0 %v4665, 32
  %v4668 = vpop.permute.xlu0 %4667
  %v4670 = vadd.f32 %v4660, %v4668
  %v4671 = vtanh.pop %v4670
  %4673 = vrot.lane.b32.xlu0 %v4671, 64
  %v4674 = vpop.permute.xlu0 %4673
  %v4676 = vmul.f32 %v4659, %v4674
  %v4677 = vsel %vm307, %v4676, %v4473
  %v4678 = vsel %vm307, %v4670, %v4474
  %4680 = vrot.lane.b32.xlu0 %v4677, 64
  %v4681 = vpop.permute.xlu0 %4680
  %4683 = vst.msk [vmem:[#allocation3 + $0x28] sm:$0xff] %vm771, %v4681
  %v4684 = vld [vmem:[#allocation2 + $0x70] sm:$0xff]
  %v4685 = vsel %vm364, %v4578, 0
  %4687 = vmatprep.subr.mxu0 0.0
  %4688 = vmatpush1.msra.mxu0 0.0
  %4689 = vmatprep.subr.mxu0 0.0
  %4690 = vmatpush1.msra.mxu0 0.0
  %4691 = vmatprep.subr.mxu0 0.0
  %4692 = vmatpush1.msra.mxu0 0.0
  %4693 = vmatprep.subr.mxu0 0.0
  %4694 = vmatpush1.msra.mxu0 0.0
  %4695 = vmatprep.subr.mxu0 0.0
  %4696 = vmatpush1.msra.mxu0 0.0
  %4697 = vmatprep.subr.mxu0 0.0
  %4698 = vmatpush1.msra.mxu0 0.0
  %4699 = vmatprep.subr.mxu0 0.0
  %4700 = vmatpush1.msra.mxu0 0.0
  %4701 = vmatprep.subr.mxu0 0.0
  %4702 = vmatpush1.msra.mxu0 0.0
  %4703 = vmatprep.subr.mxu0 0.0
  %4704 = vmatpush1.msra.mxu0 0.0
  %4705 = vmatprep.subr.mxu0 0.0
  %4706 = vmatpush1.msra.mxu0 0.0
  %4707 = vmatprep.subr.mxu0 0.0
  %4708 = vmatpush1.msra.mxu0 0.0
  %4709 = vmatprep.subr.mxu0 0.0
  %4710 = vmatpush1.msra.mxu0 0.0
  %4711 = vmatprep.subr.mxu0 0.0
  %4712 = vmatpush1.msra.mxu0 %v3256
  %4713 = vmatprep.subr.mxu0 0.0
  %4714 = vmatpush1.msra.mxu0 %v3255
  %4715 = vmatprep.subr.mxu0 0.0
  %4716 = vmatpush1.msra.mxu0 %v3254
  %4717 = vmatprep.subr.mxu0 0.0
  %4718 = vmatpush1.msra.mxu0 %v3253
  %4719 = vmatprep.subr.mxu0 0.0
  %4720 = vmatpush2.msra.mxu0 0.0
  %4721 = vmatprep.subr.mxu0 0.0
  %4722 = vmatpush2.msra.mxu0 0.0
  %4723 = vmatprep.subr.mxu0 0.0
  %4724 = vmatpush2.msra.mxu0 0.0
  %4725 = vmatprep.subr.mxu0 0.0
  %4726 = vmatpush2.msra.mxu0 0.0
  %4727 = vmatprep.subr.mxu0 0.0
  %4728 = vmatpush2.msra.mxu0 0.0
  %4729 = vmatprep.subr.mxu0 0.0
  %4730 = vmatpush2.msra.mxu0 0.0
  %4731 = vmatprep.subr.mxu0 0.0
  %4732 = vmatpush2.msra.mxu0 0.0
  %4733 = vmatprep.subr.mxu0 0.0
  %4734 = vmatpush2.msra.mxu0 0.0
  %4735 = vmatprep.subr.mxu0 0.0
  %4736 = vmatpush2.msra.mxu0 0.0
  %4737 = vmatprep.subr.mxu0 0.0
  %4738 = vmatpush2.msra.mxu0 0.0
  %4739 = vmatprep.subr.mxu0 0.0
  %4740 = vmatpush2.msra.mxu0 0.0
  %4741 = vmatprep.subr.mxu0 0.0
  %4742 = vmatpush2.msra.mxu0 0.0
  %4743 = vmatprep.subr.mxu0 0.0
  %4744 = vmatpush2.msra.mxu0 0.0
  %4745 = vmatprep.subr.mxu0 0.0
  %4746 = vmatpush2.msra.mxu0 0.0
  %4747 = vmatprep.subr.mxu0 0.0
  %4748 = vmatpush2.msra.mxu0 0.0
  %4749 = vmatprep.subr.mxu0 0.0
  %4750 = vmatpush2.msra.mxu0 0.0
  %4751 = vmatprep.mubr.f32.mxu0 0.0
  %4752 = vmatmul.mubr.f32.gmra.mxu0 %v4685
  %v4753 = vpop.f32.mrf.mxu0
  %v4754 = vadd.f32 0.0, %v4753
  %v4755 = vpop.f32.mrf.mxu0
  %4756 = vdwg.mxu0
  %v4757 = vadd.f32 %v4684, %v4754
  %v4758 = vtanh.pop %v4757
  %v4759 = vmul.f32 %v4758, 0.5
  %v4760 = vadd.f32 %v4759, 0.5
  %v4761 = vmul.f32 %v4760, %v4575
  %4763 = vrot.lane.b32.xlu0 %v4758, 64
  %v4764 = vpop.permute.xlu0 %4763
  %v4766 = vmul.f32 %v4760, %v4764
  %4768 = vrot.lane.b32.xlu0 %v4766, 32
  %v4769 = vpop.permute.xlu0 %4768
  %v4771 = vadd.f32 %v4761, %v4769
  %v4772 = vtanh.pop %v4771
  %4774 = vrot.lane.b32.xlu0 %v4772, 64
  %v4775 = vpop.permute.xlu0 %4774
  %v4777 = vmul.f32 %v4760, %v4775
  %v4778 = vsel %vm319, %v4777, %v4574
  %v4779 = vsel %vm319, %v4771, %v4575
  %4781 = vrot.lane.b32.xlu0 %v4778, 32
  %v4782 = vpop.permute.xlu0 %4781
  %4784 = vst.msk [vmem:[#allocation3 + $0x38] sm:$0xff] %vm364, %v4782
  %v4785 = vld [vmem:[#allocation2 + $0x48] sm:$0xff]
  %4786 = vrot.lane.b32.xlu0 %v4677, 32
  %v4787 = vpop.permute.xlu0 %4786
  %v4788 = vsel %vm364, %v4787, 0
  %4790 = vmatprep.subr.mxu0 0.0
  %4791 = vmatpush1.msra.mxu0 0.0
  %4792 = vmatprep.subr.mxu0 0.0
  %4793 = vmatpush1.msra.mxu0 0.0
  %4794 = vmatprep.subr.mxu0 0.0
  %4795 = vmatpush1.msra.mxu0 0.0
  %4796 = vmatprep.subr.mxu0 0.0
  %4797 = vmatpush1.msra.mxu0 0.0
  %4798 = vmatprep.subr.mxu0 0.0
  %4799 = vmatpush1.msra.mxu0 0.0
  %4800 = vmatprep.subr.mxu0 0.0
  %4801 = vmatpush1.msra.mxu0 0.0
  %4802 = vmatprep.subr.mxu0 0.0
  %4803 = vmatpush1.msra.mxu0 0.0
  %4804 = vmatprep.subr.mxu0 0.0
  %4805 = vmatpush1.msra.mxu0 0.0
  %4806 = vmatprep.subr.mxu0 0.0
  %4807 = vmatpush1.msra.mxu0 0.0
  %4808 = vmatprep.subr.mxu0 0.0
  %4809 = vmatpush1.msra.mxu0 0.0
  %4810 = vmatprep.subr.mxu0 0.0
  %4811 = vmatpush1.msra.mxu0 0.0
  %4812 = vmatprep.subr.mxu0 0.0
  %4813 = vmatpush1.msra.mxu0 0.0
  %4814 = vmatprep.subr.mxu0 0.0
  %4815 = vmatpush1.msra.mxu0 %v3261
  %4816 = vmatprep.subr.mxu0 0.0
  %4817 = vmatpush1.msra.mxu0 %v3260
  %4818 = vmatprep.subr.mxu0 0.0
  %4819 = vmatpush1.msra.mxu0 %v3259
  %4820 = vmatprep.subr.mxu0 0.0
  %4821 = vmatpush1.msra.mxu0 %v3258
  %4822 = vmatprep.subr.mxu0 0.0
  %4823 = vmatpush2.msra.mxu0 0.0
  %4824 = vmatprep.subr.mxu0 0.0
  %4825 = vmatpush2.msra.mxu0 0.0
  %4826 = vmatprep.subr.mxu0 0.0
  %4827 = vmatpush2.msra.mxu0 0.0
  %4828 = vmatprep.subr.mxu0 0.0
  %4829 = vmatpush2.msra.mxu0 0.0
  %4830 = vmatprep.subr.mxu0 0.0
  %4831 = vmatpush2.msra.mxu0 0.0
  %4832 = vmatprep.subr.mxu0 0.0
  %4833 = vmatpush2.msra.mxu0 0.0
  %4834 = vmatprep.subr.mxu0 0.0
  %4835 = vmatpush2.msra.mxu0 0.0
  %4836 = vmatprep.subr.mxu0 0.0
  %4837 = vmatpush2.msra.mxu0 0.0
  %4838 = vmatprep.subr.mxu0 0.0
  %4839 = vmatpush2.msra.mxu0 0.0
  %4840 = vmatprep.subr.mxu0 0.0
  %4841 = vmatpush2.msra.mxu0 0.0
  %4842 = vmatprep.subr.mxu0 0.0
  %4843 = vmatpush2.msra.mxu0 0.0
  %4844 = vmatprep.subr.mxu0 0.0
  %4845 = vmatpush2.msra.mxu0 0.0
  %4846 = vmatprep.subr.mxu0 0.0
  %4847 = vmatpush2.msra.mxu0 0.0
  %4848 = vmatprep.subr.mxu0 0.0
  %4849 = vmatpush2.msra.mxu0 0.0
  %4850 = vmatprep.subr.mxu0 0.0
  %4851 = vmatpush2.msra.mxu0 0.0
  %4852 = vmatprep.subr.mxu0 0.0
  %4853 = vmatpush2.msra.mxu0 0.0
  %4854 = vmatprep.mubr.f32.mxu0 0.0
  %4855 = vmatmul.mubr.f32.gmra.mxu0 %v4788
  %v4856 = vpop.f32.mrf.mxu0
  %v4857 = vadd.f32 0.0, %v4856
  %v4858 = vpop.f32.mrf.mxu0
  %4859 = vdwg.mxu0
  %v4860 = vadd.f32 %v4785, %v4857
  %v4861 = vtanh.pop %v4860
  %v4862 = vmul.f32 %v4861, 0.5
  %v4863 = vadd.f32 %v4862, 0.5
  %v4864 = vmul.f32 %v4863, %v4678
  %4866 = vrot.lane.b32.xlu0 %v4861, 64
  %v4867 = vpop.permute.xlu0 %4866
  %v4869 = vmul.f32 %v4863, %v4867
  %4871 = vrot.lane.b32.xlu0 %v4869, 32
  %v4872 = vpop.permute.xlu0 %4871
  %v4874 = vadd.f32 %v4864, %v4872
  %v4875 = vtanh.pop %v4874
  %4877 = vrot.lane.b32.xlu0 %v4875, 64
  %v4878 = vpop.permute.xlu0 %4877
  %v4880 = vmul.f32 %v4863, %v4878
  %v4881 = vsel %vm301, %v4880, %v4677
  %v4882 = vsel %vm301, %v4874, %v4678
  %4884 = vrot.lane.b32.xlu0 %v4881, 64
  %v4885 = vpop.permute.xlu0 %4884
  %4887 = vst.msk [vmem:[#allocation3 + $0x20] sm:$0xff] %vm771, %v4885
  %v4888 = vld [vmem:[#allocation2 + $0x80] sm:$0xff]
  %v4889 = vsel %vm364, %v4782, 0
  %4891 = vmatprep.subr.mxu0 0.0
  %4892 = vmatpush1.msra.mxu0 0.0
  %4893 = vmatprep.subr.mxu0 0.0
  %4894 = vmatpush1.msra.mxu0 0.0
  %4895 = vmatprep.subr.mxu0 0.0
  %4896 = vmatpush1.msra.mxu0 0.0
  %4897 = vmatprep.subr.mxu0 0.0
  %4898 = vmatpush1.msra.mxu0 0.0
  %4899 = vmatprep.subr.mxu0 0.0
  %4900 = vmatpush1.msra.mxu0 0.0
  %4901 = vmatprep.subr.mxu0 0.0
  %4902 = vmatpush1.msra.mxu0 0.0
  %4903 = vmatprep.subr.mxu0 0.0
  %4904 = vmatpush1.msra.mxu0 0.0
  %4905 = vmatprep.subr.mxu0 0.0
  %4906 = vmatpush1.msra.mxu0 0.0
  %4907 = vmatprep.subr.mxu0 0.0
  %4908 = vmatpush1.msra.mxu0 0.0
  %4909 = vmatprep.subr.mxu0 0.0
  %4910 = vmatpush1.msra.mxu0 0.0
  %4911 = vmatprep.subr.mxu0 0.0
  %4912 = vmatpush1.msra.mxu0 0.0
  %4913 = vmatprep.subr.mxu0 0.0
  %4914 = vmatpush1.msra.mxu0 0.0
  %4915 = vmatprep.subr.mxu0 0.0
  %4916 = vmatpush1.msra.mxu0 %v3256
  %4917 = vmatprep.subr.mxu0 0.0
  %4918 = vmatpush1.msra.mxu0 %v3255
  %4919 = vmatprep.subr.mxu0 0.0
  %4920 = vmatpush1.msra.mxu0 %v3254
  %4921 = vmatprep.subr.mxu0 0.0
  %4922 = vmatpush1.msra.mxu0 %v3253
  %4923 = vmatprep.subr.mxu0 0.0
  %4924 = vmatpush2.msra.mxu0 0.0
  %4925 = vmatprep.subr.mxu0 0.0
  %4926 = vmatpush2.msra.mxu0 0.0
  %4927 = vmatprep.subr.mxu0 0.0
  %4928 = vmatpush2.msra.mxu0 0.0
  %4929 = vmatprep.subr.mxu0 0.0
  %4930 = vmatpush2.msra.mxu0 0.0
  %4931 = vmatprep.subr.mxu0 0.0
  %4932 = vmatpush2.msra.mxu0 0.0
  %4933 = vmatprep.subr.mxu0 0.0
  %4934 = vmatpush2.msra.mxu0 0.0
  %4935 = vmatprep.subr.mxu0 0.0
  %4936 = vmatpush2.msra.mxu0 0.0
  %4937 = vmatprep.subr.mxu0 0.0
  %4938 = vmatpush2.msra.mxu0 0.0
  %4939 = vmatprep.subr.mxu0 0.0
  %4940 = vmatpush2.msra.mxu0 0.0
  %4941 = vmatprep.subr.mxu0 0.0
  %4942 = vmatpush2.msra.mxu0 0.0
  %4943 = vmatprep.subr.mxu0 0.0
  %4944 = vmatpush2.msra.mxu0 0.0
  %4945 = vmatprep.subr.mxu0 0.0
  %4946 = vmatpush2.msra.mxu0 0.0
  %4947 = vmatprep.subr.mxu0 0.0
  %4948 = vmatpush2.msra.mxu0 0.0
  %4949 = vmatprep.subr.mxu0 0.0
  %4950 = vmatpush2.msra.mxu0 0.0
  %4951 = vmatprep.subr.mxu0 0.0
  %4952 = vmatpush2.msra.mxu0 0.0
  %4953 = vmatprep.subr.mxu0 0.0
  %4954 = vmatpush2.msra.mxu0 0.0
  %4955 = vmatprep.mubr.f32.mxu0 0.0
  %4956 = vmatmul.mubr.f32.gmra.mxu0 %v4889
  %v4957 = vpop.f32.mrf.mxu0
  %v4958 = vadd.f32 0.0, %v4957
  %v4959 = vpop.f32.mrf.mxu0
  %4960 = vdwg.mxu0
  %v4961 = vadd.f32 %v4888, %v4958
  %v4962 = vtanh.pop %v4961
  %v4963 = vmul.f32 %v4962, 0.5
  %v4964 = vadd.f32 %v4963, 0.5
  %v4965 = vmul.f32 %v4964, %v4779
  %4967 = vrot.lane.b32.xlu0 %v4962, 64
  %v4968 = vpop.permute.xlu0 %4967
  %v4970 = vmul.f32 %v4964, %v4968
  %4972 = vrot.lane.b32.xlu0 %v4970, 32
  %v4973 = vpop.permute.xlu0 %4972
  %v4975 = vadd.f32 %v4965, %v4973
  %v4976 = vtanh.pop %v4975
  %4978 = vrot.lane.b32.xlu0 %v4976, 64
  %v4979 = vpop.permute.xlu0 %4978
  %v4981 = vmul.f32 %v4964, %v4979
  %v4982 = vsel %vm325, %v4981, %v4778
  %v4983 = vsel %vm325, %v4975, %v4779
  %4985 = vrot.lane.b32.xlu0 %v4982, 32
  %v4986 = vpop.permute.xlu0 %4985
  %4988 = vst.msk [vmem:[#allocation3 + $0x40] sm:$0xff] %vm364, %v4986
  %v4989 = vld [vmem:[#allocation2 + $0x38] sm:$0xff]
  %4990 = vrot.lane.b32.xlu0 %v4881, 32
  %v4991 = vpop.permute.xlu0 %4990
  %v4992 = vsel %vm364, %v4991, 0
  %4994 = vmatprep.subr.mxu0 0.0
  %4995 = vmatpush1.msra.mxu0 0.0
  %4996 = vmatprep.subr.mxu0 0.0
  %4997 = vmatpush1.msra.mxu0 0.0
  %4998 = vmatprep.subr.mxu0 0.0
  %4999 = vmatpush1.msra.mxu0 0.0
  %5000 = vmatprep.subr.mxu0 0.0
  %5001 = vmatpush1.msra.mxu0 0.0
  %5002 = vmatprep.subr.mxu0 0.0
  %5003 = vmatpush1.msra.mxu0 0.0
  %5004 = vmatprep.subr.mxu0 0.0
  %5005 = vmatpush1.msra.mxu0 0.0
  %5006 = vmatprep.subr.mxu0 0.0
  %5007 = vmatpush1.msra.mxu0 0.0
  %5008 = vmatprep.subr.mxu0 0.0
  %5009 = vmatpush1.msra.mxu0 0.0
  %5010 = vmatprep.subr.mxu0 0.0
  %5011 = vmatpush1.msra.mxu0 0.0
  %5012 = vmatprep.subr.mxu0 0.0
  %5013 = vmatpush1.msra.mxu0 0.0
  %5014 = vmatprep.subr.mxu0 0.0
  %5015 = vmatpush1.msra.mxu0 0.0
  %5016 = vmatprep.subr.mxu0 0.0
  %5017 = vmatpush1.msra.mxu0 0.0
  %5018 = vmatprep.subr.mxu0 0.0
  %5019 = vmatpush1.msra.mxu0 %v3261
  %5020 = vmatprep.subr.mxu0 0.0
  %5021 = vmatpush1.msra.mxu0 %v3260
  %5022 = vmatprep.subr.mxu0 0.0
  %5023 = vmatpush1.msra.mxu0 %v3259
  %5024 = vmatprep.subr.mxu0 0.0
  %5025 = vmatpush1.msra.mxu0 %v3258
  %5026 = vmatprep.subr.mxu0 0.0
  %5027 = vmatpush2.msra.mxu0 0.0
  %5028 = vmatprep.subr.mxu0 0.0
  %5029 = vmatpush2.msra.mxu0 0.0
  %5030 = vmatprep.subr.mxu0 0.0
  %5031 = vmatpush2.msra.mxu0 0.0
  %5032 = vmatprep.subr.mxu0 0.0
  %5033 = vmatpush2.msra.mxu0 0.0
  %5034 = vmatprep.subr.mxu0 0.0
  %5035 = vmatpush2.msra.mxu0 0.0
  %5036 = vmatprep.subr.mxu0 0.0
  %5037 = vmatpush2.msra.mxu0 0.0
  %5038 = vmatprep.subr.mxu0 0.0
  %5039 = vmatpush2.msra.mxu0 0.0
  %5040 = vmatprep.subr.mxu0 0.0
  %5041 = vmatpush2.msra.mxu0 0.0
  %5042 = vmatprep.subr.mxu0 0.0
  %5043 = vmatpush2.msra.mxu0 0.0
  %5044 = vmatprep.subr.mxu0 0.0
  %5045 = vmatpush2.msra.mxu0 0.0
  %5046 = vmatprep.subr.mxu0 0.0
  %5047 = vmatpush2.msra.mxu0 0.0
  %5048 = vmatprep.subr.mxu0 0.0
  %5049 = vmatpush2.msra.mxu0 0.0
  %5050 = vmatprep.subr.mxu0 0.0
  %5051 = vmatpush2.msra.mxu0 0.0
  %5052 = vmatprep.subr.mxu0 0.0
  %5053 = vmatpush2.msra.mxu0 0.0
  %5054 = vmatprep.subr.mxu0 0.0
  %5055 = vmatpush2.msra.mxu0 0.0
  %5056 = vmatprep.subr.mxu0 0.0
  %5057 = vmatpush2.msra.mxu0 0.0
  %5058 = vmatprep.mubr.f32.mxu0 0.0
  %5059 = vmatmul.mubr.f32.gmra.mxu0 %v4992
  %v5060 = vpop.f32.mrf.mxu0
  %v5061 = vadd.f32 0.0, %v5060
  %v5062 = vpop.f32.mrf.mxu0
  %5063 = vdwg.mxu0
  %v5064 = vadd.f32 %v4989, %v5061
  %v5065 = vtanh.pop %v5064
  %v5066 = vmul.f32 %v5065, 0.5
  %v5067 = vadd.f32 %v5066, 0.5
  %v5068 = vmul.f32 %v5067, %v4882
  %5070 = vrot.lane.b32.xlu0 %v5065, 64
  %v5071 = vpop.permute.xlu0 %5070
  %v5073 = vmul.f32 %v5067, %v5071
  %5075 = vrot.lane.b32.xlu0 %v5073, 32
  %v5076 = vpop.permute.xlu0 %5075
  %v5078 = vadd.f32 %v5068, %v5076
  %v5079 = vtanh.pop %v5078
  %5081 = vrot.lane.b32.xlu0 %v5079, 64
  %v5082 = vpop.permute.xlu0 %5081
  %v5084 = vmul.f32 %v5067, %v5082
  %v5085 = vsel %vm295, %v5084, %v4881
  %v5086 = vsel %vm295, %v5078, %v4882
  %5088 = vrot.lane.b32.xlu0 %v5085, 64
  %v5089 = vpop.permute.xlu0 %5088
  %5091 = vst.msk [vmem:[#allocation3 + $0x18] sm:$0xff] %vm771, %v5089
  %v5092 = vld [vmem:[#allocation2 + $0x90] sm:$0xff]
  %v5093 = vsel %vm364, %v4986, 0
  %5095 = vmatprep.subr.mxu0 0.0
  %5096 = vmatpush1.msra.mxu0 0.0
  %5097 = vmatprep.subr.mxu0 0.0
  %5098 = vmatpush1.msra.mxu0 0.0
  %5099 = vmatprep.subr.mxu0 0.0
  %5100 = vmatpush1.msra.mxu0 0.0
  %5101 = vmatprep.subr.mxu0 0.0
  %5102 = vmatpush1.msra.mxu0 0.0
  %5103 = vmatprep.subr.mxu0 0.0
  %5104 = vmatpush1.msra.mxu0 0.0
  %5105 = vmatprep.subr.mxu0 0.0
  %5106 = vmatpush1.msra.mxu0 0.0
  %5107 = vmatprep.subr.mxu0 0.0
  %5108 = vmatpush1.msra.mxu0 0.0
  %5109 = vmatprep.subr.mxu0 0.0
  %5110 = vmatpush1.msra.mxu0 0.0
  %5111 = vmatprep.subr.mxu0 0.0
  %5112 = vmatpush1.msra.mxu0 0.0
  %5113 = vmatprep.subr.mxu0 0.0
  %5114 = vmatpush1.msra.mxu0 0.0
  %5115 = vmatprep.subr.mxu0 0.0
  %5116 = vmatpush1.msra.mxu0 0.0
  %5117 = vmatprep.subr.mxu0 0.0
  %5118 = vmatpush1.msra.mxu0 0.0
  %5119 = vmatprep.subr.mxu0 0.0
  %5120 = vmatpush1.msra.mxu0 %v3256
  %5121 = vmatprep.subr.mxu0 0.0
  %5122 = vmatpush1.msra.mxu0 %v3255
  %5123 = vmatprep.subr.mxu0 0.0
  %5124 = vmatpush1.msra.mxu0 %v3254
  %5125 = vmatprep.subr.mxu0 0.0
  %5126 = vmatpush1.msra.mxu0 %v3253
  %5127 = vmatprep.subr.mxu0 0.0
  %5128 = vmatpush2.msra.mxu0 0.0
  %5129 = vmatprep.subr.mxu0 0.0
  %5130 = vmatpush2.msra.mxu0 0.0
  %5131 = vmatprep.subr.mxu0 0.0
  %5132 = vmatpush2.msra.mxu0 0.0
  %5133 = vmatprep.subr.mxu0 0.0
  %5134 = vmatpush2.msra.mxu0 0.0
  %5135 = vmatprep.subr.mxu0 0.0
  %5136 = vmatpush2.msra.mxu0 0.0
  %5137 = vmatprep.subr.mxu0 0.0
  %5138 = vmatpush2.msra.mxu0 0.0
  %5139 = vmatprep.subr.mxu0 0.0
  %5140 = vmatpush2.msra.mxu0 0.0
  %5141 = vmatprep.subr.mxu0 0.0
  %5142 = vmatpush2.msra.mxu0 0.0
  %5143 = vmatprep.subr.mxu0 0.0
  %5144 = vmatpush2.msra.mxu0 0.0
  %5145 = vmatprep.subr.mxu0 0.0
  %5146 = vmatpush2.msra.mxu0 0.0
  %5147 = vmatprep.subr.mxu0 0.0
  %5148 = vmatpush2.msra.mxu0 0.0
  %5149 = vmatprep.subr.mxu0 0.0
  %5150 = vmatpush2.msra.mxu0 0.0
  %5151 = vmatprep.subr.mxu0 0.0
  %5152 = vmatpush2.msra.mxu0 0.0
  %5153 = vmatprep.subr.mxu0 0.0
  %5154 = vmatpush2.msra.mxu0 0.0
  %5155 = vmatprep.subr.mxu0 0.0
  %5156 = vmatpush2.msra.mxu0 0.0
  %5157 = vmatprep.subr.mxu0 0.0
  %5158 = vmatpush2.msra.mxu0 0.0
  %5159 = vmatprep.mubr.f32.mxu0 0.0
  %5160 = vmatmul.mubr.f32.gmra.mxu0 %v5093
  %v5161 = vpop.f32.mrf.mxu0
  %v5162 = vadd.f32 0.0, %v5161
  %v5163 = vpop.f32.mrf.mxu0
  %5164 = vdwg.mxu0
  %v5165 = vadd.f32 %v5092, %v5162
  %v5166 = vtanh.pop %v5165
  %v5167 = vmul.f32 %v5166, 0.5
  %v5168 = vadd.f32 %v5167, 0.5
  %v5169 = vmul.f32 %v5168, %v4983
  %5171 = vrot.lane.b32.xlu0 %v5166, 64
  %v5172 = vpop.permute.xlu0 %5171
  %v5174 = vmul.f32 %v5168, %v5172
  %5176 = vrot.lane.b32.xlu0 %v5174, 32
  %v5177 = vpop.permute.xlu0 %5176
  %v5179 = vadd.f32 %v5169, %v5177
  %v5180 = vtanh.pop %v5179
  %5182 = vrot.lane.b32.xlu0 %v5180, 64
  %v5183 = vpop.permute.xlu0 %5182
  %v5185 = vmul.f32 %v5168, %v5183
  %v5186 = vsel %vm331, %v5185, %v4982
  %v5187 = vsel %vm331, %v5179, %v4983
  %5189 = vrot.lane.b32.xlu0 %v5186, 32
  %v5190 = vpop.permute.xlu0 %5189
  %5192 = vst.msk [vmem:[#allocation3 + $0x48] sm:$0xff] %vm364, %v5190
  %v5193 = vld [vmem:[#allocation2 + $0x28] sm:$0xff]
  %5194 = vrot.lane.b32.xlu0 %v5085, 32
  %v5195 = vpop.permute.xlu0 %5194
  %v5196 = vsel %vm364, %v5195, 0
  %5198 = vmatprep.subr.mxu0 0.0
  %5199 = vmatpush1.msra.mxu0 0.0
  %5200 = vmatprep.subr.mxu0 0.0
  %5201 = vmatpush1.msra.mxu0 0.0
  %5202 = vmatprep.subr.mxu0 0.0
  %5203 = vmatpush1.msra.mxu0 0.0
  %5204 = vmatprep.subr.mxu0 0.0
  %5205 = vmatpush1.msra.mxu0 0.0
  %5206 = vmatprep.subr.mxu0 0.0
  %5207 = vmatpush1.msra.mxu0 0.0
  %5208 = vmatprep.subr.mxu0 0.0
  %5209 = vmatpush1.msra.mxu0 0.0
  %5210 = vmatprep.subr.mxu0 0.0
  %5211 = vmatpush1.msra.mxu0 0.0
  %5212 = vmatprep.subr.mxu0 0.0
  %5213 = vmatpush1.msra.mxu0 0.0
  %5214 = vmatprep.subr.mxu0 0.0
  %5215 = vmatpush1.msra.mxu0 0.0
  %5216 = vmatprep.subr.mxu0 0.0
  %5217 = vmatpush1.msra.mxu0 0.0
  %5218 = vmatprep.subr.mxu0 0.0
  %5219 = vmatpush1.msra.mxu0 0.0
  %5220 = vmatprep.subr.mxu0 0.0
  %5221 = vmatpush1.msra.mxu0 0.0
  %5222 = vmatprep.subr.mxu0 0.0
  %5223 = vmatpush1.msra.mxu0 %v3261
  %5224 = vmatprep.subr.mxu0 0.0
  %5225 = vmatpush1.msra.mxu0 %v3260
  %5226 = vmatprep.subr.mxu0 0.0
  %5227 = vmatpush1.msra.mxu0 %v3259
  %5228 = vmatprep.subr.mxu0 0.0
  %5229 = vmatpush1.msra.mxu0 %v3258
  %5230 = vmatprep.subr.mxu0 0.0
  %5231 = vmatpush2.msra.mxu0 0.0
  %5232 = vmatprep.subr.mxu0 0.0
  %5233 = vmatpush2.msra.mxu0 0.0
  %5234 = vmatprep.subr.mxu0 0.0
  %5235 = vmatpush2.msra.mxu0 0.0
  %5236 = vmatprep.subr.mxu0 0.0
  %5237 = vmatpush2.msra.mxu0 0.0
  %5238 = vmatprep.subr.mxu0 0.0
  %5239 = vmatpush2.msra.mxu0 0.0
  %5240 = vmatprep.subr.mxu0 0.0
  %5241 = vmatpush2.msra.mxu0 0.0
  %5242 = vmatprep.subr.mxu0 0.0
  %5243 = vmatpush2.msra.mxu0 0.0
  %5244 = vmatprep.subr.mxu0 0.0
  %5245 = vmatpush2.msra.mxu0 0.0
  %5246 = vmatprep.subr.mxu0 0.0
  %5247 = vmatpush2.msra.mxu0 0.0
  %5248 = vmatprep.subr.mxu0 0.0
  %5249 = vmatpush2.msra.mxu0 0.0
  %5250 = vmatprep.subr.mxu0 0.0
  %5251 = vmatpush2.msra.mxu0 0.0
  %5252 = vmatprep.subr.mxu0 0.0
  %5253 = vmatpush2.msra.mxu0 0.0
  %5254 = vmatprep.subr.mxu0 0.0
  %5255 = vmatpush2.msra.mxu0 0.0
  %5256 = vmatprep.subr.mxu0 0.0
  %5257 = vmatpush2.msra.mxu0 0.0
  %5258 = vmatprep.subr.mxu0 0.0
  %5259 = vmatpush2.msra.mxu0 0.0
  %5260 = vmatprep.subr.mxu0 0.0
  %5261 = vmatpush2.msra.mxu0 0.0
  %5262 = vmatprep.mubr.f32.mxu0 0.0
  %5263 = vmatmul.mubr.f32.gmra.mxu0 %v5196
  %v5264 = vpop.f32.mrf.mxu0
  %v5265 = vadd.f32 0.0, %v5264
  %v5266 = vpop.f32.mrf.mxu0
  %5267 = vdwg.mxu0
  %v5268 = vadd.f32 %v5193, %v5265
  %v5269 = vtanh.pop %v5268
  %v5270 = vmul.f32 %v5269, 0.5
  %v5271 = vadd.f32 %v5270, 0.5
  %v5272 = vmul.f32 %v5271, %v5086
  %5274 = vrot.lane.b32.xlu0 %v5269, 64
  %v5275 = vpop.permute.xlu0 %5274
  %v5277 = vmul.f32 %v5271, %v5275
  %5279 = vrot.lane.b32.xlu0 %v5277, 32
  %v5280 = vpop.permute.xlu0 %5279
  %v5282 = vadd.f32 %v5272, %v5280
  %v5283 = vtanh.pop %v5282
  %5285 = vrot.lane.b32.xlu0 %v5283, 64
  %v5286 = vpop.permute.xlu0 %5285
  %v5288 = vmul.f32 %v5271, %v5286
  %v5289 = vsel %vm289, %v5288, %v5085
  %v5290 = vsel %vm289, %v5282, %v5086
  %5292 = vrot.lane.b32.xlu0 %v5289, 64
  %v5293 = vpop.permute.xlu0 %5292
  %5295 = vst.msk [vmem:[#allocation3 + $0x10] sm:$0xff] %vm771, %v5293
  %v5296 = vld [vmem:[#allocation2 + $0xa0] sm:$0xff]
  %v5297 = vsel %vm364, %v5190, 0
  %5299 = vmatprep.subr.mxu0 0.0
  %5300 = vmatpush1.msra.mxu0 0.0
  %5301 = vmatprep.subr.mxu0 0.0
  %5302 = vmatpush1.msra.mxu0 0.0
  %5303 = vmatprep.subr.mxu0 0.0
  %5304 = vmatpush1.msra.mxu0 0.0
  %5305 = vmatprep.subr.mxu0 0.0
  %5306 = vmatpush1.msra.mxu0 0.0
  %5307 = vmatprep.subr.mxu0 0.0
  %5308 = vmatpush1.msra.mxu0 0.0
  %5309 = vmatprep.subr.mxu0 0.0
  %5310 = vmatpush1.msra.mxu0 0.0
  %5311 = vmatprep.subr.mxu0 0.0
  %5312 = vmatpush1.msra.mxu0 0.0
  %5313 = vmatprep.subr.mxu0 0.0
  %5314 = vmatpush1.msra.mxu0 0.0
  %5315 = vmatprep.subr.mxu0 0.0
  %5316 = vmatpush1.msra.mxu0 0.0
  %5317 = vmatprep.subr.mxu0 0.0
  %5318 = vmatpush1.msra.mxu0 0.0
  %5319 = vmatprep.subr.mxu0 0.0
  %5320 = vmatpush1.msra.mxu0 0.0
  %5321 = vmatprep.subr.mxu0 0.0
  %5322 = vmatpush1.msra.mxu0 0.0
  %5323 = vmatprep.subr.mxu0 0.0
  %5324 = vmatpush1.msra.mxu0 %v3256
  %5325 = vmatprep.subr.mxu0 0.0
  %5326 = vmatpush1.msra.mxu0 %v3255
  %5327 = vmatprep.subr.mxu0 0.0
  %5328 = vmatpush1.msra.mxu0 %v3254
  %5329 = vmatprep.subr.mxu0 0.0
  %5330 = vmatpush1.msra.mxu0 %v3253
  %5331 = vmatprep.subr.mxu0 0.0
  %5332 = vmatpush2.msra.mxu0 0.0
  %5333 = vmatprep.subr.mxu0 0.0
  %5334 = vmatpush2.msra.mxu0 0.0
  %5335 = vmatprep.subr.mxu0 0.0
  %5336 = vmatpush2.msra.mxu0 0.0
  %5337 = vmatprep.subr.mxu0 0.0
  %5338 = vmatpush2.msra.mxu0 0.0
  %5339 = vmatprep.subr.mxu0 0.0
  %5340 = vmatpush2.msra.mxu0 0.0
  %5341 = vmatprep.subr.mxu0 0.0
  %5342 = vmatpush2.msra.mxu0 0.0
  %5343 = vmatprep.subr.mxu0 0.0
  %5344 = vmatpush2.msra.mxu0 0.0
  %5345 = vmatprep.subr.mxu0 0.0
  %5346 = vmatpush2.msra.mxu0 0.0
  %5347 = vmatprep.subr.mxu0 0.0
  %5348 = vmatpush2.msra.mxu0 0.0
  %5349 = vmatprep.subr.mxu0 0.0
  %5350 = vmatpush2.msra.mxu0 0.0
  %5351 = vmatprep.subr.mxu0 0.0
  %5352 = vmatpush2.msra.mxu0 0.0
  %5353 = vmatprep.subr.mxu0 0.0
  %5354 = vmatpush2.msra.mxu0 0.0
  %5355 = vmatprep.subr.mxu0 0.0
  %5356 = vmatpush2.msra.mxu0 0.0
  %5357 = vmatprep.subr.mxu0 0.0
  %5358 = vmatpush2.msra.mxu0 0.0
  %5359 = vmatprep.subr.mxu0 0.0
  %5360 = vmatpush2.msra.mxu0 0.0
  %5361 = vmatprep.subr.mxu0 0.0
  %5362 = vmatpush2.msra.mxu0 0.0
  %5363 = vmatprep.mubr.f32.mxu0 0.0
  %5364 = vmatmul.mubr.f32.gmra.mxu0 %v5297
  %v5365 = vpop.f32.mrf.mxu0
  %v5366 = vadd.f32 0.0, %v5365
  %v5367 = vpop.f32.mrf.mxu0
  %5368 = vdwg.mxu0
  %v5369 = vadd.f32 %v5296, %v5366
  %v5370 = vtanh.pop %v5369
  %v5371 = vmul.f32 %v5370, 0.5
  %v5372 = vadd.f32 %v5371, 0.5
  %v5373 = vmul.f32 %v5372, %v5187
  %5375 = vrot.lane.b32.xlu0 %v5370, 64
  %v5376 = vpop.permute.xlu0 %5375
  %v5378 = vmul.f32 %v5372, %v5376
  %5380 = vrot.lane.b32.xlu0 %v5378, 32
  %v5381 = vpop.permute.xlu0 %5380
  %v5383 = vadd.f32 %v5373, %v5381
  %v5384 = vtanh.pop %v5383
  %5386 = vrot.lane.b32.xlu0 %v5384, 64
  %v5387 = vpop.permute.xlu0 %5386
  %v5389 = vmul.f32 %v5372, %v5387
  %v5390 = vsel %vm337, %v5389, %v5186
  %v5391 = vsel %vm337, %v5383, %v5187
  %5393 = vrot.lane.b32.xlu0 %v5390, 32
  %v5394 = vpop.permute.xlu0 %5393
  %5396 = vst.msk [vmem:[#allocation3 + $0x50] sm:$0xff] %vm364, %v5394
  %v5397 = vld [vmem:[#allocation2 + $0x18] sm:$0xff]
  %5398 = vrot.lane.b32.xlu0 %v5289, 32
  %v5399 = vpop.permute.xlu0 %5398
  %v5400 = vsel %vm364, %v5399, 0
  %5402 = vmatprep.subr.mxu0 0.0
  %5403 = vmatpush1.msra.mxu0 0.0
  %5404 = vmatprep.subr.mxu0 0.0
  %5405 = vmatpush1.msra.mxu0 0.0
  %5406 = vmatprep.subr.mxu0 0.0
  %5407 = vmatpush1.msra.mxu0 0.0
  %5408 = vmatprep.subr.mxu0 0.0
  %5409 = vmatpush1.msra.mxu0 0.0
  %5410 = vmatprep.subr.mxu0 0.0
  %5411 = vmatpush1.msra.mxu0 0.0
  %5412 = vmatprep.subr.mxu0 0.0
  %5413 = vmatpush1.msra.mxu0 0.0
  %5414 = vmatprep.subr.mxu0 0.0
  %5415 = vmatpush1.msra.mxu0 0.0
  %5416 = vmatprep.subr.mxu0 0.0
  %5417 = vmatpush1.msra.mxu0 0.0
  %5418 = vmatprep.subr.mxu0 0.0
  %5419 = vmatpush1.msra.mxu0 0.0
  %5420 = vmatprep.subr.mxu0 0.0
  %5421 = vmatpush1.msra.mxu0 0.0
  %5422 = vmatprep.subr.mxu0 0.0
  %5423 = vmatpush1.msra.mxu0 0.0
  %5424 = vmatprep.subr.mxu0 0.0
  %5425 = vmatpush1.msra.mxu0 0.0
  %5426 = vmatprep.subr.mxu0 0.0
  %5427 = vmatpush1.msra.mxu0 %v3261
  %5428 = vmatprep.subr.mxu0 0.0
  %5429 = vmatpush1.msra.mxu0 %v3260
  %5430 = vmatprep.subr.mxu0 0.0
  %5431 = vmatpush1.msra.mxu0 %v3259
  %5432 = vmatprep.subr.mxu0 0.0
  %5433 = vmatpush1.msra.mxu0 %v3258
  %5434 = vmatprep.subr.mxu0 0.0
  %5435 = vmatpush2.msra.mxu0 0.0
  %5436 = vmatprep.subr.mxu0 0.0
  %5437 = vmatpush2.msra.mxu0 0.0
  %5438 = vmatprep.subr.mxu0 0.0
  %5439 = vmatpush2.msra.mxu0 0.0
  %5440 = vmatprep.subr.mxu0 0.0
  %5441 = vmatpush2.msra.mxu0 0.0
  %5442 = vmatprep.subr.mxu0 0.0
  %5443 = vmatpush2.msra.mxu0 0.0
  %5444 = vmatprep.subr.mxu0 0.0
  %5445 = vmatpush2.msra.mxu0 0.0
  %5446 = vmatprep.subr.mxu0 0.0
  %5447 = vmatpush2.msra.mxu0 0.0
  %5448 = vmatprep.subr.mxu0 0.0
  %5449 = vmatpush2.msra.mxu0 0.0
  %5450 = vmatprep.subr.mxu0 0.0
  %5451 = vmatpush2.msra.mxu0 0.0
  %5452 = vmatprep.subr.mxu0 0.0
  %5453 = vmatpush2.msra.mxu0 0.0
  %5454 = vmatprep.subr.mxu0 0.0
  %5455 = vmatpush2.msra.mxu0 0.0
  %5456 = vmatprep.subr.mxu0 0.0
  %5457 = vmatpush2.msra.mxu0 0.0
  %5458 = vmatprep.subr.mxu0 0.0
  %5459 = vmatpush2.msra.mxu0 0.0
  %5460 = vmatprep.subr.mxu0 0.0
  %5461 = vmatpush2.msra.mxu0 0.0
  %5462 = vmatprep.subr.mxu0 0.0
  %5463 = vmatpush2.msra.mxu0 0.0
  %5464 = vmatprep.subr.mxu0 0.0
  %5465 = vmatpush2.msra.mxu0 0.0
  %5466 = vmatprep.mubr.f32.mxu0 0.0
  %5467 = vmatmul.mubr.f32.gmra.mxu0 %v5400
  %v5468 = vpop.f32.mrf.mxu0
  %v5469 = vadd.f32 0.0, %v5468
  %v5470 = vpop.f32.mrf.mxu0
  %5471 = vdwg.mxu0
  %v5472 = vadd.f32 %v5397, %v5469
  %v5473 = vtanh.pop %v5472
  %v5474 = vmul.f32 %v5473, 0.5
  %v5475 = vadd.f32 %v5474, 0.5
  %v5476 = vmul.f32 %v5475, %v5290
  %5478 = vrot.lane.b32.xlu0 %v5473, 64
  %v5479 = vpop.permute.xlu0 %5478
  %v5481 = vmul.f32 %v5475, %v5479
  %5483 = vrot.lane.b32.xlu0 %v5481, 32
  %v5484 = vpop.permute.xlu0 %5483
  %v5486 = vadd.f32 %v5476, %v5484
  %v5487 = vtanh.pop %v5486
  %5489 = vrot.lane.b32.xlu0 %v5487, 64
  %v5490 = vpop.permute.xlu0 %5489
  %v5492 = vmul.f32 %v5475, %v5490
  %v5493 = vsel %vm283, %v5492, %v5289
  %v5494 = vsel %vm283, %v5486, %v5290
  %5496 = vrot.lane.b32.xlu0 %v5493, 64
  %v5497 = vpop.permute.xlu0 %5496
  %5499 = vst.msk [vmem:[#allocation3 + $0x8] sm:$0xff] %vm771, %v5497
  %v5500 = vld [vmem:[#allocation2 + $0xb0] sm:$0xff]
  %v5501 = vsel %vm364, %v5394, 0
  %5503 = vmatprep.subr.mxu0 0.0
  %5504 = vmatpush1.msra.mxu0 0.0
  %5505 = vmatprep.subr.mxu0 0.0
  %5506 = vmatpush1.msra.mxu0 0.0
  %5507 = vmatprep.subr.mxu0 0.0
  %5508 = vmatpush1.msra.mxu0 0.0
  %5509 = vmatprep.subr.mxu0 0.0
  %5510 = vmatpush1.msra.mxu0 0.0
  %5511 = vmatprep.subr.mxu0 0.0
  %5512 = vmatpush1.msra.mxu0 0.0
  %5513 = vmatprep.subr.mxu0 0.0
  %5514 = vmatpush1.msra.mxu0 0.0
  %5515 = vmatprep.subr.mxu0 0.0
  %5516 = vmatpush1.msra.mxu0 0.0
  %5517 = vmatprep.subr.mxu0 0.0
  %5518 = vmatpush1.msra.mxu0 0.0
  %5519 = vmatprep.subr.mxu0 0.0
  %5520 = vmatpush1.msra.mxu0 0.0
  %5521 = vmatprep.subr.mxu0 0.0
  %5522 = vmatpush1.msra.mxu0 0.0
  %5523 = vmatprep.subr.mxu0 0.0
  %5524 = vmatpush1.msra.mxu0 0.0
  %5525 = vmatprep.subr.mxu0 0.0
  %5526 = vmatpush1.msra.mxu0 0.0
  %5527 = vmatprep.subr.mxu0 0.0
  %5528 = vmatpush1.msra.mxu0 %v3256
  %5529 = vmatprep.subr.mxu0 0.0
  %5530 = vmatpush1.msra.mxu0 %v3255
  %5531 = vmatprep.subr.mxu0 0.0
  %5532 = vmatpush1.msra.mxu0 %v3254
  %5533 = vmatprep.subr.mxu0 0.0
  %5534 = vmatpush1.msra.mxu0 %v3253
  %5535 = vmatprep.subr.mxu0 0.0
  %5536 = vmatpush2.msra.mxu0 0.0
  %5537 = vmatprep.subr.mxu0 0.0
  %5538 = vmatpush2.msra.mxu0 0.0
  %5539 = vmatprep.subr.mxu0 0.0
  %5540 = vmatpush2.msra.mxu0 0.0
  %5541 = vmatprep.subr.mxu0 0.0
  %5542 = vmatpush2.msra.mxu0 0.0
  %5543 = vmatprep.subr.mxu0 0.0
  %5544 = vmatpush2.msra.mxu0 0.0
  %5545 = vmatprep.subr.mxu0 0.0
  %5546 = vmatpush2.msra.mxu0 0.0
  %5547 = vmatprep.subr.mxu0 0.0
  %5548 = vmatpush2.msra.mxu0 0.0
  %5549 = vmatprep.subr.mxu0 0.0
  %5550 = vmatpush2.msra.mxu0 0.0
  %5551 = vmatprep.subr.mxu0 0.0
  %5552 = vmatpush2.msra.mxu0 0.0
  %5553 = vmatprep.subr.mxu0 0.0
  %5554 = vmatpush2.msra.mxu0 0.0
  %5555 = vmatprep.subr.mxu0 0.0
  %5556 = vmatpush2.msra.mxu0 0.0
  %5557 = vmatprep.subr.mxu0 0.0
  %5558 = vmatpush2.msra.mxu0 0.0
  %5559 = vmatprep.subr.mxu0 0.0
  %5560 = vmatpush2.msra.mxu0 0.0
  %5561 = vmatprep.subr.mxu0 0.0
  %5562 = vmatpush2.msra.mxu0 0.0
  %5563 = vmatprep.subr.mxu0 0.0
  %5564 = vmatpush2.msra.mxu0 0.0
  %5565 = vmatprep.subr.mxu0 0.0
  %5566 = vmatpush2.msra.mxu0 0.0
  %5567 = vmatprep.mubr.f32.mxu0 0.0
  %5568 = vmatmul.mubr.f32.gmra.mxu0 %v5501
  %v5569 = vpop.f32.mrf.mxu0
  %v5570 = vadd.f32 0.0, %v5569
  %v5571 = vpop.f32.mrf.mxu0
  %5572 = vdwg.mxu0
  %v5573 = vadd.f32 %v5500, %v5570
  %v5574 = vtanh.pop %v5573
  %v5575 = vmul.f32 %v5574, 0.5
  %v5576 = vadd.f32 %v5575, 0.5
  %v5577 = vmul.f32 %v5576, %v5391
  %5579 = vrot.lane.b32.xlu0 %v5574, 64
  %v5580 = vpop.permute.xlu0 %5579
  %v5582 = vmul.f32 %v5576, %v5580
  %5584 = vrot.lane.b32.xlu0 %v5582, 32
  %v5585 = vpop.permute.xlu0 %5584
  %v5587 = vadd.f32 %v5577, %v5585
  %v5588 = vtanh.pop %v5587
  %5590 = vrot.lane.b32.xlu0 %v5588, 64
  %v5591 = vpop.permute.xlu0 %5590
  %v5593 = vmul.f32 %v5576, %v5591
  %v5594 = vsel %vm343, %v5593, %v5390
  %5596 = vrot.lane.b32.xlu0 %v5594, 32
  %v5597 = vpop.permute.xlu0 %5596
  %5599 = vst.msk [vmem:[#allocation3 + $0x58] sm:$0xff] %vm364, %v5597
  %v5600 = vld [vmem:[#allocation2 + $0x8] sm:$0xff]
  %5601 = vrot.lane.b32.xlu0 %v5493, 32
  %v5602 = vpop.permute.xlu0 %5601
  %v5603 = vsel %vm364, %v5602, 0
  %5605 = vmatprep.subr.mxu0 0.0
  %5606 = vmatpush1.msra.mxu0 0.0
  %5607 = vmatprep.subr.mxu0 0.0
  %5608 = vmatpush1.msra.mxu0 0.0
  %5609 = vmatprep.subr.mxu0 0.0
  %5610 = vmatpush1.msra.mxu0 0.0
  %5611 = vmatprep.subr.mxu0 0.0
  %5612 = vmatpush1.msra.mxu0 0.0
  %5613 = vmatprep.subr.mxu0 0.0
  %5614 = vmatpush1.msra.mxu0 0.0
  %5615 = vmatprep.subr.mxu0 0.0
  %5616 = vmatpush1.msra.mxu0 0.0
  %5617 = vmatprep.subr.mxu0 0.0
  %5618 = vmatpush1.msra.mxu0 0.0
  %5619 = vmatprep.subr.mxu0 0.0
  %5620 = vmatpush1.msra.mxu0 0.0
  %5621 = vmatprep.subr.mxu0 0.0
  %5622 = vmatpush1.msra.mxu0 0.0
  %5623 = vmatprep.subr.mxu0 0.0
  %5624 = vmatpush1.msra.mxu0 0.0
  %5625 = vmatprep.subr.mxu0 0.0
  %5626 = vmatpush1.msra.mxu0 0.0
  %5627 = vmatprep.subr.mxu0 0.0
  %5628 = vmatpush1.msra.mxu0 0.0
  %5629 = vmatprep.subr.mxu0 0.0
  %5630 = vmatpush1.msra.mxu0 %v3261
  %5631 = vmatprep.subr.mxu0 0.0
  %5632 = vmatpush1.msra.mxu0 %v3260
  %5633 = vmatprep.subr.mxu0 0.0
  %5634 = vmatpush1.msra.mxu0 %v3259
  %5635 = vmatprep.subr.mxu0 0.0
  %5636 = vmatpush1.msra.mxu0 %v3258
  %5637 = vmatprep.subr.mxu0 0.0
  %5638 = vmatpush2.msra.mxu0 0.0
  %5639 = vmatprep.subr.mxu0 0.0
  %5640 = vmatpush2.msra.mxu0 0.0
  %5641 = vmatprep.subr.mxu0 0.0
  %5642 = vmatpush2.msra.mxu0 0.0
  %5643 = vmatprep.subr.mxu0 0.0
  %5644 = vmatpush2.msra.mxu0 0.0
  %5645 = vmatprep.subr.mxu0 0.0
  %5646 = vmatpush2.msra.mxu0 0.0
  %5647 = vmatprep.subr.mxu0 0.0
  %5648 = vmatpush2.msra.mxu0 0.0
  %5649 = vmatprep.subr.mxu0 0.0
  %5650 = vmatpush2.msra.mxu0 0.0
  %5651 = vmatprep.subr.mxu0 0.0
  %5652 = vmatpush2.msra.mxu0 0.0
  %5653 = vmatprep.subr.mxu0 0.0
  %5654 = vmatpush2.msra.mxu0 0.0
  %5655 = vmatprep.subr.mxu0 0.0
  %5656 = vmatpush2.msra.mxu0 0.0
  %5657 = vmatprep.subr.mxu0 0.0
  %5658 = vmatpush2.msra.mxu0 0.0
  %5659 = vmatprep.subr.mxu0 0.0
  %5660 = vmatpush2.msra.mxu0 0.0
  %5661 = vmatprep.subr.mxu0 0.0
  %5662 = vmatpush2.msra.mxu0 0.0
  %5663 = vmatprep.subr.mxu0 0.0
  %5664 = vmatpush2.msra.mxu0 0.0
  %5665 = vmatprep.subr.mxu0 0.0
  %5666 = vmatpush2.msra.mxu0 0.0
  %5667 = vmatprep.subr.mxu0 0.0
  %5668 = vmatpush2.msra.mxu0 0.0
  %5669 = vmatprep.mubr.f32.mxu0 0.0
  %5670 = vmatmul.mubr.f32.gmra.mxu0 %v5603
  %v5671 = vpop.f32.mrf.mxu0
  %v5672 = vadd.f32 0.0, %v5671
  %v5673 = vpop.f32.mrf.mxu0
  %5674 = vdwg.mxu0
  %v5675 = vadd.f32 %v5600, %v5672
  %v5676 = vtanh.pop %v5675
  %v5677 = vmul.f32 %v5676, 0.5
  %v5678 = vadd.f32 %v5677, 0.5
  %v5679 = vmul.f32 %v5678, %v5494
  %5681 = vrot.lane.b32.xlu0 %v5676, 64
  %v5682 = vpop.permute.xlu0 %5681
  %v5684 = vmul.f32 %v5678, %v5682
  %5686 = vrot.lane.b32.xlu0 %v5684, 32
  %v5687 = vpop.permute.xlu0 %5686
  %v5689 = vadd.f32 %v5679, %v5687
  %v5690 = vtanh.pop %v5689
  %5692 = vrot.lane.b32.xlu0 %v5690, 64
  %v5693 = vpop.permute.xlu0 %5692
  %v5695 = vmul.f32 %v5678, %v5693
  %v5696 = vsel %vm277, %v5695, %v5493
  %5698 = vrot.lane.b32.xlu0 %v5696, 64
  %v5699 = vpop.permute.xlu0 %5698
  %5701 = vst.msk [vmem:[#allocation3] sm:$0xff] %vm771, %v5699
  %v5702 = vld [vmem:[#allocation3] sm:$0xff]
  %v5703 = vld [vmem:[#allocation3 + $0x8] sm:$0xff]
  %v5704 = vld [vmem:[#allocation3 + $0x10] sm:$0xff]
  %v5705 = vld [vmem:[#allocation3 + $0x18] sm:$0xff]
  %v5706 = vld [vmem:[#allocation3 + $0x20] sm:$0xff]
  %v5707 = vld [vmem:[#allocation3 + $0x28] sm:$0xff]
  %v5708 = vld [vmem:[#allocation3 + $0x30] sm:$0xff]
  %v5709 = vld [vmem:[#allocation3 + $0x38] sm:$0xff]
  %v5710 = vld [vmem:[#allocation3 + $0x40] sm:$0xff]
  %v5711 = vld [vmem:[#allocation3 + $0x48] sm:$0xff]
  %v5712 = vld [vmem:[#allocation3 + $0x50] sm:$0xff]
  %v5713 = vld [vmem:[#allocation3 + $0x58] sm:$0xff]
  %v5714 = vld [vmem:[%s9] sm:$0xff]
  %v5715 = vld [vmem:[%s9 + $0x8] sm:$0xff]
  %v5716 = vld [vmem:[%s9 + $0x10] sm:$0xff]
  %v5717 = vld [vmem:[%s9 + $0x18] sm:$0xff]
  %v5718 = vld [vmem:[%s9 + $0x20] sm:$0xff]
  %v5719 = vld [vmem:[%s9 + $0x28] sm:$0xff]
  %v5720 = vld [vmem:[%s9 + $0x30] sm:$0xff]
  %v5721 = vld [vmem:[%s9 + $0x38] sm:$0xff]
  %v5722 = vld [vmem:[%s10] sm:$0x1]
  %v5724 = vlaneseq
  %v5725 = vshrl.u32 %v5724, 7
  %v5726 = vsub.s32 0, %v5725
  %v5727 = vrot.slane %v5722, %v5726
  %v5730 = vsel %vm3055, %v5702, 0
  %v5733 = vsel %vm3055, %v5703, 0
  %v5736 = vsel %vm3055, %v5704, 0
  %v5739 = vsel %vm3055, %v5705, 0
  %v5742 = vsel %vm3055, %v5706, 0
  %v5745 = vsel %vm3055, %v5707, 0
  %v5748 = vsel %vm3055, %v5708, 0
  %v5751 = vsel %vm3055, %v5709, 0
  %v5754 = vsel %vm3055, %v5710, 0
  %v5757 = vsel %vm3055, %v5711, 0
  %v5760 = vsel %vm3055, %v5712, 0
  %v5763 = vsel %vm3055, %v5713, 0
  %5765 = vmatprep.subr.mxu0 0.0
  %5766 = vmatpush1.msra.mxu0 0.0
  %5767 = vmatprep.subr.mxu0 0.0
  %5768 = vmatpush1.msra.mxu0 0.0
  %5769 = vmatprep.subr.mxu0 0.0
  %5770 = vmatpush1.msra.mxu0 0.0
  %5771 = vmatprep.subr.mxu0 0.0
  %5772 = vmatpush1.msra.mxu0 0.0
  %5773 = vmatprep.subr.mxu0 0.0
  %5774 = vmatpush1.msra.mxu0 0.0
  %5775 = vmatprep.subr.mxu0 0.0
  %5776 = vmatpush1.msra.mxu0 0.0
  %5777 = vmatprep.subr.mxu0 0.0
  %5778 = vmatpush1.msra.mxu0 0.0
  %5779 = vmatprep.subr.mxu0 0.0
  %5780 = vmatpush1.msra.mxu0 0.0
  %5781 = vmatprep.subr.mxu0 0.0
  %5782 = vmatpush1.msra.mxu0 %v5721
  %5783 = vmatprep.subr.mxu0 0.0
  %5784 = vmatpush1.msra.mxu0 %v5720
  %5785 = vmatprep.subr.mxu0 0.0
  %5786 = vmatpush1.msra.mxu0 %v5719
  %5787 = vmatprep.subr.mxu0 0.0
  %5788 = vmatpush1.msra.mxu0 %v5718
  %5789 = vmatprep.subr.mxu0 0.0
  %5790 = vmatpush1.msra.mxu0 %v5717
  %5791 = vmatprep.subr.mxu0 0.0
  %5792 = vmatpush1.msra.mxu0 %v5716
  %5793 = vmatprep.subr.mxu0 0.0
  %5794 = vmatpush1.msra.mxu0 %v5715
  %5795 = vmatprep.subr.mxu0 0.0
  %5796 = vmatpush1.msra.mxu0 %v5714
  %5797 = vmatprep.subr.mxu0 0.0
  %5798 = vmatpush2.msra.mxu0 0.0
  %5799 = vmatprep.subr.mxu0 0.0
  %5800 = vmatpush2.msra.mxu0 0.0
  %5801 = vmatprep.subr.mxu0 0.0
  %5802 = vmatpush2.msra.mxu0 0.0
  %5803 = vmatprep.subr.mxu0 0.0
  %5804 = vmatpush2.msra.mxu0 0.0
  %5805 = vmatprep.subr.mxu0 0.0
  %5806 = vmatpush2.msra.mxu0 0.0
  %5807 = vmatprep.subr.mxu0 0.0
  %5808 = vmatpush2.msra.mxu0 0.0
  %5809 = vmatprep.subr.mxu0 0.0
  %5810 = vmatpush2.msra.mxu0 0.0
  %5811 = vmatprep.subr.mxu0 0.0
  %5812 = vmatpush2.msra.mxu0 0.0
  %5813 = vmatprep.subr.mxu0 0.0
  %5814 = vmatpush2.msra.mxu0 0.0
  %5815 = vmatprep.subr.mxu0 0.0
  %5816 = vmatpush2.msra.mxu0 0.0
  %5817 = vmatprep.subr.mxu0 0.0
  %5818 = vmatpush2.msra.mxu0 0.0
  %5819 = vmatprep.subr.mxu0 0.0
  %5820 = vmatpush2.msra.mxu0 0.0
  %5821 = vmatprep.subr.mxu0 0.0
  %5822 = vmatpush2.msra.mxu0 0.0
  %5823 = vmatprep.subr.mxu0 0.0
  %5824 = vmatpush2.msra.mxu0 0.0
  %5825 = vmatprep.subr.mxu0 0.0
  %5826 = vmatpush2.msra.mxu0 0.0
  %5827 = vmatprep.subr.mxu0 0.0
  %5828 = vmatpush2.msra.mxu0 0.0
  %5829 = vmatprep.mubr.f32.mxu0 0.0
  %5830 = vmatmul.mubr.f32.gmra.mxu0 %v5730
  %v5831 = vpop.f32.mrf.mxu0
  %v5832 = vadd.f32 %v5727, %v5831
  %v5833 = vpop.f32.mrf.mxu0
  %5834 = vmatprep.mubr.f32.mxu0 0.0
  %5835 = vmatmul.mubr.f32.gmra.mxu0 %v5733
  %v5836 = vpop.f32.mrf.mxu0
  %v5837 = vadd.f32 %v5727, %v5836
  %v5838 = vpop.f32.mrf.mxu0
  %5839 = vmatprep.mubr.f32.mxu0 0.0
  %5840 = vmatmul.mubr.f32.gmra.mxu0 %v5736
  %v5841 = vpop.f32.mrf.mxu0
  %v5842 = vadd.f32 %v5727, %v5841
  %v5843 = vpop.f32.mrf.mxu0
  %5844 = vmatprep.mubr.f32.mxu0 0.0
  %5845 = vmatmul.mubr.f32.gmra.mxu0 %v5739
  %v5846 = vpop.f32.mrf.mxu0
  %v5847 = vadd.f32 %v5727, %v5846
  %v5848 = vpop.f32.mrf.mxu0
  %5849 = vmatprep.mubr.f32.mxu0 0.0
  %5850 = vmatmul.mubr.f32.gmra.mxu0 %v5742
  %v5851 = vpop.f32.mrf.mxu0
  %v5852 = vadd.f32 %v5727, %v5851
  %v5853 = vpop.f32.mrf.mxu0
  %5854 = vmatprep.mubr.f32.mxu0 0.0
  %5855 = vmatmul.mubr.f32.gmra.mxu0 %v5745
  %v5856 = vpop.f32.mrf.mxu0
  %v5857 = vadd.f32 %v5727, %v5856
  %v5858 = vpop.f32.mrf.mxu0
  %5859 = vmatprep.mubr.f32.mxu0 0.0
  %5860 = vmatmul.mubr.f32.gmra.mxu0 %v5748
  %v5861 = vpop.f32.mrf.mxu0
  %v5862 = vadd.f32 %v5727, %v5861
  %v5863 = vpop.f32.mrf.mxu0
  %5864 = vmatprep.mubr.f32.mxu0 0.0
  %5865 = vmatmul.mubr.f32.gmra.mxu0 %v5751
  %v5866 = vpop.f32.mrf.mxu0
  %v5867 = vadd.f32 %v5727, %v5866
  %v5868 = vpop.f32.mrf.mxu0
  %5869 = vmatprep.mubr.f32.mxu0 0.0
  %5870 = vmatmul.mubr.f32.gmra.mxu0 %v5754
  %v5871 = vpop.f32.mrf.mxu0
  %v5872 = vadd.f32 %v5727, %v5871
  %v5873 = vpop.f32.mrf.mxu0
  %5874 = vmatprep.mubr.f32.mxu0 0.0
  %5875 = vmatmul.mubr.f32.gmra.mxu0 %v5757
  %v5876 = vpop.f32.mrf.mxu0
  %v5877 = vadd.f32 %v5727, %v5876
  %v5878 = vpop.f32.mrf.mxu0
  %5879 = vmatprep.mubr.f32.mxu0 0.0
  %5880 = vmatmul.mubr.f32.gmra.mxu0 %v5760
  %v5881 = vpop.f32.mrf.mxu0
  %v5882 = vadd.f32 %v5727, %v5881
  %v5883 = vpop.f32.mrf.mxu0
  %5884 = vmatprep.mubr.f32.mxu0 0.0
  %5885 = vmatmul.mubr.f32.gmra.mxu0 %v5763
  %v5886 = vpop.f32.mrf.mxu0
  %v5887 = vadd.f32 %v5727, %v5886
  %v5888 = vpop.f32.mrf.mxu0
  %5889 = vdwg.mxu0
  %v5890 = vtanh.pop %v5832
  %v5891 = vtanh.pop %v5837
  %v5892 = vtanh.pop %v5842
  %v5893 = vtanh.pop %v5847
  %v5894 = vtanh.pop %v5852
  %v5895 = vtanh.pop %v5857
  %v5896 = vtanh.pop %v5862
  %v5897 = vtanh.pop %v5867
  %v5898 = vtanh.pop %v5872
  %v5899 = vtanh.pop %v5877
  %v5900 = vtanh.pop %v5882
  %v5901 = vtanh.pop %v5887
  %v5902 = vld [vmem:[%s11] sm:$0xff]
  %v5903 = vld [vmem:[%s11 + $0x8] sm:$0xff]
  %v5904 = vld [vmem:[%s11 + $0x10] sm:$0xff]
  %v5905 = vld [vmem:[%s11 + $0x18] sm:$0xff]
  %v5906 = vld [vmem:[%s12] sm:$0x1]
  %v5908 = vlaneseq
  %v5909 = vshrl.u32 %v5908, 7
  %v5910 = vsub.s32 0, %v5909
  %v5911 = vrot.slane %v5906, %v5910
  %v5914 = vsel %vm364, %v5890, 0
  %v5917 = vsel %vm364, %v5891, 0
  %v5920 = vsel %vm364, %v5892, 0
  %v5923 = vsel %vm364, %v5893, 0
  %v5926 = vsel %vm364, %v5894, 0
  %v5929 = vsel %vm364, %v5895, 0
  %v5932 = vsel %vm364, %v5896, 0
  %v5935 = vsel %vm364, %v5897, 0
  %v5938 = vsel %vm364, %v5898, 0
  %v5941 = vsel %vm364, %v5899, 0
  %v5944 = vsel %vm364, %v5900, 0
  %v5947 = vsel %vm364, %v5901, 0
  %5949 = vmatprep.subr.mxu0 0.0
  %5950 = vmatpush1.msra.mxu0 0.0
  %5951 = vmatprep.subr.mxu0 0.0
  %5952 = vmatpush1.msra.mxu0 0.0
  %5953 = vmatprep.subr.mxu0 0.0
  %5954 = vmatpush1.msra.mxu0 0.0
  %5955 = vmatprep.subr.mxu0 0.0
  %5956 = vmatpush1.msra.mxu0 0.0
  %5957 = vmatprep.subr.mxu0 0.0
  %5958 = vmatpush1.msra.mxu0 0.0
  %5959 = vmatprep.subr.mxu0 0.0
  %5960 = vmatpush1.msra.mxu0 0.0
  %5961 = vmatprep.subr.mxu0 0.0
  %5962 = vmatpush1.msra.mxu0 0.0
  %5963 = vmatprep.subr.mxu0 0.0
  %5964 = vmatpush1.msra.mxu0 0.0
  %5965 = vmatprep.subr.mxu0 0.0
  %5966 = vmatpush1.msra.mxu0 0.0
  %5967 = vmatprep.subr.mxu0 0.0
  %5968 = vmatpush1.msra.mxu0 0.0
  %5969 = vmatprep.subr.mxu0 0.0
  %5970 = vmatpush1.msra.mxu0 0.0
  %5971 = vmatprep.subr.mxu0 0.0
  %5972 = vmatpush1.msra.mxu0 0.0
  %5973 = vmatprep.subr.mxu0 0.0
  %5974 = vmatpush1.msra.mxu0 %v5905
  %5975 = vmatprep.subr.mxu0 0.0
  %5976 = vmatpush1.msra.mxu0 %v5904
  %5977 = vmatprep.subr.mxu0 0.0
  %5978 = vmatpush1.msra.mxu0 %v5903
  %5979 = vmatprep.subr.mxu0 0.0
  %5980 = vmatpush1.msra.mxu0 %v5902
  %5981 = vmatprep.subr.mxu0 0.0
  %5982 = vmatpush2.msra.mxu0 0.0
  %5983 = vmatprep.subr.mxu0 0.0
  %5984 = vmatpush2.msra.mxu0 0.0
  %5985 = vmatprep.subr.mxu0 0.0
  %5986 = vmatpush2.msra.mxu0 0.0
  %5987 = vmatprep.subr.mxu0 0.0
  %5988 = vmatpush2.msra.mxu0 0.0
  %5989 = vmatprep.subr.mxu0 0.0
  %5990 = vmatpush2.msra.mxu0 0.0
  %5991 = vmatprep.subr.mxu0 0.0
  %5992 = vmatpush2.msra.mxu0 0.0
  %5993 = vmatprep.subr.mxu0 0.0
  %5994 = vmatpush2.msra.mxu0 0.0
  %5995 = vmatprep.subr.mxu0 0.0
  %5996 = vmatpush2.msra.mxu0 0.0
  %5997 = vmatprep.subr.mxu0 0.0
  %5998 = vmatpush2.msra.mxu0 0.0
  %5999 = vmatprep.subr.mxu0 0.0
  %6000 = vmatpush2.msra.mxu0 0.0
  %6001 = vmatprep.subr.mxu0 0.0
  %6002 = vmatpush2.msra.mxu0 0.0
  %6003 = vmatprep.subr.mxu0 0.0
  %6004 = vmatpush2.msra.mxu0 0.0
  %6005 = vmatprep.subr.mxu0 0.0
  %6006 = vmatpush2.msra.mxu0 0.0
  %6007 = vmatprep.subr.mxu0 0.0
  %6008 = vmatpush2.msra.mxu0 0.0
  %6009 = vmatprep.subr.mxu0 0.0
  %6010 = vmatpush2.msra.mxu0 0.0
  %6011 = vmatprep.subr.mxu0 0.0
  %6012 = vmatpush2.msra.mxu0 0.0
  %6013 = vmatprep.mubr.f32.mxu0 0.0
  %6014 = vmatmul.mubr.f32.gmra.mxu0 %v5914
  %v6015 = vpop.f32.mrf.mxu0
  %v6016 = vadd.f32 %v5911, %v6015
  %v6017 = vpop.f32.mrf.mxu0
  %6018 = vmatprep.mubr.f32.mxu0 0.0
  %6019 = vmatmul.mubr.f32.gmra.mxu0 %v5917
  %v6020 = vpop.f32.mrf.mxu0
  %v6021 = vadd.f32 %v5911, %v6020
  %v6022 = vpop.f32.mrf.mxu0
  %6023 = vmatprep.mubr.f32.mxu0 0.0
  %6024 = vmatmul.mubr.f32.gmra.mxu0 %v5920
  %v6025 = vpop.f32.mrf.mxu0
  %v6026 = vadd.f32 %v5911, %v6025
  %v6027 = vpop.f32.mrf.mxu0
  %6028 = vmatprep.mubr.f32.mxu0 0.0
  %6029 = vmatmul.mubr.f32.gmra.mxu0 %v5923
  %v6030 = vpop.f32.mrf.mxu0
  %v6031 = vadd.f32 %v5911, %v6030
  %v6032 = vpop.f32.mrf.mxu0
  %6033 = vmatprep.mubr.f32.mxu0 0.0
  %6034 = vmatmul.mubr.f32.gmra.mxu0 %v5926
  %v6035 = vpop.f32.mrf.mxu0
  %v6036 = vadd.f32 %v5911, %v6035
  %v6037 = vpop.f32.mrf.mxu0
  %6038 = vmatprep.mubr.f32.mxu0 0.0
  %6039 = vmatmul.mubr.f32.gmra.mxu0 %v5929
  %v6040 = vpop.f32.mrf.mxu0
  %v6041 = vadd.f32 %v5911, %v6040
  %v6042 = vpop.f32.mrf.mxu0
  %6043 = vmatprep.mubr.f32.mxu0 0.0
  %6044 = vmatmul.mubr.f32.gmra.mxu0 %v5932
  %v6045 = vpop.f32.mrf.mxu0
  %v6046 = vadd.f32 %v5911, %v6045
  %v6047 = vpop.f32.mrf.mxu0
  %6048 = vmatprep.mubr.f32.mxu0 0.0
  %6049 = vmatmul.mubr.f32.gmra.mxu0 %v5935
  %v6050 = vpop.f32.mrf.mxu0
  %v6051 = vadd.f32 %v5911, %v6050
  %v6052 = vpop.f32.mrf.mxu0
  %6053 = vmatprep.mubr.f32.mxu0 0.0
  %6054 = vmatmul.mubr.f32.gmra.mxu0 %v5938
  %v6055 = vpop.f32.mrf.mxu0
  %v6056 = vadd.f32 %v5911, %v6055
  %v6057 = vpop.f32.mrf.mxu0
  %6058 = vmatprep.mubr.f32.mxu0 0.0
  %6059 = vmatmul.mubr.f32.gmra.mxu0 %v5941
  %v6060 = vpop.f32.mrf.mxu0
  %v6061 = vadd.f32 %v5911, %v6060
  %v6062 = vpop.f32.mrf.mxu0
  %6063 = vmatprep.mubr.f32.mxu0 0.0
  %6064 = vmatmul.mubr.f32.gmra.mxu0 %v5944
  %v6065 = vpop.f32.mrf.mxu0
  %v6066 = vadd.f32 %v5911, %v6065
  %v6067 = vpop.f32.mrf.mxu0
  %6068 = vmatprep.mubr.f32.mxu0 0.0
  %6069 = vmatmul.mubr.f32.gmra.mxu0 %v5947
  %v6070 = vpop.f32.mrf.mxu0
  %v6071 = vadd.f32 %v5911, %v6070
  %v6072 = vpop.f32.mrf.mxu0
  %6073 = vdwg.mxu0
  %vm6074 = vcmask 64512
  %6075 = vst.msk [vmem:[%s13] sm:$0xff] %vm6074, %v6016
  %6076 = vst.msk [vmem:[%s13 + $0x8] sm:$0xff] %vm6074, %v6021
  %6077 = vst.msk [vmem:[%s13 + $0x10] sm:$0xff] %vm6074, %v6026
  %6078 = vst.msk [vmem:[%s13 + $0x18] sm:$0xff] %vm6074, %v6031
  %6079 = vst.msk [vmem:[%s13 + $0x20] sm:$0xff] %vm6074, %v6036
  %6080 = vst.msk [vmem:[%s13 + $0x28] sm:$0xff] %vm6074, %v6041
  %6081 = vst.msk [vmem:[%s13 + $0x30] sm:$0xff] %vm6074, %v6046
  %6082 = vst.msk [vmem:[%s13 + $0x38] sm:$0xff] %vm6074, %v6051
  %6083 = vst.msk [vmem:[%s13 + $0x40] sm:$0xff] %vm6074, %v6056
  %6084 = vst.msk [vmem:[%s13 + $0x48] sm:$0xff] %vm6074, %v6061
  %6085 = vst.msk [vmem:[%s13 + $0x50] sm:$0xff] %vm6074, %v6066
  %6086 = vst.msk [vmem:[%s13 + $0x58] sm:$0xff] %vm6074, %v6071
  // Predicated region
  $region54: #{tpu_custom_call.1} parent=0 // pred_check
    _
  $region55: #{tpu_custom_call.1} parent=0 // pred_check_branch
    %6088 = sbr.rel (0) target = $region57
  $region56: #{tpu_custom_call.1} parent=0 // pred_region
    _
  $region57: #{tpu_custom_call.1} parent=0 // pred_fallthru
    _
  // Predicated region
  $region58: #{tpu_custom_call.1} parent=0 // pred_check
    _
  $region59: #{tpu_custom_call.1} parent=0 // pred_check_branch
    %6090 = sbr.rel (0) target = $region61
  $region60: #{tpu_custom_call.1} parent=0 // pred_region
    _
  $region61: #{tpu_custom_call.1} parent=0 // pred_fallthru
    _

</llo_original>
